<compile_context>
chip_gen: v7x
topology: tpu7x:2x2x1
jax: 0.10.0
libtpu: 0.0.40
codegen_flags: <defaults>
</compile_context>

<pallas_src>
import functools

import jax
import jax.numpy as jnp
import numpy as np
from jax.experimental import pallas as pl
from jax.experimental.pallas import tpu as pltpu

HIDDEN = 256
LANES = 128


def _round_up(x, m):
    return (x + m - 1) // m * m


def _cond_mlp_kernel(x_ref, w0_ref, b0_ref, wres_ref, bres_ref, wl1_ref,
                     bl1_ref, o_ref):
    """One row-tile of the CondMLP forward pass.

    x_ref    : (tm, input_dim)  f32
    w0_ref   : (input_dim, 256) bf16     b0_ref  : (1, 256)  f32
    wres_ref : (9, 256, 256)    bf16     bres_ref: (9, 1, 256) f32
               order per ResBlock r: [3r+0]=lz, [3r+1]=l1, [3r+2]=l2
    wl1_ref  : (256, out_pad)   bf16     bl1_ref : (1, out_pad) f32
    o_ref    : (tm, out_pad)    f32
    """
    bf16 = jnp.bfloat16

    # l0 (no activation after it -- matches the PyTorch module). Cast the
    # input tile to bf16 once; accumulate in f32 on the MXU.
    h = jnp.dot(x_ref[...].astype(bf16), w0_ref[...],
                preferred_element_type=jnp.float32) + b0_ref[...]

    # 3 ResBlocks, statically unrolled (all weights resident in VMEM).
    for r in range(3):
        wz, bz = wres_ref[3 * r + 0], bres_ref[3 * r + 0]
        w1, b1 = wres_ref[3 * r + 1], bres_ref[3 * r + 1]
        w2, b2 = wres_ref[3 * r + 2], bres_ref[3 * r + 2]

        z = jax.nn.relu(
            jnp.dot(h.astype(bf16), wz, preferred_element_type=jnp.float32) + bz)
        res = h + z
        t = jax.nn.relu(
            jnp.dot(res.astype(bf16), w1, preferred_element_type=jnp.float32) + b1)
        h = jax.nn.relu(
            jnp.dot(t.astype(bf16), w2, preferred_element_type=jnp.float32) + b2
        ) + res

    # Final linear (lane-padded to a multiple of 128) + sigmoid; store is a
    # full-lane, unmasked vst.
    out = jnp.dot(h.astype(bf16), wl1_ref[...],
                  preferred_element_type=jnp.float32) + bl1_ref[...]
    o_ref[...] = jax.nn.sigmoid(out).astype(o_ref.dtype)


def _cond_mlp_padded(x_pad, w0, b0, wres, bres3, wl1p, bl1p, *, tm):
    """pallas_call on row-padded input / lane-padded output."""
    n_pad, in_dim = x_pad.shape
    out_pad = wl1p.shape[1]
    grid = (n_pad // tm,)

    full = lambda shape: pl.BlockSpec(shape, lambda i: (0,) * len(shape))

    # Explicit VMEM budget (feedback: don't rely on defaults when scaling tm):
    #   2x double-buffered weight/bias/x/out DMA blocks + live f32 activations,
    # with ~2x headroom, clamped to stay safely under v7x's 64 MiB.
    weight_bytes = (w0.size + wres.size + wl1p.size) * 2            # bf16
    bias_bytes = (b0.size + bres3.size + bl1p.size) * 4             # f32
    io_bytes = (tm * max(in_dim, LANES) + tm * out_pad) * 4         # x + out
    act_bytes = 10 * tm * HIDDEN * 4                                # live acts
    est = 2 * (weight_bytes + bias_bytes + io_bytes) + act_bytes
    vmem_limit = int(min(max(2 * est, 32 * 1024 * 1024), 60 * 1024 * 1024))

    # NOTE: the weight blocks have constant index_maps (fetched once per call);
    # pl.Buffered(1) on their specs would reclaim the second pipeline buffer
    # (~1.3 MiB at bf16) if VMEM ever gets tight at very large tm.
    return pl.pallas_call(
        _cond_mlp_kernel,
        out_shape=jax.ShapeDtypeStruct((n_pad, out_pad), jnp.float32),
        grid_spec=pltpu.PrefetchScalarGridSpec(
            num_scalar_prefetch=0,
            grid=grid,
            in_specs=[
                pl.BlockSpec((tm, in_dim), lambda i: (i, 0)),   # x (row tiles)
                full((in_dim, HIDDEN)),                         # w0   (bf16)
                full((1, HIDDEN)),                              # b0   (f32)
                full((9, HIDDEN, HIDDEN)),                      # wres (bf16)
                full((9, 1, HIDDEN)),                           # bres (f32)
                full((HIDDEN, out_pad)),                        # wl1  (bf16)
                full((1, out_pad)),                             # bl1  (f32)
            ],
            out_specs=pl.BlockSpec((tm, out_pad), lambda i: (i, 0)),
        ),
        compiler_params=pltpu.CompilerParams(
            dimension_semantics=("parallel",),
            vmem_limit_bytes=vmem_limit),
    )(x_pad, w0, b0, wres, bres3, wl1p, bl1p)


@functools.partial(jax.jit, static_argnames=("tm",))
def cond_mlp_pallas(x, params, *, tm=512):
    """x: (N, input_dim) float32. Returns (N, out_dim) float32.

    Choose tm so that ceil(N / tm) is >= 2 (ideally even) on v7x so both
    TensorCores get grid steps; tm in [512, 1024] amortizes weight streaming.
    """
    w0, b0, wres, bres, wl1, bl1 = params
    n, in_dim = x.shape
    out_dim = wl1.shape[1]

    # Row-pad N to a multiple of the tile.
    n_pad = _round_up(n, tm)
    if n_pad != n:
        x = jnp.pad(x, ((0, n_pad - n), (0, 0)))

    # Lane-pad the final projection to a multiple of 128 (lane-dense output,
    # no masked vst.msk stores); pad columns are sliced off below.
    out_pad = _round_up(max(out_dim, LANES), LANES)
    wl1p = jnp.pad(wl1, ((0, 0), (0, out_pad - out_dim))).astype(jnp.bfloat16)
    bl1p = jnp.pad(bl1, ((0, 0), (0, out_pad - out_dim)))

    # bf16 weights feed the MXU at its native rate; biases stay f32 and are
    # shaped for a clean sublane-broadcast add.
    w0_b = w0.astype(jnp.bfloat16)
    wres_b = wres.astype(jnp.bfloat16)
    bres3 = bres.reshape(9, 1, HIDDEN)

    out = _cond_mlp_padded(x, w0_b, b0, wres_b, bres3, wl1p, bl1p, tm=tm)
    return out[:n, :out_dim]


def init_params(key, input_dim, out_dim):
    """Deterministic synthetic parameters (weights stored as (in, out))."""
    ks = jax.random.split(key, 6)
    scale = 0.05
    w0 = scale * jax.random.normal(ks[0], (input_dim, HIDDEN), jnp.float32)
    b0 = scale * jax.random.normal(ks[1], (1, HIDDEN), jnp.float32)
    wres = scale * jax.random.normal(ks[2], (9, HIDDEN, HIDDEN), jnp.float32)
    bres = scale * jax.random.normal(ks[3], (9, HIDDEN), jnp.float32)
    wl1 = scale * jax.random.normal(ks[4], (HIDDEN, out_dim), jnp.float32)
    bl1 = scale * jax.random.normal(ks[5], (1, out_dim), jnp.float32)
    return (w0, b0, wres, bres, wl1, bl1)


def cond_mlp_reference(x, params):
    """Pure-JAX f32 reference mirroring the PyTorch forward exactly."""
    w0, b0, wres, bres, wl1, bl1 = params
    h = x @ w0 + b0
    for r in range(3):
        z = jax.nn.relu(h @ wres[3 * r + 0] + bres[3 * r + 0])
        res = h + z
        t = jax.nn.relu(res @ wres[3 * r + 1] + bres[3 * r + 1])
        h = jax.nn.relu(t @ wres[3 * r + 2] + bres[3 * r + 2]) + res
    return jax.nn.sigmoid(h @ wl1 + bl1)


if __name__ == "__main__":
    key = jax.random.PRNGKey(0)
    k_x, k_p = jax.random.split(key)

    input_dim, out_dim = 32, 16
    n = 1024          # 2 row tiles of tm=512 -> even grid, both v7x TCs busy
    x = jax.random.normal(k_x, (n, input_dim), jnp.float32)
    params = init_params(k_p, input_dim, out_dim)

    out = cond_mlp_pallas(x, params, tm=512)
    out = jax.block_until_ready(out)

    ref = cond_mlp_reference(x, params)
    # bf16 MXU inputs with f32 accumulation: tolerances loosened vs f32 ref.
    np.testing.assert_allclose(np.asarray(out), np.asarray(ref),
                               rtol=2e-2, atol=2e-2)
    print("KERNEL_OK")
</pallas_src>

<mosaic_0001>
module attributes {stable_mosaic.version = 11 : i64} {
  func.func @_cond_mlp_kernel(%arg0: i32, %arg1: memref<512x32xf32, #tpu.memory_space<vmem>>, %arg2: memref<32x256xbf16, #tpu.memory_space<vmem>>, %arg3: memref<1x256xf32, #tpu.memory_space<vmem>>, %arg4: memref<9x256x256xbf16, #tpu.memory_space<vmem>>, %arg5: memref<9x1x256xf32, #tpu.memory_space<vmem>>, %arg6: memref<256x128xbf16, #tpu.memory_space<vmem>>, %arg7: memref<1x128xf32, #tpu.memory_space<vmem>>, %arg8: memref<512x128xf32, #tpu.memory_space<vmem>>) attributes {dimension_semantics = [#tpu.dimension_semantics<parallel>], iteration_bounds = array<i64: 2>, scalar_prefetch = 0 : i64, scratch_operands = 0 : i64, tpu.core_type = #tpu.core_type<tc>, window_params = [{transform_indices = @transform_0, window_bounds = array<i64: 512, 32>}, {pipeline_mode = #tpu.pipeline_mode<synchronous>, transform_indices = @transform_1, window_bounds = array<i64: 32, 256>}, {pipeline_mode = #tpu.pipeline_mode<synchronous>, transform_indices = @transform_2, window_bounds = array<i64: 1, 256>}, {pipeline_mode = #tpu.pipeline_mode<synchronous>, transform_indices = @transform_3, window_bounds = array<i64: 9, 256, 256>}, {pipeline_mode = #tpu.pipeline_mode<synchronous>, transform_indices = @transform_4, window_bounds = array<i64: 9, 1, 256>}, {pipeline_mode = #tpu.pipeline_mode<synchronous>, transform_indices = @transform_5, window_bounds = array<i64: 256, 128>}, {pipeline_mode = #tpu.pipeline_mode<synchronous>, transform_indices = @transform_6, window_bounds = array<i64: 1, 128>}, {transform_indices = @transform_7, window_bounds = array<i64: 512, 128>}]} {
    %c0 = arith.constant 0 : index
    %c0_0 = arith.constant 0 : index
    %0 = vector.load %arg1[%c0, %c0_0] : memref<512x32xf32, #tpu.memory_space<vmem>>, vector<512x32xf32>
    %1 = arith.truncf %0 : vector<512x32xf32> to vector<512x32xbf16>
    %c0_1 = arith.constant 0 : index
    %c0_2 = arith.constant 0 : index
    %2 = vector.load %arg2[%c0_1, %c0_2] : memref<32x256xbf16, #tpu.memory_space<vmem>>, vector<32x256xbf16>
    %cst = arith.constant dense<0.000000e+00> : vector<512x256xf32>
    %3 = tpu.matmul %1, %2, %cst {dimension_numbers = #tpu.dot_dimension_numbers<[1], [0], [0], [1], [0, 0, 1, 1], [], []>} : vector<512x32xbf16>, vector<32x256xbf16>, vector<512x256xf32> -> vector<512x256xf32>
    %c0_3 = arith.constant 0 : index
    %c0_4 = arith.constant 0 : index
    %4 = vector.load %arg3[%c0_3, %c0_4] : memref<1x256xf32, #tpu.memory_space<vmem>>, vector<1x256xf32>
    %5 = vector.broadcast %4 : vector<1x256xf32> to vector<512x256xf32>
    %6 = arith.addf %3, %5 : vector<512x256xf32>
    %c0_5 = arith.constant 0 : index
    %c0_6 = arith.constant 0 : index
    %c0_7 = arith.constant 0 : index
    %7 = vector.load %arg4[%c0_5, %c0_6, %c0_7] : memref<9x256x256xbf16, #tpu.memory_space<vmem>>, vector<1x256x256xbf16>
    %8 = vector.shape_cast %7 : vector<1x256x256xbf16> to vector<256x256xbf16>
    %c0_8 = arith.constant 0 : index
    %c0_9 = arith.constant 0 : index
    %c0_10 = arith.constant 0 : index
    %9 = vector.load %arg5[%c0_8, %c0_9, %c0_10] : memref<9x1x256xf32, #tpu.memory_space<vmem>>, vector<1x1x256xf32>
    %10 = vector.shape_cast %9 : vector<1x1x256xf32> to vector<1x256xf32>
    %c1 = arith.constant 1 : index
    %c0_11 = arith.constant 0 : index
    %c0_12 = arith.constant 0 : index
    %11 = vector.load %arg4[%c1, %c0_11, %c0_12] : memref<9x256x256xbf16, #tpu.memory_space<vmem>>, vector<1x256x256xbf16>
    %12 = vector.shape_cast %11 : vector<1x256x256xbf16> to vector<256x256xbf16>
    %c1_13 = arith.constant 1 : index
    %c0_14 = arith.constant 0 : index
    %c0_15 = arith.constant 0 : index
    %13 = vector.load %arg5[%c1_13, %c0_14, %c0_15] : memref<9x1x256xf32, #tpu.memory_space<vmem>>, vector<1x1x256xf32>
    %14 = vector.shape_cast %13 : vector<1x1x256xf32> to vector<1x256xf32>
    %c2 = arith.constant 2 : index
    %c0_16 = arith.constant 0 : index
    %c0_17 = arith.constant 0 : index
    %15 = vector.load %arg4[%c2, %c0_16, %c0_17] : memref<9x256x256xbf16, #tpu.memory_space<vmem>>, vector<1x256x256xbf16>
    %16 = vector.shape_cast %15 : vector<1x256x256xbf16> to vector<256x256xbf16>
    %c2_18 = arith.constant 2 : index
    %c0_19 = arith.constant 0 : index
    %c0_20 = arith.constant 0 : index
    %17 = vector.load %arg5[%c2_18, %c0_19, %c0_20] : memref<9x1x256xf32, #tpu.memory_space<vmem>>, vector<1x1x256xf32>
    %18 = vector.shape_cast %17 : vector<1x1x256xf32> to vector<1x256xf32>
    %19 = arith.truncf %6 : vector<512x256xf32> to vector<512x256xbf16>
    %cst_21 = arith.constant dense<0.000000e+00> : vector<512x256xf32>
    %20 = tpu.matmul %19, %8, %cst_21 {dimension_numbers = #tpu.dot_dimension_numbers<[1], [0], [0], [1], [0, 0, 1, 1], [], []>} : vector<512x256xbf16>, vector<256x256xbf16>, vector<512x256xf32> -> vector<512x256xf32>
    %21 = vector.broadcast %10 : vector<1x256xf32> to vector<512x256xf32>
    %22 = arith.addf %20, %21 : vector<512x256xf32>
    %cst_22 = arith.constant 0.000000e+00 : f32
    %23 = vector.broadcast %cst_22 : f32 to vector<512x256xf32>
    %24 = arith.maximumf %22, %23 : vector<512x256xf32>
    %25 = arith.addf %6, %24 : vector<512x256xf32>
    %26 = arith.truncf %25 : vector<512x256xf32> to vector<512x256xbf16>
    %cst_23 = arith.constant dense<0.000000e+00> : vector<512x256xf32>
    %27 = tpu.matmul %26, %12, %cst_23 {dimension_numbers = #tpu.dot_dimension_numbers<[1], [0], [0], [1], [0, 0, 1, 1], [], []>} : vector<512x256xbf16>, vector<256x256xbf16>, vector<512x256xf32> -> vector<512x256xf32>
    %28 = vector.broadcast %14 : vector<1x256xf32> to vector<512x256xf32>
    %29 = arith.addf %27, %28 : vector<512x256xf32>
    %cst_24 = arith.constant 0.000000e+00 : f32
    %30 = vector.broadcast %cst_24 : f32 to vector<512x256xf32>
    %31 = arith.maximumf %29, %30 : vector<512x256xf32>
    %32 = arith.truncf %31 : vector<512x256xf32> to vector<512x256xbf16>
    %cst_25 = arith.constant dense<0.000000e+00> : vector<512x256xf32>
    %33 = tpu.matmul %32, %16, %cst_25 {dimension_numbers = #tpu.dot_dimension_numbers<[1], [0], [0], [1], [0, 0, 1, 1], [], []>} : vector<512x256xbf16>, vector<256x256xbf16>, vector<512x256xf32> -> vector<512x256xf32>
    %34 = vector.broadcast %18 : vector<1x256xf32> to vector<512x256xf32>
    %35 = arith.addf %33, %34 : vector<512x256xf32>
    %cst_26 = arith.constant 0.000000e+00 : f32
    %36 = vector.broadcast %cst_26 : f32 to vector<512x256xf32>
    %37 = arith.maximumf %35, %36 : vector<512x256xf32>
    %38 = arith.addf %37, %25 : vector<512x256xf32>
    %c3 = arith.constant 3 : index
    %c0_27 = arith.constant 0 : index
    %c0_28 = arith.constant 0 : index
    %39 = vector.load %arg4[%c3, %c0_27, %c0_28] : memref<9x256x256xbf16, #tpu.memory_space<vmem>>, vector<1x256x256xbf16>
    %40 = vector.shape_cast %39 : vector<1x256x256xbf16> to vector<256x256xbf16>
    %c3_29 = arith.constant 3 : index
    %c0_30 = arith.constant 0 : index
    %c0_31 = arith.constant 0 : index
    %41 = vector.load %arg5[%c3_29, %c0_30, %c0_31] : memref<9x1x256xf32, #tpu.memory_space<vmem>>, vector<1x1x256xf32>
    %42 = vector.shape_cast %41 : vector<1x1x256xf32> to vector<1x256xf32>
    %c4 = arith.constant 4 : index
    %c0_32 = arith.constant 0 : index
    %c0_33 = arith.constant 0 : index
    %43 = vector.load %arg4[%c4, %c0_32, %c0_33] : memref<9x256x256xbf16, #tpu.memory_space<vmem>>, vector<1x256x256xbf16>
    %44 = vector.shape_cast %43 : vector<1x256x256xbf16> to vector<256x256xbf16>
    %c4_34 = arith.constant 4 : index
    %c0_35 = arith.constant 0 : index
    %c0_36 = arith.constant 0 : index
    %45 = vector.load %arg5[%c4_34, %c0_35, %c0_36] : memref<9x1x256xf32, #tpu.memory_space<vmem>>, vector<1x1x256xf32>
    %46 = vector.shape_cast %45 : vector<1x1x256xf32> to vector<1x256xf32>
    %c5 = arith.constant 5 : index
    %c0_37 = arith.constant 0 : index
    %c0_38 = arith.constant 0 : index
    %47 = vector.load %arg4[%c5, %c0_37, %c0_38] : memref<9x256x256xbf16, #tpu.memory_space<vmem>>, vector<1x256x256xbf16>
    %48 = vector.shape_cast %47 : vector<1x256x256xbf16> to vector<256x256xbf16>
    %c5_39 = arith.constant 5 : index
    %c0_40 = arith.constant 0 : index
    %c0_41 = arith.constant 0 : index
    %49 = vector.load %arg5[%c5_39, %c0_40, %c0_41] : memref<9x1x256xf32, #tpu.memory_space<vmem>>, vector<1x1x256xf32>
    %50 = vector.shape_cast %49 : vector<1x1x256xf32> to vector<1x256xf32>
    %51 = arith.truncf %38 : vector<512x256xf32> to vector<512x256xbf16>
    %cst_42 = arith.constant dense<0.000000e+00> : vector<512x256xf32>
    %52 = tpu.matmul %51, %40, %cst_42 {dimension_numbers = #tpu.dot_dimension_numbers<[1], [0], [0], [1], [0, 0, 1, 1], [], []>} : vector<512x256xbf16>, vector<256x256xbf16>, vector<512x256xf32> -> vector<512x256xf32>
    %53 = vector.broadcast %42 : vector<1x256xf32> to vector<512x256xf32>
    %54 = arith.addf %52, %53 : vector<512x256xf32>
    %cst_43 = arith.constant 0.000000e+00 : f32
    %55 = vector.broadcast %cst_43 : f32 to vector<512x256xf32>
    %56 = arith.maximumf %54, %55 : vector<512x256xf32>
    %57 = arith.addf %38, %56 : vector<512x256xf32>
    %58 = arith.truncf %57 : vector<512x256xf32> to vector<512x256xbf16>
    %cst_44 = arith.constant dense<0.000000e+00> : vector<512x256xf32>
    %59 = tpu.matmul %58, %44, %cst_44 {dimension_numbers = #tpu.dot_dimension_numbers<[1], [0], [0], [1], [0, 0, 1, 1], [], []>} : vector<512x256xbf16>, vector<256x256xbf16>, vector<512x256xf32> -> vector<512x256xf32>
    %60 = vector.broadcast %46 : vector<1x256xf32> to vector<512x256xf32>
    %61 = arith.addf %59, %60 : vector<512x256xf32>
    %cst_45 = arith.constant 0.000000e+00 : f32
    %62 = vector.broadcast %cst_45 : f32 to vector<512x256xf32>
    %63 = arith.maximumf %61, %62 : vector<512x256xf32>
    %64 = arith.truncf %63 : vector<512x256xf32> to vector<512x256xbf16>
    %cst_46 = arith.constant dense<0.000000e+00> : vector<512x256xf32>
    %65 = tpu.matmul %64, %48, %cst_46 {dimension_numbers = #tpu.dot_dimension_numbers<[1], [0], [0], [1], [0, 0, 1, 1], [], []>} : vector<512x256xbf16>, vector<256x256xbf16>, vector<512x256xf32> -> vector<512x256xf32>
    %66 = vector.broadcast %50 : vector<1x256xf32> to vector<512x256xf32>
    %67 = arith.addf %65, %66 : vector<512x256xf32>
    %cst_47 = arith.constant 0.000000e+00 : f32
    %68 = vector.broadcast %cst_47 : f32 to vector<512x256xf32>
    %69 = arith.maximumf %67, %68 : vector<512x256xf32>
    %70 = arith.addf %69, %57 : vector<512x256xf32>
    %c6 = arith.constant 6 : index
    %c0_48 = arith.constant 0 : index
    %c0_49 = arith.constant 0 : index
    %71 = vector.load %arg4[%c6, %c0_48, %c0_49] : memref<9x256x256xbf16, #tpu.memory_space<vmem>>, vector<1x256x256xbf16>
    %72 = vector.shape_cast %71 : vector<1x256x256xbf16> to vector<256x256xbf16>
    %c6_50 = arith.constant 6 : index
    %c0_51 = arith.constant 0 : index
    %c0_52 = arith.constant 0 : index
    %73 = vector.load %arg5[%c6_50, %c0_51, %c0_52] : memref<9x1x256xf32, #tpu.memory_space<vmem>>, vector<1x1x256xf32>
    %74 = vector.shape_cast %73 : vector<1x1x256xf32> to vector<1x256xf32>
    %c7 = arith.constant 7 : index
    %c0_53 = arith.constant 0 : index
    %c0_54 = arith.constant 0 : index
    %75 = vector.load %arg4[%c7, %c0_53, %c0_54] : memref<9x256x256xbf16, #tpu.memory_space<vmem>>, vector<1x256x256xbf16>
    %76 = vector.shape_cast %75 : vector<1x256x256xbf16> to vector<256x256xbf16>
    %c7_55 = arith.constant 7 : index
    %c0_56 = arith.constant 0 : index
    %c0_57 = arith.constant 0 : index
    %77 = vector.load %arg5[%c7_55, %c0_56, %c0_57] : memref<9x1x256xf32, #tpu.memory_space<vmem>>, vector<1x1x256xf32>
    %78 = vector.shape_cast %77 : vector<1x1x256xf32> to vector<1x256xf32>
    %c8 = arith.constant 8 : index
    %c0_58 = arith.constant 0 : index
    %c0_59 = arith.constant 0 : index
    %79 = vector.load %arg4[%c8, %c0_58, %c0_59] : memref<9x256x256xbf16, #tpu.memory_space<vmem>>, vector<1x256x256xbf16>
    %80 = vector.shape_cast %79 : vector<1x256x256xbf16> to vector<256x256xbf16>
    %c8_60 = arith.constant 8 : index
    %c0_61 = arith.constant 0 : index
    %c0_62 = arith.constant 0 : index
    %81 = vector.load %arg5[%c8_60, %c0_61, %c0_62] : memref<9x1x256xf32, #tpu.memory_space<vmem>>, vector<1x1x256xf32>
    %82 = vector.shape_cast %81 : vector<1x1x256xf32> to vector<1x256xf32>
    %83 = arith.truncf %70 : vector<512x256xf32> to vector<512x256xbf16>
    %cst_63 = arith.constant dense<0.000000e+00> : vector<512x256xf32>
    %84 = tpu.matmul %83, %72, %cst_63 {dimension_numbers = #tpu.dot_dimension_numbers<[1], [0], [0], [1], [0, 0, 1, 1], [], []>} : vector<512x256xbf16>, vector<256x256xbf16>, vector<512x256xf32> -> vector<512x256xf32>
    %85 = vector.broadcast %74 : vector<1x256xf32> to vector<512x256xf32>
    %86 = arith.addf %84, %85 : vector<512x256xf32>
    %cst_64 = arith.constant 0.000000e+00 : f32
    %87 = vector.broadcast %cst_64 : f32 to vector<512x256xf32>
    %88 = arith.maximumf %86, %87 : vector<512x256xf32>
    %89 = arith.addf %70, %88 : vector<512x256xf32>
    %90 = arith.truncf %89 : vector<512x256xf32> to vector<512x256xbf16>
    %cst_65 = arith.constant dense<0.000000e+00> : vector<512x256xf32>
    %91 = tpu.matmul %90, %76, %cst_65 {dimension_numbers = #tpu.dot_dimension_numbers<[1], [0], [0], [1], [0, 0, 1, 1], [], []>} : vector<512x256xbf16>, vector<256x256xbf16>, vector<512x256xf32> -> vector<512x256xf32>
    %92 = vector.broadcast %78 : vector<1x256xf32> to vector<512x256xf32>
    %93 = arith.addf %91, %92 : vector<512x256xf32>
    %cst_66 = arith.constant 0.000000e+00 : f32
    %94 = vector.broadcast %cst_66 : f32 to vector<512x256xf32>
    %95 = arith.maximumf %93, %94 : vector<512x256xf32>
    %96 = arith.truncf %95 : vector<512x256xf32> to vector<512x256xbf16>
    %cst_67 = arith.constant dense<0.000000e+00> : vector<512x256xf32>
    %97 = tpu.matmul %96, %80, %cst_67 {dimension_numbers = #tpu.dot_dimension_numbers<[1], [0], [0], [1], [0, 0, 1, 1], [], []>} : vector<512x256xbf16>, vector<256x256xbf16>, vector<512x256xf32> -> vector<512x256xf32>
    %98 = vector.broadcast %82 : vector<1x256xf32> to vector<512x256xf32>
    %99 = arith.addf %97, %98 : vector<512x256xf32>
    %cst_68 = arith.constant 0.000000e+00 : f32
    %100 = vector.broadcast %cst_68 : f32 to vector<512x256xf32>
    %101 = arith.maximumf %99, %100 : vector<512x256xf32>
    %102 = arith.addf %101, %89 : vector<512x256xf32>
    %103 = arith.truncf %102 : vector<512x256xf32> to vector<512x256xbf16>
    %c0_69 = arith.constant 0 : index
    %c0_70 = arith.constant 0 : index
    %104 = vector.load %arg6[%c0_69, %c0_70] : memref<256x128xbf16, #tpu.memory_space<vmem>>, vector<256x128xbf16>
    %cst_71 = arith.constant dense<0.000000e+00> : vector<512x128xf32>
    %105 = tpu.matmul %103, %104, %cst_71 {dimension_numbers = #tpu.dot_dimension_numbers<[1], [0], [0], [1], [0, 0, 1, 1], [], []>} : vector<512x256xbf16>, vector<256x128xbf16>, vector<512x128xf32> -> vector<512x128xf32>
    %c0_72 = arith.constant 0 : index
    %c0_73 = arith.constant 0 : index
    %106 = vector.load %arg7[%c0_72, %c0_73] : memref<1x128xf32, #tpu.memory_space<vmem>>, vector<1x128xf32>
    %107 = vector.broadcast %106 : vector<1x128xf32> to vector<512x128xf32>
    %108 = arith.addf %105, %107 : vector<512x128xf32>
    %109 = arith.negf %108 : vector<512x128xf32>
    %110 = math.exp %109 : vector<512x128xf32>
    %cst_74 = arith.constant 1.000000e+00 : f32
    %111 = vector.broadcast %cst_74 : f32 to vector<512x128xf32>
    %112 = arith.addf %111, %110 : vector<512x128xf32>
    %113 = arith.divf %111, %112 : vector<512x128xf32>
    %c0_75 = arith.constant 0 : index
    %c0_76 = arith.constant 0 : index
    %114 = vector.load %arg8[%c0_75, %c0_76] : memref<512x128xf32, #tpu.memory_space<vmem>>, vector<512x128xf32>
    tpu.vector_store %arg8[%c0_75, %c0_76], %113 {strides = array<i32>} : memref<512x128xf32, #tpu.memory_space<vmem>>, vector<512x128xf32>,
    return
  }
  func.func @transform_0(%arg0: i32) -> (i32, i32) {
    %c0_i32 = arith.constant 0 : i32
    %c0_i32_0 = arith.constant 0 : i32
    return %arg0, %c0_i32 : i32, i32
  }
  func.func @transform_1(%arg0: i32) -> (i32, i32) {
    %c0_i32 = arith.constant 0 : i32
    %c0_i32_0 = arith.constant 0 : i32
    %c0_i32_1 = arith.constant 0 : i32
    return %c0_i32, %c0_i32_0 : i32, i32
  }
  func.func @transform_2(%arg0: i32) -> (i32, i32) {
    %c0_i32 = arith.constant 0 : i32
    %c0_i32_0 = arith.constant 0 : i32
    %c0_i32_1 = arith.constant 0 : i32
    return %c0_i32, %c0_i32_0 : i32, i32
  }
  func.func @transform_3(%arg0: i32) -> (i32, i32, i32) {
    %c0_i32 = arith.constant 0 : i32
    %c0_i32_0 = arith.constant 0 : i32
    %c0_i32_1 = arith.constant 0 : i32
    %c0_i32_2 = arith.constant 0 : i32
    return %c0_i32, %c0_i32_0, %c0_i32_1 : i32, i32, i32
  }
  func.func @transform_4(%arg0: i32) -> (i32, i32, i32) {
    %c0_i32 = arith.constant 0 : i32
    %c0_i32_0 = arith.constant 0 : i32
    %c0_i32_1 = arith.constant 0 : i32
    %c0_i32_2 = arith.constant 0 : i32
    return %c0_i32, %c0_i32_0, %c0_i32_1 : i32, i32, i32
  }
  func.func @transform_5(%arg0: i32) -> (i32, i32) {
    %c0_i32 = arith.constant 0 : i32
    %c0_i32_0 = arith.constant 0 : i32
    %c0_i32_1 = arith.constant 0 : i32
    return %c0_i32, %c0_i32_0 : i32, i32
  }
  func.func @transform_6(%arg0: i32) -> (i32, i32) {
    %c0_i32 = arith.constant 0 : i32
    %c0_i32_0 = arith.constant 0 : i32
    %c0_i32_1 = arith.constant 0 : i32
    return %c0_i32, %c0_i32_0 : i32, i32
  }
  func.func @transform_7(%arg0: i32) -> (i32, i32) {
    %c0_i32 = arith.constant 0 : i32
    %c0_i32_0 = arith.constant 0 : i32
    return %arg0, %c0_i32 : i32, i32
  }
}

</mosaic_0001>

<llo_original>
// kernel: cond_mlp_pallas.1
$region0: #{cond_mlp_pallas.1}
  #allocation0 [shape = 'u32[]', space=smem, size = 0x4, offset = 0x4, fixed_abs, tag = 'smem constant byte address 0x4 - core index']
  #allocation1 [shape = 'u32[144,128]{1,0:T(1,128)}', space=vmem, size = 0x12000, scoped, tag = 'internal scratch']
  %s0 = inlined_call_operand.vmem [shape: f32[1024,32], index: 0, kind: input, shape index: {}]
  %s1 = inlined_call_operand.vmem [shape: bf16[32,256], index: 1, kind: input, shape index: {}]
  %s2 = inlined_call_operand.vmem [shape: f32[1,256], index: 2, kind: input, shape index: {}]
  %s3 = inlined_call_operand.vmem [shape: bf16[9,256,256], index: 3, kind: input, shape index: {}]
  %s4 = inlined_call_operand.vmem [shape: f32[9,1,256], index: 4, kind: input, shape index: {}]
  %s5 = inlined_call_operand.vmem [shape: bf16[256,128], index: 5, kind: input, shape index: {}]
  %s6 = inlined_call_operand.vmem [shape: f32[1,128], index: 6, kind: input, shape index: {}]
  %s7 = inlined_call_operand.vmem [shape: f32[1024,128], index: 7, kind: output, shape index: {}]
  %s8 = sld [smem:[#allocation0]]
  $region61: #{cond_mlp_pallas.1} parent=0
    _
  %s10 = ssub.s32 1, %s8
  %s11 = scalar_select 0, %s10, %s8
  loop: start=0, step=1, limit=4
  $region2: #{cond_mlp_pallas.1} parent=0 // loop_pre_header
    _
  $region3: #{cond_mlp_pallas.1} parent=0 // loop_header
    %s13 = sphi 0, %s17
    %p14 = scmp.ge.s32.totalorder %s13, 4
    %s23 = sphi 0, %s25
    %s26 = sphi 0, %s23
    %s27 = sphi 0, %s26
    %s43 = sphi 0, %s27
    %s47 = sphi 0, %s47
    %s49 = sphi 0, %s47
    %s50 = sphi 0, %s49
    %s64 = sphi 0, %s50
    %s68 = sphi 0, %s68
    %s70 = sphi 0, %s68
    %s71 = sphi 0, %s70
    %s85 = sphi 0, %s71
    %s89 = sphi 0, %s89
    %s91 = sphi 0, %s89
    %s92 = sphi 0, %s91
    %s106 = sphi 0, %s92
    %s110 = sphi 0, %s110
    %s112 = sphi 0, %s110
    %s113 = sphi 0, %s112
    %s127 = sphi 0, %s113
    %s131 = sphi 0, %s131
    %s133 = sphi 0, %s131
    %s134 = sphi 0, %s133
    %s148 = sphi 0, %s134
    %s152 = sphi 0, %s152
    %s154 = sphi 0, %s152
    %s155 = sphi 0, %s154
    %s169 = sphi 0, %s155
    %s175 = sphi 0, %s177
    %s178 = sphi 0, %s175
    %s179 = sphi 0, %s178
    %s195 = sphi 0, %s179
  $region4: #{cond_mlp_pallas.1} parent=0 // loop_header_branch
    %16 = sbr.rel (%p14) target = $region8
  $region5: #{cond_mlp_pallas.1} parent=0 // loop_body
    %s18 = ssub.s32 %s13, 1
    %s19 = ssub.s32 %s13, 2
    %s20 = sadd.s32 %s13, 1
    %s21 = ssub.s32 %s13, %s20
    %p22 = scmp.eq.s32.totalorder %s21, 0
    %s24 = sadd.s32 %s23, 1
    %s25 = scalar_select %p22, %s23, %s24
    %p28 = pneg %p22
    %p29 = scmp.eq.s32.totalorder %s13, 1
    %p30 = por %p28, %p29
    %p31 = scmp.ne.s32.totalorder %s23, %s26
    %p32 = scmp.eq.s32.totalorder %s13, 0
    %p33 = por %p31, %p32
    %p34 = scmp.ne.s32.totalorder %s23, %s26
    %p35 = scmp.eq.s32.totalorder %s18, 1
    %p36 = por %p34, %p35
    %p37 = scmp.ne.s32.totalorder %s26, %s27
    %p38 = scmp.eq.s32.totalorder %s18, 0
    %p39 = por %p37, %p38
    %p40 = scmp.ne.s32.totalorder %s26, %s27
    %p41 = scmp.eq.s32.totalorder %s19, 1
    %p42 = por %p40, %p41
    %p44 = scmp.ne.s32.totalorder %s27, %s43
    %p45 = scmp.eq.s32.totalorder %s19, 0
    %p46 = por %p44, %p45
    %s48 = sadd.s32 %s47, 1
    %p51 = scmp.eq.s32.totalorder %s13, 1
    %p52 = scmp.ne.s32.totalorder %s47, %s49
    %p53 = scmp.eq.s32.totalorder %s13, 0
    %p54 = por %p52, %p53
    %p55 = scmp.ne.s32.totalorder %s47, %s49
    %p56 = scmp.eq.s32.totalorder %s18, 1
    %p57 = por %p55, %p56
    %p58 = scmp.ne.s32.totalorder %s49, %s50
    %p59 = scmp.eq.s32.totalorder %s18, 0
    %p60 = por %p58, %p59
    %p61 = scmp.ne.s32.totalorder %s49, %s50
    %p62 = scmp.eq.s32.totalorder %s19, 1
    %p63 = por %p61, %p62
    %p65 = scmp.ne.s32.totalorder %s50, %s64
    %p66 = scmp.eq.s32.totalorder %s19, 0
    %p67 = por %p65, %p66
    %s69 = sadd.s32 %s68, 1
    %p72 = scmp.eq.s32.totalorder %s13, 1
    %p73 = scmp.ne.s32.totalorder %s68, %s70
    %p74 = scmp.eq.s32.totalorder %s13, 0
    %p75 = por %p73, %p74
    %p76 = scmp.ne.s32.totalorder %s68, %s70
    %p77 = scmp.eq.s32.totalorder %s18, 1
    %p78 = por %p76, %p77
    %p79 = scmp.ne.s32.totalorder %s70, %s71
    %p80 = scmp.eq.s32.totalorder %s18, 0
    %p81 = por %p79, %p80
    %p82 = scmp.ne.s32.totalorder %s70, %s71
    %p83 = scmp.eq.s32.totalorder %s19, 1
    %p84 = por %p82, %p83
    %p86 = scmp.ne.s32.totalorder %s71, %s85
    %p87 = scmp.eq.s32.totalorder %s19, 0
    %p88 = por %p86, %p87
    %s90 = sadd.s32 %s89, 1
    %p93 = scmp.eq.s32.totalorder %s13, 1
    %p94 = scmp.ne.s32.totalorder %s89, %s91
    %p95 = scmp.eq.s32.totalorder %s13, 0
    %p96 = por %p94, %p95
    %p97 = scmp.ne.s32.totalorder %s89, %s91
    %p98 = scmp.eq.s32.totalorder %s18, 1
    %p99 = por %p97, %p98
    %p100 = scmp.ne.s32.totalorder %s91, %s92
    %p101 = scmp.eq.s32.totalorder %s18, 0
    %p102 = por %p100, %p101
    %p103 = scmp.ne.s32.totalorder %s91, %s92
    %p104 = scmp.eq.s32.totalorder %s19, 1
    %p105 = por %p103, %p104
    %p107 = scmp.ne.s32.totalorder %s92, %s106
    %p108 = scmp.eq.s32.totalorder %s19, 0
    %p109 = por %p107, %p108
    %s111 = sadd.s32 %s110, 1
    %p114 = scmp.eq.s32.totalorder %s13, 1
    %p115 = scmp.ne.s32.totalorder %s110, %s112
    %p116 = scmp.eq.s32.totalorder %s13, 0
    %p117 = por %p115, %p116
    %p118 = scmp.ne.s32.totalorder %s110, %s112
    %p119 = scmp.eq.s32.totalorder %s18, 1
    %p120 = por %p118, %p119
    %p121 = scmp.ne.s32.totalorder %s112, %s113
    %p122 = scmp.eq.s32.totalorder %s18, 0
    %p123 = por %p121, %p122
    %p124 = scmp.ne.s32.totalorder %s112, %s113
    %p125 = scmp.eq.s32.totalorder %s19, 1
    %p126 = por %p124, %p125
    %p128 = scmp.ne.s32.totalorder %s113, %s127
    %p129 = scmp.eq.s32.totalorder %s19, 0
    %p130 = por %p128, %p129
    %s132 = sadd.s32 %s131, 1
    %p135 = scmp.eq.s32.totalorder %s13, 1
    %p136 = scmp.ne.s32.totalorder %s131, %s133
    %p137 = scmp.eq.s32.totalorder %s13, 0
    %p138 = por %p136, %p137
    %p139 = scmp.ne.s32.totalorder %s131, %s133
    %p140 = scmp.eq.s32.totalorder %s18, 1
    %p141 = por %p139, %p140
    %p142 = scmp.ne.s32.totalorder %s133, %s134
    %p143 = scmp.eq.s32.totalorder %s18, 0
    %p144 = por %p142, %p143
    %p145 = scmp.ne.s32.totalorder %s133, %s134
    %p146 = scmp.eq.s32.totalorder %s19, 1
    %p147 = por %p145, %p146
    %p149 = scmp.ne.s32.totalorder %s134, %s148
    %p150 = scmp.eq.s32.totalorder %s19, 0
    %p151 = por %p149, %p150
    %s153 = sadd.s32 %s152, 1
    %p156 = scmp.eq.s32.totalorder %s13, 1
    %p157 = scmp.ne.s32.totalorder %s152, %s154
    %p158 = scmp.eq.s32.totalorder %s13, 0
    %p159 = por %p157, %p158
    %p160 = scmp.ne.s32.totalorder %s152, %s154
    %p161 = scmp.eq.s32.totalorder %s18, 1
    %p162 = por %p160, %p161
    %p163 = scmp.ne.s32.totalorder %s154, %s155
    %p164 = scmp.eq.s32.totalorder %s18, 0
    %p165 = por %p163, %p164
    %p166 = scmp.ne.s32.totalorder %s154, %s155
    %p167 = scmp.eq.s32.totalorder %s19, 1
    %p168 = por %p166, %p167
    %p170 = scmp.ne.s32.totalorder %s155, %s169
    %p171 = scmp.eq.s32.totalorder %s19, 0
    %p172 = por %p170, %p171
    %s173 = ssub.s32 %s13, %s20
    %p174 = scmp.eq.s32.totalorder %s173, 0
    %s176 = sadd.s32 %s175, 1
    %s177 = scalar_select %p174, %s175, %s176
    %p180 = pneg %p174
    %p181 = scmp.eq.s32.totalorder %s13, 1
    %p182 = por %p180, %p181
    %p183 = scmp.ne.s32.totalorder %s175, %s178
    %p184 = scmp.eq.s32.totalorder %s13, 0
    %p185 = por %p183, %p184
    %p186 = scmp.ne.s32.totalorder %s175, %s178
    %p187 = scmp.eq.s32.totalorder %s18, 1
    %p188 = por %p186, %p187
    %p189 = scmp.ne.s32.totalorder %s178, %s179
    %p190 = scmp.eq.s32.totalorder %s18, 0
    %p191 = por %p189, %p190
    %p192 = scmp.ne.s32.totalorder %s178, %s179
    %p193 = scmp.eq.s32.totalorder %s19, 1
    %p194 = por %p192, %p193
    %p196 = scmp.ne.s32.totalorder %s179, %s195
    %p197 = scmp.eq.s32.totalorder %s19, 0
    %p198 = por %p196, %p197
    %p199 = scmp.le.s32.totalorder 1, %s13
    %p200 = scmp.lt.s32.totalorder %s13, 3
    %p201 = pnand %p199, %p200
    %p202 = pneg %p201
    // Predicated region
    $region9: #{cond_mlp_pallas.1} parent=5 // pred_check
      _
    $region10: #{cond_mlp_pallas.1} parent=5 // pred_check_branch
      %204 = sbr.rel (%p201) target = $region12
    $region11: #{cond_mlp_pallas.1} parent=5 // pred_region
      %s205 = ssub.s32 %s13, 1
      // Predicated region
      $region13: #{cond_mlp_pallas.1} parent=11 // pred_check
        %p206 = pneg %p60
      $region14: #{cond_mlp_pallas.1} parent=11 // pred_check_branch
        %208 = sbr.rel (%p206) target = $region16
      $region15: #{cond_mlp_pallas.1} parent=11 // pred_region
        _
      $region16: #{cond_mlp_pallas.1} parent=11 // pred_fallthru
        _
      // Predicated region
      $region17: #{cond_mlp_pallas.1} parent=11 // pred_check
        %p209 = pneg %p81
      $region18: #{cond_mlp_pallas.1} parent=11 // pred_check_branch
        %211 = sbr.rel (%p209) target = $region20
      $region19: #{cond_mlp_pallas.1} parent=11 // pred_region
        _
      $region20: #{cond_mlp_pallas.1} parent=11 // pred_fallthru
        _
      // Predicated region
      $region21: #{cond_mlp_pallas.1} parent=11 // pred_check
        %p212 = pneg %p102
      $region22: #{cond_mlp_pallas.1} parent=11 // pred_check_branch
        %214 = sbr.rel (%p212) target = $region24
      $region23: #{cond_mlp_pallas.1} parent=11 // pred_region
        _
      $region24: #{cond_mlp_pallas.1} parent=11 // pred_fallthru
        _
      // Predicated region
      $region25: #{cond_mlp_pallas.1} parent=11 // pred_check
        %p215 = pneg %p123
      $region26: #{cond_mlp_pallas.1} parent=11 // pred_check_branch
        %217 = sbr.rel (%p215) target = $region28
      $region27: #{cond_mlp_pallas.1} parent=11 // pred_region
        _
      $region28: #{cond_mlp_pallas.1} parent=11 // pred_fallthru
        _
      // Predicated region
      $region29: #{cond_mlp_pallas.1} parent=11 // pred_check
        %p218 = pneg %p144
      $region30: #{cond_mlp_pallas.1} parent=11 // pred_check_branch
        %220 = sbr.rel (%p218) target = $region32
      $region31: #{cond_mlp_pallas.1} parent=11 // pred_region
        _
      $region32: #{cond_mlp_pallas.1} parent=11 // pred_fallthru
        _
      // Predicated region
      $region33: #{cond_mlp_pallas.1} parent=11 // pred_check
        %p221 = pneg %p165
      $region34: #{cond_mlp_pallas.1} parent=11 // pred_check_branch
        %223 = sbr.rel (%p221) target = $region36
      $region35: #{cond_mlp_pallas.1} parent=11 // pred_region
        _
      $region36: #{cond_mlp_pallas.1} parent=11 // pred_fallthru
        _
    $region12: #{cond_mlp_pallas.1} parent=5 // pred_fallthru
      _
    %p224 = scmp.lt.s32.totalorder %s13, 2
    // Predicated region
    $region37: #{cond_mlp_pallas.1} parent=5 // pred_check
      %p225 = pneg %p224
    $region38: #{cond_mlp_pallas.1} parent=5 // pred_check_branch
      %227 = sbr.rel (%p225) target = $region40
    $region39: #{cond_mlp_pallas.1} parent=5 // pred_region
      // Predicated region
      $region41: #{cond_mlp_pallas.1} parent=39 // pred_check
        %p228 = pneg %p33
      $region42: #{cond_mlp_pallas.1} parent=39 // pred_check_branch
        %230 = sbr.rel (%p228) target = $region44
      $region43: #{cond_mlp_pallas.1} parent=39 // pred_region
        %s231 = smul.u32 64, %s13
        %p232 = scmp.lt.s32.totalorder %s231, 127
        %s233 = scalar_select %p232, %s231, 127
        %s234 = smul.addr %s233, 8
        %s235 = scalar_lea.vmem %s0, %s234
        %s236 = smul.u32 64, %s13
      $region44: #{cond_mlp_pallas.1} parent=39 // pred_fallthru
        _
    $region40: #{cond_mlp_pallas.1} parent=5 // pred_fallthru
      _
    %p237 = scmp.le.s32.totalorder 1, %s13
    %p238 = scmp.lt.s32.totalorder %s13, 3
    %p239 = pnand %p237, %p238
    %p240 = pneg %p239
    // Predicated region
    $region45: #{cond_mlp_pallas.1} parent=5 // pred_check
      _
    $region46: #{cond_mlp_pallas.1} parent=5 // pred_check_branch
      %242 = sbr.rel (%p239) target = $region48
    $region47: #{cond_mlp_pallas.1} parent=5 // pred_region
      %s243 = ssub.s32 %s13, 1
      %s244 = smul.u32 64, %s18
      %p245 = scmp.lt.s32.totalorder %s244, 127
      %s246 = scalar_select %p245, %s244, 127
      %s247 = smul.addr %s246, 8
      %s248 = scalar_lea.vmem %s0, %s247
      %p249 = pneg %p39
      %p250 = pneg %p36
      %p251 = pneg %p60
      %p252 = pneg %p57
      %p253 = pneg %p81
      %p254 = pneg %p78
      %p255 = pneg %p102
      %p256 = pneg %p99
      %p257 = pneg %p123
      %p258 = pneg %p120
      %p259 = pneg %p144
      %p260 = pneg %p141
      %p261 = pneg %p165
      %p262 = pneg %p162
      %p263 = pneg %p191
      %p264 = pneg %p188
      %s265 = smul.u32 64, %s18
      %p266 = scmp.lt.s32.totalorder %s265, 127
      %s267 = scalar_select %p266, %s265, 127
      %s268 = smul.addr %s267, 8
      %s269 = scalar_lea.vmem %s7, %s268
      %s270 = smul.u32 64, %s18
      %p271 = scmp.lt.s32.totalorder %s270, 127
      %s272 = scalar_select %p271, %s270, 127
      %s273 = smul.addr %s272, 8
      %s274 = scalar_lea.vmem %s0, %s273
      %s275 = smul.u32 64, %s18
      %s276 = smul.u32 64, %s18
      %p277 = scmp.lt.s32.totalorder %s276, 127
      %s278 = scalar_select %p277, %s276, 127
      %s279 = smul.addr %s278, 8
      %s280 = scalar_lea.vmem %s7, %s279
      %s281 = smul.u32 64, %s18
      %v283 = vld [vmem:[%s274] sm:$0xff]
      %v284 = vld [vmem:[%s274 + $0x8] sm:$0xff]
      %v285 = vld [vmem:[%s274 + $0x10] sm:$0xff]
      %v286 = vld [vmem:[%s274 + $0x18] sm:$0xff]
      %v287 = vld [vmem:[%s274 + $0x20] sm:$0xff]
      %v288 = vld [vmem:[%s274 + $0x28] sm:$0xff]
      %v289 = vld [vmem:[%s274 + $0x30] sm:$0xff]
      %v290 = vld [vmem:[%s274 + $0x38] sm:$0xff]
      %v291 = vld [vmem:[%s274 + $0x40] sm:$0xff]
      %v292 = vld [vmem:[%s274 + $0x48] sm:$0xff]
      %v293 = vld [vmem:[%s274 + $0x50] sm:$0xff]
      %v294 = vld [vmem:[%s274 + $0x58] sm:$0xff]
      %v295 = vld [vmem:[%s274 + $0x60] sm:$0xff]
      %v296 = vld [vmem:[%s274 + $0x68] sm:$0xff]
      %v297 = vld [vmem:[%s274 + $0x70] sm:$0xff]
      %v298 = vld [vmem:[%s274 + $0x78] sm:$0xff]
      %v299 = vld [vmem:[%s274 + $0x80] sm:$0xff]
      %v300 = vld [vmem:[%s274 + $0x88] sm:$0xff]
      %v301 = vld [vmem:[%s274 + $0x90] sm:$0xff]
      %v302 = vld [vmem:[%s274 + $0x98] sm:$0xff]
      %v303 = vld [vmem:[%s274 + $0xa0] sm:$0xff]
      %v304 = vld [vmem:[%s274 + $0xa8] sm:$0xff]
      %v305 = vld [vmem:[%s274 + $0xb0] sm:$0xff]
      %v306 = vld [vmem:[%s274 + $0xb8] sm:$0xff]
      %v307 = vld [vmem:[%s274 + $0xc0] sm:$0xff]
      %v308 = vld [vmem:[%s274 + $0xc8] sm:$0xff]
      %v309 = vld [vmem:[%s274 + $0xd0] sm:$0xff]
      %v310 = vld [vmem:[%s274 + $0xd8] sm:$0xff]
      %v311 = vld [vmem:[%s274 + $0xe0] sm:$0xff]
      %v312 = vld [vmem:[%s274 + $0xe8] sm:$0xff]
      %v313 = vld [vmem:[%s274 + $0xf0] sm:$0xff]
      %v314 = vld [vmem:[%s274 + $0xf8] sm:$0xff]
      %v315 = vld [vmem:[%s274 + $0x100] sm:$0xff]
      %v316 = vld [vmem:[%s274 + $0x108] sm:$0xff]
      %v317 = vld [vmem:[%s274 + $0x110] sm:$0xff]
      %v318 = vld [vmem:[%s274 + $0x118] sm:$0xff]
      %v319 = vld [vmem:[%s274 + $0x120] sm:$0xff]
      %v320 = vld [vmem:[%s274 + $0x128] sm:$0xff]
      %v321 = vld [vmem:[%s274 + $0x130] sm:$0xff]
      %v322 = vld [vmem:[%s274 + $0x138] sm:$0xff]
      %v323 = vld [vmem:[%s274 + $0x140] sm:$0xff]
      %v324 = vld [vmem:[%s274 + $0x148] sm:$0xff]
      %v325 = vld [vmem:[%s274 + $0x150] sm:$0xff]
      %v326 = vld [vmem:[%s274 + $0x158] sm:$0xff]
      %v327 = vld [vmem:[%s274 + $0x160] sm:$0xff]
      %v328 = vld [vmem:[%s274 + $0x168] sm:$0xff]
      %v329 = vld [vmem:[%s274 + $0x170] sm:$0xff]
      %v330 = vld [vmem:[%s274 + $0x178] sm:$0xff]
      %v331 = vld [vmem:[%s274 + $0x180] sm:$0xff]
      %v332 = vld [vmem:[%s274 + $0x188] sm:$0xff]
      %v333 = vld [vmem:[%s274 + $0x190] sm:$0xff]
      %v334 = vld [vmem:[%s274 + $0x198] sm:$0xff]
      %v335 = vld [vmem:[%s274 + $0x1a0] sm:$0xff]
      %v336 = vld [vmem:[%s274 + $0x1a8] sm:$0xff]
      %v337 = vld [vmem:[%s274 + $0x1b0] sm:$0xff]
      %v338 = vld [vmem:[%s274 + $0x1b8] sm:$0xff]
      %v339 = vld [vmem:[%s274 + $0x1c0] sm:$0xff]
      %v340 = vld [vmem:[%s274 + $0x1c8] sm:$0xff]
      %v341 = vld [vmem:[%s274 + $0x1d0] sm:$0xff]
      %v342 = vld [vmem:[%s274 + $0x1d8] sm:$0xff]
      %v343 = vld [vmem:[%s274 + $0x1e0] sm:$0xff]
      %v344 = vld [vmem:[%s274 + $0x1e8] sm:$0xff]
      %v345 = vld [vmem:[%s274 + $0x1f0] sm:$0xff]
      %v346 = vld [vmem:[%s274 + $0x1f8] sm:$0xff]
      %v347 = vpack.c.bf16 %v284, %v283
      %v348 = vpack.c.bf16 %v286, %v285
      %v349 = vpack.c.bf16 %v288, %v287
      %v350 = vpack.c.bf16 %v290, %v289
      %v351 = vpack.c.bf16 %v292, %v291
      %v352 = vpack.c.bf16 %v294, %v293
      %v353 = vpack.c.bf16 %v296, %v295
      %v354 = vpack.c.bf16 %v298, %v297
      %v355 = vpack.c.bf16 %v300, %v299
      %v356 = vpack.c.bf16 %v302, %v301
      %v357 = vpack.c.bf16 %v304, %v303
      %v358 = vpack.c.bf16 %v306, %v305
      %v359 = vpack.c.bf16 %v308, %v307
      %v360 = vpack.c.bf16 %v310, %v309
      %v361 = vpack.c.bf16 %v312, %v311
      %v362 = vpack.c.bf16 %v314, %v313
      %v363 = vpack.c.bf16 %v316, %v315
      %v364 = vpack.c.bf16 %v318, %v317
      %v365 = vpack.c.bf16 %v320, %v319
      %v366 = vpack.c.bf16 %v322, %v321
      %v367 = vpack.c.bf16 %v324, %v323
      %v368 = vpack.c.bf16 %v326, %v325
      %v369 = vpack.c.bf16 %v328, %v327
      %v370 = vpack.c.bf16 %v330, %v329
      %v371 = vpack.c.bf16 %v332, %v331
      %v372 = vpack.c.bf16 %v334, %v333
      %v373 = vpack.c.bf16 %v336, %v335
      %v374 = vpack.c.bf16 %v338, %v337
      %v375 = vpack.c.bf16 %v340, %v339
      %v376 = vpack.c.bf16 %v342, %v341
      %v377 = vpack.c.bf16 %v344, %v343
      %v378 = vpack.c.bf16 %v346, %v345
      %v379 = vld [vmem:[%s1] sm:$0xff]
      %v380 = vld [vmem:[%s1 + $0x8] sm:$0xff]
      %v381 = vld [vmem:[%s1 + $0x10] sm:$0xff]
      %v382 = vld [vmem:[%s1 + $0x18] sm:$0xff]
      %v383 = vld [vmem:[%s2] sm:$0x3]
      %v385 = vlaneseq
      %v386 = vshrl.u32 %v385, 7
      %v387 = vsub.s32 0, %v386
      %v388 = vrot.slane %v383, %v387
      %v389 = vlaneseq
      %v390 = vshrl.u32 %v389, 7
      %v391 = vsub.s32 1, %v390
      %v392 = vrot.slane %v383, %v391
      %v399 = vunpack.c.l.b16 %v379
      %v400 = vunpack.c.h.b16 %v379
      %v401 = vunpack.c.l.b16 %v380
      %v402 = vunpack.c.h.b16 %v380
      %v403 = vunpack.c.l.b16 %v381
      %v404 = vunpack.c.h.b16 %v381
      %v405 = vunpack.c.l.b16 %v382
      %v406 = vunpack.c.h.b16 %v382
      %v407 = vpack.c.b16 %v401, %v399
      %v408 = vpack.c.b16 %v402, %v400
      %v409 = vpack.c.b16 %v405, %v403
      %v410 = vpack.c.b16 %v406, %v404
      %vm415 = vcmask 261120
      %v417 = vsel %vm415, %v347, 0
      %v420 = vsel %vm415, %v348, 0
      %v423 = vsel %vm415, %v349, 0
      %v426 = vsel %vm415, %v350, 0
      %v429 = vsel %vm415, %v351, 0
      %v432 = vsel %vm415, %v352, 0
      %v435 = vsel %vm415, %v353, 0
      %v438 = vsel %vm415, %v354, 0
      %v441 = vsel %vm415, %v355, 0
      %v444 = vsel %vm415, %v356, 0
      %v447 = vsel %vm415, %v357, 0
      %v450 = vsel %vm415, %v358, 0
      %v453 = vsel %vm415, %v359, 0
      %v456 = vsel %vm415, %v360, 0
      %v459 = vsel %vm415, %v361, 0
      %v462 = vsel %vm415, %v362, 0
      %v465 = vsel %vm415, %v363, 0
      %v468 = vsel %vm415, %v364, 0
      %v471 = vsel %vm415, %v365, 0
      %v474 = vsel %vm415, %v366, 0
      %v477 = vsel %vm415, %v367, 0
      %v480 = vsel %vm415, %v368, 0
      %v483 = vsel %vm415, %v369, 0
      %v486 = vsel %vm415, %v370, 0
      %v489 = vsel %vm415, %v371, 0
      %v492 = vsel %vm415, %v372, 0
      %v495 = vsel %vm415, %v373, 0
      %v498 = vsel %vm415, %v374, 0
      %v501 = vsel %vm415, %v375, 0
      %v504 = vsel %vm415, %v376, 0
      %v507 = vsel %vm415, %v377, 0
      %v510 = vsel %vm415, %v378, 0
      %512 = vmatprep.subr.bf16.mxu0 %v408
      %513 = vmatpush1.bf16.msra.mxu0 %v407
      %514 = vmatprep.subr.bf16.mxu0 %v410
      %515 = vmatpush1.bf16.msra.mxu0 %v409
      %516 = vmatprep.subr.bf16.mxu0 0
      %517 = vmatpush1.bf16.msra.mxu0 0
      %518 = vmatprep.subr.bf16.mxu0 0
      %519 = vmatpush1.bf16.msra.mxu0 0
      %520 = vmatprep.subr.bf16.mxu0 0
      %521 = vmatpush1.bf16.msra.mxu0 0
      %522 = vmatprep.subr.bf16.mxu0 0
      %523 = vmatpush1.bf16.msra.mxu0 0
      %524 = vmatprep.subr.bf16.mxu0 0
      %525 = vmatpush1.bf16.msra.mxu0 0
      %526 = vmatprep.subr.bf16.mxu0 0
      %527 = vmatpush1.bf16.msra.mxu0 0
      %528 = vmatprep.subr.bf16.mxu0 0
      %529 = vmatpush1.bf16.msra.mxu0 0
      %530 = vmatprep.subr.bf16.mxu0 0
      %531 = vmatpush1.bf16.msra.mxu0 0
      %532 = vmatprep.subr.bf16.mxu0 0
      %533 = vmatpush1.bf16.msra.mxu0 0
      %534 = vmatprep.subr.bf16.mxu0 0
      %535 = vmatpush1.bf16.msra.mxu0 0
      %536 = vmatprep.subr.bf16.mxu0 0
      %537 = vmatpush1.bf16.msra.mxu0 0
      %538 = vmatprep.subr.bf16.mxu0 0
      %539 = vmatpush1.bf16.msra.mxu0 0
      %540 = vmatprep.subr.bf16.mxu0 0
      %541 = vmatpush1.bf16.msra.mxu0 0
      %542 = vmatprep.subr.bf16.mxu0 0
      %543 = vmatpush1.bf16.msra.mxu0 0
      %544 = vmatprep.mubr.bf16.mxu0 0
      %545 = vmatmul.mubr.bf16.gmra.mrb[0].mxu0 %v417
      %v546 = vpop.f32.mrb[0].mxu0
      %v547 = vadd.f32 %v388, %v546
      %v548 = vpop.f32.mrb[0].mxu0
      %v549 = vadd.f32 %v392, %v548
      %v550 = vpop.f32.mrb[0].mxu0
      %v551 = vadd.f32 %v388, %v550
      %v552 = vpop.f32.mrb[0].mxu0
      %v553 = vadd.f32 %v392, %v552
      %554 = vmatprep.mubr.bf16.mxu0 0
      %555 = vmatmul.mubr.bf16.gmra.mrb[0].mxu0 %v420
      %v556 = vpop.f32.mrb[0].mxu0
      %v557 = vadd.f32 %v388, %v556
      %v558 = vpop.f32.mrb[0].mxu0
      %v559 = vadd.f32 %v392, %v558
      %v560 = vpop.f32.mrb[0].mxu0
      %v561 = vadd.f32 %v388, %v560
      %v562 = vpop.f32.mrb[0].mxu0
      %v563 = vadd.f32 %v392, %v562
      %564 = vmatprep.mubr.bf16.mxu0 0
      %565 = vmatmul.mubr.bf16.gmra.mrb[0].mxu0 %v423
      %v566 = vpop.f32.mrb[0].mxu0
      %v567 = vadd.f32 %v388, %v566
      %v568 = vpop.f32.mrb[0].mxu0
      %v569 = vadd.f32 %v392, %v568
      %v570 = vpop.f32.mrb[0].mxu0
      %v571 = vadd.f32 %v388, %v570
      %v572 = vpop.f32.mrb[0].mxu0
      %v573 = vadd.f32 %v392, %v572
      %574 = vmatprep.mubr.bf16.mxu0 0
      %575 = vmatmul.mubr.bf16.gmra.mrb[0].mxu0 %v426
      %v576 = vpop.f32.mrb[0].mxu0
      %v577 = vadd.f32 %v388, %v576
      %v578 = vpop.f32.mrb[0].mxu0
      %v579 = vadd.f32 %v392, %v578
      %v580 = vpop.f32.mrb[0].mxu0
      %v581 = vadd.f32 %v388, %v580
      %v582 = vpop.f32.mrb[0].mxu0
      %v583 = vadd.f32 %v392, %v582
      %584 = vmatprep.mubr.bf16.mxu0 0
      %585 = vmatmul.mubr.bf16.gmra.mrb[0].mxu0 %v429
      %v586 = vpop.f32.mrb[0].mxu0
      %v587 = vadd.f32 %v388, %v586
      %v588 = vpop.f32.mrb[0].mxu0
      %v589 = vadd.f32 %v392, %v588
      %v590 = vpop.f32.mrb[0].mxu0
      %v591 = vadd.f32 %v388, %v590
      %v592 = vpop.f32.mrb[0].mxu0
      %v593 = vadd.f32 %v392, %v592
      %594 = vmatprep.mubr.bf16.mxu0 0
      %595 = vmatmul.mubr.bf16.gmra.mrb[0].mxu0 %v432
      %v596 = vpop.f32.mrb[0].mxu0
      %v597 = vadd.f32 %v388, %v596
      %v598 = vpop.f32.mrb[0].mxu0
      %v599 = vadd.f32 %v392, %v598
      %v600 = vpop.f32.mrb[0].mxu0
      %v601 = vadd.f32 %v388, %v600
      %v602 = vpop.f32.mrb[0].mxu0
      %v603 = vadd.f32 %v392, %v602
      %604 = vmatprep.mubr.bf16.mxu0 0
      %605 = vmatmul.mubr.bf16.gmra.mrb[0].mxu0 %v435
      %v606 = vpop.f32.mrb[0].mxu0
      %v607 = vadd.f32 %v388, %v606
      %v608 = vpop.f32.mrb[0].mxu0
      %v609 = vadd.f32 %v392, %v608
      %v610 = vpop.f32.mrb[0].mxu0
      %v611 = vadd.f32 %v388, %v610
      %v612 = vpop.f32.mrb[0].mxu0
      %v613 = vadd.f32 %v392, %v612
      %614 = vmatprep.mubr.bf16.mxu0 0
      %615 = vmatmul.mubr.bf16.gmra.mrb[0].mxu0 %v438
      %v616 = vpop.f32.mrb[0].mxu0
      %v617 = vadd.f32 %v388, %v616
      %v618 = vpop.f32.mrb[0].mxu0
      %v619 = vadd.f32 %v392, %v618
      %v620 = vpop.f32.mrb[0].mxu0
      %v621 = vadd.f32 %v388, %v620
      %v622 = vpop.f32.mrb[0].mxu0
      %v623 = vadd.f32 %v392, %v622
      %624 = vmatprep.mubr.bf16.mxu0 0
      %625 = vmatmul.mubr.bf16.gmra.mrb[0].mxu0 %v441
      %v626 = vpop.f32.mrb[0].mxu0
      %v627 = vadd.f32 %v388, %v626
      %v628 = vpop.f32.mrb[0].mxu0
      %v629 = vadd.f32 %v392, %v628
      %v630 = vpop.f32.mrb[0].mxu0
      %v631 = vadd.f32 %v388, %v630
      %v632 = vpop.f32.mrb[0].mxu0
      %v633 = vadd.f32 %v392, %v632
      %634 = vmatprep.mubr.bf16.mxu0 0
      %635 = vmatmul.mubr.bf16.gmra.mrb[0].mxu0 %v444
      %v636 = vpop.f32.mrb[0].mxu0
      %v637 = vadd.f32 %v388, %v636
      %v638 = vpop.f32.mrb[0].mxu0
      %v639 = vadd.f32 %v392, %v638
      %v640 = vpop.f32.mrb[0].mxu0
      %v641 = vadd.f32 %v388, %v640
      %v642 = vpop.f32.mrb[0].mxu0
      %v643 = vadd.f32 %v392, %v642
      %644 = vmatprep.mubr.bf16.mxu0 0
      %645 = vmatmul.mubr.bf16.gmra.mrb[0].mxu0 %v447
      %v646 = vpop.f32.mrb[0].mxu0
      %v647 = vadd.f32 %v388, %v646
      %v648 = vpop.f32.mrb[0].mxu0
      %v649 = vadd.f32 %v392, %v648
      %v650 = vpop.f32.mrb[0].mxu0
      %v651 = vadd.f32 %v388, %v650
      %v652 = vpop.f32.mrb[0].mxu0
      %v653 = vadd.f32 %v392, %v652
      %654 = vmatprep.mubr.bf16.mxu0 0
      %655 = vmatmul.mubr.bf16.gmra.mrb[0].mxu0 %v450
      %v656 = vpop.f32.mrb[0].mxu0
      %v657 = vadd.f32 %v388, %v656
      %v658 = vpop.f32.mrb[0].mxu0
      %v659 = vadd.f32 %v392, %v658
      %v660 = vpop.f32.mrb[0].mxu0
      %v661 = vadd.f32 %v388, %v660
      %v662 = vpop.f32.mrb[0].mxu0
      %v663 = vadd.f32 %v392, %v662
      %664 = vmatprep.mubr.bf16.mxu0 0
      %665 = vmatmul.mubr.bf16.gmra.mrb[0].mxu0 %v453
      %v666 = vpop.f32.mrb[0].mxu0
      %v667 = vadd.f32 %v388, %v666
      %v668 = vpop.f32.mrb[0].mxu0
      %v669 = vadd.f32 %v392, %v668
      %v670 = vpop.f32.mrb[0].mxu0
      %v671 = vadd.f32 %v388, %v670
      %v672 = vpop.f32.mrb[0].mxu0
      %v673 = vadd.f32 %v392, %v672
      %674 = vmatprep.mubr.bf16.mxu0 0
      %675 = vmatmul.mubr.bf16.gmra.mrb[0].mxu0 %v456
      %v676 = vpop.f32.mrb[0].mxu0
      %v677 = vadd.f32 %v388, %v676
      %v678 = vpop.f32.mrb[0].mxu0
      %v679 = vadd.f32 %v392, %v678
      %v680 = vpop.f32.mrb[0].mxu0
      %v681 = vadd.f32 %v388, %v680
      %v682 = vpop.f32.mrb[0].mxu0
      %v683 = vadd.f32 %v392, %v682
      %684 = vmatprep.mubr.bf16.mxu0 0
      %685 = vmatmul.mubr.bf16.gmra.mrb[0].mxu0 %v459
      %v686 = vpop.f32.mrb[0].mxu0
      %v687 = vadd.f32 %v388, %v686
      %v688 = vpop.f32.mrb[0].mxu0
      %v689 = vadd.f32 %v392, %v688
      %v690 = vpop.f32.mrb[0].mxu0
      %v691 = vadd.f32 %v388, %v690
      %v692 = vpop.f32.mrb[0].mxu0
      %v693 = vadd.f32 %v392, %v692
      %694 = vmatprep.mubr.bf16.mxu0 0
      %695 = vmatmul.mubr.bf16.gmra.mrb[0].mxu0 %v462
      %v696 = vpop.f32.mrb[0].mxu0
      %v697 = vadd.f32 %v388, %v696
      %v698 = vpop.f32.mrb[0].mxu0
      %v699 = vadd.f32 %v392, %v698
      %v700 = vpop.f32.mrb[0].mxu0
      %v701 = vadd.f32 %v388, %v700
      %v702 = vpop.f32.mrb[0].mxu0
      %v703 = vadd.f32 %v392, %v702
      %704 = vmatprep.mubr.bf16.mxu0 0
      %705 = vmatmul.mubr.bf16.gmra.mrb[0].mxu0 %v465
      %v706 = vpop.f32.mrb[0].mxu0
      %v707 = vadd.f32 %v388, %v706
      %v708 = vpop.f32.mrb[0].mxu0
      %v709 = vadd.f32 %v392, %v708
      %v710 = vpop.f32.mrb[0].mxu0
      %v711 = vadd.f32 %v388, %v710
      %v712 = vpop.f32.mrb[0].mxu0
      %v713 = vadd.f32 %v392, %v712
      %714 = vmatprep.mubr.bf16.mxu0 0
      %715 = vmatmul.mubr.bf16.gmra.mrb[0].mxu0 %v468
      %v716 = vpop.f32.mrb[0].mxu0
      %v717 = vadd.f32 %v388, %v716
      %v718 = vpop.f32.mrb[0].mxu0
      %v719 = vadd.f32 %v392, %v718
      %v720 = vpop.f32.mrb[0].mxu0
      %v721 = vadd.f32 %v388, %v720
      %v722 = vpop.f32.mrb[0].mxu0
      %v723 = vadd.f32 %v392, %v722
      %724 = vmatprep.mubr.bf16.mxu0 0
      %725 = vmatmul.mubr.bf16.gmra.mrb[0].mxu0 %v471
      %v726 = vpop.f32.mrb[0].mxu0
      %v727 = vadd.f32 %v388, %v726
      %v728 = vpop.f32.mrb[0].mxu0
      %v729 = vadd.f32 %v392, %v728
      %v730 = vpop.f32.mrb[0].mxu0
      %v731 = vadd.f32 %v388, %v730
      %v732 = vpop.f32.mrb[0].mxu0
      %v733 = vadd.f32 %v392, %v732
      %734 = vmatprep.mubr.bf16.mxu0 0
      %735 = vmatmul.mubr.bf16.gmra.mrb[0].mxu0 %v474
      %v736 = vpop.f32.mrb[0].mxu0
      %v737 = vadd.f32 %v388, %v736
      %v738 = vpop.f32.mrb[0].mxu0
      %v739 = vadd.f32 %v392, %v738
      %v740 = vpop.f32.mrb[0].mxu0
      %v741 = vadd.f32 %v388, %v740
      %v742 = vpop.f32.mrb[0].mxu0
      %v743 = vadd.f32 %v392, %v742
      %744 = vmatprep.mubr.bf16.mxu0 0
      %745 = vmatmul.mubr.bf16.gmra.mrb[0].mxu0 %v477
      %v746 = vpop.f32.mrb[0].mxu0
      %v747 = vadd.f32 %v388, %v746
      %v748 = vpop.f32.mrb[0].mxu0
      %v749 = vadd.f32 %v392, %v748
      %v750 = vpop.f32.mrb[0].mxu0
      %v751 = vadd.f32 %v388, %v750
      %v752 = vpop.f32.mrb[0].mxu0
      %v753 = vadd.f32 %v392, %v752
      %754 = vmatprep.mubr.bf16.mxu0 0
      %755 = vmatmul.mubr.bf16.gmra.mrb[0].mxu0 %v480
      %v756 = vpop.f32.mrb[0].mxu0
      %v757 = vadd.f32 %v388, %v756
      %v758 = vpop.f32.mrb[0].mxu0
      %v759 = vadd.f32 %v392, %v758
      %v760 = vpop.f32.mrb[0].mxu0
      %v761 = vadd.f32 %v388, %v760
      %v762 = vpop.f32.mrb[0].mxu0
      %v763 = vadd.f32 %v392, %v762
      %764 = vmatprep.mubr.bf16.mxu0 0
      %765 = vmatmul.mubr.bf16.gmra.mrb[0].mxu0 %v483
      %v766 = vpop.f32.mrb[0].mxu0
      %v767 = vadd.f32 %v388, %v766
      %v768 = vpop.f32.mrb[0].mxu0
      %v769 = vadd.f32 %v392, %v768
      %v770 = vpop.f32.mrb[0].mxu0
      %v771 = vadd.f32 %v388, %v770
      %v772 = vpop.f32.mrb[0].mxu0
      %v773 = vadd.f32 %v392, %v772
      %774 = vmatprep.mubr.bf16.mxu0 0
      %775 = vmatmul.mubr.bf16.gmra.mrb[0].mxu0 %v486
      %v776 = vpop.f32.mrb[0].mxu0
      %v777 = vadd.f32 %v388, %v776
      %v778 = vpop.f32.mrb[0].mxu0
      %v779 = vadd.f32 %v392, %v778
      %v780 = vpop.f32.mrb[0].mxu0
      %v781 = vadd.f32 %v388, %v780
      %v782 = vpop.f32.mrb[0].mxu0
      %v783 = vadd.f32 %v392, %v782
      %784 = vmatprep.mubr.bf16.mxu0 0
      %785 = vmatmul.mubr.bf16.gmra.mrb[0].mxu0 %v489
      %v786 = vpop.f32.mrb[0].mxu0
      %v787 = vadd.f32 %v388, %v786
      %v788 = vpop.f32.mrb[0].mxu0
      %v789 = vadd.f32 %v392, %v788
      %v790 = vpop.f32.mrb[0].mxu0
      %v791 = vadd.f32 %v388, %v790
      %v792 = vpop.f32.mrb[0].mxu0
      %v793 = vadd.f32 %v392, %v792
      %794 = vmatprep.mubr.bf16.mxu0 0
      %795 = vmatmul.mubr.bf16.gmra.mrb[0].mxu0 %v492
      %v796 = vpop.f32.mrb[0].mxu0
      %v797 = vadd.f32 %v388, %v796
      %v798 = vpop.f32.mrb[0].mxu0
      %v799 = vadd.f32 %v392, %v798
      %v800 = vpop.f32.mrb[0].mxu0
      %v801 = vadd.f32 %v388, %v800
      %v802 = vpop.f32.mrb[0].mxu0
      %v803 = vadd.f32 %v392, %v802
      %804 = vmatprep.mubr.bf16.mxu0 0
      %805 = vmatmul.mubr.bf16.gmra.mrb[0].mxu0 %v495
      %v806 = vpop.f32.mrb[0].mxu0
      %v807 = vadd.f32 %v388, %v806
      %v808 = vpop.f32.mrb[0].mxu0
      %v809 = vadd.f32 %v392, %v808
      %v810 = vpop.f32.mrb[0].mxu0
      %v811 = vadd.f32 %v388, %v810
      %v812 = vpop.f32.mrb[0].mxu0
      %v813 = vadd.f32 %v392, %v812
      %814 = vmatprep.mubr.bf16.mxu0 0
      %815 = vmatmul.mubr.bf16.gmra.mrb[0].mxu0 %v498
      %v816 = vpop.f32.mrb[0].mxu0
      %v817 = vadd.f32 %v388, %v816
      %v818 = vpop.f32.mrb[0].mxu0
      %v819 = vadd.f32 %v392, %v818
      %v820 = vpop.f32.mrb[0].mxu0
      %v821 = vadd.f32 %v388, %v820
      %v822 = vpop.f32.mrb[0].mxu0
      %v823 = vadd.f32 %v392, %v822
      %824 = vmatprep.mubr.bf16.mxu0 0
      %825 = vmatmul.mubr.bf16.gmra.mrb[0].mxu0 %v501
      %v826 = vpop.f32.mrb[0].mxu0
      %v827 = vadd.f32 %v388, %v826
      %v828 = vpop.f32.mrb[0].mxu0
      %v829 = vadd.f32 %v392, %v828
      %v830 = vpop.f32.mrb[0].mxu0
      %v831 = vadd.f32 %v388, %v830
      %v832 = vpop.f32.mrb[0].mxu0
      %v833 = vadd.f32 %v392, %v832
      %834 = vmatprep.mubr.bf16.mxu0 0
      %835 = vmatmul.mubr.bf16.gmra.mrb[0].mxu0 %v504
      %v836 = vpop.f32.mrb[0].mxu0
      %v837 = vadd.f32 %v388, %v836
      %v838 = vpop.f32.mrb[0].mxu0
      %v839 = vadd.f32 %v392, %v838
      %v840 = vpop.f32.mrb[0].mxu0
      %v841 = vadd.f32 %v388, %v840
      %v842 = vpop.f32.mrb[0].mxu0
      %v843 = vadd.f32 %v392, %v842
      %844 = vmatprep.mubr.bf16.mxu0 0
      %845 = vmatmul.mubr.bf16.gmra.mrb[0].mxu0 %v507
      %v846 = vpop.f32.mrb[0].mxu0
      %v847 = vadd.f32 %v388, %v846
      %v848 = vpop.f32.mrb[0].mxu0
      %v849 = vadd.f32 %v392, %v848
      %v850 = vpop.f32.mrb[0].mxu0
      %v851 = vadd.f32 %v388, %v850
      %v852 = vpop.f32.mrb[0].mxu0
      %v853 = vadd.f32 %v392, %v852
      %854 = vmatprep.mubr.bf16.mxu0 0
      %855 = vmatmul.mubr.bf16.gmra.mrb[0].mxu0 %v510
      %v856 = vpop.f32.mrb[0].mxu0
      %v857 = vadd.f32 %v388, %v856
      %v858 = vpop.f32.mrb[0].mxu0
      %v859 = vadd.f32 %v392, %v858
      %v860 = vpop.f32.mrb[0].mxu0
      %v861 = vadd.f32 %v388, %v860
      %v862 = vpop.f32.mrb[0].mxu0
      %v863 = vadd.f32 %v392, %v862
      %864 = vdwg.mxu0
      %v865 = vld [vmem:[%s3] sm:$0xff]
      %v866 = vld [vmem:[%s3 + $0x8] sm:$0xff]
      %v867 = vld [vmem:[%s3 + $0x10] sm:$0xff]
      %v868 = vld [vmem:[%s3 + $0x18] sm:$0xff]
      %v869 = vld [vmem:[%s3 + $0x20] sm:$0xff]
      %v870 = vld [vmem:[%s3 + $0x28] sm:$0xff]
      %v871 = vld [vmem:[%s3 + $0x30] sm:$0xff]
      %v872 = vld [vmem:[%s3 + $0x38] sm:$0xff]
      %v873 = vld [vmem:[%s3 + $0x40] sm:$0xff]
      %v874 = vld [vmem:[%s3 + $0x48] sm:$0xff]
      %v875 = vld [vmem:[%s3 + $0x50] sm:$0xff]
      %v876 = vld [vmem:[%s3 + $0x58] sm:$0xff]
      %v877 = vld [vmem:[%s3 + $0x60] sm:$0xff]
      %v878 = vld [vmem:[%s3 + $0x68] sm:$0xff]
      %v879 = vld [vmem:[%s3 + $0x70] sm:$0xff]
      %v880 = vld [vmem:[%s3 + $0x78] sm:$0xff]
      %v881 = vld [vmem:[%s3 + $0x80] sm:$0xff]
      %v882 = vld [vmem:[%s3 + $0x88] sm:$0xff]
      %v883 = vld [vmem:[%s3 + $0x90] sm:$0xff]
      %v884 = vld [vmem:[%s3 + $0x98] sm:$0xff]
      %v885 = vld [vmem:[%s3 + $0xa0] sm:$0xff]
      %v886 = vld [vmem:[%s3 + $0xa8] sm:$0xff]
      %v887 = vld [vmem:[%s3 + $0xb0] sm:$0xff]
      %v888 = vld [vmem:[%s3 + $0xb8] sm:$0xff]
      %v889 = vld [vmem:[%s3 + $0xc0] sm:$0xff]
      %v890 = vld [vmem:[%s3 + $0xc8] sm:$0xff]
      %v891 = vld [vmem:[%s3 + $0xd0] sm:$0xff]
      %v892 = vld [vmem:[%s3 + $0xd8] sm:$0xff]
      %v893 = vld [vmem:[%s3 + $0xe0] sm:$0xff]
      %v894 = vld [vmem:[%s3 + $0xe8] sm:$0xff]
      %v895 = vld [vmem:[%s3 + $0xf0] sm:$0xff]
      %v896 = vld [vmem:[%s3 + $0xf8] sm:$0xff]
      %v897 = vld [vmem:[%s4] sm:$0x3]
      %s898 = scalar_lea.vmem %s3, 256
      %v899 = vld [vmem:[%s898] sm:$0xff]
      %v900 = vld [vmem:[%s898 + $0x8] sm:$0xff]
      %v901 = vld [vmem:[%s898 + $0x10] sm:$0xff]
      %v902 = vld [vmem:[%s898 + $0x18] sm:$0xff]
      %v903 = vld [vmem:[%s898 + $0x20] sm:$0xff]
      %v904 = vld [vmem:[%s898 + $0x28] sm:$0xff]
      %v905 = vld [vmem:[%s898 + $0x30] sm:$0xff]
      %v906 = vld [vmem:[%s898 + $0x38] sm:$0xff]
      %v907 = vld [vmem:[%s898 + $0x40] sm:$0xff]
      %v908 = vld [vmem:[%s898 + $0x48] sm:$0xff]
      %v909 = vld [vmem:[%s898 + $0x50] sm:$0xff]
      %v910 = vld [vmem:[%s898 + $0x58] sm:$0xff]
      %v911 = vld [vmem:[%s898 + $0x60] sm:$0xff]
      %v912 = vld [vmem:[%s898 + $0x68] sm:$0xff]
      %v913 = vld [vmem:[%s898 + $0x70] sm:$0xff]
      %v914 = vld [vmem:[%s898 + $0x78] sm:$0xff]
      %v915 = vld [vmem:[%s898 + $0x80] sm:$0xff]
      %v916 = vld [vmem:[%s898 + $0x88] sm:$0xff]
      %v917 = vld [vmem:[%s898 + $0x90] sm:$0xff]
      %v918 = vld [vmem:[%s898 + $0x98] sm:$0xff]
      %v919 = vld [vmem:[%s898 + $0xa0] sm:$0xff]
      %v920 = vld [vmem:[%s898 + $0xa8] sm:$0xff]
      %v921 = vld [vmem:[%s898 + $0xb0] sm:$0xff]
      %v922 = vld [vmem:[%s898 + $0xb8] sm:$0xff]
      %v923 = vld [vmem:[%s898 + $0xc0] sm:$0xff]
      %v924 = vld [vmem:[%s898 + $0xc8] sm:$0xff]
      %v925 = vld [vmem:[%s898 + $0xd0] sm:$0xff]
      %v926 = vld [vmem:[%s898 + $0xd8] sm:$0xff]
      %v927 = vld [vmem:[%s898 + $0xe0] sm:$0xff]
      %v928 = vld [vmem:[%s898 + $0xe8] sm:$0xff]
      %v929 = vld [vmem:[%s898 + $0xf0] sm:$0xff]
      %v930 = vld [vmem:[%s898 + $0xf8] sm:$0xff]
      %s931 = scalar_lea.vmem %s4, 2
      %v932 = vld [vmem:[%s931] sm:$0x3]
      %s933 = scalar_lea.vmem %s3, 512
      %v934 = vld [vmem:[%s933] sm:$0xff]
      %v935 = vld [vmem:[%s933 + $0x8] sm:$0xff]
      %v936 = vld [vmem:[%s933 + $0x10] sm:$0xff]
      %v937 = vld [vmem:[%s933 + $0x18] sm:$0xff]
      %v938 = vld [vmem:[%s933 + $0x20] sm:$0xff]
      %v939 = vld [vmem:[%s933 + $0x28] sm:$0xff]
      %v940 = vld [vmem:[%s933 + $0x30] sm:$0xff]
      %v941 = vld [vmem:[%s933 + $0x38] sm:$0xff]
      %v942 = vld [vmem:[%s933 + $0x40] sm:$0xff]
      %v943 = vld [vmem:[%s933 + $0x48] sm:$0xff]
      %v944 = vld [vmem:[%s933 + $0x50] sm:$0xff]
      %v945 = vld [vmem:[%s933 + $0x58] sm:$0xff]
      %v946 = vld [vmem:[%s933 + $0x60] sm:$0xff]
      %v947 = vld [vmem:[%s933 + $0x68] sm:$0xff]
      %v948 = vld [vmem:[%s933 + $0x70] sm:$0xff]
      %v949 = vld [vmem:[%s933 + $0x78] sm:$0xff]
      %v950 = vld [vmem:[%s933 + $0x80] sm:$0xff]
      %v951 = vld [vmem:[%s933 + $0x88] sm:$0xff]
      %v952 = vld [vmem:[%s933 + $0x90] sm:$0xff]
      %v953 = vld [vmem:[%s933 + $0x98] sm:$0xff]
      %v954 = vld [vmem:[%s933 + $0xa0] sm:$0xff]
      %v955 = vld [vmem:[%s933 + $0xa8] sm:$0xff]
      %v956 = vld [vmem:[%s933 + $0xb0] sm:$0xff]
      %v957 = vld [vmem:[%s933 + $0xb8] sm:$0xff]
      %v958 = vld [vmem:[%s933 + $0xc0] sm:$0xff]
      %v959 = vld [vmem:[%s933 + $0xc8] sm:$0xff]
      %v960 = vld [vmem:[%s933 + $0xd0] sm:$0xff]
      %v961 = vld [vmem:[%s933 + $0xd8] sm:$0xff]
      %v962 = vld [vmem:[%s933 + $0xe0] sm:$0xff]
      %v963 = vld [vmem:[%s933 + $0xe8] sm:$0xff]
      %v964 = vld [vmem:[%s933 + $0xf0] sm:$0xff]
      %v965 = vld [vmem:[%s933 + $0xf8] sm:$0xff]
      %s966 = scalar_lea.vmem %s4, 4
      %v967 = vld [vmem:[%s966] sm:$0x3]
      %v968 = vpack.c.bf16 %v551, %v547
      %v969 = vpack.c.bf16 %v553, %v549
      %v970 = vpack.c.bf16 %v561, %v557
      %v971 = vpack.c.bf16 %v563, %v559
      %v972 = vpack.c.bf16 %v571, %v567
      %v973 = vpack.c.bf16 %v573, %v569
      %v974 = vpack.c.bf16 %v581, %v577
      %v975 = vpack.c.bf16 %v583, %v579
      %v976 = vpack.c.bf16 %v591, %v587
      %v977 = vpack.c.bf16 %v593, %v589
      %v978 = vpack.c.bf16 %v601, %v597
      %v979 = vpack.c.bf16 %v603, %v599
      %v980 = vpack.c.bf16 %v611, %v607
      %v981 = vpack.c.bf16 %v613, %v609
      %v982 = vpack.c.bf16 %v621, %v617
      %v983 = vpack.c.bf16 %v623, %v619
      %v984 = vpack.c.bf16 %v631, %v627
      %v985 = vpack.c.bf16 %v633, %v629
      %v986 = vpack.c.bf16 %v641, %v637
      %v987 = vpack.c.bf16 %v643, %v639
      %v988 = vpack.c.bf16 %v651, %v647
      %v989 = vpack.c.bf16 %v653, %v649
      %v990 = vpack.c.bf16 %v661, %v657
      %v991 = vpack.c.bf16 %v663, %v659
      %v992 = vpack.c.bf16 %v671, %v667
      %v993 = vpack.c.bf16 %v673, %v669
      %v994 = vpack.c.bf16 %v681, %v677
      %v995 = vpack.c.bf16 %v683, %v679
      %v996 = vpack.c.bf16 %v691, %v687
      %v997 = vpack.c.bf16 %v693, %v689
      %v998 = vpack.c.bf16 %v701, %v697
      %v999 = vpack.c.bf16 %v703, %v699
      %v1000 = vpack.c.bf16 %v711, %v707
      %v1001 = vpack.c.bf16 %v713, %v709
      %v1002 = vpack.c.bf16 %v721, %v717
      %v1003 = vpack.c.bf16 %v723, %v719
      %v1004 = vpack.c.bf16 %v731, %v727
      %v1005 = vpack.c.bf16 %v733, %v729
      %v1006 = vpack.c.bf16 %v741, %v737
      %v1007 = vpack.c.bf16 %v743, %v739
      %v1008 = vpack.c.bf16 %v751, %v747
      %v1009 = vpack.c.bf16 %v753, %v749
      %v1010 = vpack.c.bf16 %v761, %v757
      %v1011 = vpack.c.bf16 %v763, %v759
      %v1012 = vpack.c.bf16 %v771, %v767
      %v1013 = vpack.c.bf16 %v773, %v769
      %v1014 = vpack.c.bf16 %v781, %v777
      %v1015 = vpack.c.bf16 %v783, %v779
      %v1016 = vpack.c.bf16 %v791, %v787
      %v1017 = vpack.c.bf16 %v793, %v789
      %v1018 = vpack.c.bf16 %v801, %v797
      %v1019 = vpack.c.bf16 %v803, %v799
      %v1020 = vpack.c.bf16 %v811, %v807
      %v1021 = vpack.c.bf16 %v813, %v809
      %v1022 = vpack.c.bf16 %v821, %v817
      %v1023 = vpack.c.bf16 %v823, %v819
      %v1024 = vpack.c.bf16 %v831, %v827
      %v1025 = vpack.c.bf16 %v833, %v829
      %v1026 = vpack.c.bf16 %v841, %v837
      %v1027 = vpack.c.bf16 %v843, %v839
      %v1028 = vpack.c.bf16 %v851, %v847
      %v1029 = vpack.c.bf16 %v853, %v849
      %v1030 = vpack.c.bf16 %v861, %v857
      %v1031 = vpack.c.bf16 %v863, %v859
      %v1033 = vlaneseq
      %v1034 = vshrl.u32 %v1033, 7
      %v1035 = vsub.s32 0, %v1034
      %v1036 = vrot.slane %v897, %v1035
      %v1037 = vlaneseq
      %v1038 = vshrl.u32 %v1037, 7
      %v1039 = vsub.s32 1, %v1038
      %v1040 = vrot.slane %v897, %v1039
      %v1075 = vunpack.c.l.b16 %v865
      %v1076 = vunpack.c.h.b16 %v865
      %v1077 = vunpack.c.l.b16 %v866
      %v1078 = vunpack.c.h.b16 %v866
      %v1079 = vunpack.c.l.b16 %v867
      %v1080 = vunpack.c.h.b16 %v867
      %v1081 = vunpack.c.l.b16 %v868
      %v1082 = vunpack.c.h.b16 %v868
      %v1083 = vunpack.c.l.b16 %v869
      %v1084 = vunpack.c.h.b16 %v869
      %v1085 = vunpack.c.l.b16 %v870
      %v1086 = vunpack.c.h.b16 %v870
      %v1087 = vunpack.c.l.b16 %v871
      %v1088 = vunpack.c.h.b16 %v871
      %v1089 = vunpack.c.l.b16 %v872
      %v1090 = vunpack.c.h.b16 %v872
      %v1091 = vunpack.c.l.b16 %v873
      %v1092 = vunpack.c.h.b16 %v873
      %v1093 = vunpack.c.l.b16 %v874
      %v1094 = vunpack.c.h.b16 %v874
      %v1095 = vunpack.c.l.b16 %v875
      %v1096 = vunpack.c.h.b16 %v875
      %v1097 = vunpack.c.l.b16 %v876
      %v1098 = vunpack.c.h.b16 %v876
      %v1099 = vunpack.c.l.b16 %v877
      %v1100 = vunpack.c.h.b16 %v877
      %v1101 = vunpack.c.l.b16 %v878
      %v1102 = vunpack.c.h.b16 %v878
      %v1103 = vunpack.c.l.b16 %v879
      %v1104 = vunpack.c.h.b16 %v879
      %v1105 = vunpack.c.l.b16 %v880
      %v1106 = vunpack.c.h.b16 %v880
      %v1107 = vunpack.c.l.b16 %v881
      %v1108 = vunpack.c.h.b16 %v881
      %v1109 = vunpack.c.l.b16 %v882
      %v1110 = vunpack.c.h.b16 %v882
      %v1111 = vunpack.c.l.b16 %v883
      %v1112 = vunpack.c.h.b16 %v883
      %v1113 = vunpack.c.l.b16 %v884
      %v1114 = vunpack.c.h.b16 %v884
      %v1115 = vunpack.c.l.b16 %v885
      %v1116 = vunpack.c.h.b16 %v885
      %v1117 = vunpack.c.l.b16 %v886
      %v1118 = vunpack.c.h.b16 %v886
      %v1119 = vunpack.c.l.b16 %v887
      %v1120 = vunpack.c.h.b16 %v887
      %v1121 = vunpack.c.l.b16 %v888
      %v1122 = vunpack.c.h.b16 %v888
      %v1123 = vunpack.c.l.b16 %v889
      %v1124 = vunpack.c.h.b16 %v889
      %v1125 = vunpack.c.l.b16 %v890
      %v1126 = vunpack.c.h.b16 %v890
      %v1127 = vunpack.c.l.b16 %v891
      %v1128 = vunpack.c.h.b16 %v891
      %v1129 = vunpack.c.l.b16 %v892
      %v1130 = vunpack.c.h.b16 %v892
      %v1131 = vunpack.c.l.b16 %v893
      %v1132 = vunpack.c.h.b16 %v893
      %v1133 = vunpack.c.l.b16 %v894
      %v1134 = vunpack.c.h.b16 %v894
      %v1135 = vunpack.c.l.b16 %v895
      %v1136 = vunpack.c.h.b16 %v895
      %v1137 = vunpack.c.l.b16 %v896
      %v1138 = vunpack.c.h.b16 %v896
      %v1139 = vpack.c.b16 %v1077, %v1075
      %v1140 = vpack.c.b16 %v1078, %v1076
      %v1141 = vpack.c.b16 %v1081, %v1079
      %v1142 = vpack.c.b16 %v1082, %v1080
      %v1143 = vpack.c.b16 %v1085, %v1083
      %v1144 = vpack.c.b16 %v1086, %v1084
      %v1145 = vpack.c.b16 %v1089, %v1087
      %v1146 = vpack.c.b16 %v1090, %v1088
      %v1147 = vpack.c.b16 %v1093, %v1091
      %v1148 = vpack.c.b16 %v1094, %v1092
      %v1149 = vpack.c.b16 %v1097, %v1095
      %v1150 = vpack.c.b16 %v1098, %v1096
      %v1151 = vpack.c.b16 %v1101, %v1099
      %v1152 = vpack.c.b16 %v1102, %v1100
      %v1153 = vpack.c.b16 %v1105, %v1103
      %v1154 = vpack.c.b16 %v1106, %v1104
      %v1155 = vpack.c.b16 %v1109, %v1107
      %v1156 = vpack.c.b16 %v1110, %v1108
      %v1157 = vpack.c.b16 %v1113, %v1111
      %v1158 = vpack.c.b16 %v1114, %v1112
      %v1159 = vpack.c.b16 %v1117, %v1115
      %v1160 = vpack.c.b16 %v1118, %v1116
      %v1161 = vpack.c.b16 %v1121, %v1119
      %v1162 = vpack.c.b16 %v1122, %v1120
      %v1163 = vpack.c.b16 %v1125, %v1123
      %v1164 = vpack.c.b16 %v1126, %v1124
      %v1165 = vpack.c.b16 %v1129, %v1127
      %v1166 = vpack.c.b16 %v1130, %v1128
      %v1167 = vpack.c.b16 %v1133, %v1131
      %v1168 = vpack.c.b16 %v1134, %v1132
      %v1169 = vpack.c.b16 %v1137, %v1135
      %v1170 = vpack.c.b16 %v1138, %v1136
      %1203 = vmatprep.subr.bf16.mxu0 %v1140
      %1204 = vmatpush1.bf16.msra.mxu0 %v1139
      %1205 = vmatprep.subr.bf16.mxu0 %v1142
      %1206 = vmatpush1.bf16.msra.mxu0 %v1141
      %1207 = vmatprep.subr.bf16.mxu0 %v1144
      %1208 = vmatpush1.bf16.msra.mxu0 %v1143
      %1209 = vmatprep.subr.bf16.mxu0 %v1146
      %1210 = vmatpush1.bf16.msra.mxu0 %v1145
      %1211 = vmatprep.subr.bf16.mxu0 %v1148
      %1212 = vmatpush1.bf16.msra.mxu0 %v1147
      %1213 = vmatprep.subr.bf16.mxu0 %v1150
      %1214 = vmatpush1.bf16.msra.mxu0 %v1149
      %1215 = vmatprep.subr.bf16.mxu0 %v1152
      %1216 = vmatpush1.bf16.msra.mxu0 %v1151
      %1217 = vmatprep.subr.bf16.mxu0 %v1154
      %1218 = vmatpush1.bf16.msra.mxu0 %v1153
      %1219 = vmatprep.subr.bf16.mxu0 %v1156
      %1220 = vmatpush1.bf16.msra.mxu0 %v1155
      %1221 = vmatprep.subr.bf16.mxu0 %v1158
      %1222 = vmatpush1.bf16.msra.mxu0 %v1157
      %1223 = vmatprep.subr.bf16.mxu0 %v1160
      %1224 = vmatpush1.bf16.msra.mxu0 %v1159
      %1225 = vmatprep.subr.bf16.mxu0 %v1162
      %1226 = vmatpush1.bf16.msra.mxu0 %v1161
      %1227 = vmatprep.subr.bf16.mxu0 %v1164
      %1228 = vmatpush1.bf16.msra.mxu0 %v1163
      %1229 = vmatprep.subr.bf16.mxu0 %v1166
      %1230 = vmatpush1.bf16.msra.mxu0 %v1165
      %1231 = vmatprep.subr.bf16.mxu0 %v1168
      %1232 = vmatpush1.bf16.msra.mxu0 %v1167
      %1233 = vmatprep.subr.bf16.mxu0 %v1170
      %1234 = vmatpush1.bf16.msra.mxu0 %v1169
      %1235 = vmatprep.mubr.bf16.mxu0 %v969
      %1236 = vmatmul.mubr.bf16.gmra.mrb[0].mxu0 %v968
      %v1237 = vpop.f32.mrb[0].mxu0
      %v1238 = vadd.f32 %v1036, %v1237
      %v1239 = vpop.f32.mrb[0].mxu0
      %v1240 = vadd.f32 %v1040, %v1239
      %v1241 = vpop.f32.mrb[0].mxu0
      %v1242 = vadd.f32 %v1036, %v1241
      %v1243 = vpop.f32.mrb[0].mxu0
      %v1244 = vadd.f32 %v1040, %v1243
      %1245 = vmatprep.mubr.bf16.mxu0 %v971
      %1246 = vmatmul.mubr.bf16.gmra.mrb[0].mxu0 %v970
      %v1247 = vpop.f32.mrb[0].mxu0
      %v1248 = vadd.f32 %v1036, %v1247
      %v1249 = vpop.f32.mrb[0].mxu0
      %v1250 = vadd.f32 %v1040, %v1249
      %v1251 = vpop.f32.mrb[0].mxu0
      %v1252 = vadd.f32 %v1036, %v1251
      %v1253 = vpop.f32.mrb[0].mxu0
      %v1254 = vadd.f32 %v1040, %v1253
      %1255 = vmatprep.mubr.bf16.mxu0 %v973
      %1256 = vmatmul.mubr.bf16.gmra.mrb[0].mxu0 %v972
      %v1257 = vpop.f32.mrb[0].mxu0
      %v1258 = vadd.f32 %v1036, %v1257
      %v1259 = vpop.f32.mrb[0].mxu0
      %v1260 = vadd.f32 %v1040, %v1259
      %v1261 = vpop.f32.mrb[0].mxu0
      %v1262 = vadd.f32 %v1036, %v1261
      %v1263 = vpop.f32.mrb[0].mxu0
      %v1264 = vadd.f32 %v1040, %v1263
      %1265 = vmatprep.mubr.bf16.mxu0 %v975
      %1266 = vmatmul.mubr.bf16.gmra.mrb[0].mxu0 %v974
      %v1267 = vpop.f32.mrb[0].mxu0
      %v1268 = vadd.f32 %v1036, %v1267
      %v1269 = vpop.f32.mrb[0].mxu0
      %v1270 = vadd.f32 %v1040, %v1269
      %v1271 = vpop.f32.mrb[0].mxu0
      %v1272 = vadd.f32 %v1036, %v1271
      %v1273 = vpop.f32.mrb[0].mxu0
      %v1274 = vadd.f32 %v1040, %v1273
      %1275 = vmatprep.mubr.bf16.mxu0 %v977
      %1276 = vmatmul.mubr.bf16.gmra.mrb[0].mxu0 %v976
      %v1277 = vpop.f32.mrb[0].mxu0
      %v1278 = vadd.f32 %v1036, %v1277
      %v1279 = vpop.f32.mrb[0].mxu0
      %v1280 = vadd.f32 %v1040, %v1279
      %v1281 = vpop.f32.mrb[0].mxu0
      %v1282 = vadd.f32 %v1036, %v1281
      %v1283 = vpop.f32.mrb[0].mxu0
      %v1284 = vadd.f32 %v1040, %v1283
      %1285 = vmatprep.mubr.bf16.mxu0 %v979
      %1286 = vmatmul.mubr.bf16.gmra.mrb[0].mxu0 %v978
      %v1287 = vpop.f32.mrb[0].mxu0
      %v1288 = vadd.f32 %v1036, %v1287
      %v1289 = vpop.f32.mrb[0].mxu0
      %v1290 = vadd.f32 %v1040, %v1289
      %v1291 = vpop.f32.mrb[0].mxu0
      %v1292 = vadd.f32 %v1036, %v1291
      %v1293 = vpop.f32.mrb[0].mxu0
      %v1294 = vadd.f32 %v1040, %v1293
      %1295 = vmatprep.mubr.bf16.mxu0 %v981
      %1296 = vmatmul.mubr.bf16.gmra.mrb[0].mxu0 %v980
      %v1297 = vpop.f32.mrb[0].mxu0
      %v1298 = vadd.f32 %v1036, %v1297
      %v1299 = vpop.f32.mrb[0].mxu0
      %v1300 = vadd.f32 %v1040, %v1299
      %v1301 = vpop.f32.mrb[0].mxu0
      %v1302 = vadd.f32 %v1036, %v1301
      %v1303 = vpop.f32.mrb[0].mxu0
      %v1304 = vadd.f32 %v1040, %v1303
      %1305 = vmatprep.mubr.bf16.mxu0 %v983
      %1306 = vmatmul.mubr.bf16.gmra.mrb[0].mxu0 %v982
      %v1307 = vpop.f32.mrb[0].mxu0
      %v1308 = vadd.f32 %v1036, %v1307
      %v1309 = vpop.f32.mrb[0].mxu0
      %v1310 = vadd.f32 %v1040, %v1309
      %v1311 = vpop.f32.mrb[0].mxu0
      %v1312 = vadd.f32 %v1036, %v1311
      %v1313 = vpop.f32.mrb[0].mxu0
      %v1314 = vadd.f32 %v1040, %v1313
      %1315 = vmatprep.mubr.bf16.mxu0 %v985
      %1316 = vmatmul.mubr.bf16.gmra.mrb[0].mxu0 %v984
      %v1317 = vpop.f32.mrb[0].mxu0
      %v1318 = vadd.f32 %v1036, %v1317
      %v1319 = vpop.f32.mrb[0].mxu0
      %v1320 = vadd.f32 %v1040, %v1319
      %v1321 = vpop.f32.mrb[0].mxu0
      %v1322 = vadd.f32 %v1036, %v1321
      %v1323 = vpop.f32.mrb[0].mxu0
      %v1324 = vadd.f32 %v1040, %v1323
      %1325 = vmatprep.mubr.bf16.mxu0 %v987
      %1326 = vmatmul.mubr.bf16.gmra.mrb[0].mxu0 %v986
      %v1327 = vpop.f32.mrb[0].mxu0
      %v1328 = vadd.f32 %v1036, %v1327
      %v1329 = vpop.f32.mrb[0].mxu0
      %v1330 = vadd.f32 %v1040, %v1329
      %v1331 = vpop.f32.mrb[0].mxu0
      %v1332 = vadd.f32 %v1036, %v1331
      %v1333 = vpop.f32.mrb[0].mxu0
      %v1334 = vadd.f32 %v1040, %v1333
      %1335 = vmatprep.mubr.bf16.mxu0 %v989
      %1336 = vmatmul.mubr.bf16.gmra.mrb[0].mxu0 %v988
      %v1337 = vpop.f32.mrb[0].mxu0
      %v1338 = vadd.f32 %v1036, %v1337
      %v1339 = vpop.f32.mrb[0].mxu0
      %v1340 = vadd.f32 %v1040, %v1339
      %v1341 = vpop.f32.mrb[0].mxu0
      %v1342 = vadd.f32 %v1036, %v1341
      %v1343 = vpop.f32.mrb[0].mxu0
      %v1344 = vadd.f32 %v1040, %v1343
      %1345 = vmatprep.mubr.bf16.mxu0 %v991
      %1346 = vmatmul.mubr.bf16.gmra.mrb[0].mxu0 %v990
      %v1347 = vpop.f32.mrb[0].mxu0
      %v1348 = vadd.f32 %v1036, %v1347
      %v1349 = vpop.f32.mrb[0].mxu0
      %v1350 = vadd.f32 %v1040, %v1349
      %v1351 = vpop.f32.mrb[0].mxu0
      %v1352 = vadd.f32 %v1036, %v1351
      %v1353 = vpop.f32.mrb[0].mxu0
      %v1354 = vadd.f32 %v1040, %v1353
      %1355 = vmatprep.mubr.bf16.mxu0 %v993
      %1356 = vmatmul.mubr.bf16.gmra.mrb[0].mxu0 %v992
      %v1357 = vpop.f32.mrb[0].mxu0
      %v1358 = vadd.f32 %v1036, %v1357
      %v1359 = vpop.f32.mrb[0].mxu0
      %v1360 = vadd.f32 %v1040, %v1359
      %v1361 = vpop.f32.mrb[0].mxu0
      %v1362 = vadd.f32 %v1036, %v1361
      %v1363 = vpop.f32.mrb[0].mxu0
      %v1364 = vadd.f32 %v1040, %v1363
      %1365 = vmatprep.mubr.bf16.mxu0 %v995
      %1366 = vmatmul.mubr.bf16.gmra.mrb[0].mxu0 %v994
      %v1367 = vpop.f32.mrb[0].mxu0
      %v1368 = vadd.f32 %v1036, %v1367
      %v1369 = vpop.f32.mrb[0].mxu0
      %v1370 = vadd.f32 %v1040, %v1369
      %v1371 = vpop.f32.mrb[0].mxu0
      %v1372 = vadd.f32 %v1036, %v1371
      %v1373 = vpop.f32.mrb[0].mxu0
      %v1374 = vadd.f32 %v1040, %v1373
      %1375 = vmatprep.mubr.bf16.mxu0 %v997
      %1376 = vmatmul.mubr.bf16.gmra.mrb[0].mxu0 %v996
      %v1377 = vpop.f32.mrb[0].mxu0
      %v1378 = vadd.f32 %v1036, %v1377
      %v1379 = vpop.f32.mrb[0].mxu0
      %v1380 = vadd.f32 %v1040, %v1379
      %v1381 = vpop.f32.mrb[0].mxu0
      %v1382 = vadd.f32 %v1036, %v1381
      %v1383 = vpop.f32.mrb[0].mxu0
      %v1384 = vadd.f32 %v1040, %v1383
      %1385 = vmatprep.mubr.bf16.mxu0 %v999
      %1386 = vmatmul.mubr.bf16.gmra.mrb[0].mxu0 %v998
      %v1387 = vpop.f32.mrb[0].mxu0
      %v1388 = vadd.f32 %v1036, %v1387
      %v1389 = vpop.f32.mrb[0].mxu0
      %v1390 = vadd.f32 %v1040, %v1389
      %v1391 = vpop.f32.mrb[0].mxu0
      %v1392 = vadd.f32 %v1036, %v1391
      %v1393 = vpop.f32.mrb[0].mxu0
      %v1394 = vadd.f32 %v1040, %v1393
      %1395 = vmatprep.mubr.bf16.mxu0 %v1001
      %1396 = vmatmul.mubr.bf16.gmra.mrb[0].mxu0 %v1000
      %v1397 = vpop.f32.mrb[0].mxu0
      %v1398 = vadd.f32 %v1036, %v1397
      %v1399 = vpop.f32.mrb[0].mxu0
      %v1400 = vadd.f32 %v1040, %v1399
      %v1401 = vpop.f32.mrb[0].mxu0
      %v1402 = vadd.f32 %v1036, %v1401
      %v1403 = vpop.f32.mrb[0].mxu0
      %v1404 = vadd.f32 %v1040, %v1403
      %1405 = vmatprep.mubr.bf16.mxu0 %v1003
      %1406 = vmatmul.mubr.bf16.gmra.mrb[0].mxu0 %v1002
      %v1407 = vpop.f32.mrb[0].mxu0
      %v1408 = vadd.f32 %v1036, %v1407
      %v1409 = vpop.f32.mrb[0].mxu0
      %v1410 = vadd.f32 %v1040, %v1409
      %v1411 = vpop.f32.mrb[0].mxu0
      %v1412 = vadd.f32 %v1036, %v1411
      %v1413 = vpop.f32.mrb[0].mxu0
      %v1414 = vadd.f32 %v1040, %v1413
      %1415 = vmatprep.mubr.bf16.mxu0 %v1005
      %1416 = vmatmul.mubr.bf16.gmra.mrb[0].mxu0 %v1004
      %v1417 = vpop.f32.mrb[0].mxu0
      %v1418 = vadd.f32 %v1036, %v1417
      %v1419 = vpop.f32.mrb[0].mxu0
      %v1420 = vadd.f32 %v1040, %v1419
      %v1421 = vpop.f32.mrb[0].mxu0
      %v1422 = vadd.f32 %v1036, %v1421
      %v1423 = vpop.f32.mrb[0].mxu0
      %v1424 = vadd.f32 %v1040, %v1423
      %1425 = vmatprep.mubr.bf16.mxu0 %v1007
      %1426 = vmatmul.mubr.bf16.gmra.mrb[0].mxu0 %v1006
      %v1427 = vpop.f32.mrb[0].mxu0
      %v1428 = vadd.f32 %v1036, %v1427
      %v1429 = vpop.f32.mrb[0].mxu0
      %v1430 = vadd.f32 %v1040, %v1429
      %v1431 = vpop.f32.mrb[0].mxu0
      %v1432 = vadd.f32 %v1036, %v1431
      %v1433 = vpop.f32.mrb[0].mxu0
      %v1434 = vadd.f32 %v1040, %v1433
      %1435 = vmatprep.mubr.bf16.mxu0 %v1009
      %1436 = vmatmul.mubr.bf16.gmra.mrb[0].mxu0 %v1008
      %v1437 = vpop.f32.mrb[0].mxu0
      %v1438 = vadd.f32 %v1036, %v1437
      %v1439 = vpop.f32.mrb[0].mxu0
      %v1440 = vadd.f32 %v1040, %v1439
      %v1441 = vpop.f32.mrb[0].mxu0
      %v1442 = vadd.f32 %v1036, %v1441
      %v1443 = vpop.f32.mrb[0].mxu0
      %v1444 = vadd.f32 %v1040, %v1443
      %1445 = vmatprep.mubr.bf16.mxu0 %v1011
      %1446 = vmatmul.mubr.bf16.gmra.mrb[0].mxu0 %v1010
      %v1447 = vpop.f32.mrb[0].mxu0
      %v1448 = vadd.f32 %v1036, %v1447
      %v1449 = vpop.f32.mrb[0].mxu0
      %v1450 = vadd.f32 %v1040, %v1449
      %v1451 = vpop.f32.mrb[0].mxu0
      %v1452 = vadd.f32 %v1036, %v1451
      %v1453 = vpop.f32.mrb[0].mxu0
      %v1454 = vadd.f32 %v1040, %v1453
      %1455 = vmatprep.mubr.bf16.mxu0 %v1013
      %1456 = vmatmul.mubr.bf16.gmra.mrb[0].mxu0 %v1012
      %v1457 = vpop.f32.mrb[0].mxu0
      %v1458 = vadd.f32 %v1036, %v1457
      %v1459 = vpop.f32.mrb[0].mxu0
      %v1460 = vadd.f32 %v1040, %v1459
      %v1461 = vpop.f32.mrb[0].mxu0
      %v1462 = vadd.f32 %v1036, %v1461
      %v1463 = vpop.f32.mrb[0].mxu0
      %v1464 = vadd.f32 %v1040, %v1463
      %1465 = vmatprep.mubr.bf16.mxu0 %v1015
      %1466 = vmatmul.mubr.bf16.gmra.mrb[0].mxu0 %v1014
      %v1467 = vpop.f32.mrb[0].mxu0
      %v1468 = vadd.f32 %v1036, %v1467
      %v1469 = vpop.f32.mrb[0].mxu0
      %v1470 = vadd.f32 %v1040, %v1469
      %v1471 = vpop.f32.mrb[0].mxu0
      %v1472 = vadd.f32 %v1036, %v1471
      %v1473 = vpop.f32.mrb[0].mxu0
      %v1474 = vadd.f32 %v1040, %v1473
      %1475 = vmatprep.mubr.bf16.mxu0 %v1017
      %1476 = vmatmul.mubr.bf16.gmra.mrb[0].mxu0 %v1016
      %v1477 = vpop.f32.mrb[0].mxu0
      %v1478 = vadd.f32 %v1036, %v1477
      %v1479 = vpop.f32.mrb[0].mxu0
      %v1480 = vadd.f32 %v1040, %v1479
      %v1481 = vpop.f32.mrb[0].mxu0
      %v1482 = vadd.f32 %v1036, %v1481
      %v1483 = vpop.f32.mrb[0].mxu0
      %v1484 = vadd.f32 %v1040, %v1483
      %1485 = vmatprep.mubr.bf16.mxu0 %v1019
      %1486 = vmatmul.mubr.bf16.gmra.mrb[0].mxu0 %v1018
      %v1487 = vpop.f32.mrb[0].mxu0
      %v1488 = vadd.f32 %v1036, %v1487
      %v1489 = vpop.f32.mrb[0].mxu0
      %v1490 = vadd.f32 %v1040, %v1489
      %v1491 = vpop.f32.mrb[0].mxu0
      %v1492 = vadd.f32 %v1036, %v1491
      %v1493 = vpop.f32.mrb[0].mxu0
      %v1494 = vadd.f32 %v1040, %v1493
      %1495 = vmatprep.mubr.bf16.mxu0 %v1021
      %1496 = vmatmul.mubr.bf16.gmra.mrb[0].mxu0 %v1020
      %v1497 = vpop.f32.mrb[0].mxu0
      %v1498 = vadd.f32 %v1036, %v1497
      %v1499 = vpop.f32.mrb[0].mxu0
      %v1500 = vadd.f32 %v1040, %v1499
      %v1501 = vpop.f32.mrb[0].mxu0
      %v1502 = vadd.f32 %v1036, %v1501
      %v1503 = vpop.f32.mrb[0].mxu0
      %v1504 = vadd.f32 %v1040, %v1503
      %1505 = vmatprep.mubr.bf16.mxu0 %v1023
      %1506 = vmatmul.mubr.bf16.gmra.mrb[0].mxu0 %v1022
      %v1507 = vpop.f32.mrb[0].mxu0
      %v1508 = vadd.f32 %v1036, %v1507
      %v1509 = vpop.f32.mrb[0].mxu0
      %v1510 = vadd.f32 %v1040, %v1509
      %v1511 = vpop.f32.mrb[0].mxu0
      %v1512 = vadd.f32 %v1036, %v1511
      %v1513 = vpop.f32.mrb[0].mxu0
      %v1514 = vadd.f32 %v1040, %v1513
      %1515 = vmatprep.mubr.bf16.mxu0 %v1025
      %1516 = vmatmul.mubr.bf16.gmra.mrb[0].mxu0 %v1024
      %v1517 = vpop.f32.mrb[0].mxu0
      %v1518 = vadd.f32 %v1036, %v1517
      %v1519 = vpop.f32.mrb[0].mxu0
      %v1520 = vadd.f32 %v1040, %v1519
      %v1521 = vpop.f32.mrb[0].mxu0
      %v1522 = vadd.f32 %v1036, %v1521
      %v1523 = vpop.f32.mrb[0].mxu0
      %v1524 = vadd.f32 %v1040, %v1523
      %1525 = vmatprep.mubr.bf16.mxu0 %v1027
      %1526 = vmatmul.mubr.bf16.gmra.mrb[0].mxu0 %v1026
      %v1527 = vpop.f32.mrb[0].mxu0
      %v1528 = vadd.f32 %v1036, %v1527
      %v1529 = vpop.f32.mrb[0].mxu0
      %v1530 = vadd.f32 %v1040, %v1529
      %v1531 = vpop.f32.mrb[0].mxu0
      %v1532 = vadd.f32 %v1036, %v1531
      %v1533 = vpop.f32.mrb[0].mxu0
      %v1534 = vadd.f32 %v1040, %v1533
      %1535 = vmatprep.mubr.bf16.mxu0 %v1029
      %1536 = vmatmul.mubr.bf16.gmra.mrb[0].mxu0 %v1028
      %v1537 = vpop.f32.mrb[0].mxu0
      %v1538 = vadd.f32 %v1036, %v1537
      %v1539 = vpop.f32.mrb[0].mxu0
      %v1540 = vadd.f32 %v1040, %v1539
      %v1541 = vpop.f32.mrb[0].mxu0
      %v1542 = vadd.f32 %v1036, %v1541
      %v1543 = vpop.f32.mrb[0].mxu0
      %v1544 = vadd.f32 %v1040, %v1543
      %1545 = vmatprep.mubr.bf16.mxu0 %v1031
      %1546 = vmatmul.mubr.bf16.gmra.mrb[0].mxu0 %v1030
      %v1547 = vpop.f32.mrb[0].mxu0
      %v1548 = vadd.f32 %v1036, %v1547
      %v1549 = vpop.f32.mrb[0].mxu0
      %v1550 = vadd.f32 %v1040, %v1549
      %v1551 = vpop.f32.mrb[0].mxu0
      %v1552 = vadd.f32 %v1036, %v1551
      %v1553 = vpop.f32.mrb[0].mxu0
      %v1554 = vadd.f32 %v1040, %v1553
      %1555 = vdwg.mxu0
      %v1556 = vmax.f32 %v1238, 0.0
      %v1557 = vmax.f32 %v1240, 0.0
      %v1558 = vmax.f32 %v1242, 0.0
      %v1559 = vmax.f32 %v1244, 0.0
      %v1560 = vmax.f32 %v1248, 0.0
      %v1561 = vmax.f32 %v1250, 0.0
      %v1562 = vmax.f32 %v1252, 0.0
      %v1563 = vmax.f32 %v1254, 0.0
      %v1564 = vmax.f32 %v1258, 0.0
      %v1565 = vmax.f32 %v1260, 0.0
      %v1566 = vmax.f32 %v1262, 0.0
      %v1567 = vmax.f32 %v1264, 0.0
      %v1568 = vmax.f32 %v1268, 0.0
      %v1569 = vmax.f32 %v1270, 0.0
      %v1570 = vmax.f32 %v1272, 0.0
      %v1571 = vmax.f32 %v1274, 0.0
      %v1572 = vmax.f32 %v1278, 0.0
      %v1573 = vmax.f32 %v1280, 0.0
      %v1574 = vmax.f32 %v1282, 0.0
      %v1575 = vmax.f32 %v1284, 0.0
      %v1576 = vmax.f32 %v1288, 0.0
      %v1577 = vmax.f32 %v1290, 0.0
      %v1578 = vmax.f32 %v1292, 0.0
      %v1579 = vmax.f32 %v1294, 0.0
      %v1580 = vmax.f32 %v1298, 0.0
      %v1581 = vmax.f32 %v1300, 0.0
      %v1582 = vmax.f32 %v1302, 0.0
      %v1583 = vmax.f32 %v1304, 0.0
      %v1584 = vmax.f32 %v1308, 0.0
      %v1585 = vmax.f32 %v1310, 0.0
      %v1586 = vmax.f32 %v1312, 0.0
      %v1587 = vmax.f32 %v1314, 0.0
      %v1588 = vmax.f32 %v1318, 0.0
      %v1589 = vmax.f32 %v1320, 0.0
      %v1590 = vmax.f32 %v1322, 0.0
      %v1591 = vmax.f32 %v1324, 0.0
      %v1592 = vmax.f32 %v1328, 0.0
      %v1593 = vmax.f32 %v1330, 0.0
      %v1594 = vmax.f32 %v1332, 0.0
      %v1595 = vmax.f32 %v1334, 0.0
      %v1596 = vmax.f32 %v1338, 0.0
      %v1597 = vmax.f32 %v1340, 0.0
      %v1598 = vmax.f32 %v1342, 0.0
      %v1599 = vmax.f32 %v1344, 0.0
      %v1600 = vmax.f32 %v1348, 0.0
      %v1601 = vmax.f32 %v1350, 0.0
      %v1602 = vmax.f32 %v1352, 0.0
      %v1603 = vmax.f32 %v1354, 0.0
      %v1604 = vmax.f32 %v1358, 0.0
      %v1605 = vmax.f32 %v1360, 0.0
      %v1606 = vmax.f32 %v1362, 0.0
      %v1607 = vmax.f32 %v1364, 0.0
      %v1608 = vmax.f32 %v1368, 0.0
      %v1609 = vmax.f32 %v1370, 0.0
      %v1610 = vmax.f32 %v1372, 0.0
      %v1611 = vmax.f32 %v1374, 0.0
      %v1612 = vmax.f32 %v1378, 0.0
      %v1613 = vmax.f32 %v1380, 0.0
      %v1614 = vmax.f32 %v1382, 0.0
      %v1615 = vmax.f32 %v1384, 0.0
      %v1616 = vmax.f32 %v1388, 0.0
      %v1617 = vmax.f32 %v1390, 0.0
      %v1618 = vmax.f32 %v1392, 0.0
      %v1619 = vmax.f32 %v1394, 0.0
      %v1620 = vmax.f32 %v1398, 0.0
      %v1621 = vmax.f32 %v1400, 0.0
      %v1622 = vmax.f32 %v1402, 0.0
      %v1623 = vmax.f32 %v1404, 0.0
      %v1624 = vmax.f32 %v1408, 0.0
      %v1625 = vmax.f32 %v1410, 0.0
      %v1626 = vmax.f32 %v1412, 0.0
      %v1627 = vmax.f32 %v1414, 0.0
      %v1628 = vmax.f32 %v1418, 0.0
      %v1629 = vmax.f32 %v1420, 0.0
      %v1630 = vmax.f32 %v1422, 0.0
      %v1631 = vmax.f32 %v1424, 0.0
      %v1632 = vmax.f32 %v1428, 0.0
      %v1633 = vmax.f32 %v1430, 0.0
      %v1634 = vmax.f32 %v1432, 0.0
      %v1635 = vmax.f32 %v1434, 0.0
      %v1636 = vmax.f32 %v1438, 0.0
      %v1637 = vmax.f32 %v1440, 0.0
      %v1638 = vmax.f32 %v1442, 0.0
      %v1639 = vmax.f32 %v1444, 0.0
      %v1640 = vmax.f32 %v1448, 0.0
      %v1641 = vmax.f32 %v1450, 0.0
      %v1642 = vmax.f32 %v1452, 0.0
      %v1643 = vmax.f32 %v1454, 0.0
      %v1644 = vmax.f32 %v1458, 0.0
      %v1645 = vmax.f32 %v1460, 0.0
      %v1646 = vmax.f32 %v1462, 0.0
      %v1647 = vmax.f32 %v1464, 0.0
      %v1648 = vmax.f32 %v1468, 0.0
      %v1649 = vmax.f32 %v1470, 0.0
      %v1650 = vmax.f32 %v1472, 0.0
      %v1651 = vmax.f32 %v1474, 0.0
      %v1652 = vmax.f32 %v1478, 0.0
      %v1653 = vmax.f32 %v1480, 0.0
      %v1654 = vmax.f32 %v1482, 0.0
      %v1655 = vmax.f32 %v1484, 0.0
      %v1656 = vmax.f32 %v1488, 0.0
      %v1657 = vmax.f32 %v1490, 0.0
      %v1658 = vmax.f32 %v1492, 0.0
      %v1659 = vmax.f32 %v1494, 0.0
      %v1660 = vmax.f32 %v1498, 0.0
      %v1661 = vmax.f32 %v1500, 0.0
      %v1662 = vmax.f32 %v1502, 0.0
      %v1663 = vmax.f32 %v1504, 0.0
      %v1664 = vmax.f32 %v1508, 0.0
      %v1665 = vmax.f32 %v1510, 0.0
      %v1666 = vmax.f32 %v1512, 0.0
      %v1667 = vmax.f32 %v1514, 0.0
      %v1668 = vmax.f32 %v1518, 0.0
      %v1669 = vmax.f32 %v1520, 0.0
      %v1670 = vmax.f32 %v1522, 0.0
      %v1671 = vmax.f32 %v1524, 0.0
      %v1672 = vmax.f32 %v1528, 0.0
      %v1673 = vmax.f32 %v1530, 0.0
      %v1674 = vmax.f32 %v1532, 0.0
      %v1675 = vmax.f32 %v1534, 0.0
      %v1676 = vmax.f32 %v1538, 0.0
      %v1677 = vmax.f32 %v1540, 0.0
      %v1678 = vmax.f32 %v1542, 0.0
      %v1679 = vmax.f32 %v1544, 0.0
      %v1680 = vmax.f32 %v1548, 0.0
      %v1681 = vmax.f32 %v1550, 0.0
      %v1682 = vmax.f32 %v1552, 0.0
      %v1683 = vmax.f32 %v1554, 0.0
      %v1684 = vadd.f32 %v547, %v1556
      %v1685 = vadd.f32 %v549, %v1557
      %v1686 = vadd.f32 %v551, %v1558
      %v1687 = vadd.f32 %v553, %v1559
      %v1688 = vadd.f32 %v557, %v1560
      %v1689 = vadd.f32 %v559, %v1561
      %v1690 = vadd.f32 %v561, %v1562
      %v1691 = vadd.f32 %v563, %v1563
      %v1692 = vadd.f32 %v567, %v1564
      %v1693 = vadd.f32 %v569, %v1565
      %v1694 = vadd.f32 %v571, %v1566
      %v1695 = vadd.f32 %v573, %v1567
      %v1696 = vadd.f32 %v577, %v1568
      %v1697 = vadd.f32 %v579, %v1569
      %v1698 = vadd.f32 %v581, %v1570
      %v1699 = vadd.f32 %v583, %v1571
      %v1700 = vadd.f32 %v587, %v1572
      %v1701 = vadd.f32 %v589, %v1573
      %v1702 = vadd.f32 %v591, %v1574
      %v1703 = vadd.f32 %v593, %v1575
      %v1704 = vadd.f32 %v597, %v1576
      %v1705 = vadd.f32 %v599, %v1577
      %v1706 = vadd.f32 %v601, %v1578
      %v1707 = vadd.f32 %v603, %v1579
      %v1708 = vadd.f32 %v607, %v1580
      %v1709 = vadd.f32 %v609, %v1581
      %v1710 = vadd.f32 %v611, %v1582
      %v1711 = vadd.f32 %v613, %v1583
      %v1712 = vadd.f32 %v617, %v1584
      %v1713 = vadd.f32 %v619, %v1585
      %v1714 = vadd.f32 %v621, %v1586
      %v1715 = vadd.f32 %v623, %v1587
      %v1716 = vadd.f32 %v627, %v1588
      %v1717 = vadd.f32 %v629, %v1589
      %v1718 = vadd.f32 %v631, %v1590
      %v1719 = vadd.f32 %v633, %v1591
      %v1720 = vadd.f32 %v637, %v1592
      %v1721 = vadd.f32 %v639, %v1593
      %v1722 = vadd.f32 %v641, %v1594
      %v1723 = vadd.f32 %v643, %v1595
      %v1724 = vadd.f32 %v647, %v1596
      %v1725 = vadd.f32 %v649, %v1597
      %v1726 = vadd.f32 %v651, %v1598
      %v1727 = vadd.f32 %v653, %v1599
      %v1728 = vadd.f32 %v657, %v1600
      %v1729 = vadd.f32 %v659, %v1601
      %v1730 = vadd.f32 %v661, %v1602
      %v1731 = vadd.f32 %v663, %v1603
      %v1732 = vadd.f32 %v667, %v1604
      %v1733 = vadd.f32 %v669, %v1605
      %v1734 = vadd.f32 %v671, %v1606
      %v1735 = vadd.f32 %v673, %v1607
      %v1736 = vadd.f32 %v677, %v1608
      %v1737 = vadd.f32 %v679, %v1609
      %v1738 = vadd.f32 %v681, %v1610
      %v1739 = vadd.f32 %v683, %v1611
      %v1740 = vadd.f32 %v687, %v1612
      %v1741 = vadd.f32 %v689, %v1613
      %v1742 = vadd.f32 %v691, %v1614
      %v1743 = vadd.f32 %v693, %v1615
      %v1744 = vadd.f32 %v697, %v1616
      %v1745 = vadd.f32 %v699, %v1617
      %v1746 = vadd.f32 %v701, %v1618
      %v1747 = vadd.f32 %v703, %v1619
      %v1748 = vadd.f32 %v707, %v1620
      %v1749 = vadd.f32 %v709, %v1621
      %v1750 = vadd.f32 %v711, %v1622
      %v1751 = vadd.f32 %v713, %v1623
      %v1752 = vadd.f32 %v717, %v1624
      %v1753 = vadd.f32 %v719, %v1625
      %v1754 = vadd.f32 %v721, %v1626
      %v1755 = vadd.f32 %v723, %v1627
      %v1756 = vadd.f32 %v727, %v1628
      %v1757 = vadd.f32 %v729, %v1629
      %v1758 = vadd.f32 %v731, %v1630
      %v1759 = vadd.f32 %v733, %v1631
      %v1760 = vadd.f32 %v737, %v1632
      %v1761 = vadd.f32 %v739, %v1633
      %v1762 = vadd.f32 %v741, %v1634
      %v1763 = vadd.f32 %v743, %v1635
      %v1764 = vadd.f32 %v747, %v1636
      %v1765 = vadd.f32 %v749, %v1637
      %v1766 = vadd.f32 %v751, %v1638
      %v1767 = vadd.f32 %v753, %v1639
      %v1768 = vadd.f32 %v757, %v1640
      %v1769 = vadd.f32 %v759, %v1641
      %v1770 = vadd.f32 %v761, %v1642
      %v1771 = vadd.f32 %v763, %v1643
      %v1772 = vadd.f32 %v767, %v1644
      %v1773 = vadd.f32 %v769, %v1645
      %v1774 = vadd.f32 %v771, %v1646
      %v1775 = vadd.f32 %v773, %v1647
      %v1776 = vadd.f32 %v777, %v1648
      %v1777 = vadd.f32 %v779, %v1649
      %v1778 = vadd.f32 %v781, %v1650
      %v1779 = vadd.f32 %v783, %v1651
      %v1780 = vadd.f32 %v787, %v1652
      %v1781 = vadd.f32 %v789, %v1653
      %v1782 = vadd.f32 %v791, %v1654
      %v1783 = vadd.f32 %v793, %v1655
      %v1784 = vadd.f32 %v797, %v1656
      %v1785 = vadd.f32 %v799, %v1657
      %v1786 = vadd.f32 %v801, %v1658
      %v1787 = vadd.f32 %v803, %v1659
      %v1788 = vadd.f32 %v807, %v1660
      %v1789 = vadd.f32 %v809, %v1661
      %v1790 = vadd.f32 %v811, %v1662
      %v1791 = vadd.f32 %v813, %v1663
      %v1792 = vadd.f32 %v817, %v1664
      %v1793 = vadd.f32 %v819, %v1665
      %v1794 = vadd.f32 %v821, %v1666
      %v1795 = vadd.f32 %v823, %v1667
      %v1796 = vadd.f32 %v827, %v1668
      %v1797 = vadd.f32 %v829, %v1669
      %v1798 = vadd.f32 %v831, %v1670
      %v1799 = vadd.f32 %v833, %v1671
      %v1800 = vadd.f32 %v837, %v1672
      %v1801 = vadd.f32 %v839, %v1673
      %v1802 = vadd.f32 %v841, %v1674
      %v1803 = vadd.f32 %v843, %v1675
      %v1804 = vadd.f32 %v847, %v1676
      %v1805 = vadd.f32 %v849, %v1677
      %v1806 = vadd.f32 %v851, %v1678
      %v1807 = vadd.f32 %v853, %v1679
      %v1808 = vadd.f32 %v857, %v1680
      %v1809 = vadd.f32 %v859, %v1681
      %v1810 = vadd.f32 %v861, %v1682
      %v1811 = vadd.f32 %v863, %v1683
      %v1812 = vpack.c.bf16 %v1686, %v1684
      %v1813 = vpack.c.bf16 %v1687, %v1685
      %v1814 = vpack.c.bf16 %v1690, %v1688
      %v1815 = vpack.c.bf16 %v1691, %v1689
      %v1816 = vpack.c.bf16 %v1694, %v1692
      %v1817 = vpack.c.bf16 %v1695, %v1693
      %v1818 = vpack.c.bf16 %v1698, %v1696
      %v1819 = vpack.c.bf16 %v1699, %v1697
      %v1820 = vpack.c.bf16 %v1702, %v1700
      %v1821 = vpack.c.bf16 %v1703, %v1701
      %v1822 = vpack.c.bf16 %v1706, %v1704
      %v1823 = vpack.c.bf16 %v1707, %v1705
      %v1824 = vpack.c.bf16 %v1710, %v1708
      %v1825 = vpack.c.bf16 %v1711, %v1709
      %v1826 = vpack.c.bf16 %v1714, %v1712
      %v1827 = vpack.c.bf16 %v1715, %v1713
      %v1828 = vpack.c.bf16 %v1718, %v1716
      %v1829 = vpack.c.bf16 %v1719, %v1717
      %v1830 = vpack.c.bf16 %v1722, %v1720
      %v1831 = vpack.c.bf16 %v1723, %v1721
      %v1832 = vpack.c.bf16 %v1726, %v1724
      %v1833 = vpack.c.bf16 %v1727, %v1725
      %v1834 = vpack.c.bf16 %v1730, %v1728
      %v1835 = vpack.c.bf16 %v1731, %v1729
      %v1836 = vpack.c.bf16 %v1734, %v1732
      %v1837 = vpack.c.bf16 %v1735, %v1733
      %v1838 = vpack.c.bf16 %v1738, %v1736
      %v1839 = vpack.c.bf16 %v1739, %v1737
      %v1840 = vpack.c.bf16 %v1742, %v1740
      %v1841 = vpack.c.bf16 %v1743, %v1741
      %v1842 = vpack.c.bf16 %v1746, %v1744
      %v1843 = vpack.c.bf16 %v1747, %v1745
      %v1844 = vpack.c.bf16 %v1750, %v1748
      %v1845 = vpack.c.bf16 %v1751, %v1749
      %v1846 = vpack.c.bf16 %v1754, %v1752
      %v1847 = vpack.c.bf16 %v1755, %v1753
      %v1848 = vpack.c.bf16 %v1758, %v1756
      %v1849 = vpack.c.bf16 %v1759, %v1757
      %v1850 = vpack.c.bf16 %v1762, %v1760
      %v1851 = vpack.c.bf16 %v1763, %v1761
      %v1852 = vpack.c.bf16 %v1766, %v1764
      %v1853 = vpack.c.bf16 %v1767, %v1765
      %v1854 = vpack.c.bf16 %v1770, %v1768
      %v1855 = vpack.c.bf16 %v1771, %v1769
      %v1856 = vpack.c.bf16 %v1774, %v1772
      %v1857 = vpack.c.bf16 %v1775, %v1773
      %v1858 = vpack.c.bf16 %v1778, %v1776
      %v1859 = vpack.c.bf16 %v1779, %v1777
      %v1860 = vpack.c.bf16 %v1782, %v1780
      %v1861 = vpack.c.bf16 %v1783, %v1781
      %v1862 = vpack.c.bf16 %v1786, %v1784
      %v1863 = vpack.c.bf16 %v1787, %v1785
      %v1864 = vpack.c.bf16 %v1790, %v1788
      %v1865 = vpack.c.bf16 %v1791, %v1789
      %v1866 = vpack.c.bf16 %v1794, %v1792
      %v1867 = vpack.c.bf16 %v1795, %v1793
      %v1868 = vpack.c.bf16 %v1798, %v1796
      %v1869 = vpack.c.bf16 %v1799, %v1797
      %v1870 = vpack.c.bf16 %v1802, %v1800
      %v1871 = vpack.c.bf16 %v1803, %v1801
      %v1872 = vpack.c.bf16 %v1806, %v1804
      %v1873 = vpack.c.bf16 %v1807, %v1805
      %v1874 = vpack.c.bf16 %v1810, %v1808
      %v1875 = vpack.c.bf16 %v1811, %v1809
      %v1877 = vlaneseq
      %v1878 = vshrl.u32 %v1877, 7
      %v1879 = vsub.s32 0, %v1878
      %v1880 = vrot.slane %v932, %v1879
      %v1881 = vlaneseq
      %v1882 = vshrl.u32 %v1881, 7
      %v1883 = vsub.s32 1, %v1882
      %v1884 = vrot.slane %v932, %v1883
      %v1919 = vunpack.c.l.b16 %v899
      %v1920 = vunpack.c.h.b16 %v899
      %v1921 = vunpack.c.l.b16 %v900
      %v1922 = vunpack.c.h.b16 %v900
      %v1923 = vunpack.c.l.b16 %v901
      %v1924 = vunpack.c.h.b16 %v901
      %v1925 = vunpack.c.l.b16 %v902
      %v1926 = vunpack.c.h.b16 %v902
      %v1927 = vunpack.c.l.b16 %v903
      %v1928 = vunpack.c.h.b16 %v903
      %v1929 = vunpack.c.l.b16 %v904
      %v1930 = vunpack.c.h.b16 %v904
      %v1931 = vunpack.c.l.b16 %v905
      %v1932 = vunpack.c.h.b16 %v905
      %v1933 = vunpack.c.l.b16 %v906
      %v1934 = vunpack.c.h.b16 %v906
      %v1935 = vunpack.c.l.b16 %v907
      %v1936 = vunpack.c.h.b16 %v907
      %v1937 = vunpack.c.l.b16 %v908
      %v1938 = vunpack.c.h.b16 %v908
      %v1939 = vunpack.c.l.b16 %v909
      %v1940 = vunpack.c.h.b16 %v909
      %v1941 = vunpack.c.l.b16 %v910
      %v1942 = vunpack.c.h.b16 %v910
      %v1943 = vunpack.c.l.b16 %v911
      %v1944 = vunpack.c.h.b16 %v911
      %v1945 = vunpack.c.l.b16 %v912
      %v1946 = vunpack.c.h.b16 %v912
      %v1947 = vunpack.c.l.b16 %v913
      %v1948 = vunpack.c.h.b16 %v913
      %v1949 = vunpack.c.l.b16 %v914
      %v1950 = vunpack.c.h.b16 %v914
      %v1951 = vunpack.c.l.b16 %v915
      %v1952 = vunpack.c.h.b16 %v915
      %v1953 = vunpack.c.l.b16 %v916
      %v1954 = vunpack.c.h.b16 %v916
      %v1955 = vunpack.c.l.b16 %v917
      %v1956 = vunpack.c.h.b16 %v917
      %v1957 = vunpack.c.l.b16 %v918
      %v1958 = vunpack.c.h.b16 %v918
      %v1959 = vunpack.c.l.b16 %v919
      %v1960 = vunpack.c.h.b16 %v919
      %v1961 = vunpack.c.l.b16 %v920
      %v1962 = vunpack.c.h.b16 %v920
      %v1963 = vunpack.c.l.b16 %v921
      %v1964 = vunpack.c.h.b16 %v921
      %v1965 = vunpack.c.l.b16 %v922
      %v1966 = vunpack.c.h.b16 %v922
      %v1967 = vunpack.c.l.b16 %v923
      %v1968 = vunpack.c.h.b16 %v923
      %v1969 = vunpack.c.l.b16 %v924
      %v1970 = vunpack.c.h.b16 %v924
      %v1971 = vunpack.c.l.b16 %v925
      %v1972 = vunpack.c.h.b16 %v925
      %v1973 = vunpack.c.l.b16 %v926
      %v1974 = vunpack.c.h.b16 %v926
      %v1975 = vunpack.c.l.b16 %v927
      %v1976 = vunpack.c.h.b16 %v927
      %v1977 = vunpack.c.l.b16 %v928
      %v1978 = vunpack.c.h.b16 %v928
      %v1979 = vunpack.c.l.b16 %v929
      %v1980 = vunpack.c.h.b16 %v929
      %v1981 = vunpack.c.l.b16 %v930
      %v1982 = vunpack.c.h.b16 %v930
      %v1983 = vpack.c.b16 %v1921, %v1919
      %v1984 = vpack.c.b16 %v1922, %v1920
      %v1985 = vpack.c.b16 %v1925, %v1923
      %v1986 = vpack.c.b16 %v1926, %v1924
      %v1987 = vpack.c.b16 %v1929, %v1927
      %v1988 = vpack.c.b16 %v1930, %v1928
      %v1989 = vpack.c.b16 %v1933, %v1931
      %v1990 = vpack.c.b16 %v1934, %v1932
      %v1991 = vpack.c.b16 %v1937, %v1935
      %v1992 = vpack.c.b16 %v1938, %v1936
      %v1993 = vpack.c.b16 %v1941, %v1939
      %v1994 = vpack.c.b16 %v1942, %v1940
      %v1995 = vpack.c.b16 %v1945, %v1943
      %v1996 = vpack.c.b16 %v1946, %v1944
      %v1997 = vpack.c.b16 %v1949, %v1947
      %v1998 = vpack.c.b16 %v1950, %v1948
      %v1999 = vpack.c.b16 %v1953, %v1951
      %v2000 = vpack.c.b16 %v1954, %v1952
      %v2001 = vpack.c.b16 %v1957, %v1955
      %v2002 = vpack.c.b16 %v1958, %v1956
      %v2003 = vpack.c.b16 %v1961, %v1959
      %v2004 = vpack.c.b16 %v1962, %v1960
      %v2005 = vpack.c.b16 %v1965, %v1963
      %v2006 = vpack.c.b16 %v1966, %v1964
      %v2007 = vpack.c.b16 %v1969, %v1967
      %v2008 = vpack.c.b16 %v1970, %v1968
      %v2009 = vpack.c.b16 %v1973, %v1971
      %v2010 = vpack.c.b16 %v1974, %v1972
      %v2011 = vpack.c.b16 %v1977, %v1975
      %v2012 = vpack.c.b16 %v1978, %v1976
      %v2013 = vpack.c.b16 %v1981, %v1979
      %v2014 = vpack.c.b16 %v1982, %v1980
      %2047 = vmatprep.subr.bf16.mxu0 %v1984
      %2048 = vmatpush1.bf16.msra.mxu0 %v1983
      %2049 = vmatprep.subr.bf16.mxu0 %v1986
      %2050 = vmatpush1.bf16.msra.mxu0 %v1985
      %2051 = vmatprep.subr.bf16.mxu0 %v1988
      %2052 = vmatpush1.bf16.msra.mxu0 %v1987
      %2053 = vmatprep.subr.bf16.mxu0 %v1990
      %2054 = vmatpush1.bf16.msra.mxu0 %v1989
      %2055 = vmatprep.subr.bf16.mxu0 %v1992
      %2056 = vmatpush1.bf16.msra.mxu0 %v1991
      %2057 = vmatprep.subr.bf16.mxu0 %v1994
      %2058 = vmatpush1.bf16.msra.mxu0 %v1993
      %2059 = vmatprep.subr.bf16.mxu0 %v1996
      %2060 = vmatpush1.bf16.msra.mxu0 %v1995
      %2061 = vmatprep.subr.bf16.mxu0 %v1998
      %2062 = vmatpush1.bf16.msra.mxu0 %v1997
      %2063 = vmatprep.subr.bf16.mxu0 %v2000
      %2064 = vmatpush1.bf16.msra.mxu0 %v1999
      %2065 = vmatprep.subr.bf16.mxu0 %v2002
      %2066 = vmatpush1.bf16.msra.mxu0 %v2001
      %2067 = vmatprep.subr.bf16.mxu0 %v2004
      %2068 = vmatpush1.bf16.msra.mxu0 %v2003
      %2069 = vmatprep.subr.bf16.mxu0 %v2006
      %2070 = vmatpush1.bf16.msra.mxu0 %v2005
      %2071 = vmatprep.subr.bf16.mxu0 %v2008
      %2072 = vmatpush1.bf16.msra.mxu0 %v2007
      %2073 = vmatprep.subr.bf16.mxu0 %v2010
      %2074 = vmatpush1.bf16.msra.mxu0 %v2009
      %2075 = vmatprep.subr.bf16.mxu0 %v2012
      %2076 = vmatpush1.bf16.msra.mxu0 %v2011
      %2077 = vmatprep.subr.bf16.mxu0 %v2014
      %2078 = vmatpush1.bf16.msra.mxu0 %v2013
      %2079 = vmatprep.mubr.bf16.mxu0 %v1813
      %2080 = vmatmul.mubr.bf16.gmra.mrb[0].mxu0 %v1812
      %v2081 = vpop.f32.mrb[0].mxu0
      %v2082 = vadd.f32 %v1880, %v2081
      %v2083 = vpop.f32.mrb[0].mxu0
      %v2084 = vadd.f32 %v1884, %v2083
      %v2085 = vpop.f32.mrb[0].mxu0
      %v2086 = vadd.f32 %v1880, %v2085
      %v2087 = vpop.f32.mrb[0].mxu0
      %v2088 = vadd.f32 %v1884, %v2087
      %2089 = vmatprep.mubr.bf16.mxu0 %v1815
      %2090 = vmatmul.mubr.bf16.gmra.mrb[0].mxu0 %v1814
      %v2091 = vpop.f32.mrb[0].mxu0
      %v2092 = vadd.f32 %v1880, %v2091
      %v2093 = vpop.f32.mrb[0].mxu0
      %v2094 = vadd.f32 %v1884, %v2093
      %v2095 = vpop.f32.mrb[0].mxu0
      %v2096 = vadd.f32 %v1880, %v2095
      %v2097 = vpop.f32.mrb[0].mxu0
      %v2098 = vadd.f32 %v1884, %v2097
      %2099 = vmatprep.mubr.bf16.mxu0 %v1817
      %2100 = vmatmul.mubr.bf16.gmra.mrb[0].mxu0 %v1816
      %v2101 = vpop.f32.mrb[0].mxu0
      %v2102 = vadd.f32 %v1880, %v2101
      %v2103 = vpop.f32.mrb[0].mxu0
      %v2104 = vadd.f32 %v1884, %v2103
      %v2105 = vpop.f32.mrb[0].mxu0
      %v2106 = vadd.f32 %v1880, %v2105
      %v2107 = vpop.f32.mrb[0].mxu0
      %v2108 = vadd.f32 %v1884, %v2107
      %2109 = vmatprep.mubr.bf16.mxu0 %v1819
      %2110 = vmatmul.mubr.bf16.gmra.mrb[0].mxu0 %v1818
      %v2111 = vpop.f32.mrb[0].mxu0
      %v2112 = vadd.f32 %v1880, %v2111
      %v2113 = vpop.f32.mrb[0].mxu0
      %v2114 = vadd.f32 %v1884, %v2113
      %v2115 = vpop.f32.mrb[0].mxu0
      %v2116 = vadd.f32 %v1880, %v2115
      %v2117 = vpop.f32.mrb[0].mxu0
      %v2118 = vadd.f32 %v1884, %v2117
      %2119 = vmatprep.mubr.bf16.mxu0 %v1821
      %2120 = vmatmul.mubr.bf16.gmra.mrb[0].mxu0 %v1820
      %v2121 = vpop.f32.mrb[0].mxu0
      %v2122 = vadd.f32 %v1880, %v2121
      %v2123 = vpop.f32.mrb[0].mxu0
      %v2124 = vadd.f32 %v1884, %v2123
      %v2125 = vpop.f32.mrb[0].mxu0
      %v2126 = vadd.f32 %v1880, %v2125
      %v2127 = vpop.f32.mrb[0].mxu0
      %v2128 = vadd.f32 %v1884, %v2127
      %2129 = vmatprep.mubr.bf16.mxu0 %v1823
      %2130 = vmatmul.mubr.bf16.gmra.mrb[0].mxu0 %v1822
      %v2131 = vpop.f32.mrb[0].mxu0
      %v2132 = vadd.f32 %v1880, %v2131
      %v2133 = vpop.f32.mrb[0].mxu0
      %v2134 = vadd.f32 %v1884, %v2133
      %v2135 = vpop.f32.mrb[0].mxu0
      %v2136 = vadd.f32 %v1880, %v2135
      %v2137 = vpop.f32.mrb[0].mxu0
      %v2138 = vadd.f32 %v1884, %v2137
      %2139 = vmatprep.mubr.bf16.mxu0 %v1825
      %2140 = vmatmul.mubr.bf16.gmra.mrb[0].mxu0 %v1824
      %v2141 = vpop.f32.mrb[0].mxu0
      %v2142 = vadd.f32 %v1880, %v2141
      %v2143 = vpop.f32.mrb[0].mxu0
      %v2144 = vadd.f32 %v1884, %v2143
      %v2145 = vpop.f32.mrb[0].mxu0
      %v2146 = vadd.f32 %v1880, %v2145
      %v2147 = vpop.f32.mrb[0].mxu0
      %v2148 = vadd.f32 %v1884, %v2147
      %2149 = vmatprep.mubr.bf16.mxu0 %v1827
      %2150 = vmatmul.mubr.bf16.gmra.mrb[0].mxu0 %v1826
      %v2151 = vpop.f32.mrb[0].mxu0
      %v2152 = vadd.f32 %v1880, %v2151
      %v2153 = vpop.f32.mrb[0].mxu0
      %v2154 = vadd.f32 %v1884, %v2153
      %v2155 = vpop.f32.mrb[0].mxu0
      %v2156 = vadd.f32 %v1880, %v2155
      %v2157 = vpop.f32.mrb[0].mxu0
      %v2158 = vadd.f32 %v1884, %v2157
      %2159 = vmatprep.mubr.bf16.mxu0 %v1829
      %2160 = vmatmul.mubr.bf16.gmra.mrb[0].mxu0 %v1828
      %v2161 = vpop.f32.mrb[0].mxu0
      %v2162 = vadd.f32 %v1880, %v2161
      %v2163 = vpop.f32.mrb[0].mxu0
      %v2164 = vadd.f32 %v1884, %v2163
      %v2165 = vpop.f32.mrb[0].mxu0
      %v2166 = vadd.f32 %v1880, %v2165
      %v2167 = vpop.f32.mrb[0].mxu0
      %v2168 = vadd.f32 %v1884, %v2167
      %2169 = vmatprep.mubr.bf16.mxu0 %v1831
      %2170 = vmatmul.mubr.bf16.gmra.mrb[0].mxu0 %v1830
      %v2171 = vpop.f32.mrb[0].mxu0
      %v2172 = vadd.f32 %v1880, %v2171
      %v2173 = vpop.f32.mrb[0].mxu0
      %v2174 = vadd.f32 %v1884, %v2173
      %v2175 = vpop.f32.mrb[0].mxu0
      %v2176 = vadd.f32 %v1880, %v2175
      %v2177 = vpop.f32.mrb[0].mxu0
      %v2178 = vadd.f32 %v1884, %v2177
      %2179 = vmatprep.mubr.bf16.mxu0 %v1833
      %2180 = vmatmul.mubr.bf16.gmra.mrb[0].mxu0 %v1832
      %v2181 = vpop.f32.mrb[0].mxu0
      %v2182 = vadd.f32 %v1880, %v2181
      %v2183 = vpop.f32.mrb[0].mxu0
      %v2184 = vadd.f32 %v1884, %v2183
      %v2185 = vpop.f32.mrb[0].mxu0
      %v2186 = vadd.f32 %v1880, %v2185
      %v2187 = vpop.f32.mrb[0].mxu0
      %v2188 = vadd.f32 %v1884, %v2187
      %2189 = vmatprep.mubr.bf16.mxu0 %v1835
      %2190 = vmatmul.mubr.bf16.gmra.mrb[0].mxu0 %v1834
      %v2191 = vpop.f32.mrb[0].mxu0
      %v2192 = vadd.f32 %v1880, %v2191
      %v2193 = vpop.f32.mrb[0].mxu0
      %v2194 = vadd.f32 %v1884, %v2193
      %v2195 = vpop.f32.mrb[0].mxu0
      %v2196 = vadd.f32 %v1880, %v2195
      %v2197 = vpop.f32.mrb[0].mxu0
      %v2198 = vadd.f32 %v1884, %v2197
      %2199 = vmatprep.mubr.bf16.mxu0 %v1837
      %2200 = vmatmul.mubr.bf16.gmra.mrb[0].mxu0 %v1836
      %v2201 = vpop.f32.mrb[0].mxu0
      %v2202 = vadd.f32 %v1880, %v2201
      %v2203 = vpop.f32.mrb[0].mxu0
      %v2204 = vadd.f32 %v1884, %v2203
      %v2205 = vpop.f32.mrb[0].mxu0
      %v2206 = vadd.f32 %v1880, %v2205
      %v2207 = vpop.f32.mrb[0].mxu0
      %v2208 = vadd.f32 %v1884, %v2207
      %2209 = vmatprep.mubr.bf16.mxu0 %v1839
      %2210 = vmatmul.mubr.bf16.gmra.mrb[0].mxu0 %v1838
      %v2211 = vpop.f32.mrb[0].mxu0
      %v2212 = vadd.f32 %v1880, %v2211
      %v2213 = vpop.f32.mrb[0].mxu0
      %v2214 = vadd.f32 %v1884, %v2213
      %v2215 = vpop.f32.mrb[0].mxu0
      %v2216 = vadd.f32 %v1880, %v2215
      %v2217 = vpop.f32.mrb[0].mxu0
      %v2218 = vadd.f32 %v1884, %v2217
      %2219 = vmatprep.mubr.bf16.mxu0 %v1841
      %2220 = vmatmul.mubr.bf16.gmra.mrb[0].mxu0 %v1840
      %v2221 = vpop.f32.mrb[0].mxu0
      %v2222 = vadd.f32 %v1880, %v2221
      %v2223 = vpop.f32.mrb[0].mxu0
      %v2224 = vadd.f32 %v1884, %v2223
      %v2225 = vpop.f32.mrb[0].mxu0
      %v2226 = vadd.f32 %v1880, %v2225
      %v2227 = vpop.f32.mrb[0].mxu0
      %v2228 = vadd.f32 %v1884, %v2227
      %2229 = vmatprep.mubr.bf16.mxu0 %v1843
      %2230 = vmatmul.mubr.bf16.gmra.mrb[0].mxu0 %v1842
      %v2231 = vpop.f32.mrb[0].mxu0
      %v2232 = vadd.f32 %v1880, %v2231
      %v2233 = vpop.f32.mrb[0].mxu0
      %v2234 = vadd.f32 %v1884, %v2233
      %v2235 = vpop.f32.mrb[0].mxu0
      %v2236 = vadd.f32 %v1880, %v2235
      %v2237 = vpop.f32.mrb[0].mxu0
      %v2238 = vadd.f32 %v1884, %v2237
      %2239 = vmatprep.mubr.bf16.mxu0 %v1845
      %2240 = vmatmul.mubr.bf16.gmra.mrb[0].mxu0 %v1844
      %v2241 = vpop.f32.mrb[0].mxu0
      %v2242 = vadd.f32 %v1880, %v2241
      %v2243 = vpop.f32.mrb[0].mxu0
      %v2244 = vadd.f32 %v1884, %v2243
      %v2245 = vpop.f32.mrb[0].mxu0
      %v2246 = vadd.f32 %v1880, %v2245
      %v2247 = vpop.f32.mrb[0].mxu0
      %v2248 = vadd.f32 %v1884, %v2247
      %2249 = vmatprep.mubr.bf16.mxu0 %v1847
      %2250 = vmatmul.mubr.bf16.gmra.mrb[0].mxu0 %v1846
      %v2251 = vpop.f32.mrb[0].mxu0
      %v2252 = vadd.f32 %v1880, %v2251
      %v2253 = vpop.f32.mrb[0].mxu0
      %v2254 = vadd.f32 %v1884, %v2253
      %v2255 = vpop.f32.mrb[0].mxu0
      %v2256 = vadd.f32 %v1880, %v2255
      %v2257 = vpop.f32.mrb[0].mxu0
      %v2258 = vadd.f32 %v1884, %v2257
      %2259 = vmatprep.mubr.bf16.mxu0 %v1849
      %2260 = vmatmul.mubr.bf16.gmra.mrb[0].mxu0 %v1848
      %v2261 = vpop.f32.mrb[0].mxu0
      %v2262 = vadd.f32 %v1880, %v2261
      %v2263 = vpop.f32.mrb[0].mxu0
      %v2264 = vadd.f32 %v1884, %v2263
      %v2265 = vpop.f32.mrb[0].mxu0
      %v2266 = vadd.f32 %v1880, %v2265
      %v2267 = vpop.f32.mrb[0].mxu0
      %v2268 = vadd.f32 %v1884, %v2267
      %2269 = vmatprep.mubr.bf16.mxu0 %v1851
      %2270 = vmatmul.mubr.bf16.gmra.mrb[0].mxu0 %v1850
      %v2271 = vpop.f32.mrb[0].mxu0
      %v2272 = vadd.f32 %v1880, %v2271
      %v2273 = vpop.f32.mrb[0].mxu0
      %v2274 = vadd.f32 %v1884, %v2273
      %v2275 = vpop.f32.mrb[0].mxu0
      %v2276 = vadd.f32 %v1880, %v2275
      %v2277 = vpop.f32.mrb[0].mxu0
      %v2278 = vadd.f32 %v1884, %v2277
      %2279 = vmatprep.mubr.bf16.mxu0 %v1853
      %2280 = vmatmul.mubr.bf16.gmra.mrb[0].mxu0 %v1852
      %v2281 = vpop.f32.mrb[0].mxu0
      %v2282 = vadd.f32 %v1880, %v2281
      %v2283 = vpop.f32.mrb[0].mxu0
      %v2284 = vadd.f32 %v1884, %v2283
      %v2285 = vpop.f32.mrb[0].mxu0
      %v2286 = vadd.f32 %v1880, %v2285
      %v2287 = vpop.f32.mrb[0].mxu0
      %v2288 = vadd.f32 %v1884, %v2287
      %2289 = vmatprep.mubr.bf16.mxu0 %v1855
      %2290 = vmatmul.mubr.bf16.gmra.mrb[0].mxu0 %v1854
      %v2291 = vpop.f32.mrb[0].mxu0
      %v2292 = vadd.f32 %v1880, %v2291
      %v2293 = vpop.f32.mrb[0].mxu0
      %v2294 = vadd.f32 %v1884, %v2293
      %v2295 = vpop.f32.mrb[0].mxu0
      %v2296 = vadd.f32 %v1880, %v2295
      %v2297 = vpop.f32.mrb[0].mxu0
      %v2298 = vadd.f32 %v1884, %v2297
      %2299 = vmatprep.mubr.bf16.mxu0 %v1857
      %2300 = vmatmul.mubr.bf16.gmra.mrb[0].mxu0 %v1856
      %v2301 = vpop.f32.mrb[0].mxu0
      %v2302 = vadd.f32 %v1880, %v2301
      %v2303 = vpop.f32.mrb[0].mxu0
      %v2304 = vadd.f32 %v1884, %v2303
      %v2305 = vpop.f32.mrb[0].mxu0
      %v2306 = vadd.f32 %v1880, %v2305
      %v2307 = vpop.f32.mrb[0].mxu0
      %v2308 = vadd.f32 %v1884, %v2307
      %2309 = vmatprep.mubr.bf16.mxu0 %v1859
      %2310 = vmatmul.mubr.bf16.gmra.mrb[0].mxu0 %v1858
      %v2311 = vpop.f32.mrb[0].mxu0
      %v2312 = vadd.f32 %v1880, %v2311
      %v2313 = vpop.f32.mrb[0].mxu0
      %v2314 = vadd.f32 %v1884, %v2313
      %v2315 = vpop.f32.mrb[0].mxu0
      %v2316 = vadd.f32 %v1880, %v2315
      %v2317 = vpop.f32.mrb[0].mxu0
      %v2318 = vadd.f32 %v1884, %v2317
      %2319 = vmatprep.mubr.bf16.mxu0 %v1861
      %2320 = vmatmul.mubr.bf16.gmra.mrb[0].mxu0 %v1860
      %v2321 = vpop.f32.mrb[0].mxu0
      %v2322 = vadd.f32 %v1880, %v2321
      %v2323 = vpop.f32.mrb[0].mxu0
      %v2324 = vadd.f32 %v1884, %v2323
      %v2325 = vpop.f32.mrb[0].mxu0
      %v2326 = vadd.f32 %v1880, %v2325
      %v2327 = vpop.f32.mrb[0].mxu0
      %v2328 = vadd.f32 %v1884, %v2327
      %2329 = vmatprep.mubr.bf16.mxu0 %v1863
      %2330 = vmatmul.mubr.bf16.gmra.mrb[0].mxu0 %v1862
      %v2331 = vpop.f32.mrb[0].mxu0
      %v2332 = vadd.f32 %v1880, %v2331
      %v2333 = vpop.f32.mrb[0].mxu0
      %v2334 = vadd.f32 %v1884, %v2333
      %v2335 = vpop.f32.mrb[0].mxu0
      %v2336 = vadd.f32 %v1880, %v2335
      %v2337 = vpop.f32.mrb[0].mxu0
      %v2338 = vadd.f32 %v1884, %v2337
      %2339 = vmatprep.mubr.bf16.mxu0 %v1865
      %2340 = vmatmul.mubr.bf16.gmra.mrb[0].mxu0 %v1864
      %v2341 = vpop.f32.mrb[0].mxu0
      %v2342 = vadd.f32 %v1880, %v2341
      %v2343 = vpop.f32.mrb[0].mxu0
      %v2344 = vadd.f32 %v1884, %v2343
      %v2345 = vpop.f32.mrb[0].mxu0
      %v2346 = vadd.f32 %v1880, %v2345
      %v2347 = vpop.f32.mrb[0].mxu0
      %v2348 = vadd.f32 %v1884, %v2347
      %2349 = vmatprep.mubr.bf16.mxu0 %v1867
      %2350 = vmatmul.mubr.bf16.gmra.mrb[0].mxu0 %v1866
      %v2351 = vpop.f32.mrb[0].mxu0
      %v2352 = vadd.f32 %v1880, %v2351
      %v2353 = vpop.f32.mrb[0].mxu0
      %v2354 = vadd.f32 %v1884, %v2353
      %v2355 = vpop.f32.mrb[0].mxu0
      %v2356 = vadd.f32 %v1880, %v2355
      %v2357 = vpop.f32.mrb[0].mxu0
      %v2358 = vadd.f32 %v1884, %v2357
      %2359 = vmatprep.mubr.bf16.mxu0 %v1869
      %2360 = vmatmul.mubr.bf16.gmra.mrb[0].mxu0 %v1868
      %v2361 = vpop.f32.mrb[0].mxu0
      %v2362 = vadd.f32 %v1880, %v2361
      %v2363 = vpop.f32.mrb[0].mxu0
      %v2364 = vadd.f32 %v1884, %v2363
      %v2365 = vpop.f32.mrb[0].mxu0
      %v2366 = vadd.f32 %v1880, %v2365
      %v2367 = vpop.f32.mrb[0].mxu0
      %v2368 = vadd.f32 %v1884, %v2367
      %2369 = vmatprep.mubr.bf16.mxu0 %v1871
      %2370 = vmatmul.mubr.bf16.gmra.mrb[0].mxu0 %v1870
      %v2371 = vpop.f32.mrb[0].mxu0
      %v2372 = vadd.f32 %v1880, %v2371
      %v2373 = vpop.f32.mrb[0].mxu0
      %v2374 = vadd.f32 %v1884, %v2373
      %v2375 = vpop.f32.mrb[0].mxu0
      %v2376 = vadd.f32 %v1880, %v2375
      %v2377 = vpop.f32.mrb[0].mxu0
      %v2378 = vadd.f32 %v1884, %v2377
      %2379 = vmatprep.mubr.bf16.mxu0 %v1873
      %2380 = vmatmul.mubr.bf16.gmra.mrb[0].mxu0 %v1872
      %v2381 = vpop.f32.mrb[0].mxu0
      %v2382 = vadd.f32 %v1880, %v2381
      %v2383 = vpop.f32.mrb[0].mxu0
      %v2384 = vadd.f32 %v1884, %v2383
      %v2385 = vpop.f32.mrb[0].mxu0
      %v2386 = vadd.f32 %v1880, %v2385
      %v2387 = vpop.f32.mrb[0].mxu0
      %v2388 = vadd.f32 %v1884, %v2387
      %2389 = vmatprep.mubr.bf16.mxu0 %v1875
      %2390 = vmatmul.mubr.bf16.gmra.mrb[0].mxu0 %v1874
      %v2391 = vpop.f32.mrb[0].mxu0
      %v2392 = vadd.f32 %v1880, %v2391
      %v2393 = vpop.f32.mrb[0].mxu0
      %v2394 = vadd.f32 %v1884, %v2393
      %v2395 = vpop.f32.mrb[0].mxu0
      %v2396 = vadd.f32 %v1880, %v2395
      %v2397 = vpop.f32.mrb[0].mxu0
      %v2398 = vadd.f32 %v1884, %v2397
      %2399 = vdwg.mxu0
      %v2400 = vmax.f32 %v2082, 0.0
      %v2401 = vmax.f32 %v2084, 0.0
      %v2402 = vmax.f32 %v2086, 0.0
      %v2403 = vmax.f32 %v2088, 0.0
      %v2404 = vmax.f32 %v2092, 0.0
      %v2405 = vmax.f32 %v2094, 0.0
      %v2406 = vmax.f32 %v2096, 0.0
      %v2407 = vmax.f32 %v2098, 0.0
      %v2408 = vmax.f32 %v2102, 0.0
      %v2409 = vmax.f32 %v2104, 0.0
      %v2410 = vmax.f32 %v2106, 0.0
      %v2411 = vmax.f32 %v2108, 0.0
      %v2412 = vmax.f32 %v2112, 0.0
      %v2413 = vmax.f32 %v2114, 0.0
      %v2414 = vmax.f32 %v2116, 0.0
      %v2415 = vmax.f32 %v2118, 0.0
      %v2416 = vmax.f32 %v2122, 0.0
      %v2417 = vmax.f32 %v2124, 0.0
      %v2418 = vmax.f32 %v2126, 0.0
      %v2419 = vmax.f32 %v2128, 0.0
      %v2420 = vmax.f32 %v2132, 0.0
      %v2421 = vmax.f32 %v2134, 0.0
      %v2422 = vmax.f32 %v2136, 0.0
      %v2423 = vmax.f32 %v2138, 0.0
      %v2424 = vmax.f32 %v2142, 0.0
      %v2425 = vmax.f32 %v2144, 0.0
      %v2426 = vmax.f32 %v2146, 0.0
      %v2427 = vmax.f32 %v2148, 0.0
      %v2428 = vmax.f32 %v2152, 0.0
      %v2429 = vmax.f32 %v2154, 0.0
      %v2430 = vmax.f32 %v2156, 0.0
      %v2431 = vmax.f32 %v2158, 0.0
      %v2432 = vmax.f32 %v2162, 0.0
      %v2433 = vmax.f32 %v2164, 0.0
      %v2434 = vmax.f32 %v2166, 0.0
      %v2435 = vmax.f32 %v2168, 0.0
      %v2436 = vmax.f32 %v2172, 0.0
      %v2437 = vmax.f32 %v2174, 0.0
      %v2438 = vmax.f32 %v2176, 0.0
      %v2439 = vmax.f32 %v2178, 0.0
      %v2440 = vmax.f32 %v2182, 0.0
      %v2441 = vmax.f32 %v2184, 0.0
      %v2442 = vmax.f32 %v2186, 0.0
      %v2443 = vmax.f32 %v2188, 0.0
      %v2444 = vmax.f32 %v2192, 0.0
      %v2445 = vmax.f32 %v2194, 0.0
      %v2446 = vmax.f32 %v2196, 0.0
      %v2447 = vmax.f32 %v2198, 0.0
      %v2448 = vmax.f32 %v2202, 0.0
      %v2449 = vmax.f32 %v2204, 0.0
      %v2450 = vmax.f32 %v2206, 0.0
      %v2451 = vmax.f32 %v2208, 0.0
      %v2452 = vmax.f32 %v2212, 0.0
      %v2453 = vmax.f32 %v2214, 0.0
      %v2454 = vmax.f32 %v2216, 0.0
      %v2455 = vmax.f32 %v2218, 0.0
      %v2456 = vmax.f32 %v2222, 0.0
      %v2457 = vmax.f32 %v2224, 0.0
      %v2458 = vmax.f32 %v2226, 0.0
      %v2459 = vmax.f32 %v2228, 0.0
      %v2460 = vmax.f32 %v2232, 0.0
      %v2461 = vmax.f32 %v2234, 0.0
      %v2462 = vmax.f32 %v2236, 0.0
      %v2463 = vmax.f32 %v2238, 0.0
      %v2464 = vmax.f32 %v2242, 0.0
      %v2465 = vmax.f32 %v2244, 0.0
      %v2466 = vmax.f32 %v2246, 0.0
      %v2467 = vmax.f32 %v2248, 0.0
      %v2468 = vmax.f32 %v2252, 0.0
      %v2469 = vmax.f32 %v2254, 0.0
      %v2470 = vmax.f32 %v2256, 0.0
      %v2471 = vmax.f32 %v2258, 0.0
      %v2472 = vmax.f32 %v2262, 0.0
      %v2473 = vmax.f32 %v2264, 0.0
      %v2474 = vmax.f32 %v2266, 0.0
      %v2475 = vmax.f32 %v2268, 0.0
      %v2476 = vmax.f32 %v2272, 0.0
      %v2477 = vmax.f32 %v2274, 0.0
      %v2478 = vmax.f32 %v2276, 0.0
      %v2479 = vmax.f32 %v2278, 0.0
      %v2480 = vmax.f32 %v2282, 0.0
      %v2481 = vmax.f32 %v2284, 0.0
      %v2482 = vmax.f32 %v2286, 0.0
      %v2483 = vmax.f32 %v2288, 0.0
      %v2484 = vmax.f32 %v2292, 0.0
      %v2485 = vmax.f32 %v2294, 0.0
      %v2486 = vmax.f32 %v2296, 0.0
      %v2487 = vmax.f32 %v2298, 0.0
      %v2488 = vmax.f32 %v2302, 0.0
      %v2489 = vmax.f32 %v2304, 0.0
      %v2490 = vmax.f32 %v2306, 0.0
      %v2491 = vmax.f32 %v2308, 0.0
      %v2492 = vmax.f32 %v2312, 0.0
      %v2493 = vmax.f32 %v2314, 0.0
      %v2494 = vmax.f32 %v2316, 0.0
      %v2495 = vmax.f32 %v2318, 0.0
      %v2496 = vmax.f32 %v2322, 0.0
      %v2497 = vmax.f32 %v2324, 0.0
      %v2498 = vmax.f32 %v2326, 0.0
      %v2499 = vmax.f32 %v2328, 0.0
      %v2500 = vmax.f32 %v2332, 0.0
      %v2501 = vmax.f32 %v2334, 0.0
      %v2502 = vmax.f32 %v2336, 0.0
      %v2503 = vmax.f32 %v2338, 0.0
      %v2504 = vmax.f32 %v2342, 0.0
      %v2505 = vmax.f32 %v2344, 0.0
      %v2506 = vmax.f32 %v2346, 0.0
      %v2507 = vmax.f32 %v2348, 0.0
      %v2508 = vmax.f32 %v2352, 0.0
      %v2509 = vmax.f32 %v2354, 0.0
      %v2510 = vmax.f32 %v2356, 0.0
      %v2511 = vmax.f32 %v2358, 0.0
      %v2512 = vmax.f32 %v2362, 0.0
      %v2513 = vmax.f32 %v2364, 0.0
      %v2514 = vmax.f32 %v2366, 0.0
      %v2515 = vmax.f32 %v2368, 0.0
      %v2516 = vmax.f32 %v2372, 0.0
      %v2517 = vmax.f32 %v2374, 0.0
      %v2518 = vmax.f32 %v2376, 0.0
      %v2519 = vmax.f32 %v2378, 0.0
      %v2520 = vmax.f32 %v2382, 0.0
      %v2521 = vmax.f32 %v2384, 0.0
      %v2522 = vmax.f32 %v2386, 0.0
      %v2523 = vmax.f32 %v2388, 0.0
      %v2524 = vmax.f32 %v2392, 0.0
      %v2525 = vmax.f32 %v2394, 0.0
      %v2526 = vmax.f32 %v2396, 0.0
      %v2527 = vmax.f32 %v2398, 0.0
      %v2528 = vpack.c.bf16 %v2402, %v2400
      %v2529 = vpack.c.bf16 %v2403, %v2401
      %v2530 = vpack.c.bf16 %v2406, %v2404
      %v2531 = vpack.c.bf16 %v2407, %v2405
      %v2532 = vpack.c.bf16 %v2410, %v2408
      %v2533 = vpack.c.bf16 %v2411, %v2409
      %v2534 = vpack.c.bf16 %v2414, %v2412
      %v2535 = vpack.c.bf16 %v2415, %v2413
      %v2536 = vpack.c.bf16 %v2418, %v2416
      %v2537 = vpack.c.bf16 %v2419, %v2417
      %v2538 = vpack.c.bf16 %v2422, %v2420
      %v2539 = vpack.c.bf16 %v2423, %v2421
      %v2540 = vpack.c.bf16 %v2426, %v2424
      %v2541 = vpack.c.bf16 %v2427, %v2425
      %v2542 = vpack.c.bf16 %v2430, %v2428
      %v2543 = vpack.c.bf16 %v2431, %v2429
      %v2544 = vpack.c.bf16 %v2434, %v2432
      %v2545 = vpack.c.bf16 %v2435, %v2433
      %v2546 = vpack.c.bf16 %v2438, %v2436
      %v2547 = vpack.c.bf16 %v2439, %v2437
      %v2548 = vpack.c.bf16 %v2442, %v2440
      %v2549 = vpack.c.bf16 %v2443, %v2441
      %v2550 = vpack.c.bf16 %v2446, %v2444
      %v2551 = vpack.c.bf16 %v2447, %v2445
      %v2552 = vpack.c.bf16 %v2450, %v2448
      %v2553 = vpack.c.bf16 %v2451, %v2449
      %v2554 = vpack.c.bf16 %v2454, %v2452
      %v2555 = vpack.c.bf16 %v2455, %v2453
      %v2556 = vpack.c.bf16 %v2458, %v2456
      %v2557 = vpack.c.bf16 %v2459, %v2457
      %v2558 = vpack.c.bf16 %v2462, %v2460
      %v2559 = vpack.c.bf16 %v2463, %v2461
      %v2560 = vpack.c.bf16 %v2466, %v2464
      %v2561 = vpack.c.bf16 %v2467, %v2465
      %v2562 = vpack.c.bf16 %v2470, %v2468
      %v2563 = vpack.c.bf16 %v2471, %v2469
      %v2564 = vpack.c.bf16 %v2474, %v2472
      %v2565 = vpack.c.bf16 %v2475, %v2473
      %v2566 = vpack.c.bf16 %v2478, %v2476
      %v2567 = vpack.c.bf16 %v2479, %v2477
      %v2568 = vpack.c.bf16 %v2482, %v2480
      %v2569 = vpack.c.bf16 %v2483, %v2481
      %v2570 = vpack.c.bf16 %v2486, %v2484
      %v2571 = vpack.c.bf16 %v2487, %v2485
      %v2572 = vpack.c.bf16 %v2490, %v2488
      %v2573 = vpack.c.bf16 %v2491, %v2489
      %v2574 = vpack.c.bf16 %v2494, %v2492
      %v2575 = vpack.c.bf16 %v2495, %v2493
      %v2576 = vpack.c.bf16 %v2498, %v2496
      %v2577 = vpack.c.bf16 %v2499, %v2497
      %v2578 = vpack.c.bf16 %v2502, %v2500
      %v2579 = vpack.c.bf16 %v2503, %v2501
      %v2580 = vpack.c.bf16 %v2506, %v2504
      %v2581 = vpack.c.bf16 %v2507, %v2505
      %v2582 = vpack.c.bf16 %v2510, %v2508
      %v2583 = vpack.c.bf16 %v2511, %v2509
      %v2584 = vpack.c.bf16 %v2514, %v2512
      %v2585 = vpack.c.bf16 %v2515, %v2513
      %v2586 = vpack.c.bf16 %v2518, %v2516
      %v2587 = vpack.c.bf16 %v2519, %v2517
      %v2588 = vpack.c.bf16 %v2522, %v2520
      %v2589 = vpack.c.bf16 %v2523, %v2521
      %v2590 = vpack.c.bf16 %v2526, %v2524
      %v2591 = vpack.c.bf16 %v2527, %v2525
      %v2593 = vlaneseq
      %v2594 = vshrl.u32 %v2593, 7
      %v2595 = vsub.s32 0, %v2594
      %v2596 = vrot.slane %v967, %v2595
      %v2597 = vlaneseq
      %v2598 = vshrl.u32 %v2597, 7
      %v2599 = vsub.s32 1, %v2598
      %v2600 = vrot.slane %v967, %v2599
      %v2635 = vunpack.c.l.b16 %v934
      %v2636 = vunpack.c.h.b16 %v934
      %v2637 = vunpack.c.l.b16 %v935
      %v2638 = vunpack.c.h.b16 %v935
      %v2639 = vunpack.c.l.b16 %v936
      %v2640 = vunpack.c.h.b16 %v936
      %v2641 = vunpack.c.l.b16 %v937
      %v2642 = vunpack.c.h.b16 %v937
      %v2643 = vunpack.c.l.b16 %v938
      %v2644 = vunpack.c.h.b16 %v938
      %v2645 = vunpack.c.l.b16 %v939
      %v2646 = vunpack.c.h.b16 %v939
      %v2647 = vunpack.c.l.b16 %v940
      %v2648 = vunpack.c.h.b16 %v940
      %v2649 = vunpack.c.l.b16 %v941
      %v2650 = vunpack.c.h.b16 %v941
      %v2651 = vunpack.c.l.b16 %v942
      %v2652 = vunpack.c.h.b16 %v942
      %v2653 = vunpack.c.l.b16 %v943
      %v2654 = vunpack.c.h.b16 %v943
      %v2655 = vunpack.c.l.b16 %v944
      %v2656 = vunpack.c.h.b16 %v944
      %v2657 = vunpack.c.l.b16 %v945
      %v2658 = vunpack.c.h.b16 %v945
      %v2659 = vunpack.c.l.b16 %v946
      %v2660 = vunpack.c.h.b16 %v946
      %v2661 = vunpack.c.l.b16 %v947
      %v2662 = vunpack.c.h.b16 %v947
      %v2663 = vunpack.c.l.b16 %v948
      %v2664 = vunpack.c.h.b16 %v948
      %v2665 = vunpack.c.l.b16 %v949
      %v2666 = vunpack.c.h.b16 %v949
      %v2667 = vunpack.c.l.b16 %v950
      %v2668 = vunpack.c.h.b16 %v950
      %v2669 = vunpack.c.l.b16 %v951
      %v2670 = vunpack.c.h.b16 %v951
      %v2671 = vunpack.c.l.b16 %v952
      %v2672 = vunpack.c.h.b16 %v952
      %v2673 = vunpack.c.l.b16 %v953
      %v2674 = vunpack.c.h.b16 %v953
      %v2675 = vunpack.c.l.b16 %v954
      %v2676 = vunpack.c.h.b16 %v954
      %v2677 = vunpack.c.l.b16 %v955
      %v2678 = vunpack.c.h.b16 %v955
      %v2679 = vunpack.c.l.b16 %v956
      %v2680 = vunpack.c.h.b16 %v956
      %v2681 = vunpack.c.l.b16 %v957
      %v2682 = vunpack.c.h.b16 %v957
      %v2683 = vunpack.c.l.b16 %v958
      %v2684 = vunpack.c.h.b16 %v958
      %v2685 = vunpack.c.l.b16 %v959
      %v2686 = vunpack.c.h.b16 %v959
      %v2687 = vunpack.c.l.b16 %v960
      %v2688 = vunpack.c.h.b16 %v960
      %v2689 = vunpack.c.l.b16 %v961
      %v2690 = vunpack.c.h.b16 %v961
      %v2691 = vunpack.c.l.b16 %v962
      %v2692 = vunpack.c.h.b16 %v962
      %v2693 = vunpack.c.l.b16 %v963
      %v2694 = vunpack.c.h.b16 %v963
      %v2695 = vunpack.c.l.b16 %v964
      %v2696 = vunpack.c.h.b16 %v964
      %v2697 = vunpack.c.l.b16 %v965
      %v2698 = vunpack.c.h.b16 %v965
      %v2699 = vpack.c.b16 %v2637, %v2635
      %v2700 = vpack.c.b16 %v2638, %v2636
      %v2701 = vpack.c.b16 %v2641, %v2639
      %v2702 = vpack.c.b16 %v2642, %v2640
      %v2703 = vpack.c.b16 %v2645, %v2643
      %v2704 = vpack.c.b16 %v2646, %v2644
      %v2705 = vpack.c.b16 %v2649, %v2647
      %v2706 = vpack.c.b16 %v2650, %v2648
      %v2707 = vpack.c.b16 %v2653, %v2651
      %v2708 = vpack.c.b16 %v2654, %v2652
      %v2709 = vpack.c.b16 %v2657, %v2655
      %v2710 = vpack.c.b16 %v2658, %v2656
      %v2711 = vpack.c.b16 %v2661, %v2659
      %v2712 = vpack.c.b16 %v2662, %v2660
      %v2713 = vpack.c.b16 %v2665, %v2663
      %v2714 = vpack.c.b16 %v2666, %v2664
      %v2715 = vpack.c.b16 %v2669, %v2667
      %v2716 = vpack.c.b16 %v2670, %v2668
      %v2717 = vpack.c.b16 %v2673, %v2671
      %v2718 = vpack.c.b16 %v2674, %v2672
      %v2719 = vpack.c.b16 %v2677, %v2675
      %v2720 = vpack.c.b16 %v2678, %v2676
      %v2721 = vpack.c.b16 %v2681, %v2679
      %v2722 = vpack.c.b16 %v2682, %v2680
      %v2723 = vpack.c.b16 %v2685, %v2683
      %v2724 = vpack.c.b16 %v2686, %v2684
      %v2725 = vpack.c.b16 %v2689, %v2687
      %v2726 = vpack.c.b16 %v2690, %v2688
      %v2727 = vpack.c.b16 %v2693, %v2691
      %v2728 = vpack.c.b16 %v2694, %v2692
      %v2729 = vpack.c.b16 %v2697, %v2695
      %v2730 = vpack.c.b16 %v2698, %v2696
      %2763 = vmatprep.subr.bf16.mxu0 %v2700
      %2764 = vmatpush1.bf16.msra.mxu0 %v2699
      %2765 = vmatprep.subr.bf16.mxu0 %v2702
      %2766 = vmatpush1.bf16.msra.mxu0 %v2701
      %2767 = vmatprep.subr.bf16.mxu0 %v2704
      %2768 = vmatpush1.bf16.msra.mxu0 %v2703
      %2769 = vmatprep.subr.bf16.mxu0 %v2706
      %2770 = vmatpush1.bf16.msra.mxu0 %v2705
      %2771 = vmatprep.subr.bf16.mxu0 %v2708
      %2772 = vmatpush1.bf16.msra.mxu0 %v2707
      %2773 = vmatprep.subr.bf16.mxu0 %v2710
      %2774 = vmatpush1.bf16.msra.mxu0 %v2709
      %2775 = vmatprep.subr.bf16.mxu0 %v2712
      %2776 = vmatpush1.bf16.msra.mxu0 %v2711
      %2777 = vmatprep.subr.bf16.mxu0 %v2714
      %2778 = vmatpush1.bf16.msra.mxu0 %v2713
      %2779 = vmatprep.subr.bf16.mxu0 %v2716
      %2780 = vmatpush1.bf16.msra.mxu0 %v2715
      %2781 = vmatprep.subr.bf16.mxu0 %v2718
      %2782 = vmatpush1.bf16.msra.mxu0 %v2717
      %2783 = vmatprep.subr.bf16.mxu0 %v2720
      %2784 = vmatpush1.bf16.msra.mxu0 %v2719
      %2785 = vmatprep.subr.bf16.mxu0 %v2722
      %2786 = vmatpush1.bf16.msra.mxu0 %v2721
      %2787 = vmatprep.subr.bf16.mxu0 %v2724
      %2788 = vmatpush1.bf16.msra.mxu0 %v2723
      %2789 = vmatprep.subr.bf16.mxu0 %v2726
      %2790 = vmatpush1.bf16.msra.mxu0 %v2725
      %2791 = vmatprep.subr.bf16.mxu0 %v2728
      %2792 = vmatpush1.bf16.msra.mxu0 %v2727
      %2793 = vmatprep.subr.bf16.mxu0 %v2730
      %2794 = vmatpush1.bf16.msra.mxu0 %v2729
      %2795 = vmatprep.mubr.bf16.mxu0 %v2529
      %2796 = vmatmul.mubr.bf16.gmra.mrb[0].mxu0 %v2528
      %v2797 = vpop.f32.mrb[0].mxu0
      %v2798 = vadd.f32 %v2596, %v2797
      %v2799 = vpop.f32.mrb[0].mxu0
      %v2800 = vadd.f32 %v2600, %v2799
      %v2801 = vpop.f32.mrb[0].mxu0
      %v2802 = vadd.f32 %v2596, %v2801
      %v2803 = vpop.f32.mrb[0].mxu0
      %v2804 = vadd.f32 %v2600, %v2803
      %2805 = vmatprep.mubr.bf16.mxu0 %v2531
      %2806 = vmatmul.mubr.bf16.gmra.mrb[0].mxu0 %v2530
      %v2807 = vpop.f32.mrb[0].mxu0
      %v2808 = vadd.f32 %v2596, %v2807
      %v2809 = vpop.f32.mrb[0].mxu0
      %v2810 = vadd.f32 %v2600, %v2809
      %v2811 = vpop.f32.mrb[0].mxu0
      %v2812 = vadd.f32 %v2596, %v2811
      %v2813 = vpop.f32.mrb[0].mxu0
      %v2814 = vadd.f32 %v2600, %v2813
      %2815 = vmatprep.mubr.bf16.mxu0 %v2533
      %2816 = vmatmul.mubr.bf16.gmra.mrb[0].mxu0 %v2532
      %v2817 = vpop.f32.mrb[0].mxu0
      %v2818 = vadd.f32 %v2596, %v2817
      %v2819 = vpop.f32.mrb[0].mxu0
      %v2820 = vadd.f32 %v2600, %v2819
      %v2821 = vpop.f32.mrb[0].mxu0
      %v2822 = vadd.f32 %v2596, %v2821
      %v2823 = vpop.f32.mrb[0].mxu0
      %v2824 = vadd.f32 %v2600, %v2823
      %2825 = vmatprep.mubr.bf16.mxu0 %v2535
      %2826 = vmatmul.mubr.bf16.gmra.mrb[0].mxu0 %v2534
      %v2827 = vpop.f32.mrb[0].mxu0
      %v2828 = vadd.f32 %v2596, %v2827
      %v2829 = vpop.f32.mrb[0].mxu0
      %v2830 = vadd.f32 %v2600, %v2829
      %v2831 = vpop.f32.mrb[0].mxu0
      %v2832 = vadd.f32 %v2596, %v2831
      %v2833 = vpop.f32.mrb[0].mxu0
      %v2834 = vadd.f32 %v2600, %v2833
      %2835 = vmatprep.mubr.bf16.mxu0 %v2537
      %2836 = vmatmul.mubr.bf16.gmra.mrb[0].mxu0 %v2536
      %v2837 = vpop.f32.mrb[0].mxu0
      %v2838 = vadd.f32 %v2596, %v2837
      %v2839 = vpop.f32.mrb[0].mxu0
      %v2840 = vadd.f32 %v2600, %v2839
      %v2841 = vpop.f32.mrb[0].mxu0
      %v2842 = vadd.f32 %v2596, %v2841
      %v2843 = vpop.f32.mrb[0].mxu0
      %v2844 = vadd.f32 %v2600, %v2843
      %2845 = vmatprep.mubr.bf16.mxu0 %v2539
      %2846 = vmatmul.mubr.bf16.gmra.mrb[0].mxu0 %v2538
      %v2847 = vpop.f32.mrb[0].mxu0
      %v2848 = vadd.f32 %v2596, %v2847
      %v2849 = vpop.f32.mrb[0].mxu0
      %v2850 = vadd.f32 %v2600, %v2849
      %v2851 = vpop.f32.mrb[0].mxu0
      %v2852 = vadd.f32 %v2596, %v2851
      %v2853 = vpop.f32.mrb[0].mxu0
      %v2854 = vadd.f32 %v2600, %v2853
      %2855 = vmatprep.mubr.bf16.mxu0 %v2541
      %2856 = vmatmul.mubr.bf16.gmra.mrb[0].mxu0 %v2540
      %v2857 = vpop.f32.mrb[0].mxu0
      %v2858 = vadd.f32 %v2596, %v2857
      %v2859 = vpop.f32.mrb[0].mxu0
      %v2860 = vadd.f32 %v2600, %v2859
      %v2861 = vpop.f32.mrb[0].mxu0
      %v2862 = vadd.f32 %v2596, %v2861
      %v2863 = vpop.f32.mrb[0].mxu0
      %v2864 = vadd.f32 %v2600, %v2863
      %2865 = vmatprep.mubr.bf16.mxu0 %v2543
      %2866 = vmatmul.mubr.bf16.gmra.mrb[0].mxu0 %v2542
      %v2867 = vpop.f32.mrb[0].mxu0
      %v2868 = vadd.f32 %v2596, %v2867
      %v2869 = vpop.f32.mrb[0].mxu0
      %v2870 = vadd.f32 %v2600, %v2869
      %v2871 = vpop.f32.mrb[0].mxu0
      %v2872 = vadd.f32 %v2596, %v2871
      %v2873 = vpop.f32.mrb[0].mxu0
      %v2874 = vadd.f32 %v2600, %v2873
      %2875 = vmatprep.mubr.bf16.mxu0 %v2545
      %2876 = vmatmul.mubr.bf16.gmra.mrb[0].mxu0 %v2544
      %v2877 = vpop.f32.mrb[0].mxu0
      %v2878 = vadd.f32 %v2596, %v2877
      %v2879 = vpop.f32.mrb[0].mxu0
      %v2880 = vadd.f32 %v2600, %v2879
      %v2881 = vpop.f32.mrb[0].mxu0
      %v2882 = vadd.f32 %v2596, %v2881
      %v2883 = vpop.f32.mrb[0].mxu0
      %v2884 = vadd.f32 %v2600, %v2883
      %2885 = vmatprep.mubr.bf16.mxu0 %v2547
      %2886 = vmatmul.mubr.bf16.gmra.mrb[0].mxu0 %v2546
      %v2887 = vpop.f32.mrb[0].mxu0
      %v2888 = vadd.f32 %v2596, %v2887
      %v2889 = vpop.f32.mrb[0].mxu0
      %v2890 = vadd.f32 %v2600, %v2889
      %v2891 = vpop.f32.mrb[0].mxu0
      %v2892 = vadd.f32 %v2596, %v2891
      %v2893 = vpop.f32.mrb[0].mxu0
      %v2894 = vadd.f32 %v2600, %v2893
      %2895 = vmatprep.mubr.bf16.mxu0 %v2549
      %2896 = vmatmul.mubr.bf16.gmra.mrb[0].mxu0 %v2548
      %v2897 = vpop.f32.mrb[0].mxu0
      %v2898 = vadd.f32 %v2596, %v2897
      %v2899 = vpop.f32.mrb[0].mxu0
      %v2900 = vadd.f32 %v2600, %v2899
      %v2901 = vpop.f32.mrb[0].mxu0
      %v2902 = vadd.f32 %v2596, %v2901
      %v2903 = vpop.f32.mrb[0].mxu0
      %v2904 = vadd.f32 %v2600, %v2903
      %2905 = vmatprep.mubr.bf16.mxu0 %v2551
      %2906 = vmatmul.mubr.bf16.gmra.mrb[0].mxu0 %v2550
      %v2907 = vpop.f32.mrb[0].mxu0
      %v2908 = vadd.f32 %v2596, %v2907
      %v2909 = vpop.f32.mrb[0].mxu0
      %v2910 = vadd.f32 %v2600, %v2909
      %v2911 = vpop.f32.mrb[0].mxu0
      %v2912 = vadd.f32 %v2596, %v2911
      %v2913 = vpop.f32.mrb[0].mxu0
      %v2914 = vadd.f32 %v2600, %v2913
      %2915 = vmatprep.mubr.bf16.mxu0 %v2553
      %2916 = vmatmul.mubr.bf16.gmra.mrb[0].mxu0 %v2552
      %v2917 = vpop.f32.mrb[0].mxu0
      %v2918 = vadd.f32 %v2596, %v2917
      %v2919 = vpop.f32.mrb[0].mxu0
      %v2920 = vadd.f32 %v2600, %v2919
      %v2921 = vpop.f32.mrb[0].mxu0
      %v2922 = vadd.f32 %v2596, %v2921
      %v2923 = vpop.f32.mrb[0].mxu0
      %v2924 = vadd.f32 %v2600, %v2923
      %2925 = vmatprep.mubr.bf16.mxu0 %v2555
      %2926 = vmatmul.mubr.bf16.gmra.mrb[0].mxu0 %v2554
      %v2927 = vpop.f32.mrb[0].mxu0
      %v2928 = vadd.f32 %v2596, %v2927
      %v2929 = vpop.f32.mrb[0].mxu0
      %v2930 = vadd.f32 %v2600, %v2929
      %v2931 = vpop.f32.mrb[0].mxu0
      %v2932 = vadd.f32 %v2596, %v2931
      %v2933 = vpop.f32.mrb[0].mxu0
      %v2934 = vadd.f32 %v2600, %v2933
      %2935 = vmatprep.mubr.bf16.mxu0 %v2557
      %2936 = vmatmul.mubr.bf16.gmra.mrb[0].mxu0 %v2556
      %v2937 = vpop.f32.mrb[0].mxu0
      %v2938 = vadd.f32 %v2596, %v2937
      %v2939 = vpop.f32.mrb[0].mxu0
      %v2940 = vadd.f32 %v2600, %v2939
      %v2941 = vpop.f32.mrb[0].mxu0
      %v2942 = vadd.f32 %v2596, %v2941
      %v2943 = vpop.f32.mrb[0].mxu0
      %v2944 = vadd.f32 %v2600, %v2943
      %2945 = vmatprep.mubr.bf16.mxu0 %v2559
      %2946 = vmatmul.mubr.bf16.gmra.mrb[0].mxu0 %v2558
      %v2947 = vpop.f32.mrb[0].mxu0
      %v2948 = vadd.f32 %v2596, %v2947
      %v2949 = vpop.f32.mrb[0].mxu0
      %v2950 = vadd.f32 %v2600, %v2949
      %v2951 = vpop.f32.mrb[0].mxu0
      %v2952 = vadd.f32 %v2596, %v2951
      %v2953 = vpop.f32.mrb[0].mxu0
      %v2954 = vadd.f32 %v2600, %v2953
      %2955 = vmatprep.mubr.bf16.mxu0 %v2561
      %2956 = vmatmul.mubr.bf16.gmra.mrb[0].mxu0 %v2560
      %v2957 = vpop.f32.mrb[0].mxu0
      %v2958 = vadd.f32 %v2596, %v2957
      %v2959 = vpop.f32.mrb[0].mxu0
      %v2960 = vadd.f32 %v2600, %v2959
      %v2961 = vpop.f32.mrb[0].mxu0
      %v2962 = vadd.f32 %v2596, %v2961
      %v2963 = vpop.f32.mrb[0].mxu0
      %v2964 = vadd.f32 %v2600, %v2963
      %2965 = vmatprep.mubr.bf16.mxu0 %v2563
      %2966 = vmatmul.mubr.bf16.gmra.mrb[0].mxu0 %v2562
      %v2967 = vpop.f32.mrb[0].mxu0
      %v2968 = vadd.f32 %v2596, %v2967
      %v2969 = vpop.f32.mrb[0].mxu0
      %v2970 = vadd.f32 %v2600, %v2969
      %v2971 = vpop.f32.mrb[0].mxu0
      %v2972 = vadd.f32 %v2596, %v2971
      %v2973 = vpop.f32.mrb[0].mxu0
      %v2974 = vadd.f32 %v2600, %v2973
      %2975 = vmatprep.mubr.bf16.mxu0 %v2565
      %2976 = vmatmul.mubr.bf16.gmra.mrb[0].mxu0 %v2564
      %v2977 = vpop.f32.mrb[0].mxu0
      %v2978 = vadd.f32 %v2596, %v2977
      %v2979 = vpop.f32.mrb[0].mxu0
      %v2980 = vadd.f32 %v2600, %v2979
      %v2981 = vpop.f32.mrb[0].mxu0
      %v2982 = vadd.f32 %v2596, %v2981
      %v2983 = vpop.f32.mrb[0].mxu0
      %v2984 = vadd.f32 %v2600, %v2983
      %2985 = vmatprep.mubr.bf16.mxu0 %v2567
      %2986 = vmatmul.mubr.bf16.gmra.mrb[0].mxu0 %v2566
      %v2987 = vpop.f32.mrb[0].mxu0
      %v2988 = vadd.f32 %v2596, %v2987
      %v2989 = vpop.f32.mrb[0].mxu0
      %v2990 = vadd.f32 %v2600, %v2989
      %v2991 = vpop.f32.mrb[0].mxu0
      %v2992 = vadd.f32 %v2596, %v2991
      %v2993 = vpop.f32.mrb[0].mxu0
      %v2994 = vadd.f32 %v2600, %v2993
      %2995 = vmatprep.mubr.bf16.mxu0 %v2569
      %2996 = vmatmul.mubr.bf16.gmra.mrb[0].mxu0 %v2568
      %v2997 = vpop.f32.mrb[0].mxu0
      %v2998 = vadd.f32 %v2596, %v2997
      %v2999 = vpop.f32.mrb[0].mxu0
      %v3000 = vadd.f32 %v2600, %v2999
      %v3001 = vpop.f32.mrb[0].mxu0
      %v3002 = vadd.f32 %v2596, %v3001
      %v3003 = vpop.f32.mrb[0].mxu0
      %v3004 = vadd.f32 %v2600, %v3003
      %3005 = vmatprep.mubr.bf16.mxu0 %v2571
      %3006 = vmatmul.mubr.bf16.gmra.mrb[0].mxu0 %v2570
      %v3007 = vpop.f32.mrb[0].mxu0
      %v3008 = vadd.f32 %v2596, %v3007
      %v3009 = vpop.f32.mrb[0].mxu0
      %v3010 = vadd.f32 %v2600, %v3009
      %v3011 = vpop.f32.mrb[0].mxu0
      %v3012 = vadd.f32 %v2596, %v3011
      %v3013 = vpop.f32.mrb[0].mxu0
      %v3014 = vadd.f32 %v2600, %v3013
      %3015 = vmatprep.mubr.bf16.mxu0 %v2573
      %3016 = vmatmul.mubr.bf16.gmra.mrb[0].mxu0 %v2572
      %v3017 = vpop.f32.mrb[0].mxu0
      %v3018 = vadd.f32 %v2596, %v3017
      %v3019 = vpop.f32.mrb[0].mxu0
      %v3020 = vadd.f32 %v2600, %v3019
      %v3021 = vpop.f32.mrb[0].mxu0
      %v3022 = vadd.f32 %v2596, %v3021
      %v3023 = vpop.f32.mrb[0].mxu0
      %v3024 = vadd.f32 %v2600, %v3023
      %3025 = vmatprep.mubr.bf16.mxu0 %v2575
      %3026 = vmatmul.mubr.bf16.gmra.mrb[0].mxu0 %v2574
      %v3027 = vpop.f32.mrb[0].mxu0
      %v3028 = vadd.f32 %v2596, %v3027
      %v3029 = vpop.f32.mrb[0].mxu0
      %v3030 = vadd.f32 %v2600, %v3029
      %v3031 = vpop.f32.mrb[0].mxu0
      %v3032 = vadd.f32 %v2596, %v3031
      %v3033 = vpop.f32.mrb[0].mxu0
      %v3034 = vadd.f32 %v2600, %v3033
      %3035 = vmatprep.mubr.bf16.mxu0 %v2577
      %3036 = vmatmul.mubr.bf16.gmra.mrb[0].mxu0 %v2576
      %v3037 = vpop.f32.mrb[0].mxu0
      %v3038 = vadd.f32 %v2596, %v3037
      %v3039 = vpop.f32.mrb[0].mxu0
      %v3040 = vadd.f32 %v2600, %v3039
      %v3041 = vpop.f32.mrb[0].mxu0
      %v3042 = vadd.f32 %v2596, %v3041
      %v3043 = vpop.f32.mrb[0].mxu0
      %v3044 = vadd.f32 %v2600, %v3043
      %3045 = vmatprep.mubr.bf16.mxu0 %v2579
      %3046 = vmatmul.mubr.bf16.gmra.mrb[0].mxu0 %v2578
      %v3047 = vpop.f32.mrb[0].mxu0
      %v3048 = vadd.f32 %v2596, %v3047
      %v3049 = vpop.f32.mrb[0].mxu0
      %v3050 = vadd.f32 %v2600, %v3049
      %v3051 = vpop.f32.mrb[0].mxu0
      %v3052 = vadd.f32 %v2596, %v3051
      %v3053 = vpop.f32.mrb[0].mxu0
      %v3054 = vadd.f32 %v2600, %v3053
      %3055 = vmatprep.mubr.bf16.mxu0 %v2581
      %3056 = vmatmul.mubr.bf16.gmra.mrb[0].mxu0 %v2580
      %v3057 = vpop.f32.mrb[0].mxu0
      %v3058 = vadd.f32 %v2596, %v3057
      %v3059 = vpop.f32.mrb[0].mxu0
      %v3060 = vadd.f32 %v2600, %v3059
      %v3061 = vpop.f32.mrb[0].mxu0
      %v3062 = vadd.f32 %v2596, %v3061
      %v3063 = vpop.f32.mrb[0].mxu0
      %v3064 = vadd.f32 %v2600, %v3063
      %3065 = vmatprep.mubr.bf16.mxu0 %v2583
      %3066 = vmatmul.mubr.bf16.gmra.mrb[0].mxu0 %v2582
      %v3067 = vpop.f32.mrb[0].mxu0
      %v3068 = vadd.f32 %v2596, %v3067
      %v3069 = vpop.f32.mrb[0].mxu0
      %v3070 = vadd.f32 %v2600, %v3069
      %v3071 = vpop.f32.mrb[0].mxu0
      %v3072 = vadd.f32 %v2596, %v3071
      %v3073 = vpop.f32.mrb[0].mxu0
      %v3074 = vadd.f32 %v2600, %v3073
      %3075 = vmatprep.mubr.bf16.mxu0 %v2585
      %3076 = vmatmul.mubr.bf16.gmra.mrb[0].mxu0 %v2584
      %v3077 = vpop.f32.mrb[0].mxu0
      %v3078 = vadd.f32 %v2596, %v3077
      %v3079 = vpop.f32.mrb[0].mxu0
      %v3080 = vadd.f32 %v2600, %v3079
      %v3081 = vpop.f32.mrb[0].mxu0
      %v3082 = vadd.f32 %v2596, %v3081
      %v3083 = vpop.f32.mrb[0].mxu0
      %v3084 = vadd.f32 %v2600, %v3083
      %3085 = vmatprep.mubr.bf16.mxu0 %v2587
      %3086 = vmatmul.mubr.bf16.gmra.mrb[0].mxu0 %v2586
      %v3087 = vpop.f32.mrb[0].mxu0
      %v3088 = vadd.f32 %v2596, %v3087
      %v3089 = vpop.f32.mrb[0].mxu0
      %v3090 = vadd.f32 %v2600, %v3089
      %v3091 = vpop.f32.mrb[0].mxu0
      %v3092 = vadd.f32 %v2596, %v3091
      %v3093 = vpop.f32.mrb[0].mxu0
      %v3094 = vadd.f32 %v2600, %v3093
      %3095 = vmatprep.mubr.bf16.mxu0 %v2589
      %3096 = vmatmul.mubr.bf16.gmra.mrb[0].mxu0 %v2588
      %v3097 = vpop.f32.mrb[0].mxu0
      %v3098 = vadd.f32 %v2596, %v3097
      %v3099 = vpop.f32.mrb[0].mxu0
      %v3100 = vadd.f32 %v2600, %v3099
      %v3101 = vpop.f32.mrb[0].mxu0
      %v3102 = vadd.f32 %v2596, %v3101
      %v3103 = vpop.f32.mrb[0].mxu0
      %v3104 = vadd.f32 %v2600, %v3103
      %3105 = vmatprep.mubr.bf16.mxu0 %v2591
      %3106 = vmatmul.mubr.bf16.gmra.mrb[0].mxu0 %v2590
      %v3107 = vpop.f32.mrb[0].mxu0
      %v3108 = vadd.f32 %v2596, %v3107
      %v3109 = vpop.f32.mrb[0].mxu0
      %v3110 = vadd.f32 %v2600, %v3109
      %v3111 = vpop.f32.mrb[0].mxu0
      %v3112 = vadd.f32 %v2596, %v3111
      %v3113 = vpop.f32.mrb[0].mxu0
      %v3114 = vadd.f32 %v2600, %v3113
      %3115 = vdwg.mxu0
      %v3116 = vmax.f32 %v2798, 0.0
      %v3117 = vmax.f32 %v2800, 0.0
      %v3118 = vmax.f32 %v2802, 0.0
      %v3119 = vmax.f32 %v2804, 0.0
      %v3120 = vmax.f32 %v2808, 0.0
      %v3121 = vmax.f32 %v2810, 0.0
      %v3122 = vmax.f32 %v2812, 0.0
      %v3123 = vmax.f32 %v2814, 0.0
      %v3124 = vmax.f32 %v2818, 0.0
      %v3125 = vmax.f32 %v2820, 0.0
      %v3126 = vmax.f32 %v2822, 0.0
      %v3127 = vmax.f32 %v2824, 0.0
      %v3128 = vmax.f32 %v2828, 0.0
      %v3129 = vmax.f32 %v2830, 0.0
      %v3130 = vmax.f32 %v2832, 0.0
      %v3131 = vmax.f32 %v2834, 0.0
      %v3132 = vmax.f32 %v2838, 0.0
      %v3133 = vmax.f32 %v2840, 0.0
      %v3134 = vmax.f32 %v2842, 0.0
      %v3135 = vmax.f32 %v2844, 0.0
      %v3136 = vmax.f32 %v2848, 0.0
      %v3137 = vmax.f32 %v2850, 0.0
      %v3138 = vmax.f32 %v2852, 0.0
      %v3139 = vmax.f32 %v2854, 0.0
      %v3140 = vmax.f32 %v2858, 0.0
      %v3141 = vmax.f32 %v2860, 0.0
      %v3142 = vmax.f32 %v2862, 0.0
      %v3143 = vmax.f32 %v2864, 0.0
      %v3144 = vmax.f32 %v2868, 0.0
      %v3145 = vmax.f32 %v2870, 0.0
      %v3146 = vmax.f32 %v2872, 0.0
      %v3147 = vmax.f32 %v2874, 0.0
      %v3148 = vmax.f32 %v2878, 0.0
      %v3149 = vmax.f32 %v2880, 0.0
      %v3150 = vmax.f32 %v2882, 0.0
      %v3151 = vmax.f32 %v2884, 0.0
      %v3152 = vmax.f32 %v2888, 0.0
      %v3153 = vmax.f32 %v2890, 0.0
      %v3154 = vmax.f32 %v2892, 0.0
      %v3155 = vmax.f32 %v2894, 0.0
      %v3156 = vmax.f32 %v2898, 0.0
      %v3157 = vmax.f32 %v2900, 0.0
      %v3158 = vmax.f32 %v2902, 0.0
      %v3159 = vmax.f32 %v2904, 0.0
      %v3160 = vmax.f32 %v2908, 0.0
      %v3161 = vmax.f32 %v2910, 0.0
      %v3162 = vmax.f32 %v2912, 0.0
      %v3163 = vmax.f32 %v2914, 0.0
      %v3164 = vmax.f32 %v2918, 0.0
      %v3165 = vmax.f32 %v2920, 0.0
      %v3166 = vmax.f32 %v2922, 0.0
      %v3167 = vmax.f32 %v2924, 0.0
      %v3168 = vmax.f32 %v2928, 0.0
      %v3169 = vmax.f32 %v2930, 0.0
      %v3170 = vmax.f32 %v2932, 0.0
      %v3171 = vmax.f32 %v2934, 0.0
      %v3172 = vmax.f32 %v2938, 0.0
      %v3173 = vmax.f32 %v2940, 0.0
      %v3174 = vmax.f32 %v2942, 0.0
      %v3175 = vmax.f32 %v2944, 0.0
      %v3176 = vmax.f32 %v2948, 0.0
      %v3177 = vmax.f32 %v2950, 0.0
      %v3178 = vmax.f32 %v2952, 0.0
      %v3179 = vmax.f32 %v2954, 0.0
      %v3180 = vmax.f32 %v2958, 0.0
      %v3181 = vmax.f32 %v2960, 0.0
      %v3182 = vmax.f32 %v2962, 0.0
      %v3183 = vmax.f32 %v2964, 0.0
      %v3184 = vmax.f32 %v2968, 0.0
      %v3185 = vmax.f32 %v2970, 0.0
      %v3186 = vmax.f32 %v2972, 0.0
      %v3187 = vmax.f32 %v2974, 0.0
      %v3188 = vmax.f32 %v2978, 0.0
      %v3189 = vmax.f32 %v2980, 0.0
      %v3190 = vmax.f32 %v2982, 0.0
      %v3191 = vmax.f32 %v2984, 0.0
      %v3192 = vmax.f32 %v2988, 0.0
      %v3193 = vmax.f32 %v2990, 0.0
      %v3194 = vmax.f32 %v2992, 0.0
      %v3195 = vmax.f32 %v2994, 0.0
      %v3196 = vmax.f32 %v2998, 0.0
      %v3197 = vmax.f32 %v3000, 0.0
      %v3198 = vmax.f32 %v3002, 0.0
      %v3199 = vmax.f32 %v3004, 0.0
      %v3200 = vmax.f32 %v3008, 0.0
      %v3201 = vmax.f32 %v3010, 0.0
      %v3202 = vmax.f32 %v3012, 0.0
      %v3203 = vmax.f32 %v3014, 0.0
      %v3204 = vmax.f32 %v3018, 0.0
      %v3205 = vmax.f32 %v3020, 0.0
      %v3206 = vmax.f32 %v3022, 0.0
      %v3207 = vmax.f32 %v3024, 0.0
      %v3208 = vmax.f32 %v3028, 0.0
      %v3209 = vmax.f32 %v3030, 0.0
      %v3210 = vmax.f32 %v3032, 0.0
      %v3211 = vmax.f32 %v3034, 0.0
      %v3212 = vmax.f32 %v3038, 0.0
      %v3213 = vmax.f32 %v3040, 0.0
      %v3214 = vmax.f32 %v3042, 0.0
      %v3215 = vmax.f32 %v3044, 0.0
      %v3216 = vmax.f32 %v3048, 0.0
      %v3217 = vmax.f32 %v3050, 0.0
      %v3218 = vmax.f32 %v3052, 0.0
      %v3219 = vmax.f32 %v3054, 0.0
      %v3220 = vmax.f32 %v3058, 0.0
      %v3221 = vmax.f32 %v3060, 0.0
      %v3222 = vmax.f32 %v3062, 0.0
      %v3223 = vmax.f32 %v3064, 0.0
      %v3224 = vmax.f32 %v3068, 0.0
      %v3225 = vmax.f32 %v3070, 0.0
      %v3226 = vmax.f32 %v3072, 0.0
      %v3227 = vmax.f32 %v3074, 0.0
      %v3228 = vmax.f32 %v3078, 0.0
      %v3229 = vmax.f32 %v3080, 0.0
      %v3230 = vmax.f32 %v3082, 0.0
      %v3231 = vmax.f32 %v3084, 0.0
      %v3232 = vmax.f32 %v3088, 0.0
      %v3233 = vmax.f32 %v3090, 0.0
      %v3234 = vmax.f32 %v3092, 0.0
      %v3235 = vmax.f32 %v3094, 0.0
      %v3236 = vmax.f32 %v3098, 0.0
      %v3237 = vmax.f32 %v3100, 0.0
      %v3238 = vmax.f32 %v3102, 0.0
      %v3239 = vmax.f32 %v3104, 0.0
      %v3240 = vmax.f32 %v3108, 0.0
      %v3241 = vmax.f32 %v3110, 0.0
      %v3242 = vmax.f32 %v3112, 0.0
      %v3243 = vmax.f32 %v3114, 0.0
      %v3244 = vadd.f32 %v3116, %v1684
      %v3245 = vadd.f32 %v3117, %v1685
      %v3246 = vadd.f32 %v3118, %v1686
      %v3247 = vadd.f32 %v3119, %v1687
      %v3248 = vadd.f32 %v3120, %v1688
      %v3249 = vadd.f32 %v3121, %v1689
      %v3250 = vadd.f32 %v3122, %v1690
      %v3251 = vadd.f32 %v3123, %v1691
      %v3252 = vadd.f32 %v3124, %v1692
      %v3253 = vadd.f32 %v3125, %v1693
      %v3254 = vadd.f32 %v3126, %v1694
      %v3255 = vadd.f32 %v3127, %v1695
      %v3256 = vadd.f32 %v3128, %v1696
      %v3257 = vadd.f32 %v3129, %v1697
      %v3258 = vadd.f32 %v3130, %v1698
      %v3259 = vadd.f32 %v3131, %v1699
      %v3260 = vadd.f32 %v3132, %v1700
      %v3261 = vadd.f32 %v3133, %v1701
      %v3262 = vadd.f32 %v3134, %v1702
      %v3263 = vadd.f32 %v3135, %v1703
      %v3264 = vadd.f32 %v3136, %v1704
      %v3265 = vadd.f32 %v3137, %v1705
      %v3266 = vadd.f32 %v3138, %v1706
      %v3267 = vadd.f32 %v3139, %v1707
      %v3268 = vadd.f32 %v3140, %v1708
      %v3269 = vadd.f32 %v3141, %v1709
      %v3270 = vadd.f32 %v3142, %v1710
      %v3271 = vadd.f32 %v3143, %v1711
      %v3272 = vadd.f32 %v3144, %v1712
      %v3273 = vadd.f32 %v3145, %v1713
      %v3274 = vadd.f32 %v3146, %v1714
      %v3275 = vadd.f32 %v3147, %v1715
      %v3276 = vadd.f32 %v3148, %v1716
      %v3277 = vadd.f32 %v3149, %v1717
      %v3278 = vadd.f32 %v3150, %v1718
      %v3279 = vadd.f32 %v3151, %v1719
      %v3280 = vadd.f32 %v3152, %v1720
      %v3281 = vadd.f32 %v3153, %v1721
      %v3282 = vadd.f32 %v3154, %v1722
      %v3283 = vadd.f32 %v3155, %v1723
      %v3284 = vadd.f32 %v3156, %v1724
      %v3285 = vadd.f32 %v3157, %v1725
      %v3286 = vadd.f32 %v3158, %v1726
      %v3287 = vadd.f32 %v3159, %v1727
      %v3288 = vadd.f32 %v3160, %v1728
      %v3289 = vadd.f32 %v3161, %v1729
      %v3290 = vadd.f32 %v3162, %v1730
      %v3291 = vadd.f32 %v3163, %v1731
      %v3292 = vadd.f32 %v3164, %v1732
      %v3293 = vadd.f32 %v3165, %v1733
      %v3294 = vadd.f32 %v3166, %v1734
      %v3295 = vadd.f32 %v3167, %v1735
      %v3296 = vadd.f32 %v3168, %v1736
      %v3297 = vadd.f32 %v3169, %v1737
      %v3298 = vadd.f32 %v3170, %v1738
      %v3299 = vadd.f32 %v3171, %v1739
      %v3300 = vadd.f32 %v3172, %v1740
      %v3301 = vadd.f32 %v3173, %v1741
      %v3302 = vadd.f32 %v3174, %v1742
      %v3303 = vadd.f32 %v3175, %v1743
      %v3304 = vadd.f32 %v3176, %v1744
      %v3305 = vadd.f32 %v3177, %v1745
      %v3306 = vadd.f32 %v3178, %v1746
      %v3307 = vadd.f32 %v3179, %v1747
      %v3308 = vadd.f32 %v3180, %v1748
      %v3309 = vadd.f32 %v3181, %v1749
      %v3310 = vadd.f32 %v3182, %v1750
      %v3311 = vadd.f32 %v3183, %v1751
      %v3312 = vadd.f32 %v3184, %v1752
      %v3313 = vadd.f32 %v3185, %v1753
      %v3314 = vadd.f32 %v3186, %v1754
      %v3315 = vadd.f32 %v3187, %v1755
      %v3316 = vadd.f32 %v3188, %v1756
      %v3317 = vadd.f32 %v3189, %v1757
      %v3318 = vadd.f32 %v3190, %v1758
      %v3319 = vadd.f32 %v3191, %v1759
      %v3320 = vadd.f32 %v3192, %v1760
      %v3321 = vadd.f32 %v3193, %v1761
      %v3322 = vadd.f32 %v3194, %v1762
      %v3323 = vadd.f32 %v3195, %v1763
      %v3324 = vadd.f32 %v3196, %v1764
      %v3325 = vadd.f32 %v3197, %v1765
      %v3326 = vadd.f32 %v3198, %v1766
      %v3327 = vadd.f32 %v3199, %v1767
      %v3328 = vadd.f32 %v3200, %v1768
      %v3329 = vadd.f32 %v3201, %v1769
      %v3330 = vadd.f32 %v3202, %v1770
      %v3331 = vadd.f32 %v3203, %v1771
      %v3332 = vadd.f32 %v3204, %v1772
      %v3333 = vadd.f32 %v3205, %v1773
      %v3334 = vadd.f32 %v3206, %v1774
      %v3335 = vadd.f32 %v3207, %v1775
      %v3336 = vadd.f32 %v3208, %v1776
      %v3337 = vadd.f32 %v3209, %v1777
      %v3338 = vadd.f32 %v3210, %v1778
      %v3339 = vadd.f32 %v3211, %v1779
      %v3340 = vadd.f32 %v3212, %v1780
      %v3341 = vadd.f32 %v3213, %v1781
      %v3342 = vadd.f32 %v3214, %v1782
      %v3343 = vadd.f32 %v3215, %v1783
      %v3344 = vadd.f32 %v3216, %v1784
      %v3345 = vadd.f32 %v3217, %v1785
      %v3346 = vadd.f32 %v3218, %v1786
      %v3347 = vadd.f32 %v3219, %v1787
      %v3348 = vadd.f32 %v3220, %v1788
      %v3349 = vadd.f32 %v3221, %v1789
      %v3350 = vadd.f32 %v3222, %v1790
      %v3351 = vadd.f32 %v3223, %v1791
      %v3352 = vadd.f32 %v3224, %v1792
      %v3353 = vadd.f32 %v3225, %v1793
      %v3354 = vadd.f32 %v3226, %v1794
      %v3355 = vadd.f32 %v3227, %v1795
      %v3356 = vadd.f32 %v3228, %v1796
      %v3357 = vadd.f32 %v3229, %v1797
      %v3358 = vadd.f32 %v3230, %v1798
      %v3359 = vadd.f32 %v3231, %v1799
      %v3360 = vadd.f32 %v3232, %v1800
      %v3361 = vadd.f32 %v3233, %v1801
      %v3362 = vadd.f32 %v3234, %v1802
      %v3363 = vadd.f32 %v3235, %v1803
      %v3364 = vadd.f32 %v3236, %v1804
      %v3365 = vadd.f32 %v3237, %v1805
      %v3366 = vadd.f32 %v3238, %v1806
      %v3367 = vadd.f32 %v3239, %v1807
      %v3368 = vadd.f32 %v3240, %v1808
      %v3369 = vadd.f32 %v3241, %v1809
      %v3370 = vadd.f32 %v3242, %v1810
      %v3371 = vadd.f32 %v3243, %v1811
      %s3372 = scalar_lea.vmem %s3, 768
      %v3373 = vld [vmem:[%s3372] sm:$0xff]
      %v3374 = vld [vmem:[%s3372 + $0x8] sm:$0xff]
      %v3375 = vld [vmem:[%s3372 + $0x10] sm:$0xff]
      %v3376 = vld [vmem:[%s3372 + $0x18] sm:$0xff]
      %v3377 = vld [vmem:[%s3372 + $0x20] sm:$0xff]
      %v3378 = vld [vmem:[%s3372 + $0x28] sm:$0xff]
      %v3379 = vld [vmem:[%s3372 + $0x30] sm:$0xff]
      %v3380 = vld [vmem:[%s3372 + $0x38] sm:$0xff]
      %v3381 = vld [vmem:[%s3372 + $0x40] sm:$0xff]
      %v3382 = vld [vmem:[%s3372 + $0x48] sm:$0xff]
      %v3383 = vld [vmem:[%s3372 + $0x50] sm:$0xff]
      %v3384 = vld [vmem:[%s3372 + $0x58] sm:$0xff]
      %v3385 = vld [vmem:[%s3372 + $0x60] sm:$0xff]
      %v3386 = vld [vmem:[%s3372 + $0x68] sm:$0xff]
      %v3387 = vld [vmem:[%s3372 + $0x70] sm:$0xff]
      %v3388 = vld [vmem:[%s3372 + $0x78] sm:$0xff]
      %v3389 = vld [vmem:[%s3372 + $0x80] sm:$0xff]
      %v3390 = vld [vmem:[%s3372 + $0x88] sm:$0xff]
      %v3391 = vld [vmem:[%s3372 + $0x90] sm:$0xff]
      %v3392 = vld [vmem:[%s3372 + $0x98] sm:$0xff]
      %v3393 = vld [vmem:[%s3372 + $0xa0] sm:$0xff]
      %v3394 = vld [vmem:[%s3372 + $0xa8] sm:$0xff]
      %v3395 = vld [vmem:[%s3372 + $0xb0] sm:$0xff]
      %v3396 = vld [vmem:[%s3372 + $0xb8] sm:$0xff]
      %v3397 = vld [vmem:[%s3372 + $0xc0] sm:$0xff]
      %v3398 = vld [vmem:[%s3372 + $0xc8] sm:$0xff]
      %v3399 = vld [vmem:[%s3372 + $0xd0] sm:$0xff]
      %v3400 = vld [vmem:[%s3372 + $0xd8] sm:$0xff]
      %v3401 = vld [vmem:[%s3372 + $0xe0] sm:$0xff]
      %v3402 = vld [vmem:[%s3372 + $0xe8] sm:$0xff]
      %v3403 = vld [vmem:[%s3372 + $0xf0] sm:$0xff]
      %v3404 = vld [vmem:[%s3372 + $0xf8] sm:$0xff]
      %s3405 = scalar_lea.vmem %s4, 6
      %v3406 = vld [vmem:[%s3405] sm:$0x3]
      %s3407 = scalar_lea.vmem %s3, 1024
      %v3408 = vld [vmem:[%s3407] sm:$0xff]
      %v3409 = vld [vmem:[%s3407 + $0x8] sm:$0xff]
      %v3410 = vld [vmem:[%s3407 + $0x10] sm:$0xff]
      %v3411 = vld [vmem:[%s3407 + $0x18] sm:$0xff]
      %v3412 = vld [vmem:[%s3407 + $0x20] sm:$0xff]
      %v3413 = vld [vmem:[%s3407 + $0x28] sm:$0xff]
      %v3414 = vld [vmem:[%s3407 + $0x30] sm:$0xff]
      %v3415 = vld [vmem:[%s3407 + $0x38] sm:$0xff]
      %v3416 = vld [vmem:[%s3407 + $0x40] sm:$0xff]
      %v3417 = vld [vmem:[%s3407 + $0x48] sm:$0xff]
      %v3418 = vld [vmem:[%s3407 + $0x50] sm:$0xff]
      %v3419 = vld [vmem:[%s3407 + $0x58] sm:$0xff]
      %v3420 = vld [vmem:[%s3407 + $0x60] sm:$0xff]
      %v3421 = vld [vmem:[%s3407 + $0x68] sm:$0xff]
      %v3422 = vld [vmem:[%s3407 + $0x70] sm:$0xff]
      %v3423 = vld [vmem:[%s3407 + $0x78] sm:$0xff]
      %v3424 = vld [vmem:[%s3407 + $0x80] sm:$0xff]
      %v3425 = vld [vmem:[%s3407 + $0x88] sm:$0xff]
      %v3426 = vld [vmem:[%s3407 + $0x90] sm:$0xff]
      %v3427 = vld [vmem:[%s3407 + $0x98] sm:$0xff]
      %v3428 = vld [vmem:[%s3407 + $0xa0] sm:$0xff]
      %v3429 = vld [vmem:[%s3407 + $0xa8] sm:$0xff]
      %v3430 = vld [vmem:[%s3407 + $0xb0] sm:$0xff]
      %v3431 = vld [vmem:[%s3407 + $0xb8] sm:$0xff]
      %v3432 = vld [vmem:[%s3407 + $0xc0] sm:$0xff]
      %v3433 = vld [vmem:[%s3407 + $0xc8] sm:$0xff]
      %v3434 = vld [vmem:[%s3407 + $0xd0] sm:$0xff]
      %v3435 = vld [vmem:[%s3407 + $0xd8] sm:$0xff]
      %v3436 = vld [vmem:[%s3407 + $0xe0] sm:$0xff]
      %v3437 = vld [vmem:[%s3407 + $0xe8] sm:$0xff]
      %v3438 = vld [vmem:[%s3407 + $0xf0] sm:$0xff]
      %v3439 = vld [vmem:[%s3407 + $0xf8] sm:$0xff]
      %s3440 = scalar_lea.vmem %s4, 8
      %v3441 = vld [vmem:[%s3440] sm:$0x3]
      %s3442 = scalar_lea.vmem %s3, 1280
      %v3443 = vld [vmem:[%s3442] sm:$0xff]
      %v3444 = vld [vmem:[%s3442 + $0x8] sm:$0xff]
      %v3445 = vld [vmem:[%s3442 + $0x10] sm:$0xff]
      %v3446 = vld [vmem:[%s3442 + $0x18] sm:$0xff]
      %v3447 = vld [vmem:[%s3442 + $0x20] sm:$0xff]
      %v3448 = vld [vmem:[%s3442 + $0x28] sm:$0xff]
      %v3449 = vld [vmem:[%s3442 + $0x30] sm:$0xff]
      %v3450 = vld [vmem:[%s3442 + $0x38] sm:$0xff]
      %v3451 = vld [vmem:[%s3442 + $0x40] sm:$0xff]
      %v3452 = vld [vmem:[%s3442 + $0x48] sm:$0xff]
      %v3453 = vld [vmem:[%s3442 + $0x50] sm:$0xff]
      %v3454 = vld [vmem:[%s3442 + $0x58] sm:$0xff]
      %v3455 = vld [vmem:[%s3442 + $0x60] sm:$0xff]
      %v3456 = vld [vmem:[%s3442 + $0x68] sm:$0xff]
      %v3457 = vld [vmem:[%s3442 + $0x70] sm:$0xff]
      %v3458 = vld [vmem:[%s3442 + $0x78] sm:$0xff]
      %v3459 = vld [vmem:[%s3442 + $0x80] sm:$0xff]
      %v3460 = vld [vmem:[%s3442 + $0x88] sm:$0xff]
      %v3461 = vld [vmem:[%s3442 + $0x90] sm:$0xff]
      %v3462 = vld [vmem:[%s3442 + $0x98] sm:$0xff]
      %v3463 = vld [vmem:[%s3442 + $0xa0] sm:$0xff]
      %v3464 = vld [vmem:[%s3442 + $0xa8] sm:$0xff]
      %v3465 = vld [vmem:[%s3442 + $0xb0] sm:$0xff]
      %v3466 = vld [vmem:[%s3442 + $0xb8] sm:$0xff]
      %v3467 = vld [vmem:[%s3442 + $0xc0] sm:$0xff]
      %v3468 = vld [vmem:[%s3442 + $0xc8] sm:$0xff]
      %v3469 = vld [vmem:[%s3442 + $0xd0] sm:$0xff]
      %v3470 = vld [vmem:[%s3442 + $0xd8] sm:$0xff]
      %v3471 = vld [vmem:[%s3442 + $0xe0] sm:$0xff]
      %v3472 = vld [vmem:[%s3442 + $0xe8] sm:$0xff]
      %v3473 = vld [vmem:[%s3442 + $0xf0] sm:$0xff]
      %v3474 = vld [vmem:[%s3442 + $0xf8] sm:$0xff]
      %s3475 = scalar_lea.vmem %s4, 10
      %v3476 = vld [vmem:[%s3475] sm:$0x3]
      %v3477 = vpack.c.bf16 %v3246, %v3244
      %v3478 = vpack.c.bf16 %v3247, %v3245
      %v3479 = vpack.c.bf16 %v3250, %v3248
      %v3480 = vpack.c.bf16 %v3251, %v3249
      %v3481 = vpack.c.bf16 %v3254, %v3252
      %v3482 = vpack.c.bf16 %v3255, %v3253
      %v3483 = vpack.c.bf16 %v3258, %v3256
      %v3484 = vpack.c.bf16 %v3259, %v3257
      %v3485 = vpack.c.bf16 %v3262, %v3260
      %v3486 = vpack.c.bf16 %v3263, %v3261
      %v3487 = vpack.c.bf16 %v3266, %v3264
      %v3488 = vpack.c.bf16 %v3267, %v3265
      %v3489 = vpack.c.bf16 %v3270, %v3268
      %v3490 = vpack.c.bf16 %v3271, %v3269
      %v3491 = vpack.c.bf16 %v3274, %v3272
      %v3492 = vpack.c.bf16 %v3275, %v3273
      %v3493 = vpack.c.bf16 %v3278, %v3276
      %v3494 = vpack.c.bf16 %v3279, %v3277
      %v3495 = vpack.c.bf16 %v3282, %v3280
      %v3496 = vpack.c.bf16 %v3283, %v3281
      %v3497 = vpack.c.bf16 %v3286, %v3284
      %v3498 = vpack.c.bf16 %v3287, %v3285
      %v3499 = vpack.c.bf16 %v3290, %v3288
      %v3500 = vpack.c.bf16 %v3291, %v3289
      %v3501 = vpack.c.bf16 %v3294, %v3292
      %v3502 = vpack.c.bf16 %v3295, %v3293
      %v3503 = vpack.c.bf16 %v3298, %v3296
      %v3504 = vpack.c.bf16 %v3299, %v3297
      %v3505 = vpack.c.bf16 %v3302, %v3300
      %v3506 = vpack.c.bf16 %v3303, %v3301
      %v3507 = vpack.c.bf16 %v3306, %v3304
      %v3508 = vpack.c.bf16 %v3307, %v3305
      %v3509 = vpack.c.bf16 %v3310, %v3308
      %v3510 = vpack.c.bf16 %v3311, %v3309
      %v3511 = vpack.c.bf16 %v3314, %v3312
      %v3512 = vpack.c.bf16 %v3315, %v3313
      %v3513 = vpack.c.bf16 %v3318, %v3316
      %v3514 = vpack.c.bf16 %v3319, %v3317
      %v3515 = vpack.c.bf16 %v3322, %v3320
      %v3516 = vpack.c.bf16 %v3323, %v3321
      %v3517 = vpack.c.bf16 %v3326, %v3324
      %v3518 = vpack.c.bf16 %v3327, %v3325
      %v3519 = vpack.c.bf16 %v3330, %v3328
      %v3520 = vpack.c.bf16 %v3331, %v3329
      %v3521 = vpack.c.bf16 %v3334, %v3332
      %v3522 = vpack.c.bf16 %v3335, %v3333
      %v3523 = vpack.c.bf16 %v3338, %v3336
      %v3524 = vpack.c.bf16 %v3339, %v3337
      %v3525 = vpack.c.bf16 %v3342, %v3340
      %v3526 = vpack.c.bf16 %v3343, %v3341
      %v3527 = vpack.c.bf16 %v3346, %v3344
      %v3528 = vpack.c.bf16 %v3347, %v3345
      %v3529 = vpack.c.bf16 %v3350, %v3348
      %v3530 = vpack.c.bf16 %v3351, %v3349
      %v3531 = vpack.c.bf16 %v3354, %v3352
      %v3532 = vpack.c.bf16 %v3355, %v3353
      %v3533 = vpack.c.bf16 %v3358, %v3356
      %v3534 = vpack.c.bf16 %v3359, %v3357
      %v3535 = vpack.c.bf16 %v3362, %v3360
      %v3536 = vpack.c.bf16 %v3363, %v3361
      %v3537 = vpack.c.bf16 %v3366, %v3364
      %v3538 = vpack.c.bf16 %v3367, %v3365
      %v3539 = vpack.c.bf16 %v3370, %v3368
      %v3540 = vpack.c.bf16 %v3371, %v3369
      %v3542 = vlaneseq
      %v3543 = vshrl.u32 %v3542, 7
      %v3544 = vsub.s32 0, %v3543
      %v3545 = vrot.slane %v3406, %v3544
      %v3546 = vlaneseq
      %v3547 = vshrl.u32 %v3546, 7
      %v3548 = vsub.s32 1, %v3547
      %v3549 = vrot.slane %v3406, %v3548
      %v3584 = vunpack.c.l.b16 %v3373
      %v3585 = vunpack.c.h.b16 %v3373
      %v3586 = vunpack.c.l.b16 %v3374
      %v3587 = vunpack.c.h.b16 %v3374
      %v3588 = vunpack.c.l.b16 %v3375
      %v3589 = vunpack.c.h.b16 %v3375
      %v3590 = vunpack.c.l.b16 %v3376
      %v3591 = vunpack.c.h.b16 %v3376
      %v3592 = vunpack.c.l.b16 %v3377
      %v3593 = vunpack.c.h.b16 %v3377
      %v3594 = vunpack.c.l.b16 %v3378
      %v3595 = vunpack.c.h.b16 %v3378
      %v3596 = vunpack.c.l.b16 %v3379
      %v3597 = vunpack.c.h.b16 %v3379
      %v3598 = vunpack.c.l.b16 %v3380
      %v3599 = vunpack.c.h.b16 %v3380
      %v3600 = vunpack.c.l.b16 %v3381
      %v3601 = vunpack.c.h.b16 %v3381
      %v3602 = vunpack.c.l.b16 %v3382
      %v3603 = vunpack.c.h.b16 %v3382
      %v3604 = vunpack.c.l.b16 %v3383
      %v3605 = vunpack.c.h.b16 %v3383
      %v3606 = vunpack.c.l.b16 %v3384
      %v3607 = vunpack.c.h.b16 %v3384
      %v3608 = vunpack.c.l.b16 %v3385
      %v3609 = vunpack.c.h.b16 %v3385
      %v3610 = vunpack.c.l.b16 %v3386
      %v3611 = vunpack.c.h.b16 %v3386
      %v3612 = vunpack.c.l.b16 %v3387
      %v3613 = vunpack.c.h.b16 %v3387
      %v3614 = vunpack.c.l.b16 %v3388
      %v3615 = vunpack.c.h.b16 %v3388
      %v3616 = vunpack.c.l.b16 %v3389
      %v3617 = vunpack.c.h.b16 %v3389
      %v3618 = vunpack.c.l.b16 %v3390
      %v3619 = vunpack.c.h.b16 %v3390
      %v3620 = vunpack.c.l.b16 %v3391
      %v3621 = vunpack.c.h.b16 %v3391
      %v3622 = vunpack.c.l.b16 %v3392
      %v3623 = vunpack.c.h.b16 %v3392
      %v3624 = vunpack.c.l.b16 %v3393
      %v3625 = vunpack.c.h.b16 %v3393
      %v3626 = vunpack.c.l.b16 %v3394
      %v3627 = vunpack.c.h.b16 %v3394
      %v3628 = vunpack.c.l.b16 %v3395
      %v3629 = vunpack.c.h.b16 %v3395
      %v3630 = vunpack.c.l.b16 %v3396
      %v3631 = vunpack.c.h.b16 %v3396
      %v3632 = vunpack.c.l.b16 %v3397
      %v3633 = vunpack.c.h.b16 %v3397
      %v3634 = vunpack.c.l.b16 %v3398
      %v3635 = vunpack.c.h.b16 %v3398
      %v3636 = vunpack.c.l.b16 %v3399
      %v3637 = vunpack.c.h.b16 %v3399
      %v3638 = vunpack.c.l.b16 %v3400
      %v3639 = vunpack.c.h.b16 %v3400
      %v3640 = vunpack.c.l.b16 %v3401
      %v3641 = vunpack.c.h.b16 %v3401
      %v3642 = vunpack.c.l.b16 %v3402
      %v3643 = vunpack.c.h.b16 %v3402
      %v3644 = vunpack.c.l.b16 %v3403
      %v3645 = vunpack.c.h.b16 %v3403
      %v3646 = vunpack.c.l.b16 %v3404
      %v3647 = vunpack.c.h.b16 %v3404
      %v3648 = vpack.c.b16 %v3586, %v3584
      %v3649 = vpack.c.b16 %v3587, %v3585
      %v3650 = vpack.c.b16 %v3590, %v3588
      %v3651 = vpack.c.b16 %v3591, %v3589
      %v3652 = vpack.c.b16 %v3594, %v3592
      %v3653 = vpack.c.b16 %v3595, %v3593
      %v3654 = vpack.c.b16 %v3598, %v3596
      %v3655 = vpack.c.b16 %v3599, %v3597
      %v3656 = vpack.c.b16 %v3602, %v3600
      %v3657 = vpack.c.b16 %v3603, %v3601
      %v3658 = vpack.c.b16 %v3606, %v3604
      %v3659 = vpack.c.b16 %v3607, %v3605
      %v3660 = vpack.c.b16 %v3610, %v3608
      %v3661 = vpack.c.b16 %v3611, %v3609
      %v3662 = vpack.c.b16 %v3614, %v3612
      %v3663 = vpack.c.b16 %v3615, %v3613
      %v3664 = vpack.c.b16 %v3618, %v3616
      %v3665 = vpack.c.b16 %v3619, %v3617
      %v3666 = vpack.c.b16 %v3622, %v3620
      %v3667 = vpack.c.b16 %v3623, %v3621
      %v3668 = vpack.c.b16 %v3626, %v3624
      %v3669 = vpack.c.b16 %v3627, %v3625
      %v3670 = vpack.c.b16 %v3630, %v3628
      %v3671 = vpack.c.b16 %v3631, %v3629
      %v3672 = vpack.c.b16 %v3634, %v3632
      %v3673 = vpack.c.b16 %v3635, %v3633
      %v3674 = vpack.c.b16 %v3638, %v3636
      %v3675 = vpack.c.b16 %v3639, %v3637
      %v3676 = vpack.c.b16 %v3642, %v3640
      %v3677 = vpack.c.b16 %v3643, %v3641
      %v3678 = vpack.c.b16 %v3646, %v3644
      %v3679 = vpack.c.b16 %v3647, %v3645
      %3712 = vmatprep.subr.bf16.mxu0 %v3649
      %3713 = vmatpush1.bf16.msra.mxu0 %v3648
      %3714 = vmatprep.subr.bf16.mxu0 %v3651
      %3715 = vmatpush1.bf16.msra.mxu0 %v3650
      %3716 = vmatprep.subr.bf16.mxu0 %v3653
      %3717 = vmatpush1.bf16.msra.mxu0 %v3652
      %3718 = vmatprep.subr.bf16.mxu0 %v3655
      %3719 = vmatpush1.bf16.msra.mxu0 %v3654
      %3720 = vmatprep.subr.bf16.mxu0 %v3657
      %3721 = vmatpush1.bf16.msra.mxu0 %v3656
      %3722 = vmatprep.subr.bf16.mxu0 %v3659
      %3723 = vmatpush1.bf16.msra.mxu0 %v3658
      %3724 = vmatprep.subr.bf16.mxu0 %v3661
      %3725 = vmatpush1.bf16.msra.mxu0 %v3660
      %3726 = vmatprep.subr.bf16.mxu0 %v3663
      %3727 = vmatpush1.bf16.msra.mxu0 %v3662
      %3728 = vmatprep.subr.bf16.mxu0 %v3665
      %3729 = vmatpush1.bf16.msra.mxu0 %v3664
      %3730 = vmatprep.subr.bf16.mxu0 %v3667
      %3731 = vmatpush1.bf16.msra.mxu0 %v3666
      %3732 = vmatprep.subr.bf16.mxu0 %v3669
      %3733 = vmatpush1.bf16.msra.mxu0 %v3668
      %3734 = vmatprep.subr.bf16.mxu0 %v3671
      %3735 = vmatpush1.bf16.msra.mxu0 %v3670
      %3736 = vmatprep.subr.bf16.mxu0 %v3673
      %3737 = vmatpush1.bf16.msra.mxu0 %v3672
      %3738 = vmatprep.subr.bf16.mxu0 %v3675
      %3739 = vmatpush1.bf16.msra.mxu0 %v3674
      %3740 = vmatprep.subr.bf16.mxu0 %v3677
      %3741 = vmatpush1.bf16.msra.mxu0 %v3676
      %3742 = vmatprep.subr.bf16.mxu0 %v3679
      %3743 = vmatpush1.bf16.msra.mxu0 %v3678
      %3744 = vmatprep.mubr.bf16.mxu0 %v3478
      %3745 = vmatmul.mubr.bf16.gmra.mrb[0].mxu0 %v3477
      %v3746 = vpop.f32.mrb[0].mxu0
      %v3747 = vadd.f32 %v3545, %v3746
      %v3748 = vpop.f32.mrb[0].mxu0
      %v3749 = vadd.f32 %v3549, %v3748
      %v3750 = vpop.f32.mrb[0].mxu0
      %v3751 = vadd.f32 %v3545, %v3750
      %v3752 = vpop.f32.mrb[0].mxu0
      %v3753 = vadd.f32 %v3549, %v3752
      %3754 = vmatprep.mubr.bf16.mxu0 %v3480
      %3755 = vmatmul.mubr.bf16.gmra.mrb[0].mxu0 %v3479
      %v3756 = vpop.f32.mrb[0].mxu0
      %v3757 = vadd.f32 %v3545, %v3756
      %v3758 = vpop.f32.mrb[0].mxu0
      %v3759 = vadd.f32 %v3549, %v3758
      %v3760 = vpop.f32.mrb[0].mxu0
      %v3761 = vadd.f32 %v3545, %v3760
      %v3762 = vpop.f32.mrb[0].mxu0
      %v3763 = vadd.f32 %v3549, %v3762
      %3764 = vmatprep.mubr.bf16.mxu0 %v3482
      %3765 = vmatmul.mubr.bf16.gmra.mrb[0].mxu0 %v3481
      %v3766 = vpop.f32.mrb[0].mxu0
      %v3767 = vadd.f32 %v3545, %v3766
      %v3768 = vpop.f32.mrb[0].mxu0
      %v3769 = vadd.f32 %v3549, %v3768
      %v3770 = vpop.f32.mrb[0].mxu0
      %v3771 = vadd.f32 %v3545, %v3770
      %v3772 = vpop.f32.mrb[0].mxu0
      %v3773 = vadd.f32 %v3549, %v3772
      %3774 = vmatprep.mubr.bf16.mxu0 %v3484
      %3775 = vmatmul.mubr.bf16.gmra.mrb[0].mxu0 %v3483
      %v3776 = vpop.f32.mrb[0].mxu0
      %v3777 = vadd.f32 %v3545, %v3776
      %v3778 = vpop.f32.mrb[0].mxu0
      %v3779 = vadd.f32 %v3549, %v3778
      %v3780 = vpop.f32.mrb[0].mxu0
      %v3781 = vadd.f32 %v3545, %v3780
      %v3782 = vpop.f32.mrb[0].mxu0
      %v3783 = vadd.f32 %v3549, %v3782
      %3784 = vmatprep.mubr.bf16.mxu0 %v3486
      %3785 = vmatmul.mubr.bf16.gmra.mrb[0].mxu0 %v3485
      %v3786 = vpop.f32.mrb[0].mxu0
      %v3787 = vadd.f32 %v3545, %v3786
      %v3788 = vpop.f32.mrb[0].mxu0
      %v3789 = vadd.f32 %v3549, %v3788
      %v3790 = vpop.f32.mrb[0].mxu0
      %v3791 = vadd.f32 %v3545, %v3790
      %v3792 = vpop.f32.mrb[0].mxu0
      %v3793 = vadd.f32 %v3549, %v3792
      %3794 = vmatprep.mubr.bf16.mxu0 %v3488
      %3795 = vmatmul.mubr.bf16.gmra.mrb[0].mxu0 %v3487
      %v3796 = vpop.f32.mrb[0].mxu0
      %v3797 = vadd.f32 %v3545, %v3796
      %v3798 = vpop.f32.mrb[0].mxu0
      %v3799 = vadd.f32 %v3549, %v3798
      %v3800 = vpop.f32.mrb[0].mxu0
      %v3801 = vadd.f32 %v3545, %v3800
      %v3802 = vpop.f32.mrb[0].mxu0
      %v3803 = vadd.f32 %v3549, %v3802
      %3804 = vmatprep.mubr.bf16.mxu0 %v3490
      %3805 = vmatmul.mubr.bf16.gmra.mrb[0].mxu0 %v3489
      %v3806 = vpop.f32.mrb[0].mxu0
      %v3807 = vadd.f32 %v3545, %v3806
      %v3808 = vpop.f32.mrb[0].mxu0
      %v3809 = vadd.f32 %v3549, %v3808
      %v3810 = vpop.f32.mrb[0].mxu0
      %v3811 = vadd.f32 %v3545, %v3810
      %v3812 = vpop.f32.mrb[0].mxu0
      %v3813 = vadd.f32 %v3549, %v3812
      %3814 = vmatprep.mubr.bf16.mxu0 %v3492
      %3815 = vmatmul.mubr.bf16.gmra.mrb[0].mxu0 %v3491
      %v3816 = vpop.f32.mrb[0].mxu0
      %v3817 = vadd.f32 %v3545, %v3816
      %v3818 = vpop.f32.mrb[0].mxu0
      %v3819 = vadd.f32 %v3549, %v3818
      %v3820 = vpop.f32.mrb[0].mxu0
      %v3821 = vadd.f32 %v3545, %v3820
      %v3822 = vpop.f32.mrb[0].mxu0
      %v3823 = vadd.f32 %v3549, %v3822
      %3824 = vmatprep.mubr.bf16.mxu0 %v3494
      %3825 = vmatmul.mubr.bf16.gmra.mrb[0].mxu0 %v3493
      %v3826 = vpop.f32.mrb[0].mxu0
      %v3827 = vadd.f32 %v3545, %v3826
      %v3828 = vpop.f32.mrb[0].mxu0
      %v3829 = vadd.f32 %v3549, %v3828
      %v3830 = vpop.f32.mrb[0].mxu0
      %v3831 = vadd.f32 %v3545, %v3830
      %v3832 = vpop.f32.mrb[0].mxu0
      %v3833 = vadd.f32 %v3549, %v3832
      %3834 = vmatprep.mubr.bf16.mxu0 %v3496
      %3835 = vmatmul.mubr.bf16.gmra.mrb[0].mxu0 %v3495
      %v3836 = vpop.f32.mrb[0].mxu0
      %v3837 = vadd.f32 %v3545, %v3836
      %v3838 = vpop.f32.mrb[0].mxu0
      %v3839 = vadd.f32 %v3549, %v3838
      %v3840 = vpop.f32.mrb[0].mxu0
      %v3841 = vadd.f32 %v3545, %v3840
      %v3842 = vpop.f32.mrb[0].mxu0
      %v3843 = vadd.f32 %v3549, %v3842
      %3844 = vmatprep.mubr.bf16.mxu0 %v3498
      %3845 = vmatmul.mubr.bf16.gmra.mrb[0].mxu0 %v3497
      %v3846 = vpop.f32.mrb[0].mxu0
      %v3847 = vadd.f32 %v3545, %v3846
      %v3848 = vpop.f32.mrb[0].mxu0
      %v3849 = vadd.f32 %v3549, %v3848
      %v3850 = vpop.f32.mrb[0].mxu0
      %v3851 = vadd.f32 %v3545, %v3850
      %v3852 = vpop.f32.mrb[0].mxu0
      %v3853 = vadd.f32 %v3549, %v3852
      %3854 = vmatprep.mubr.bf16.mxu0 %v3500
      %3855 = vmatmul.mubr.bf16.gmra.mrb[0].mxu0 %v3499
      %v3856 = vpop.f32.mrb[0].mxu0
      %v3857 = vadd.f32 %v3545, %v3856
      %v3858 = vpop.f32.mrb[0].mxu0
      %v3859 = vadd.f32 %v3549, %v3858
      %v3860 = vpop.f32.mrb[0].mxu0
      %v3861 = vadd.f32 %v3545, %v3860
      %v3862 = vpop.f32.mrb[0].mxu0
      %v3863 = vadd.f32 %v3549, %v3862
      %3864 = vmatprep.mubr.bf16.mxu0 %v3502
      %3865 = vmatmul.mubr.bf16.gmra.mrb[0].mxu0 %v3501
      %v3866 = vpop.f32.mrb[0].mxu0
      %v3867 = vadd.f32 %v3545, %v3866
      %v3868 = vpop.f32.mrb[0].mxu0
      %v3869 = vadd.f32 %v3549, %v3868
      %v3870 = vpop.f32.mrb[0].mxu0
      %v3871 = vadd.f32 %v3545, %v3870
      %v3872 = vpop.f32.mrb[0].mxu0
      %v3873 = vadd.f32 %v3549, %v3872
      %3874 = vmatprep.mubr.bf16.mxu0 %v3504
      %3875 = vmatmul.mubr.bf16.gmra.mrb[0].mxu0 %v3503
      %v3876 = vpop.f32.mrb[0].mxu0
      %v3877 = vadd.f32 %v3545, %v3876
      %v3878 = vpop.f32.mrb[0].mxu0
      %v3879 = vadd.f32 %v3549, %v3878
      %v3880 = vpop.f32.mrb[0].mxu0
      %v3881 = vadd.f32 %v3545, %v3880
      %v3882 = vpop.f32.mrb[0].mxu0
      %v3883 = vadd.f32 %v3549, %v3882
      %3884 = vmatprep.mubr.bf16.mxu0 %v3506
      %3885 = vmatmul.mubr.bf16.gmra.mrb[0].mxu0 %v3505
      %v3886 = vpop.f32.mrb[0].mxu0
      %v3887 = vadd.f32 %v3545, %v3886
      %v3888 = vpop.f32.mrb[0].mxu0
      %v3889 = vadd.f32 %v3549, %v3888
      %v3890 = vpop.f32.mrb[0].mxu0
      %v3891 = vadd.f32 %v3545, %v3890
      %v3892 = vpop.f32.mrb[0].mxu0
      %v3893 = vadd.f32 %v3549, %v3892
      %3894 = vmatprep.mubr.bf16.mxu0 %v3508
      %3895 = vmatmul.mubr.bf16.gmra.mrb[0].mxu0 %v3507
      %v3896 = vpop.f32.mrb[0].mxu0
      %v3897 = vadd.f32 %v3545, %v3896
      %v3898 = vpop.f32.mrb[0].mxu0
      %v3899 = vadd.f32 %v3549, %v3898
      %v3900 = vpop.f32.mrb[0].mxu0
      %v3901 = vadd.f32 %v3545, %v3900
      %v3902 = vpop.f32.mrb[0].mxu0
      %v3903 = vadd.f32 %v3549, %v3902
      %3904 = vmatprep.mubr.bf16.mxu0 %v3510
      %3905 = vmatmul.mubr.bf16.gmra.mrb[0].mxu0 %v3509
      %v3906 = vpop.f32.mrb[0].mxu0
      %v3907 = vadd.f32 %v3545, %v3906
      %v3908 = vpop.f32.mrb[0].mxu0
      %v3909 = vadd.f32 %v3549, %v3908
      %v3910 = vpop.f32.mrb[0].mxu0
      %v3911 = vadd.f32 %v3545, %v3910
      %v3912 = vpop.f32.mrb[0].mxu0
      %v3913 = vadd.f32 %v3549, %v3912
      %3914 = vmatprep.mubr.bf16.mxu0 %v3512
      %3915 = vmatmul.mubr.bf16.gmra.mrb[0].mxu0 %v3511
      %v3916 = vpop.f32.mrb[0].mxu0
      %v3917 = vadd.f32 %v3545, %v3916
      %v3918 = vpop.f32.mrb[0].mxu0
      %v3919 = vadd.f32 %v3549, %v3918
      %v3920 = vpop.f32.mrb[0].mxu0
      %v3921 = vadd.f32 %v3545, %v3920
      %v3922 = vpop.f32.mrb[0].mxu0
      %v3923 = vadd.f32 %v3549, %v3922
      %3924 = vmatprep.mubr.bf16.mxu0 %v3514
      %3925 = vmatmul.mubr.bf16.gmra.mrb[0].mxu0 %v3513
      %v3926 = vpop.f32.mrb[0].mxu0
      %v3927 = vadd.f32 %v3545, %v3926
      %v3928 = vpop.f32.mrb[0].mxu0
      %v3929 = vadd.f32 %v3549, %v3928
      %v3930 = vpop.f32.mrb[0].mxu0
      %v3931 = vadd.f32 %v3545, %v3930
      %v3932 = vpop.f32.mrb[0].mxu0
      %v3933 = vadd.f32 %v3549, %v3932
      %3934 = vmatprep.mubr.bf16.mxu0 %v3516
      %3935 = vmatmul.mubr.bf16.gmra.mrb[0].mxu0 %v3515
      %v3936 = vpop.f32.mrb[0].mxu0
      %v3937 = vadd.f32 %v3545, %v3936
      %v3938 = vpop.f32.mrb[0].mxu0
      %v3939 = vadd.f32 %v3549, %v3938
      %v3940 = vpop.f32.mrb[0].mxu0
      %v3941 = vadd.f32 %v3545, %v3940
      %v3942 = vpop.f32.mrb[0].mxu0
      %v3943 = vadd.f32 %v3549, %v3942
      %3944 = vmatprep.mubr.bf16.mxu0 %v3518
      %3945 = vmatmul.mubr.bf16.gmra.mrb[0].mxu0 %v3517
      %v3946 = vpop.f32.mrb[0].mxu0
      %v3947 = vadd.f32 %v3545, %v3946
      %v3948 = vpop.f32.mrb[0].mxu0
      %v3949 = vadd.f32 %v3549, %v3948
      %v3950 = vpop.f32.mrb[0].mxu0
      %v3951 = vadd.f32 %v3545, %v3950
      %v3952 = vpop.f32.mrb[0].mxu0
      %v3953 = vadd.f32 %v3549, %v3952
      %3954 = vmatprep.mubr.bf16.mxu0 %v3520
      %3955 = vmatmul.mubr.bf16.gmra.mrb[0].mxu0 %v3519
      %v3956 = vpop.f32.mrb[0].mxu0
      %v3957 = vadd.f32 %v3545, %v3956
      %v3958 = vpop.f32.mrb[0].mxu0
      %v3959 = vadd.f32 %v3549, %v3958
      %v3960 = vpop.f32.mrb[0].mxu0
      %v3961 = vadd.f32 %v3545, %v3960
      %v3962 = vpop.f32.mrb[0].mxu0
      %v3963 = vadd.f32 %v3549, %v3962
      %3964 = vmatprep.mubr.bf16.mxu0 %v3522
      %3965 = vmatmul.mubr.bf16.gmra.mrb[0].mxu0 %v3521
      %v3966 = vpop.f32.mrb[0].mxu0
      %v3967 = vadd.f32 %v3545, %v3966
      %v3968 = vpop.f32.mrb[0].mxu0
      %v3969 = vadd.f32 %v3549, %v3968
      %v3970 = vpop.f32.mrb[0].mxu0
      %v3971 = vadd.f32 %v3545, %v3970
      %v3972 = vpop.f32.mrb[0].mxu0
      %v3973 = vadd.f32 %v3549, %v3972
      %3974 = vmatprep.mubr.bf16.mxu0 %v3524
      %3975 = vmatmul.mubr.bf16.gmra.mrb[0].mxu0 %v3523
      %v3976 = vpop.f32.mrb[0].mxu0
      %v3977 = vadd.f32 %v3545, %v3976
      %v3978 = vpop.f32.mrb[0].mxu0
      %v3979 = vadd.f32 %v3549, %v3978
      %v3980 = vpop.f32.mrb[0].mxu0
      %v3981 = vadd.f32 %v3545, %v3980
      %v3982 = vpop.f32.mrb[0].mxu0
      %v3983 = vadd.f32 %v3549, %v3982
      %3984 = vmatprep.mubr.bf16.mxu0 %v3526
      %3985 = vmatmul.mubr.bf16.gmra.mrb[0].mxu0 %v3525
      %v3986 = vpop.f32.mrb[0].mxu0
      %v3987 = vadd.f32 %v3545, %v3986
      %v3988 = vpop.f32.mrb[0].mxu0
      %v3989 = vadd.f32 %v3549, %v3988
      %v3990 = vpop.f32.mrb[0].mxu0
      %v3991 = vadd.f32 %v3545, %v3990
      %v3992 = vpop.f32.mrb[0].mxu0
      %v3993 = vadd.f32 %v3549, %v3992
      %3994 = vmatprep.mubr.bf16.mxu0 %v3528
      %3995 = vmatmul.mubr.bf16.gmra.mrb[0].mxu0 %v3527
      %v3996 = vpop.f32.mrb[0].mxu0
      %v3997 = vadd.f32 %v3545, %v3996
      %v3998 = vpop.f32.mrb[0].mxu0
      %v3999 = vadd.f32 %v3549, %v3998
      %v4000 = vpop.f32.mrb[0].mxu0
      %v4001 = vadd.f32 %v3545, %v4000
      %v4002 = vpop.f32.mrb[0].mxu0
      %v4003 = vadd.f32 %v3549, %v4002
      %4004 = vmatprep.mubr.bf16.mxu0 %v3530
      %4005 = vmatmul.mubr.bf16.gmra.mrb[0].mxu0 %v3529
      %v4006 = vpop.f32.mrb[0].mxu0
      %v4007 = vadd.f32 %v3545, %v4006
      %v4008 = vpop.f32.mrb[0].mxu0
      %v4009 = vadd.f32 %v3549, %v4008
      %v4010 = vpop.f32.mrb[0].mxu0
      %v4011 = vadd.f32 %v3545, %v4010
      %v4012 = vpop.f32.mrb[0].mxu0
      %v4013 = vadd.f32 %v3549, %v4012
      %4014 = vmatprep.mubr.bf16.mxu0 %v3532
      %4015 = vmatmul.mubr.bf16.gmra.mrb[0].mxu0 %v3531
      %v4016 = vpop.f32.mrb[0].mxu0
      %v4017 = vadd.f32 %v3545, %v4016
      %v4018 = vpop.f32.mrb[0].mxu0
      %v4019 = vadd.f32 %v3549, %v4018
      %v4020 = vpop.f32.mrb[0].mxu0
      %v4021 = vadd.f32 %v3545, %v4020
      %v4022 = vpop.f32.mrb[0].mxu0
      %v4023 = vadd.f32 %v3549, %v4022
      %4024 = vmatprep.mubr.bf16.mxu0 %v3534
      %4025 = vmatmul.mubr.bf16.gmra.mrb[0].mxu0 %v3533
      %v4026 = vpop.f32.mrb[0].mxu0
      %v4027 = vadd.f32 %v3545, %v4026
      %v4028 = vpop.f32.mrb[0].mxu0
      %v4029 = vadd.f32 %v3549, %v4028
      %v4030 = vpop.f32.mrb[0].mxu0
      %v4031 = vadd.f32 %v3545, %v4030
      %v4032 = vpop.f32.mrb[0].mxu0
      %v4033 = vadd.f32 %v3549, %v4032
      %4034 = vmatprep.mubr.bf16.mxu0 %v3536
      %4035 = vmatmul.mubr.bf16.gmra.mrb[0].mxu0 %v3535
      %v4036 = vpop.f32.mrb[0].mxu0
      %v4037 = vadd.f32 %v3545, %v4036
      %v4038 = vpop.f32.mrb[0].mxu0
      %v4039 = vadd.f32 %v3549, %v4038
      %v4040 = vpop.f32.mrb[0].mxu0
      %v4041 = vadd.f32 %v3545, %v4040
      %v4042 = vpop.f32.mrb[0].mxu0
      %v4043 = vadd.f32 %v3549, %v4042
      %4044 = vmatprep.mubr.bf16.mxu0 %v3538
      %4045 = vmatmul.mubr.bf16.gmra.mrb[0].mxu0 %v3537
      %v4046 = vpop.f32.mrb[0].mxu0
      %v4047 = vadd.f32 %v3545, %v4046
      %v4048 = vpop.f32.mrb[0].mxu0
      %v4049 = vadd.f32 %v3549, %v4048
      %v4050 = vpop.f32.mrb[0].mxu0
      %v4051 = vadd.f32 %v3545, %v4050
      %v4052 = vpop.f32.mrb[0].mxu0
      %v4053 = vadd.f32 %v3549, %v4052
      %4054 = vmatprep.mubr.bf16.mxu0 %v3540
      %4055 = vmatmul.mubr.bf16.gmra.mrb[0].mxu0 %v3539
      %v4056 = vpop.f32.mrb[0].mxu0
      %v4057 = vadd.f32 %v3545, %v4056
      %v4058 = vpop.f32.mrb[0].mxu0
      %v4059 = vadd.f32 %v3549, %v4058
      %v4060 = vpop.f32.mrb[0].mxu0
      %v4061 = vadd.f32 %v3545, %v4060
      %v4062 = vpop.f32.mrb[0].mxu0
      %v4063 = vadd.f32 %v3549, %v4062
      %4064 = vdwg.mxu0
      %v4065 = vmax.f32 %v3747, 0.0
      %v4066 = vmax.f32 %v3749, 0.0
      %v4067 = vmax.f32 %v3751, 0.0
      %v4068 = vmax.f32 %v3753, 0.0
      %v4069 = vmax.f32 %v3757, 0.0
      %v4070 = vmax.f32 %v3759, 0.0
      %v4071 = vmax.f32 %v3761, 0.0
      %v4072 = vmax.f32 %v3763, 0.0
      %v4073 = vmax.f32 %v3767, 0.0
      %v4074 = vmax.f32 %v3769, 0.0
      %v4075 = vmax.f32 %v3771, 0.0
      %v4076 = vmax.f32 %v3773, 0.0
      %v4077 = vmax.f32 %v3777, 0.0
      %v4078 = vmax.f32 %v3779, 0.0
      %v4079 = vmax.f32 %v3781, 0.0
      %v4080 = vmax.f32 %v3783, 0.0
      %v4081 = vmax.f32 %v3787, 0.0
      %v4082 = vmax.f32 %v3789, 0.0
      %v4083 = vmax.f32 %v3791, 0.0
      %v4084 = vmax.f32 %v3793, 0.0
      %v4085 = vmax.f32 %v3797, 0.0
      %v4086 = vmax.f32 %v3799, 0.0
      %v4087 = vmax.f32 %v3801, 0.0
      %v4088 = vmax.f32 %v3803, 0.0
      %v4089 = vmax.f32 %v3807, 0.0
      %v4090 = vmax.f32 %v3809, 0.0
      %v4091 = vmax.f32 %v3811, 0.0
      %v4092 = vmax.f32 %v3813, 0.0
      %v4093 = vmax.f32 %v3817, 0.0
      %v4094 = vmax.f32 %v3819, 0.0
      %v4095 = vmax.f32 %v3821, 0.0
      %v4096 = vmax.f32 %v3823, 0.0
      %v4097 = vmax.f32 %v3827, 0.0
      %v4098 = vmax.f32 %v3829, 0.0
      %v4099 = vmax.f32 %v3831, 0.0
      %v4100 = vmax.f32 %v3833, 0.0
      %v4101 = vmax.f32 %v3837, 0.0
      %v4102 = vmax.f32 %v3839, 0.0
      %v4103 = vmax.f32 %v3841, 0.0
      %v4104 = vmax.f32 %v3843, 0.0
      %v4105 = vmax.f32 %v3847, 0.0
      %v4106 = vmax.f32 %v3849, 0.0
      %v4107 = vmax.f32 %v3851, 0.0
      %v4108 = vmax.f32 %v3853, 0.0
      %v4109 = vmax.f32 %v3857, 0.0
      %v4110 = vmax.f32 %v3859, 0.0
      %v4111 = vmax.f32 %v3861, 0.0
      %v4112 = vmax.f32 %v3863, 0.0
      %v4113 = vmax.f32 %v3867, 0.0
      %v4114 = vmax.f32 %v3869, 0.0
      %v4115 = vmax.f32 %v3871, 0.0
      %v4116 = vmax.f32 %v3873, 0.0
      %v4117 = vmax.f32 %v3877, 0.0
      %v4118 = vmax.f32 %v3879, 0.0
      %v4119 = vmax.f32 %v3881, 0.0
      %v4120 = vmax.f32 %v3883, 0.0
      %v4121 = vmax.f32 %v3887, 0.0
      %v4122 = vmax.f32 %v3889, 0.0
      %v4123 = vmax.f32 %v3891, 0.0
      %v4124 = vmax.f32 %v3893, 0.0
      %v4125 = vmax.f32 %v3897, 0.0
      %v4126 = vmax.f32 %v3899, 0.0
      %v4127 = vmax.f32 %v3901, 0.0
      %v4128 = vmax.f32 %v3903, 0.0
      %v4129 = vmax.f32 %v3907, 0.0
      %v4130 = vmax.f32 %v3909, 0.0
      %v4131 = vmax.f32 %v3911, 0.0
      %v4132 = vmax.f32 %v3913, 0.0
      %v4133 = vmax.f32 %v3917, 0.0
      %v4134 = vmax.f32 %v3919, 0.0
      %v4135 = vmax.f32 %v3921, 0.0
      %v4136 = vmax.f32 %v3923, 0.0
      %v4137 = vmax.f32 %v3927, 0.0
      %v4138 = vmax.f32 %v3929, 0.0
      %v4139 = vmax.f32 %v3931, 0.0
      %v4140 = vmax.f32 %v3933, 0.0
      %v4141 = vmax.f32 %v3937, 0.0
      %v4142 = vmax.f32 %v3939, 0.0
      %v4143 = vmax.f32 %v3941, 0.0
      %v4144 = vmax.f32 %v3943, 0.0
      %v4145 = vmax.f32 %v3947, 0.0
      %v4146 = vmax.f32 %v3949, 0.0
      %v4147 = vmax.f32 %v3951, 0.0
      %v4148 = vmax.f32 %v3953, 0.0
      %v4149 = vmax.f32 %v3957, 0.0
      %v4150 = vmax.f32 %v3959, 0.0
      %v4151 = vmax.f32 %v3961, 0.0
      %v4152 = vmax.f32 %v3963, 0.0
      %v4153 = vmax.f32 %v3967, 0.0
      %v4154 = vmax.f32 %v3969, 0.0
      %v4155 = vmax.f32 %v3971, 0.0
      %v4156 = vmax.f32 %v3973, 0.0
      %v4157 = vmax.f32 %v3977, 0.0
      %v4158 = vmax.f32 %v3979, 0.0
      %v4159 = vmax.f32 %v3981, 0.0
      %v4160 = vmax.f32 %v3983, 0.0
      %v4161 = vmax.f32 %v3987, 0.0
      %v4162 = vmax.f32 %v3989, 0.0
      %v4163 = vmax.f32 %v3991, 0.0
      %v4164 = vmax.f32 %v3993, 0.0
      %v4165 = vmax.f32 %v3997, 0.0
      %v4166 = vmax.f32 %v3999, 0.0
      %v4167 = vmax.f32 %v4001, 0.0
      %v4168 = vmax.f32 %v4003, 0.0
      %v4169 = vmax.f32 %v4007, 0.0
      %v4170 = vmax.f32 %v4009, 0.0
      %v4171 = vmax.f32 %v4011, 0.0
      %v4172 = vmax.f32 %v4013, 0.0
      %v4173 = vmax.f32 %v4017, 0.0
      %v4174 = vmax.f32 %v4019, 0.0
      %v4175 = vmax.f32 %v4021, 0.0
      %v4176 = vmax.f32 %v4023, 0.0
      %v4177 = vmax.f32 %v4027, 0.0
      %v4178 = vmax.f32 %v4029, 0.0
      %v4179 = vmax.f32 %v4031, 0.0
      %v4180 = vmax.f32 %v4033, 0.0
      %v4181 = vmax.f32 %v4037, 0.0
      %v4182 = vmax.f32 %v4039, 0.0
      %v4183 = vmax.f32 %v4041, 0.0
      %v4184 = vmax.f32 %v4043, 0.0
      %v4185 = vmax.f32 %v4047, 0.0
      %v4186 = vmax.f32 %v4049, 0.0
      %v4187 = vmax.f32 %v4051, 0.0
      %v4188 = vmax.f32 %v4053, 0.0
      %v4189 = vmax.f32 %v4057, 0.0
      %v4190 = vmax.f32 %v4059, 0.0
      %v4191 = vmax.f32 %v4061, 0.0
      %v4192 = vmax.f32 %v4063, 0.0
      %v4193 = vadd.f32 %v3244, %v4065
      %v4194 = vadd.f32 %v3245, %v4066
      %v4195 = vadd.f32 %v3246, %v4067
      %v4196 = vadd.f32 %v3247, %v4068
      %v4197 = vadd.f32 %v3248, %v4069
      %v4198 = vadd.f32 %v3249, %v4070
      %v4199 = vadd.f32 %v3250, %v4071
      %v4200 = vadd.f32 %v3251, %v4072
      %v4201 = vadd.f32 %v3252, %v4073
      %v4202 = vadd.f32 %v3253, %v4074
      %v4203 = vadd.f32 %v3254, %v4075
      %v4204 = vadd.f32 %v3255, %v4076
      %v4205 = vadd.f32 %v3256, %v4077
      %v4206 = vadd.f32 %v3257, %v4078
      %v4207 = vadd.f32 %v3258, %v4079
      %v4208 = vadd.f32 %v3259, %v4080
      %v4209 = vadd.f32 %v3260, %v4081
      %v4210 = vadd.f32 %v3261, %v4082
      %v4211 = vadd.f32 %v3262, %v4083
      %v4212 = vadd.f32 %v3263, %v4084
      %v4213 = vadd.f32 %v3264, %v4085
      %v4214 = vadd.f32 %v3265, %v4086
      %v4215 = vadd.f32 %v3266, %v4087
      %v4216 = vadd.f32 %v3267, %v4088
      %v4217 = vadd.f32 %v3268, %v4089
      %v4218 = vadd.f32 %v3269, %v4090
      %v4219 = vadd.f32 %v3270, %v4091
      %v4220 = vadd.f32 %v3271, %v4092
      %v4221 = vadd.f32 %v3272, %v4093
      %v4222 = vadd.f32 %v3273, %v4094
      %v4223 = vadd.f32 %v3274, %v4095
      %v4224 = vadd.f32 %v3275, %v4096
      %v4225 = vadd.f32 %v3276, %v4097
      %v4226 = vadd.f32 %v3277, %v4098
      %v4227 = vadd.f32 %v3278, %v4099
      %v4228 = vadd.f32 %v3279, %v4100
      %v4229 = vadd.f32 %v3280, %v4101
      %v4230 = vadd.f32 %v3281, %v4102
      %v4231 = vadd.f32 %v3282, %v4103
      %v4232 = vadd.f32 %v3283, %v4104
      %v4233 = vadd.f32 %v3284, %v4105
      %v4234 = vadd.f32 %v3285, %v4106
      %v4235 = vadd.f32 %v3286, %v4107
      %v4236 = vadd.f32 %v3287, %v4108
      %v4237 = vadd.f32 %v3288, %v4109
      %v4238 = vadd.f32 %v3289, %v4110
      %v4239 = vadd.f32 %v3290, %v4111
      %v4240 = vadd.f32 %v3291, %v4112
      %v4241 = vadd.f32 %v3292, %v4113
      %v4242 = vadd.f32 %v3293, %v4114
      %v4243 = vadd.f32 %v3294, %v4115
      %v4244 = vadd.f32 %v3295, %v4116
      %v4245 = vadd.f32 %v3296, %v4117
      %v4246 = vadd.f32 %v3297, %v4118
      %v4247 = vadd.f32 %v3298, %v4119
      %v4248 = vadd.f32 %v3299, %v4120
      %v4249 = vadd.f32 %v3300, %v4121
      %v4250 = vadd.f32 %v3301, %v4122
      %v4251 = vadd.f32 %v3302, %v4123
      %v4252 = vadd.f32 %v3303, %v4124
      %v4253 = vadd.f32 %v3304, %v4125
      %v4254 = vadd.f32 %v3305, %v4126
      %v4255 = vadd.f32 %v3306, %v4127
      %v4256 = vadd.f32 %v3307, %v4128
      %v4257 = vadd.f32 %v3308, %v4129
      %v4258 = vadd.f32 %v3309, %v4130
      %v4259 = vadd.f32 %v3310, %v4131
      %v4260 = vadd.f32 %v3311, %v4132
      %v4261 = vadd.f32 %v3312, %v4133
      %v4262 = vadd.f32 %v3313, %v4134
      %v4263 = vadd.f32 %v3314, %v4135
      %v4264 = vadd.f32 %v3315, %v4136
      %v4265 = vadd.f32 %v3316, %v4137
      %v4266 = vadd.f32 %v3317, %v4138
      %v4267 = vadd.f32 %v3318, %v4139
      %v4268 = vadd.f32 %v3319, %v4140
      %v4269 = vadd.f32 %v3320, %v4141
      %v4270 = vadd.f32 %v3321, %v4142
      %v4271 = vadd.f32 %v3322, %v4143
      %v4272 = vadd.f32 %v3323, %v4144
      %v4273 = vadd.f32 %v3324, %v4145
      %v4274 = vadd.f32 %v3325, %v4146
      %v4275 = vadd.f32 %v3326, %v4147
      %v4276 = vadd.f32 %v3327, %v4148
      %v4277 = vadd.f32 %v3328, %v4149
      %v4278 = vadd.f32 %v3329, %v4150
      %v4279 = vadd.f32 %v3330, %v4151
      %v4280 = vadd.f32 %v3331, %v4152
      %v4281 = vadd.f32 %v3332, %v4153
      %v4282 = vadd.f32 %v3333, %v4154
      %v4283 = vadd.f32 %v3334, %v4155
      %v4284 = vadd.f32 %v3335, %v4156
      %v4285 = vadd.f32 %v3336, %v4157
      %v4286 = vadd.f32 %v3337, %v4158
      %v4287 = vadd.f32 %v3338, %v4159
      %v4288 = vadd.f32 %v3339, %v4160
      %v4289 = vadd.f32 %v3340, %v4161
      %v4290 = vadd.f32 %v3341, %v4162
      %v4291 = vadd.f32 %v3342, %v4163
      %v4292 = vadd.f32 %v3343, %v4164
      %v4293 = vadd.f32 %v3344, %v4165
      %v4294 = vadd.f32 %v3345, %v4166
      %v4295 = vadd.f32 %v3346, %v4167
      %v4296 = vadd.f32 %v3347, %v4168
      %v4297 = vadd.f32 %v3348, %v4169
      %v4298 = vadd.f32 %v3349, %v4170
      %v4299 = vadd.f32 %v3350, %v4171
      %v4300 = vadd.f32 %v3351, %v4172
      %v4301 = vadd.f32 %v3352, %v4173
      %v4302 = vadd.f32 %v3353, %v4174
      %v4303 = vadd.f32 %v3354, %v4175
      %v4304 = vadd.f32 %v3355, %v4176
      %v4305 = vadd.f32 %v3356, %v4177
      %v4306 = vadd.f32 %v3357, %v4178
      %v4307 = vadd.f32 %v3358, %v4179
      %v4308 = vadd.f32 %v3359, %v4180
      %v4309 = vadd.f32 %v3360, %v4181
      %v4310 = vadd.f32 %v3361, %v4182
      %v4311 = vadd.f32 %v3362, %v4183
      %v4312 = vadd.f32 %v3363, %v4184
      %v4313 = vadd.f32 %v3364, %v4185
      %v4314 = vadd.f32 %v3365, %v4186
      %v4315 = vadd.f32 %v3366, %v4187
      %v4316 = vadd.f32 %v3367, %v4188
      %v4317 = vadd.f32 %v3368, %v4189
      %v4318 = vadd.f32 %v3369, %v4190
      %v4319 = vadd.f32 %v3370, %v4191
      %v4320 = vadd.f32 %v3371, %v4192
      %v4321 = vpack.c.bf16 %v4195, %v4193
      %v4322 = vpack.c.bf16 %v4196, %v4194
      %v4323 = vpack.c.bf16 %v4199, %v4197
      %v4324 = vpack.c.bf16 %v4200, %v4198
      %v4325 = vpack.c.bf16 %v4203, %v4201
      %v4326 = vpack.c.bf16 %v4204, %v4202
      %v4327 = vpack.c.bf16 %v4207, %v4205
      %v4328 = vpack.c.bf16 %v4208, %v4206
      %v4329 = vpack.c.bf16 %v4211, %v4209
      %v4330 = vpack.c.bf16 %v4212, %v4210
      %v4331 = vpack.c.bf16 %v4215, %v4213
      %v4332 = vpack.c.bf16 %v4216, %v4214
      %v4333 = vpack.c.bf16 %v4219, %v4217
      %v4334 = vpack.c.bf16 %v4220, %v4218
      %v4335 = vpack.c.bf16 %v4223, %v4221
      %v4336 = vpack.c.bf16 %v4224, %v4222
      %v4337 = vpack.c.bf16 %v4227, %v4225
      %v4338 = vpack.c.bf16 %v4228, %v4226
      %v4339 = vpack.c.bf16 %v4231, %v4229
      %v4340 = vpack.c.bf16 %v4232, %v4230
      %v4341 = vpack.c.bf16 %v4235, %v4233
      %v4342 = vpack.c.bf16 %v4236, %v4234
      %v4343 = vpack.c.bf16 %v4239, %v4237
      %v4344 = vpack.c.bf16 %v4240, %v4238
      %v4345 = vpack.c.bf16 %v4243, %v4241
      %v4346 = vpack.c.bf16 %v4244, %v4242
      %v4347 = vpack.c.bf16 %v4247, %v4245
      %v4348 = vpack.c.bf16 %v4248, %v4246
      %v4349 = vpack.c.bf16 %v4251, %v4249
      %v4350 = vpack.c.bf16 %v4252, %v4250
      %v4351 = vpack.c.bf16 %v4255, %v4253
      %v4352 = vpack.c.bf16 %v4256, %v4254
      %v4353 = vpack.c.bf16 %v4259, %v4257
      %v4354 = vpack.c.bf16 %v4260, %v4258
      %v4355 = vpack.c.bf16 %v4263, %v4261
      %v4356 = vpack.c.bf16 %v4264, %v4262
      %v4357 = vpack.c.bf16 %v4267, %v4265
      %v4358 = vpack.c.bf16 %v4268, %v4266
      %v4359 = vpack.c.bf16 %v4271, %v4269
      %v4360 = vpack.c.bf16 %v4272, %v4270
      %v4361 = vpack.c.bf16 %v4275, %v4273
      %v4362 = vpack.c.bf16 %v4276, %v4274
      %v4363 = vpack.c.bf16 %v4279, %v4277
      %v4364 = vpack.c.bf16 %v4280, %v4278
      %v4365 = vpack.c.bf16 %v4283, %v4281
      %v4366 = vpack.c.bf16 %v4284, %v4282
      %v4367 = vpack.c.bf16 %v4287, %v4285
      %v4368 = vpack.c.bf16 %v4288, %v4286
      %v4369 = vpack.c.bf16 %v4291, %v4289
      %v4370 = vpack.c.bf16 %v4292, %v4290
      %v4371 = vpack.c.bf16 %v4295, %v4293
      %v4372 = vpack.c.bf16 %v4296, %v4294
      %v4373 = vpack.c.bf16 %v4299, %v4297
      %v4374 = vpack.c.bf16 %v4300, %v4298
      %v4375 = vpack.c.bf16 %v4303, %v4301
      %v4376 = vpack.c.bf16 %v4304, %v4302
      %v4377 = vpack.c.bf16 %v4307, %v4305
      %v4378 = vpack.c.bf16 %v4308, %v4306
      %v4379 = vpack.c.bf16 %v4311, %v4309
      %v4380 = vpack.c.bf16 %v4312, %v4310
      %v4381 = vpack.c.bf16 %v4315, %v4313
      %v4382 = vpack.c.bf16 %v4316, %v4314
      %v4383 = vpack.c.bf16 %v4319, %v4317
      %v4384 = vpack.c.bf16 %v4320, %v4318
      %v4386 = vlaneseq
      %v4387 = vshrl.u32 %v4386, 7
      %v4388 = vsub.s32 0, %v4387
      %v4389 = vrot.slane %v3441, %v4388
      %v4390 = vlaneseq
      %v4391 = vshrl.u32 %v4390, 7
      %v4392 = vsub.s32 1, %v4391
      %v4393 = vrot.slane %v3441, %v4392
      %v4428 = vunpack.c.l.b16 %v3408
      %v4429 = vunpack.c.h.b16 %v3408
      %v4430 = vunpack.c.l.b16 %v3409
      %v4431 = vunpack.c.h.b16 %v3409
      %v4432 = vunpack.c.l.b16 %v3410
      %v4433 = vunpack.c.h.b16 %v3410
      %v4434 = vunpack.c.l.b16 %v3411
      %v4435 = vunpack.c.h.b16 %v3411
      %v4436 = vunpack.c.l.b16 %v3412
      %v4437 = vunpack.c.h.b16 %v3412
      %v4438 = vunpack.c.l.b16 %v3413
      %v4439 = vunpack.c.h.b16 %v3413
      %v4440 = vunpack.c.l.b16 %v3414
      %v4441 = vunpack.c.h.b16 %v3414
      %v4442 = vunpack.c.l.b16 %v3415
      %v4443 = vunpack.c.h.b16 %v3415
      %v4444 = vunpack.c.l.b16 %v3416
      %v4445 = vunpack.c.h.b16 %v3416
      %v4446 = vunpack.c.l.b16 %v3417
      %v4447 = vunpack.c.h.b16 %v3417
      %v4448 = vunpack.c.l.b16 %v3418
      %v4449 = vunpack.c.h.b16 %v3418
      %v4450 = vunpack.c.l.b16 %v3419
      %v4451 = vunpack.c.h.b16 %v3419
      %v4452 = vunpack.c.l.b16 %v3420
      %v4453 = vunpack.c.h.b16 %v3420
      %v4454 = vunpack.c.l.b16 %v3421
      %v4455 = vunpack.c.h.b16 %v3421
      %v4456 = vunpack.c.l.b16 %v3422
      %v4457 = vunpack.c.h.b16 %v3422
      %v4458 = vunpack.c.l.b16 %v3423
      %v4459 = vunpack.c.h.b16 %v3423
      %v4460 = vunpack.c.l.b16 %v3424
      %v4461 = vunpack.c.h.b16 %v3424
      %v4462 = vunpack.c.l.b16 %v3425
      %v4463 = vunpack.c.h.b16 %v3425
      %v4464 = vunpack.c.l.b16 %v3426
      %v4465 = vunpack.c.h.b16 %v3426
      %v4466 = vunpack.c.l.b16 %v3427
      %v4467 = vunpack.c.h.b16 %v3427
      %v4468 = vunpack.c.l.b16 %v3428
      %v4469 = vunpack.c.h.b16 %v3428
      %v4470 = vunpack.c.l.b16 %v3429
      %v4471 = vunpack.c.h.b16 %v3429
      %v4472 = vunpack.c.l.b16 %v3430
      %v4473 = vunpack.c.h.b16 %v3430
      %v4474 = vunpack.c.l.b16 %v3431
      %v4475 = vunpack.c.h.b16 %v3431
      %v4476 = vunpack.c.l.b16 %v3432
      %v4477 = vunpack.c.h.b16 %v3432
      %v4478 = vunpack.c.l.b16 %v3433
      %v4479 = vunpack.c.h.b16 %v3433
      %v4480 = vunpack.c.l.b16 %v3434
      %v4481 = vunpack.c.h.b16 %v3434
      %v4482 = vunpack.c.l.b16 %v3435
      %v4483 = vunpack.c.h.b16 %v3435
      %v4484 = vunpack.c.l.b16 %v3436
      %v4485 = vunpack.c.h.b16 %v3436
      %v4486 = vunpack.c.l.b16 %v3437
      %v4487 = vunpack.c.h.b16 %v3437
      %v4488 = vunpack.c.l.b16 %v3438
      %v4489 = vunpack.c.h.b16 %v3438
      %v4490 = vunpack.c.l.b16 %v3439
      %v4491 = vunpack.c.h.b16 %v3439
      %v4492 = vpack.c.b16 %v4430, %v4428
      %v4493 = vpack.c.b16 %v4431, %v4429
      %v4494 = vpack.c.b16 %v4434, %v4432
      %v4495 = vpack.c.b16 %v4435, %v4433
      %v4496 = vpack.c.b16 %v4438, %v4436
      %v4497 = vpack.c.b16 %v4439, %v4437
      %v4498 = vpack.c.b16 %v4442, %v4440
      %v4499 = vpack.c.b16 %v4443, %v4441
      %v4500 = vpack.c.b16 %v4446, %v4444
      %v4501 = vpack.c.b16 %v4447, %v4445
      %v4502 = vpack.c.b16 %v4450, %v4448
      %v4503 = vpack.c.b16 %v4451, %v4449
      %v4504 = vpack.c.b16 %v4454, %v4452
      %v4505 = vpack.c.b16 %v4455, %v4453
      %v4506 = vpack.c.b16 %v4458, %v4456
      %v4507 = vpack.c.b16 %v4459, %v4457
      %v4508 = vpack.c.b16 %v4462, %v4460
      %v4509 = vpack.c.b16 %v4463, %v4461
      %v4510 = vpack.c.b16 %v4466, %v4464
      %v4511 = vpack.c.b16 %v4467, %v4465
      %v4512 = vpack.c.b16 %v4470, %v4468
      %v4513 = vpack.c.b16 %v4471, %v4469
      %v4514 = vpack.c.b16 %v4474, %v4472
      %v4515 = vpack.c.b16 %v4475, %v4473
      %v4516 = vpack.c.b16 %v4478, %v4476
      %v4517 = vpack.c.b16 %v4479, %v4477
      %v4518 = vpack.c.b16 %v4482, %v4480
      %v4519 = vpack.c.b16 %v4483, %v4481
      %v4520 = vpack.c.b16 %v4486, %v4484
      %v4521 = vpack.c.b16 %v4487, %v4485
      %v4522 = vpack.c.b16 %v4490, %v4488
      %v4523 = vpack.c.b16 %v4491, %v4489
      %4556 = vmatprep.subr.bf16.mxu0 %v4493
      %4557 = vmatpush1.bf16.msra.mxu0 %v4492
      %4558 = vmatprep.subr.bf16.mxu0 %v4495
      %4559 = vmatpush1.bf16.msra.mxu0 %v4494
      %4560 = vmatprep.subr.bf16.mxu0 %v4497
      %4561 = vmatpush1.bf16.msra.mxu0 %v4496
      %4562 = vmatprep.subr.bf16.mxu0 %v4499
      %4563 = vmatpush1.bf16.msra.mxu0 %v4498
      %4564 = vmatprep.subr.bf16.mxu0 %v4501
      %4565 = vmatpush1.bf16.msra.mxu0 %v4500
      %4566 = vmatprep.subr.bf16.mxu0 %v4503
      %4567 = vmatpush1.bf16.msra.mxu0 %v4502
      %4568 = vmatprep.subr.bf16.mxu0 %v4505
      %4569 = vmatpush1.bf16.msra.mxu0 %v4504
      %4570 = vmatprep.subr.bf16.mxu0 %v4507
      %4571 = vmatpush1.bf16.msra.mxu0 %v4506
      %4572 = vmatprep.subr.bf16.mxu0 %v4509
      %4573 = vmatpush1.bf16.msra.mxu0 %v4508
      %4574 = vmatprep.subr.bf16.mxu0 %v4511
      %4575 = vmatpush1.bf16.msra.mxu0 %v4510
      %4576 = vmatprep.subr.bf16.mxu0 %v4513
      %4577 = vmatpush1.bf16.msra.mxu0 %v4512
      %4578 = vmatprep.subr.bf16.mxu0 %v4515
      %4579 = vmatpush1.bf16.msra.mxu0 %v4514
      %4580 = vmatprep.subr.bf16.mxu0 %v4517
      %4581 = vmatpush1.bf16.msra.mxu0 %v4516
      %4582 = vmatprep.subr.bf16.mxu0 %v4519
      %4583 = vmatpush1.bf16.msra.mxu0 %v4518
      %4584 = vmatprep.subr.bf16.mxu0 %v4521
      %4585 = vmatpush1.bf16.msra.mxu0 %v4520
      %4586 = vmatprep.subr.bf16.mxu0 %v4523
      %4587 = vmatpush1.bf16.msra.mxu0 %v4522
      %4588 = vmatprep.mubr.bf16.mxu0 %v4322
      %4589 = vmatmul.mubr.bf16.gmra.mrb[0].mxu0 %v4321
      %v4590 = vpop.f32.mrb[0].mxu0
      %v4591 = vadd.f32 %v4389, %v4590
      %v4592 = vpop.f32.mrb[0].mxu0
      %v4593 = vadd.f32 %v4393, %v4592
      %v4594 = vpop.f32.mrb[0].mxu0
      %v4595 = vadd.f32 %v4389, %v4594
      %v4596 = vpop.f32.mrb[0].mxu0
      %v4597 = vadd.f32 %v4393, %v4596
      %4598 = vmatprep.mubr.bf16.mxu0 %v4324
      %4599 = vmatmul.mubr.bf16.gmra.mrb[0].mxu0 %v4323
      %v4600 = vpop.f32.mrb[0].mxu0
      %v4601 = vadd.f32 %v4389, %v4600
      %v4602 = vpop.f32.mrb[0].mxu0
      %v4603 = vadd.f32 %v4393, %v4602
      %v4604 = vpop.f32.mrb[0].mxu0
      %v4605 = vadd.f32 %v4389, %v4604
      %v4606 = vpop.f32.mrb[0].mxu0
      %v4607 = vadd.f32 %v4393, %v4606
      %4608 = vmatprep.mubr.bf16.mxu0 %v4326
      %4609 = vmatmul.mubr.bf16.gmra.mrb[0].mxu0 %v4325
      %v4610 = vpop.f32.mrb[0].mxu0
      %v4611 = vadd.f32 %v4389, %v4610
      %v4612 = vpop.f32.mrb[0].mxu0
      %v4613 = vadd.f32 %v4393, %v4612
      %v4614 = vpop.f32.mrb[0].mxu0
      %v4615 = vadd.f32 %v4389, %v4614
      %v4616 = vpop.f32.mrb[0].mxu0
      %v4617 = vadd.f32 %v4393, %v4616
      %4618 = vmatprep.mubr.bf16.mxu0 %v4328
      %4619 = vmatmul.mubr.bf16.gmra.mrb[0].mxu0 %v4327
      %v4620 = vpop.f32.mrb[0].mxu0
      %v4621 = vadd.f32 %v4389, %v4620
      %v4622 = vpop.f32.mrb[0].mxu0
      %v4623 = vadd.f32 %v4393, %v4622
      %v4624 = vpop.f32.mrb[0].mxu0
      %v4625 = vadd.f32 %v4389, %v4624
      %v4626 = vpop.f32.mrb[0].mxu0
      %v4627 = vadd.f32 %v4393, %v4626
      %4628 = vmatprep.mubr.bf16.mxu0 %v4330
      %4629 = vmatmul.mubr.bf16.gmra.mrb[0].mxu0 %v4329
      %v4630 = vpop.f32.mrb[0].mxu0
      %v4631 = vadd.f32 %v4389, %v4630
      %v4632 = vpop.f32.mrb[0].mxu0
      %v4633 = vadd.f32 %v4393, %v4632
      %v4634 = vpop.f32.mrb[0].mxu0
      %v4635 = vadd.f32 %v4389, %v4634
      %v4636 = vpop.f32.mrb[0].mxu0
      %v4637 = vadd.f32 %v4393, %v4636
      %4638 = vmatprep.mubr.bf16.mxu0 %v4332
      %4639 = vmatmul.mubr.bf16.gmra.mrb[0].mxu0 %v4331
      %v4640 = vpop.f32.mrb[0].mxu0
      %v4641 = vadd.f32 %v4389, %v4640
      %v4642 = vpop.f32.mrb[0].mxu0
      %v4643 = vadd.f32 %v4393, %v4642
      %v4644 = vpop.f32.mrb[0].mxu0
      %v4645 = vadd.f32 %v4389, %v4644
      %v4646 = vpop.f32.mrb[0].mxu0
      %v4647 = vadd.f32 %v4393, %v4646
      %4648 = vmatprep.mubr.bf16.mxu0 %v4334
      %4649 = vmatmul.mubr.bf16.gmra.mrb[0].mxu0 %v4333
      %v4650 = vpop.f32.mrb[0].mxu0
      %v4651 = vadd.f32 %v4389, %v4650
      %v4652 = vpop.f32.mrb[0].mxu0
      %v4653 = vadd.f32 %v4393, %v4652
      %v4654 = vpop.f32.mrb[0].mxu0
      %v4655 = vadd.f32 %v4389, %v4654
      %v4656 = vpop.f32.mrb[0].mxu0
      %v4657 = vadd.f32 %v4393, %v4656
      %4658 = vmatprep.mubr.bf16.mxu0 %v4336
      %4659 = vmatmul.mubr.bf16.gmra.mrb[0].mxu0 %v4335
      %v4660 = vpop.f32.mrb[0].mxu0
      %v4661 = vadd.f32 %v4389, %v4660
      %v4662 = vpop.f32.mrb[0].mxu0
      %v4663 = vadd.f32 %v4393, %v4662
      %v4664 = vpop.f32.mrb[0].mxu0
      %v4665 = vadd.f32 %v4389, %v4664
      %v4666 = vpop.f32.mrb[0].mxu0
      %v4667 = vadd.f32 %v4393, %v4666
      %4668 = vmatprep.mubr.bf16.mxu0 %v4338
      %4669 = vmatmul.mubr.bf16.gmra.mrb[0].mxu0 %v4337
      %v4670 = vpop.f32.mrb[0].mxu0
      %v4671 = vadd.f32 %v4389, %v4670
      %v4672 = vpop.f32.mrb[0].mxu0
      %v4673 = vadd.f32 %v4393, %v4672
      %v4674 = vpop.f32.mrb[0].mxu0
      %v4675 = vadd.f32 %v4389, %v4674
      %v4676 = vpop.f32.mrb[0].mxu0
      %v4677 = vadd.f32 %v4393, %v4676
      %4678 = vmatprep.mubr.bf16.mxu0 %v4340
      %4679 = vmatmul.mubr.bf16.gmra.mrb[0].mxu0 %v4339
      %v4680 = vpop.f32.mrb[0].mxu0
      %v4681 = vadd.f32 %v4389, %v4680
      %v4682 = vpop.f32.mrb[0].mxu0
      %v4683 = vadd.f32 %v4393, %v4682
      %v4684 = vpop.f32.mrb[0].mxu0
      %v4685 = vadd.f32 %v4389, %v4684
      %v4686 = vpop.f32.mrb[0].mxu0
      %v4687 = vadd.f32 %v4393, %v4686
      %4688 = vmatprep.mubr.bf16.mxu0 %v4342
      %4689 = vmatmul.mubr.bf16.gmra.mrb[0].mxu0 %v4341
      %v4690 = vpop.f32.mrb[0].mxu0
      %v4691 = vadd.f32 %v4389, %v4690
      %v4692 = vpop.f32.mrb[0].mxu0
      %v4693 = vadd.f32 %v4393, %v4692
      %v4694 = vpop.f32.mrb[0].mxu0
      %v4695 = vadd.f32 %v4389, %v4694
      %v4696 = vpop.f32.mrb[0].mxu0
      %v4697 = vadd.f32 %v4393, %v4696
      %4698 = vmatprep.mubr.bf16.mxu0 %v4344
      %4699 = vmatmul.mubr.bf16.gmra.mrb[0].mxu0 %v4343
      %v4700 = vpop.f32.mrb[0].mxu0
      %v4701 = vadd.f32 %v4389, %v4700
      %v4702 = vpop.f32.mrb[0].mxu0
      %v4703 = vadd.f32 %v4393, %v4702
      %v4704 = vpop.f32.mrb[0].mxu0
      %v4705 = vadd.f32 %v4389, %v4704
      %v4706 = vpop.f32.mrb[0].mxu0
      %v4707 = vadd.f32 %v4393, %v4706
      %4708 = vmatprep.mubr.bf16.mxu0 %v4346
      %4709 = vmatmul.mubr.bf16.gmra.mrb[0].mxu0 %v4345
      %v4710 = vpop.f32.mrb[0].mxu0
      %v4711 = vadd.f32 %v4389, %v4710
      %v4712 = vpop.f32.mrb[0].mxu0
      %v4713 = vadd.f32 %v4393, %v4712
      %v4714 = vpop.f32.mrb[0].mxu0
      %v4715 = vadd.f32 %v4389, %v4714
      %v4716 = vpop.f32.mrb[0].mxu0
      %v4717 = vadd.f32 %v4393, %v4716
      %4718 = vmatprep.mubr.bf16.mxu0 %v4348
      %4719 = vmatmul.mubr.bf16.gmra.mrb[0].mxu0 %v4347
      %v4720 = vpop.f32.mrb[0].mxu0
      %v4721 = vadd.f32 %v4389, %v4720
      %v4722 = vpop.f32.mrb[0].mxu0
      %v4723 = vadd.f32 %v4393, %v4722
      %v4724 = vpop.f32.mrb[0].mxu0
      %v4725 = vadd.f32 %v4389, %v4724
      %v4726 = vpop.f32.mrb[0].mxu0
      %v4727 = vadd.f32 %v4393, %v4726
      %4728 = vmatprep.mubr.bf16.mxu0 %v4350
      %4729 = vmatmul.mubr.bf16.gmra.mrb[0].mxu0 %v4349
      %v4730 = vpop.f32.mrb[0].mxu0
      %v4731 = vadd.f32 %v4389, %v4730
      %v4732 = vpop.f32.mrb[0].mxu0
      %v4733 = vadd.f32 %v4393, %v4732
      %v4734 = vpop.f32.mrb[0].mxu0
      %v4735 = vadd.f32 %v4389, %v4734
      %v4736 = vpop.f32.mrb[0].mxu0
      %v4737 = vadd.f32 %v4393, %v4736
      %4738 = vmatprep.mubr.bf16.mxu0 %v4352
      %4739 = vmatmul.mubr.bf16.gmra.mrb[0].mxu0 %v4351
      %v4740 = vpop.f32.mrb[0].mxu0
      %v4741 = vadd.f32 %v4389, %v4740
      %v4742 = vpop.f32.mrb[0].mxu0
      %v4743 = vadd.f32 %v4393, %v4742
      %v4744 = vpop.f32.mrb[0].mxu0
      %v4745 = vadd.f32 %v4389, %v4744
      %v4746 = vpop.f32.mrb[0].mxu0
      %v4747 = vadd.f32 %v4393, %v4746
      %4748 = vmatprep.mubr.bf16.mxu0 %v4354
      %4749 = vmatmul.mubr.bf16.gmra.mrb[0].mxu0 %v4353
      %v4750 = vpop.f32.mrb[0].mxu0
      %v4751 = vadd.f32 %v4389, %v4750
      %v4752 = vpop.f32.mrb[0].mxu0
      %v4753 = vadd.f32 %v4393, %v4752
      %v4754 = vpop.f32.mrb[0].mxu0
      %v4755 = vadd.f32 %v4389, %v4754
      %v4756 = vpop.f32.mrb[0].mxu0
      %v4757 = vadd.f32 %v4393, %v4756
      %4758 = vmatprep.mubr.bf16.mxu0 %v4356
      %4759 = vmatmul.mubr.bf16.gmra.mrb[0].mxu0 %v4355
      %v4760 = vpop.f32.mrb[0].mxu0
      %v4761 = vadd.f32 %v4389, %v4760
      %v4762 = vpop.f32.mrb[0].mxu0
      %v4763 = vadd.f32 %v4393, %v4762
      %v4764 = vpop.f32.mrb[0].mxu0
      %v4765 = vadd.f32 %v4389, %v4764
      %v4766 = vpop.f32.mrb[0].mxu0
      %v4767 = vadd.f32 %v4393, %v4766
      %4768 = vmatprep.mubr.bf16.mxu0 %v4358
      %4769 = vmatmul.mubr.bf16.gmra.mrb[0].mxu0 %v4357
      %v4770 = vpop.f32.mrb[0].mxu0
      %v4771 = vadd.f32 %v4389, %v4770
      %v4772 = vpop.f32.mrb[0].mxu0
      %v4773 = vadd.f32 %v4393, %v4772
      %v4774 = vpop.f32.mrb[0].mxu0
      %v4775 = vadd.f32 %v4389, %v4774
      %v4776 = vpop.f32.mrb[0].mxu0
      %v4777 = vadd.f32 %v4393, %v4776
      %4778 = vmatprep.mubr.bf16.mxu0 %v4360
      %4779 = vmatmul.mubr.bf16.gmra.mrb[0].mxu0 %v4359
      %v4780 = vpop.f32.mrb[0].mxu0
      %v4781 = vadd.f32 %v4389, %v4780
      %v4782 = vpop.f32.mrb[0].mxu0
      %v4783 = vadd.f32 %v4393, %v4782
      %v4784 = vpop.f32.mrb[0].mxu0
      %v4785 = vadd.f32 %v4389, %v4784
      %v4786 = vpop.f32.mrb[0].mxu0
      %v4787 = vadd.f32 %v4393, %v4786
      %4788 = vmatprep.mubr.bf16.mxu0 %v4362
      %4789 = vmatmul.mubr.bf16.gmra.mrb[0].mxu0 %v4361
      %v4790 = vpop.f32.mrb[0].mxu0
      %v4791 = vadd.f32 %v4389, %v4790
      %v4792 = vpop.f32.mrb[0].mxu0
      %v4793 = vadd.f32 %v4393, %v4792
      %v4794 = vpop.f32.mrb[0].mxu0
      %v4795 = vadd.f32 %v4389, %v4794
      %v4796 = vpop.f32.mrb[0].mxu0
      %v4797 = vadd.f32 %v4393, %v4796
      %4798 = vmatprep.mubr.bf16.mxu0 %v4364
      %4799 = vmatmul.mubr.bf16.gmra.mrb[0].mxu0 %v4363
      %v4800 = vpop.f32.mrb[0].mxu0
      %v4801 = vadd.f32 %v4389, %v4800
      %v4802 = vpop.f32.mrb[0].mxu0
      %v4803 = vadd.f32 %v4393, %v4802
      %v4804 = vpop.f32.mrb[0].mxu0
      %v4805 = vadd.f32 %v4389, %v4804
      %v4806 = vpop.f32.mrb[0].mxu0
      %v4807 = vadd.f32 %v4393, %v4806
      %4808 = vmatprep.mubr.bf16.mxu0 %v4366
      %4809 = vmatmul.mubr.bf16.gmra.mrb[0].mxu0 %v4365
      %v4810 = vpop.f32.mrb[0].mxu0
      %v4811 = vadd.f32 %v4389, %v4810
      %v4812 = vpop.f32.mrb[0].mxu0
      %v4813 = vadd.f32 %v4393, %v4812
      %v4814 = vpop.f32.mrb[0].mxu0
      %v4815 = vadd.f32 %v4389, %v4814
      %v4816 = vpop.f32.mrb[0].mxu0
      %v4817 = vadd.f32 %v4393, %v4816
      %4818 = vmatprep.mubr.bf16.mxu0 %v4368
      %4819 = vmatmul.mubr.bf16.gmra.mrb[0].mxu0 %v4367
      %v4820 = vpop.f32.mrb[0].mxu0
      %v4821 = vadd.f32 %v4389, %v4820
      %v4822 = vpop.f32.mrb[0].mxu0
      %v4823 = vadd.f32 %v4393, %v4822
      %v4824 = vpop.f32.mrb[0].mxu0
      %v4825 = vadd.f32 %v4389, %v4824
      %v4826 = vpop.f32.mrb[0].mxu0
      %v4827 = vadd.f32 %v4393, %v4826
      %4828 = vmatprep.mubr.bf16.mxu0 %v4370
      %4829 = vmatmul.mubr.bf16.gmra.mrb[0].mxu0 %v4369
      %v4830 = vpop.f32.mrb[0].mxu0
      %v4831 = vadd.f32 %v4389, %v4830
      %v4832 = vpop.f32.mrb[0].mxu0
      %v4833 = vadd.f32 %v4393, %v4832
      %v4834 = vpop.f32.mrb[0].mxu0
      %v4835 = vadd.f32 %v4389, %v4834
      %v4836 = vpop.f32.mrb[0].mxu0
      %v4837 = vadd.f32 %v4393, %v4836
      %4838 = vmatprep.mubr.bf16.mxu0 %v4372
      %4839 = vmatmul.mubr.bf16.gmra.mrb[0].mxu0 %v4371
      %v4840 = vpop.f32.mrb[0].mxu0
      %v4841 = vadd.f32 %v4389, %v4840
      %v4842 = vpop.f32.mrb[0].mxu0
      %v4843 = vadd.f32 %v4393, %v4842
      %v4844 = vpop.f32.mrb[0].mxu0
      %v4845 = vadd.f32 %v4389, %v4844
      %v4846 = vpop.f32.mrb[0].mxu0
      %v4847 = vadd.f32 %v4393, %v4846
      %4848 = vmatprep.mubr.bf16.mxu0 %v4374
      %4849 = vmatmul.mubr.bf16.gmra.mrb[0].mxu0 %v4373
      %v4850 = vpop.f32.mrb[0].mxu0
      %v4851 = vadd.f32 %v4389, %v4850
      %v4852 = vpop.f32.mrb[0].mxu0
      %v4853 = vadd.f32 %v4393, %v4852
      %v4854 = vpop.f32.mrb[0].mxu0
      %v4855 = vadd.f32 %v4389, %v4854
      %v4856 = vpop.f32.mrb[0].mxu0
      %v4857 = vadd.f32 %v4393, %v4856
      %4858 = vmatprep.mubr.bf16.mxu0 %v4376
      %4859 = vmatmul.mubr.bf16.gmra.mrb[0].mxu0 %v4375
      %v4860 = vpop.f32.mrb[0].mxu0
      %v4861 = vadd.f32 %v4389, %v4860
      %v4862 = vpop.f32.mrb[0].mxu0
      %v4863 = vadd.f32 %v4393, %v4862
      %v4864 = vpop.f32.mrb[0].mxu0
      %v4865 = vadd.f32 %v4389, %v4864
      %v4866 = vpop.f32.mrb[0].mxu0
      %v4867 = vadd.f32 %v4393, %v4866
      %4868 = vmatprep.mubr.bf16.mxu0 %v4378
      %4869 = vmatmul.mubr.bf16.gmra.mrb[0].mxu0 %v4377
      %v4870 = vpop.f32.mrb[0].mxu0
      %v4871 = vadd.f32 %v4389, %v4870
      %v4872 = vpop.f32.mrb[0].mxu0
      %v4873 = vadd.f32 %v4393, %v4872
      %v4874 = vpop.f32.mrb[0].mxu0
      %v4875 = vadd.f32 %v4389, %v4874
      %v4876 = vpop.f32.mrb[0].mxu0
      %v4877 = vadd.f32 %v4393, %v4876
      %4878 = vmatprep.mubr.bf16.mxu0 %v4380
      %4879 = vmatmul.mubr.bf16.gmra.mrb[0].mxu0 %v4379
      %v4880 = vpop.f32.mrb[0].mxu0
      %v4881 = vadd.f32 %v4389, %v4880
      %v4882 = vpop.f32.mrb[0].mxu0
      %v4883 = vadd.f32 %v4393, %v4882
      %v4884 = vpop.f32.mrb[0].mxu0
      %v4885 = vadd.f32 %v4389, %v4884
      %v4886 = vpop.f32.mrb[0].mxu0
      %v4887 = vadd.f32 %v4393, %v4886
      %4888 = vmatprep.mubr.bf16.mxu0 %v4382
      %4889 = vmatmul.mubr.bf16.gmra.mrb[0].mxu0 %v4381
      %v4890 = vpop.f32.mrb[0].mxu0
      %v4891 = vadd.f32 %v4389, %v4890
      %v4892 = vpop.f32.mrb[0].mxu0
      %v4893 = vadd.f32 %v4393, %v4892
      %v4894 = vpop.f32.mrb[0].mxu0
      %v4895 = vadd.f32 %v4389, %v4894
      %v4896 = vpop.f32.mrb[0].mxu0
      %v4897 = vadd.f32 %v4393, %v4896
      %4898 = vmatprep.mubr.bf16.mxu0 %v4384
      %4899 = vmatmul.mubr.bf16.gmra.mrb[0].mxu0 %v4383
      %v4900 = vpop.f32.mrb[0].mxu0
      %v4901 = vadd.f32 %v4389, %v4900
      %v4902 = vpop.f32.mrb[0].mxu0
      %v4903 = vadd.f32 %v4393, %v4902
      %v4904 = vpop.f32.mrb[0].mxu0
      %v4905 = vadd.f32 %v4389, %v4904
      %v4906 = vpop.f32.mrb[0].mxu0
      %v4907 = vadd.f32 %v4393, %v4906
      %4908 = vdwg.mxu0
      %v4909 = vmax.f32 %v4591, 0.0
      %v4910 = vmax.f32 %v4593, 0.0
      %v4911 = vmax.f32 %v4595, 0.0
      %v4912 = vmax.f32 %v4597, 0.0
      %v4913 = vmax.f32 %v4601, 0.0
      %v4914 = vmax.f32 %v4603, 0.0
      %v4915 = vmax.f32 %v4605, 0.0
      %v4916 = vmax.f32 %v4607, 0.0
      %v4917 = vmax.f32 %v4611, 0.0
      %v4918 = vmax.f32 %v4613, 0.0
      %v4919 = vmax.f32 %v4615, 0.0
      %v4920 = vmax.f32 %v4617, 0.0
      %v4921 = vmax.f32 %v4621, 0.0
      %v4922 = vmax.f32 %v4623, 0.0
      %v4923 = vmax.f32 %v4625, 0.0
      %v4924 = vmax.f32 %v4627, 0.0
      %v4925 = vmax.f32 %v4631, 0.0
      %v4926 = vmax.f32 %v4633, 0.0
      %v4927 = vmax.f32 %v4635, 0.0
      %v4928 = vmax.f32 %v4637, 0.0
      %v4929 = vmax.f32 %v4641, 0.0
      %v4930 = vmax.f32 %v4643, 0.0
      %v4931 = vmax.f32 %v4645, 0.0
      %v4932 = vmax.f32 %v4647, 0.0
      %v4933 = vmax.f32 %v4651, 0.0
      %v4934 = vmax.f32 %v4653, 0.0
      %v4935 = vmax.f32 %v4655, 0.0
      %v4936 = vmax.f32 %v4657, 0.0
      %v4937 = vmax.f32 %v4661, 0.0
      %v4938 = vmax.f32 %v4663, 0.0
      %v4939 = vmax.f32 %v4665, 0.0
      %v4940 = vmax.f32 %v4667, 0.0
      %v4941 = vmax.f32 %v4671, 0.0
      %v4942 = vmax.f32 %v4673, 0.0
      %v4943 = vmax.f32 %v4675, 0.0
      %v4944 = vmax.f32 %v4677, 0.0
      %v4945 = vmax.f32 %v4681, 0.0
      %v4946 = vmax.f32 %v4683, 0.0
      %v4947 = vmax.f32 %v4685, 0.0
      %v4948 = vmax.f32 %v4687, 0.0
      %v4949 = vmax.f32 %v4691, 0.0
      %v4950 = vmax.f32 %v4693, 0.0
      %v4951 = vmax.f32 %v4695, 0.0
      %v4952 = vmax.f32 %v4697, 0.0
      %v4953 = vmax.f32 %v4701, 0.0
      %v4954 = vmax.f32 %v4703, 0.0
      %v4955 = vmax.f32 %v4705, 0.0
      %v4956 = vmax.f32 %v4707, 0.0
      %v4957 = vmax.f32 %v4711, 0.0
      %v4958 = vmax.f32 %v4713, 0.0
      %v4959 = vmax.f32 %v4715, 0.0
      %v4960 = vmax.f32 %v4717, 0.0
      %v4961 = vmax.f32 %v4721, 0.0
      %v4962 = vmax.f32 %v4723, 0.0
      %v4963 = vmax.f32 %v4725, 0.0
      %v4964 = vmax.f32 %v4727, 0.0
      %v4965 = vmax.f32 %v4731, 0.0
      %v4966 = vmax.f32 %v4733, 0.0
      %v4967 = vmax.f32 %v4735, 0.0
      %v4968 = vmax.f32 %v4737, 0.0
      %v4969 = vmax.f32 %v4741, 0.0
      %v4970 = vmax.f32 %v4743, 0.0
      %v4971 = vmax.f32 %v4745, 0.0
      %v4972 = vmax.f32 %v4747, 0.0
      %v4973 = vmax.f32 %v4751, 0.0
      %v4974 = vmax.f32 %v4753, 0.0
      %v4975 = vmax.f32 %v4755, 0.0
      %v4976 = vmax.f32 %v4757, 0.0
      %v4977 = vmax.f32 %v4761, 0.0
      %v4978 = vmax.f32 %v4763, 0.0
      %v4979 = vmax.f32 %v4765, 0.0
      %v4980 = vmax.f32 %v4767, 0.0
      %v4981 = vmax.f32 %v4771, 0.0
      %v4982 = vmax.f32 %v4773, 0.0
      %v4983 = vmax.f32 %v4775, 0.0
      %v4984 = vmax.f32 %v4777, 0.0
      %v4985 = vmax.f32 %v4781, 0.0
      %v4986 = vmax.f32 %v4783, 0.0
      %v4987 = vmax.f32 %v4785, 0.0
      %v4988 = vmax.f32 %v4787, 0.0
      %v4989 = vmax.f32 %v4791, 0.0
      %v4990 = vmax.f32 %v4793, 0.0
      %v4991 = vmax.f32 %v4795, 0.0
      %v4992 = vmax.f32 %v4797, 0.0
      %v4993 = vmax.f32 %v4801, 0.0
      %v4994 = vmax.f32 %v4803, 0.0
      %v4995 = vmax.f32 %v4805, 0.0
      %v4996 = vmax.f32 %v4807, 0.0
      %v4997 = vmax.f32 %v4811, 0.0
      %v4998 = vmax.f32 %v4813, 0.0
      %v4999 = vmax.f32 %v4815, 0.0
      %v5000 = vmax.f32 %v4817, 0.0
      %v5001 = vmax.f32 %v4821, 0.0
      %v5002 = vmax.f32 %v4823, 0.0
      %v5003 = vmax.f32 %v4825, 0.0
      %v5004 = vmax.f32 %v4827, 0.0
      %v5005 = vmax.f32 %v4831, 0.0
      %v5006 = vmax.f32 %v4833, 0.0
      %v5007 = vmax.f32 %v4835, 0.0
      %v5008 = vmax.f32 %v4837, 0.0
      %v5009 = vmax.f32 %v4841, 0.0
      %v5010 = vmax.f32 %v4843, 0.0
      %v5011 = vmax.f32 %v4845, 0.0
      %v5012 = vmax.f32 %v4847, 0.0
      %v5013 = vmax.f32 %v4851, 0.0
      %v5014 = vmax.f32 %v4853, 0.0
      %v5015 = vmax.f32 %v4855, 0.0
      %v5016 = vmax.f32 %v4857, 0.0
      %v5017 = vmax.f32 %v4861, 0.0
      %v5018 = vmax.f32 %v4863, 0.0
      %v5019 = vmax.f32 %v4865, 0.0
      %v5020 = vmax.f32 %v4867, 0.0
      %v5021 = vmax.f32 %v4871, 0.0
      %v5022 = vmax.f32 %v4873, 0.0
      %v5023 = vmax.f32 %v4875, 0.0
      %v5024 = vmax.f32 %v4877, 0.0
      %v5025 = vmax.f32 %v4881, 0.0
      %v5026 = vmax.f32 %v4883, 0.0
      %v5027 = vmax.f32 %v4885, 0.0
      %v5028 = vmax.f32 %v4887, 0.0
      %v5029 = vmax.f32 %v4891, 0.0
      %v5030 = vmax.f32 %v4893, 0.0
      %v5031 = vmax.f32 %v4895, 0.0
      %v5032 = vmax.f32 %v4897, 0.0
      %v5033 = vmax.f32 %v4901, 0.0
      %v5034 = vmax.f32 %v4903, 0.0
      %v5035 = vmax.f32 %v4905, 0.0
      %v5036 = vmax.f32 %v4907, 0.0
      %v5037 = vpack.c.bf16 %v4911, %v4909
      %v5038 = vpack.c.bf16 %v4912, %v4910
      %v5039 = vpack.c.bf16 %v4915, %v4913
      %v5040 = vpack.c.bf16 %v4916, %v4914
      %v5041 = vpack.c.bf16 %v4919, %v4917
      %v5042 = vpack.c.bf16 %v4920, %v4918
      %v5043 = vpack.c.bf16 %v4923, %v4921
      %v5044 = vpack.c.bf16 %v4924, %v4922
      %v5045 = vpack.c.bf16 %v4927, %v4925
      %v5046 = vpack.c.bf16 %v4928, %v4926
      %v5047 = vpack.c.bf16 %v4931, %v4929
      %v5048 = vpack.c.bf16 %v4932, %v4930
      %v5049 = vpack.c.bf16 %v4935, %v4933
      %v5050 = vpack.c.bf16 %v4936, %v4934
      %v5051 = vpack.c.bf16 %v4939, %v4937
      %v5052 = vpack.c.bf16 %v4940, %v4938
      %v5053 = vpack.c.bf16 %v4943, %v4941
      %v5054 = vpack.c.bf16 %v4944, %v4942
      %v5055 = vpack.c.bf16 %v4947, %v4945
      %v5056 = vpack.c.bf16 %v4948, %v4946
      %v5057 = vpack.c.bf16 %v4951, %v4949
      %v5058 = vpack.c.bf16 %v4952, %v4950
      %v5059 = vpack.c.bf16 %v4955, %v4953
      %v5060 = vpack.c.bf16 %v4956, %v4954
      %v5061 = vpack.c.bf16 %v4959, %v4957
      %v5062 = vpack.c.bf16 %v4960, %v4958
      %v5063 = vpack.c.bf16 %v4963, %v4961
      %v5064 = vpack.c.bf16 %v4964, %v4962
      %v5065 = vpack.c.bf16 %v4967, %v4965
      %v5066 = vpack.c.bf16 %v4968, %v4966
      %v5067 = vpack.c.bf16 %v4971, %v4969
      %v5068 = vpack.c.bf16 %v4972, %v4970
      %v5069 = vpack.c.bf16 %v4975, %v4973
      %v5070 = vpack.c.bf16 %v4976, %v4974
      %v5071 = vpack.c.bf16 %v4979, %v4977
      %v5072 = vpack.c.bf16 %v4980, %v4978
      %v5073 = vpack.c.bf16 %v4983, %v4981
      %v5074 = vpack.c.bf16 %v4984, %v4982
      %v5075 = vpack.c.bf16 %v4987, %v4985
      %v5076 = vpack.c.bf16 %v4988, %v4986
      %v5077 = vpack.c.bf16 %v4991, %v4989
      %v5078 = vpack.c.bf16 %v4992, %v4990
      %v5079 = vpack.c.bf16 %v4995, %v4993
      %v5080 = vpack.c.bf16 %v4996, %v4994
      %v5081 = vpack.c.bf16 %v4999, %v4997
      %v5082 = vpack.c.bf16 %v5000, %v4998
      %v5083 = vpack.c.bf16 %v5003, %v5001
      %v5084 = vpack.c.bf16 %v5004, %v5002
      %v5085 = vpack.c.bf16 %v5007, %v5005
      %v5086 = vpack.c.bf16 %v5008, %v5006
      %v5087 = vpack.c.bf16 %v5011, %v5009
      %v5088 = vpack.c.bf16 %v5012, %v5010
      %v5089 = vpack.c.bf16 %v5015, %v5013
      %v5090 = vpack.c.bf16 %v5016, %v5014
      %v5091 = vpack.c.bf16 %v5019, %v5017
      %v5092 = vpack.c.bf16 %v5020, %v5018
      %v5093 = vpack.c.bf16 %v5023, %v5021
      %v5094 = vpack.c.bf16 %v5024, %v5022
      %v5095 = vpack.c.bf16 %v5027, %v5025
      %v5096 = vpack.c.bf16 %v5028, %v5026
      %v5097 = vpack.c.bf16 %v5031, %v5029
      %v5098 = vpack.c.bf16 %v5032, %v5030
      %v5099 = vpack.c.bf16 %v5035, %v5033
      %v5100 = vpack.c.bf16 %v5036, %v5034
      %v5102 = vlaneseq
      %v5103 = vshrl.u32 %v5102, 7
      %v5104 = vsub.s32 0, %v5103
      %v5105 = vrot.slane %v3476, %v5104
      %v5106 = vlaneseq
      %v5107 = vshrl.u32 %v5106, 7
      %v5108 = vsub.s32 1, %v5107
      %v5109 = vrot.slane %v3476, %v5108
      %v5144 = vunpack.c.l.b16 %v3443
      %v5145 = vunpack.c.h.b16 %v3443
      %v5146 = vunpack.c.l.b16 %v3444
      %v5147 = vunpack.c.h.b16 %v3444
      %v5148 = vunpack.c.l.b16 %v3445
      %v5149 = vunpack.c.h.b16 %v3445
      %v5150 = vunpack.c.l.b16 %v3446
      %v5151 = vunpack.c.h.b16 %v3446
      %v5152 = vunpack.c.l.b16 %v3447
      %v5153 = vunpack.c.h.b16 %v3447
      %v5154 = vunpack.c.l.b16 %v3448
      %v5155 = vunpack.c.h.b16 %v3448
      %v5156 = vunpack.c.l.b16 %v3449
      %v5157 = vunpack.c.h.b16 %v3449
      %v5158 = vunpack.c.l.b16 %v3450
      %v5159 = vunpack.c.h.b16 %v3450
      %v5160 = vunpack.c.l.b16 %v3451
      %v5161 = vunpack.c.h.b16 %v3451
      %v5162 = vunpack.c.l.b16 %v3452
      %v5163 = vunpack.c.h.b16 %v3452
      %v5164 = vunpack.c.l.b16 %v3453
      %v5165 = vunpack.c.h.b16 %v3453
      %v5166 = vunpack.c.l.b16 %v3454
      %v5167 = vunpack.c.h.b16 %v3454
      %v5168 = vunpack.c.l.b16 %v3455
      %v5169 = vunpack.c.h.b16 %v3455
      %v5170 = vunpack.c.l.b16 %v3456
      %v5171 = vunpack.c.h.b16 %v3456
      %v5172 = vunpack.c.l.b16 %v3457
      %v5173 = vunpack.c.h.b16 %v3457
      %v5174 = vunpack.c.l.b16 %v3458
      %v5175 = vunpack.c.h.b16 %v3458
      %v5176 = vunpack.c.l.b16 %v3459
      %v5177 = vunpack.c.h.b16 %v3459
      %v5178 = vunpack.c.l.b16 %v3460
      %v5179 = vunpack.c.h.b16 %v3460
      %v5180 = vunpack.c.l.b16 %v3461
      %v5181 = vunpack.c.h.b16 %v3461
      %v5182 = vunpack.c.l.b16 %v3462
      %v5183 = vunpack.c.h.b16 %v3462
      %v5184 = vunpack.c.l.b16 %v3463
      %v5185 = vunpack.c.h.b16 %v3463
      %v5186 = vunpack.c.l.b16 %v3464
      %v5187 = vunpack.c.h.b16 %v3464
      %v5188 = vunpack.c.l.b16 %v3465
      %v5189 = vunpack.c.h.b16 %v3465
      %v5190 = vunpack.c.l.b16 %v3466
      %v5191 = vunpack.c.h.b16 %v3466
      %v5192 = vunpack.c.l.b16 %v3467
      %v5193 = vunpack.c.h.b16 %v3467
      %v5194 = vunpack.c.l.b16 %v3468
      %v5195 = vunpack.c.h.b16 %v3468
      %v5196 = vunpack.c.l.b16 %v3469
      %v5197 = vunpack.c.h.b16 %v3469
      %v5198 = vunpack.c.l.b16 %v3470
      %v5199 = vunpack.c.h.b16 %v3470
      %v5200 = vunpack.c.l.b16 %v3471
      %v5201 = vunpack.c.h.b16 %v3471
      %v5202 = vunpack.c.l.b16 %v3472
      %v5203 = vunpack.c.h.b16 %v3472
      %v5204 = vunpack.c.l.b16 %v3473
      %v5205 = vunpack.c.h.b16 %v3473
      %v5206 = vunpack.c.l.b16 %v3474
      %v5207 = vunpack.c.h.b16 %v3474
      %v5208 = vpack.c.b16 %v5146, %v5144
      %v5209 = vpack.c.b16 %v5147, %v5145
      %v5210 = vpack.c.b16 %v5150, %v5148
      %v5211 = vpack.c.b16 %v5151, %v5149
      %v5212 = vpack.c.b16 %v5154, %v5152
      %v5213 = vpack.c.b16 %v5155, %v5153
      %v5214 = vpack.c.b16 %v5158, %v5156
      %v5215 = vpack.c.b16 %v5159, %v5157
      %v5216 = vpack.c.b16 %v5162, %v5160
      %v5217 = vpack.c.b16 %v5163, %v5161
      %v5218 = vpack.c.b16 %v5166, %v5164
      %v5219 = vpack.c.b16 %v5167, %v5165
      %v5220 = vpack.c.b16 %v5170, %v5168
      %v5221 = vpack.c.b16 %v5171, %v5169
      %v5222 = vpack.c.b16 %v5174, %v5172
      %v5223 = vpack.c.b16 %v5175, %v5173
      %v5224 = vpack.c.b16 %v5178, %v5176
      %v5225 = vpack.c.b16 %v5179, %v5177
      %v5226 = vpack.c.b16 %v5182, %v5180
      %v5227 = vpack.c.b16 %v5183, %v5181
      %v5228 = vpack.c.b16 %v5186, %v5184
      %v5229 = vpack.c.b16 %v5187, %v5185
      %v5230 = vpack.c.b16 %v5190, %v5188
      %v5231 = vpack.c.b16 %v5191, %v5189
      %v5232 = vpack.c.b16 %v5194, %v5192
      %v5233 = vpack.c.b16 %v5195, %v5193
      %v5234 = vpack.c.b16 %v5198, %v5196
      %v5235 = vpack.c.b16 %v5199, %v5197
      %v5236 = vpack.c.b16 %v5202, %v5200
      %v5237 = vpack.c.b16 %v5203, %v5201
      %v5238 = vpack.c.b16 %v5206, %v5204
      %v5239 = vpack.c.b16 %v5207, %v5205
      %5272 = vmatprep.subr.bf16.mxu0 %v5209
      %5273 = vmatpush1.bf16.msra.mxu0 %v5208
      %5274 = vmatprep.subr.bf16.mxu0 %v5211
      %5275 = vmatpush1.bf16.msra.mxu0 %v5210
      %5276 = vmatprep.subr.bf16.mxu0 %v5213
      %5277 = vmatpush1.bf16.msra.mxu0 %v5212
      %5278 = vmatprep.subr.bf16.mxu0 %v5215
      %5279 = vmatpush1.bf16.msra.mxu0 %v5214
      %5280 = vmatprep.subr.bf16.mxu0 %v5217
      %5281 = vmatpush1.bf16.msra.mxu0 %v5216
      %5282 = vmatprep.subr.bf16.mxu0 %v5219
      %5283 = vmatpush1.bf16.msra.mxu0 %v5218
      %5284 = vmatprep.subr.bf16.mxu0 %v5221
      %5285 = vmatpush1.bf16.msra.mxu0 %v5220
      %5286 = vmatprep.subr.bf16.mxu0 %v5223
      %5287 = vmatpush1.bf16.msra.mxu0 %v5222
      %5288 = vmatprep.subr.bf16.mxu0 %v5225
      %5289 = vmatpush1.bf16.msra.mxu0 %v5224
      %5290 = vmatprep.subr.bf16.mxu0 %v5227
      %5291 = vmatpush1.bf16.msra.mxu0 %v5226
      %5292 = vmatprep.subr.bf16.mxu0 %v5229
      %5293 = vmatpush1.bf16.msra.mxu0 %v5228
      %5294 = vmatprep.subr.bf16.mxu0 %v5231
      %5295 = vmatpush1.bf16.msra.mxu0 %v5230
      %5296 = vmatprep.subr.bf16.mxu0 %v5233
      %5297 = vmatpush1.bf16.msra.mxu0 %v5232
      %5298 = vmatprep.subr.bf16.mxu0 %v5235
      %5299 = vmatpush1.bf16.msra.mxu0 %v5234
      %5300 = vmatprep.subr.bf16.mxu0 %v5237
      %5301 = vmatpush1.bf16.msra.mxu0 %v5236
      %5302 = vmatprep.subr.bf16.mxu0 %v5239
      %5303 = vmatpush1.bf16.msra.mxu0 %v5238
      %5304 = vmatprep.mubr.bf16.mxu0 %v5038
      %5305 = vmatmul.mubr.bf16.gmra.mrb[0].mxu0 %v5037
      %v5306 = vpop.f32.mrb[0].mxu0
      %v5307 = vadd.f32 %v5105, %v5306
      %v5308 = vpop.f32.mrb[0].mxu0
      %v5309 = vadd.f32 %v5109, %v5308
      %v5310 = vpop.f32.mrb[0].mxu0
      %v5311 = vadd.f32 %v5105, %v5310
      %v5312 = vpop.f32.mrb[0].mxu0
      %v5313 = vadd.f32 %v5109, %v5312
      %5314 = vmatprep.mubr.bf16.mxu0 %v5040
      %5315 = vmatmul.mubr.bf16.gmra.mrb[0].mxu0 %v5039
      %v5316 = vpop.f32.mrb[0].mxu0
      %v5317 = vadd.f32 %v5105, %v5316
      %v5318 = vpop.f32.mrb[0].mxu0
      %v5319 = vadd.f32 %v5109, %v5318
      %v5320 = vpop.f32.mrb[0].mxu0
      %v5321 = vadd.f32 %v5105, %v5320
      %v5322 = vpop.f32.mrb[0].mxu0
      %v5323 = vadd.f32 %v5109, %v5322
      %5324 = vmatprep.mubr.bf16.mxu0 %v5042
      %5325 = vmatmul.mubr.bf16.gmra.mrb[0].mxu0 %v5041
      %v5326 = vpop.f32.mrb[0].mxu0
      %v5327 = vadd.f32 %v5105, %v5326
      %v5328 = vpop.f32.mrb[0].mxu0
      %v5329 = vadd.f32 %v5109, %v5328
      %v5330 = vpop.f32.mrb[0].mxu0
      %v5331 = vadd.f32 %v5105, %v5330
      %v5332 = vpop.f32.mrb[0].mxu0
      %v5333 = vadd.f32 %v5109, %v5332
      %5334 = vmatprep.mubr.bf16.mxu0 %v5044
      %5335 = vmatmul.mubr.bf16.gmra.mrb[0].mxu0 %v5043
      %v5336 = vpop.f32.mrb[0].mxu0
      %v5337 = vadd.f32 %v5105, %v5336
      %v5338 = vpop.f32.mrb[0].mxu0
      %v5339 = vadd.f32 %v5109, %v5338
      %v5340 = vpop.f32.mrb[0].mxu0
      %v5341 = vadd.f32 %v5105, %v5340
      %v5342 = vpop.f32.mrb[0].mxu0
      %v5343 = vadd.f32 %v5109, %v5342
      %5344 = vmatprep.mubr.bf16.mxu0 %v5046
      %5345 = vmatmul.mubr.bf16.gmra.mrb[0].mxu0 %v5045
      %v5346 = vpop.f32.mrb[0].mxu0
      %v5347 = vadd.f32 %v5105, %v5346
      %v5348 = vpop.f32.mrb[0].mxu0
      %v5349 = vadd.f32 %v5109, %v5348
      %v5350 = vpop.f32.mrb[0].mxu0
      %v5351 = vadd.f32 %v5105, %v5350
      %v5352 = vpop.f32.mrb[0].mxu0
      %v5353 = vadd.f32 %v5109, %v5352
      %5354 = vmatprep.mubr.bf16.mxu0 %v5048
      %5355 = vmatmul.mubr.bf16.gmra.mrb[0].mxu0 %v5047
      %v5356 = vpop.f32.mrb[0].mxu0
      %v5357 = vadd.f32 %v5105, %v5356
      %v5358 = vpop.f32.mrb[0].mxu0
      %v5359 = vadd.f32 %v5109, %v5358
      %v5360 = vpop.f32.mrb[0].mxu0
      %v5361 = vadd.f32 %v5105, %v5360
      %v5362 = vpop.f32.mrb[0].mxu0
      %v5363 = vadd.f32 %v5109, %v5362
      %5364 = vmatprep.mubr.bf16.mxu0 %v5050
      %5365 = vmatmul.mubr.bf16.gmra.mrb[0].mxu0 %v5049
      %v5366 = vpop.f32.mrb[0].mxu0
      %v5367 = vadd.f32 %v5105, %v5366
      %v5368 = vpop.f32.mrb[0].mxu0
      %v5369 = vadd.f32 %v5109, %v5368
      %v5370 = vpop.f32.mrb[0].mxu0
      %v5371 = vadd.f32 %v5105, %v5370
      %v5372 = vpop.f32.mrb[0].mxu0
      %v5373 = vadd.f32 %v5109, %v5372
      %5374 = vmatprep.mubr.bf16.mxu0 %v5052
      %5375 = vmatmul.mubr.bf16.gmra.mrb[0].mxu0 %v5051
      %v5376 = vpop.f32.mrb[0].mxu0
      %v5377 = vadd.f32 %v5105, %v5376
      %v5378 = vpop.f32.mrb[0].mxu0
      %v5379 = vadd.f32 %v5109, %v5378
      %v5380 = vpop.f32.mrb[0].mxu0
      %v5381 = vadd.f32 %v5105, %v5380
      %v5382 = vpop.f32.mrb[0].mxu0
      %v5383 = vadd.f32 %v5109, %v5382
      %5384 = vmatprep.mubr.bf16.mxu0 %v5054
      %5385 = vmatmul.mubr.bf16.gmra.mrb[0].mxu0 %v5053
      %v5386 = vpop.f32.mrb[0].mxu0
      %v5387 = vadd.f32 %v5105, %v5386
      %v5388 = vpop.f32.mrb[0].mxu0
      %v5389 = vadd.f32 %v5109, %v5388
      %v5390 = vpop.f32.mrb[0].mxu0
      %v5391 = vadd.f32 %v5105, %v5390
      %v5392 = vpop.f32.mrb[0].mxu0
      %v5393 = vadd.f32 %v5109, %v5392
      %5394 = vmatprep.mubr.bf16.mxu0 %v5056
      %5395 = vmatmul.mubr.bf16.gmra.mrb[0].mxu0 %v5055
      %v5396 = vpop.f32.mrb[0].mxu0
      %v5397 = vadd.f32 %v5105, %v5396
      %v5398 = vpop.f32.mrb[0].mxu0
      %v5399 = vadd.f32 %v5109, %v5398
      %v5400 = vpop.f32.mrb[0].mxu0
      %v5401 = vadd.f32 %v5105, %v5400
      %v5402 = vpop.f32.mrb[0].mxu0
      %v5403 = vadd.f32 %v5109, %v5402
      %5404 = vmatprep.mubr.bf16.mxu0 %v5058
      %5405 = vmatmul.mubr.bf16.gmra.mrb[0].mxu0 %v5057
      %v5406 = vpop.f32.mrb[0].mxu0
      %v5407 = vadd.f32 %v5105, %v5406
      %v5408 = vpop.f32.mrb[0].mxu0
      %v5409 = vadd.f32 %v5109, %v5408
      %v5410 = vpop.f32.mrb[0].mxu0
      %v5411 = vadd.f32 %v5105, %v5410
      %v5412 = vpop.f32.mrb[0].mxu0
      %v5413 = vadd.f32 %v5109, %v5412
      %5414 = vmatprep.mubr.bf16.mxu0 %v5060
      %5415 = vmatmul.mubr.bf16.gmra.mrb[0].mxu0 %v5059
      %v5416 = vpop.f32.mrb[0].mxu0
      %v5417 = vadd.f32 %v5105, %v5416
      %v5418 = vpop.f32.mrb[0].mxu0
      %v5419 = vadd.f32 %v5109, %v5418
      %v5420 = vpop.f32.mrb[0].mxu0
      %v5421 = vadd.f32 %v5105, %v5420
      %v5422 = vpop.f32.mrb[0].mxu0
      %v5423 = vadd.f32 %v5109, %v5422
      %5424 = vmatprep.mubr.bf16.mxu0 %v5062
      %5425 = vmatmul.mubr.bf16.gmra.mrb[0].mxu0 %v5061
      %v5426 = vpop.f32.mrb[0].mxu0
      %v5427 = vadd.f32 %v5105, %v5426
      %v5428 = vpop.f32.mrb[0].mxu0
      %v5429 = vadd.f32 %v5109, %v5428
      %v5430 = vpop.f32.mrb[0].mxu0
      %v5431 = vadd.f32 %v5105, %v5430
      %v5432 = vpop.f32.mrb[0].mxu0
      %v5433 = vadd.f32 %v5109, %v5432
      %5434 = vmatprep.mubr.bf16.mxu0 %v5064
      %5435 = vmatmul.mubr.bf16.gmra.mrb[0].mxu0 %v5063
      %v5436 = vpop.f32.mrb[0].mxu0
      %v5437 = vadd.f32 %v5105, %v5436
      %v5438 = vpop.f32.mrb[0].mxu0
      %v5439 = vadd.f32 %v5109, %v5438
      %v5440 = vpop.f32.mrb[0].mxu0
      %v5441 = vadd.f32 %v5105, %v5440
      %v5442 = vpop.f32.mrb[0].mxu0
      %v5443 = vadd.f32 %v5109, %v5442
      %5444 = vmatprep.mubr.bf16.mxu0 %v5066
      %5445 = vmatmul.mubr.bf16.gmra.mrb[0].mxu0 %v5065
      %v5446 = vpop.f32.mrb[0].mxu0
      %v5447 = vadd.f32 %v5105, %v5446
      %v5448 = vpop.f32.mrb[0].mxu0
      %v5449 = vadd.f32 %v5109, %v5448
      %v5450 = vpop.f32.mrb[0].mxu0
      %v5451 = vadd.f32 %v5105, %v5450
      %v5452 = vpop.f32.mrb[0].mxu0
      %v5453 = vadd.f32 %v5109, %v5452
      %5454 = vmatprep.mubr.bf16.mxu0 %v5068
      %5455 = vmatmul.mubr.bf16.gmra.mrb[0].mxu0 %v5067
      %v5456 = vpop.f32.mrb[0].mxu0
      %v5457 = vadd.f32 %v5105, %v5456
      %v5458 = vpop.f32.mrb[0].mxu0
      %v5459 = vadd.f32 %v5109, %v5458
      %v5460 = vpop.f32.mrb[0].mxu0
      %v5461 = vadd.f32 %v5105, %v5460
      %v5462 = vpop.f32.mrb[0].mxu0
      %v5463 = vadd.f32 %v5109, %v5462
      %5464 = vmatprep.mubr.bf16.mxu0 %v5070
      %5465 = vmatmul.mubr.bf16.gmra.mrb[0].mxu0 %v5069
      %v5466 = vpop.f32.mrb[0].mxu0
      %v5467 = vadd.f32 %v5105, %v5466
      %v5468 = vpop.f32.mrb[0].mxu0
      %v5469 = vadd.f32 %v5109, %v5468
      %v5470 = vpop.f32.mrb[0].mxu0
      %v5471 = vadd.f32 %v5105, %v5470
      %v5472 = vpop.f32.mrb[0].mxu0
      %v5473 = vadd.f32 %v5109, %v5472
      %5474 = vmatprep.mubr.bf16.mxu0 %v5072
      %5475 = vmatmul.mubr.bf16.gmra.mrb[0].mxu0 %v5071
      %v5476 = vpop.f32.mrb[0].mxu0
      %v5477 = vadd.f32 %v5105, %v5476
      %v5478 = vpop.f32.mrb[0].mxu0
      %v5479 = vadd.f32 %v5109, %v5478
      %v5480 = vpop.f32.mrb[0].mxu0
      %v5481 = vadd.f32 %v5105, %v5480
      %v5482 = vpop.f32.mrb[0].mxu0
      %v5483 = vadd.f32 %v5109, %v5482
      %5484 = vmatprep.mubr.bf16.mxu0 %v5074
      %5485 = vmatmul.mubr.bf16.gmra.mrb[0].mxu0 %v5073
      %v5486 = vpop.f32.mrb[0].mxu0
      %v5487 = vadd.f32 %v5105, %v5486
      %v5488 = vpop.f32.mrb[0].mxu0
      %v5489 = vadd.f32 %v5109, %v5488
      %v5490 = vpop.f32.mrb[0].mxu0
      %v5491 = vadd.f32 %v5105, %v5490
      %v5492 = vpop.f32.mrb[0].mxu0
      %v5493 = vadd.f32 %v5109, %v5492
      %5494 = vmatprep.mubr.bf16.mxu0 %v5076
      %5495 = vmatmul.mubr.bf16.gmra.mrb[0].mxu0 %v5075
      %v5496 = vpop.f32.mrb[0].mxu0
      %v5497 = vadd.f32 %v5105, %v5496
      %v5498 = vpop.f32.mrb[0].mxu0
      %v5499 = vadd.f32 %v5109, %v5498
      %v5500 = vpop.f32.mrb[0].mxu0
      %v5501 = vadd.f32 %v5105, %v5500
      %v5502 = vpop.f32.mrb[0].mxu0
      %v5503 = vadd.f32 %v5109, %v5502
      %5504 = vmatprep.mubr.bf16.mxu0 %v5078
      %5505 = vmatmul.mubr.bf16.gmra.mrb[0].mxu0 %v5077
      %v5506 = vpop.f32.mrb[0].mxu0
      %v5507 = vadd.f32 %v5105, %v5506
      %v5508 = vpop.f32.mrb[0].mxu0
      %v5509 = vadd.f32 %v5109, %v5508
      %v5510 = vpop.f32.mrb[0].mxu0
      %v5511 = vadd.f32 %v5105, %v5510
      %v5512 = vpop.f32.mrb[0].mxu0
      %v5513 = vadd.f32 %v5109, %v5512
      %5514 = vmatprep.mubr.bf16.mxu0 %v5080
      %5515 = vmatmul.mubr.bf16.gmra.mrb[0].mxu0 %v5079
      %v5516 = vpop.f32.mrb[0].mxu0
      %v5517 = vadd.f32 %v5105, %v5516
      %v5518 = vpop.f32.mrb[0].mxu0
      %v5519 = vadd.f32 %v5109, %v5518
      %v5520 = vpop.f32.mrb[0].mxu0
      %v5521 = vadd.f32 %v5105, %v5520
      %v5522 = vpop.f32.mrb[0].mxu0
      %v5523 = vadd.f32 %v5109, %v5522
      %5524 = vmatprep.mubr.bf16.mxu0 %v5082
      %5525 = vmatmul.mubr.bf16.gmra.mrb[0].mxu0 %v5081
      %v5526 = vpop.f32.mrb[0].mxu0
      %v5527 = vadd.f32 %v5105, %v5526
      %v5528 = vpop.f32.mrb[0].mxu0
      %v5529 = vadd.f32 %v5109, %v5528
      %v5530 = vpop.f32.mrb[0].mxu0
      %v5531 = vadd.f32 %v5105, %v5530
      %v5532 = vpop.f32.mrb[0].mxu0
      %v5533 = vadd.f32 %v5109, %v5532
      %5534 = vmatprep.mubr.bf16.mxu0 %v5084
      %5535 = vmatmul.mubr.bf16.gmra.mrb[0].mxu0 %v5083
      %v5536 = vpop.f32.mrb[0].mxu0
      %v5537 = vadd.f32 %v5105, %v5536
      %v5538 = vpop.f32.mrb[0].mxu0
      %v5539 = vadd.f32 %v5109, %v5538
      %v5540 = vpop.f32.mrb[0].mxu0
      %v5541 = vadd.f32 %v5105, %v5540
      %v5542 = vpop.f32.mrb[0].mxu0
      %v5543 = vadd.f32 %v5109, %v5542
      %5544 = vmatprep.mubr.bf16.mxu0 %v5086
      %5545 = vmatmul.mubr.bf16.gmra.mrb[0].mxu0 %v5085
      %v5546 = vpop.f32.mrb[0].mxu0
      %v5547 = vadd.f32 %v5105, %v5546
      %v5548 = vpop.f32.mrb[0].mxu0
      %v5549 = vadd.f32 %v5109, %v5548
      %v5550 = vpop.f32.mrb[0].mxu0
      %v5551 = vadd.f32 %v5105, %v5550
      %v5552 = vpop.f32.mrb[0].mxu0
      %v5553 = vadd.f32 %v5109, %v5552
      %5554 = vmatprep.mubr.bf16.mxu0 %v5088
      %5555 = vmatmul.mubr.bf16.gmra.mrb[0].mxu0 %v5087
      %v5556 = vpop.f32.mrb[0].mxu0
      %v5557 = vadd.f32 %v5105, %v5556
      %v5558 = vpop.f32.mrb[0].mxu0
      %v5559 = vadd.f32 %v5109, %v5558
      %v5560 = vpop.f32.mrb[0].mxu0
      %v5561 = vadd.f32 %v5105, %v5560
      %v5562 = vpop.f32.mrb[0].mxu0
      %v5563 = vadd.f32 %v5109, %v5562
      %5564 = vmatprep.mubr.bf16.mxu0 %v5090
      %5565 = vmatmul.mubr.bf16.gmra.mrb[0].mxu0 %v5089
      %v5566 = vpop.f32.mrb[0].mxu0
      %v5567 = vadd.f32 %v5105, %v5566
      %v5568 = vpop.f32.mrb[0].mxu0
      %v5569 = vadd.f32 %v5109, %v5568
      %v5570 = vpop.f32.mrb[0].mxu0
      %v5571 = vadd.f32 %v5105, %v5570
      %v5572 = vpop.f32.mrb[0].mxu0
      %v5573 = vadd.f32 %v5109, %v5572
      %5574 = vmatprep.mubr.bf16.mxu0 %v5092
      %5575 = vmatmul.mubr.bf16.gmra.mrb[0].mxu0 %v5091
      %v5576 = vpop.f32.mrb[0].mxu0
      %v5577 = vadd.f32 %v5105, %v5576
      %v5578 = vpop.f32.mrb[0].mxu0
      %v5579 = vadd.f32 %v5109, %v5578
      %v5580 = vpop.f32.mrb[0].mxu0
      %v5581 = vadd.f32 %v5105, %v5580
      %v5582 = vpop.f32.mrb[0].mxu0
      %v5583 = vadd.f32 %v5109, %v5582
      %5584 = vmatprep.mubr.bf16.mxu0 %v5094
      %5585 = vmatmul.mubr.bf16.gmra.mrb[0].mxu0 %v5093
      %v5586 = vpop.f32.mrb[0].mxu0
      %v5587 = vadd.f32 %v5105, %v5586
      %v5588 = vpop.f32.mrb[0].mxu0
      %v5589 = vadd.f32 %v5109, %v5588
      %v5590 = vpop.f32.mrb[0].mxu0
      %v5591 = vadd.f32 %v5105, %v5590
      %v5592 = vpop.f32.mrb[0].mxu0
      %v5593 = vadd.f32 %v5109, %v5592
      %5594 = vmatprep.mubr.bf16.mxu0 %v5096
      %5595 = vmatmul.mubr.bf16.gmra.mrb[0].mxu0 %v5095
      %v5596 = vpop.f32.mrb[0].mxu0
      %v5597 = vadd.f32 %v5105, %v5596
      %v5598 = vpop.f32.mrb[0].mxu0
      %v5599 = vadd.f32 %v5109, %v5598
      %v5600 = vpop.f32.mrb[0].mxu0
      %v5601 = vadd.f32 %v5105, %v5600
      %v5602 = vpop.f32.mrb[0].mxu0
      %v5603 = vadd.f32 %v5109, %v5602
      %5604 = vmatprep.mubr.bf16.mxu0 %v5098
      %5605 = vmatmul.mubr.bf16.gmra.mrb[0].mxu0 %v5097
      %v5606 = vpop.f32.mrb[0].mxu0
      %v5607 = vadd.f32 %v5105, %v5606
      %v5608 = vpop.f32.mrb[0].mxu0
      %v5609 = vadd.f32 %v5109, %v5608
      %v5610 = vpop.f32.mrb[0].mxu0
      %v5611 = vadd.f32 %v5105, %v5610
      %v5612 = vpop.f32.mrb[0].mxu0
      %v5613 = vadd.f32 %v5109, %v5612
      %5614 = vmatprep.mubr.bf16.mxu0 %v5100
      %5615 = vmatmul.mubr.bf16.gmra.mrb[0].mxu0 %v5099
      %v5616 = vpop.f32.mrb[0].mxu0
      %v5617 = vadd.f32 %v5105, %v5616
      %v5618 = vpop.f32.mrb[0].mxu0
      %v5619 = vadd.f32 %v5109, %v5618
      %v5620 = vpop.f32.mrb[0].mxu0
      %v5621 = vadd.f32 %v5105, %v5620
      %v5622 = vpop.f32.mrb[0].mxu0
      %v5623 = vadd.f32 %v5109, %v5622
      %5624 = vdwg.mxu0
      %v5625 = vmax.f32 %v5307, 0.0
      %v5626 = vmax.f32 %v5309, 0.0
      %v5627 = vmax.f32 %v5311, 0.0
      %v5628 = vmax.f32 %v5313, 0.0
      %v5629 = vmax.f32 %v5317, 0.0
      %v5630 = vmax.f32 %v5319, 0.0
      %v5631 = vmax.f32 %v5321, 0.0
      %v5632 = vmax.f32 %v5323, 0.0
      %v5633 = vmax.f32 %v5327, 0.0
      %v5634 = vmax.f32 %v5329, 0.0
      %v5635 = vmax.f32 %v5331, 0.0
      %v5636 = vmax.f32 %v5333, 0.0
      %v5637 = vmax.f32 %v5337, 0.0
      %v5638 = vmax.f32 %v5339, 0.0
      %v5639 = vmax.f32 %v5341, 0.0
      %v5640 = vmax.f32 %v5343, 0.0
      %v5641 = vmax.f32 %v5347, 0.0
      %v5642 = vmax.f32 %v5349, 0.0
      %v5643 = vmax.f32 %v5351, 0.0
      %v5644 = vmax.f32 %v5353, 0.0
      %v5645 = vmax.f32 %v5357, 0.0
      %v5646 = vmax.f32 %v5359, 0.0
      %v5647 = vmax.f32 %v5361, 0.0
      %v5648 = vmax.f32 %v5363, 0.0
      %v5649 = vmax.f32 %v5367, 0.0
      %v5650 = vmax.f32 %v5369, 0.0
      %v5651 = vmax.f32 %v5371, 0.0
      %v5652 = vmax.f32 %v5373, 0.0
      %v5653 = vmax.f32 %v5377, 0.0
      %v5654 = vmax.f32 %v5379, 0.0
      %v5655 = vmax.f32 %v5381, 0.0
      %v5656 = vmax.f32 %v5383, 0.0
      %v5657 = vmax.f32 %v5387, 0.0
      %v5658 = vmax.f32 %v5389, 0.0
      %v5659 = vmax.f32 %v5391, 0.0
      %v5660 = vmax.f32 %v5393, 0.0
      %v5661 = vmax.f32 %v5397, 0.0
      %v5662 = vmax.f32 %v5399, 0.0
      %v5663 = vmax.f32 %v5401, 0.0
      %v5664 = vmax.f32 %v5403, 0.0
      %v5665 = vmax.f32 %v5407, 0.0
      %v5666 = vmax.f32 %v5409, 0.0
      %v5667 = vmax.f32 %v5411, 0.0
      %v5668 = vmax.f32 %v5413, 0.0
      %v5669 = vmax.f32 %v5417, 0.0
      %v5670 = vmax.f32 %v5419, 0.0
      %v5671 = vmax.f32 %v5421, 0.0
      %v5672 = vmax.f32 %v5423, 0.0
      %v5673 = vmax.f32 %v5427, 0.0
      %v5674 = vmax.f32 %v5429, 0.0
      %v5675 = vmax.f32 %v5431, 0.0
      %v5676 = vmax.f32 %v5433, 0.0
      %v5677 = vmax.f32 %v5437, 0.0
      %v5678 = vmax.f32 %v5439, 0.0
      %v5679 = vmax.f32 %v5441, 0.0
      %v5680 = vmax.f32 %v5443, 0.0
      %v5681 = vmax.f32 %v5447, 0.0
      %v5682 = vmax.f32 %v5449, 0.0
      %v5683 = vmax.f32 %v5451, 0.0
      %v5684 = vmax.f32 %v5453, 0.0
      %v5685 = vmax.f32 %v5457, 0.0
      %v5686 = vmax.f32 %v5459, 0.0
      %v5687 = vmax.f32 %v5461, 0.0
      %v5688 = vmax.f32 %v5463, 0.0
      %v5689 = vmax.f32 %v5467, 0.0
      %v5690 = vmax.f32 %v5469, 0.0
      %v5691 = vmax.f32 %v5471, 0.0
      %v5692 = vmax.f32 %v5473, 0.0
      %v5693 = vmax.f32 %v5477, 0.0
      %v5694 = vmax.f32 %v5479, 0.0
      %v5695 = vmax.f32 %v5481, 0.0
      %v5696 = vmax.f32 %v5483, 0.0
      %v5697 = vmax.f32 %v5487, 0.0
      %v5698 = vmax.f32 %v5489, 0.0
      %v5699 = vmax.f32 %v5491, 0.0
      %v5700 = vmax.f32 %v5493, 0.0
      %v5701 = vmax.f32 %v5497, 0.0
      %v5702 = vmax.f32 %v5499, 0.0
      %v5703 = vmax.f32 %v5501, 0.0
      %v5704 = vmax.f32 %v5503, 0.0
      %v5705 = vmax.f32 %v5507, 0.0
      %v5706 = vmax.f32 %v5509, 0.0
      %v5707 = vmax.f32 %v5511, 0.0
      %v5708 = vmax.f32 %v5513, 0.0
      %v5709 = vmax.f32 %v5517, 0.0
      %v5710 = vmax.f32 %v5519, 0.0
      %v5711 = vmax.f32 %v5521, 0.0
      %v5712 = vmax.f32 %v5523, 0.0
      %v5713 = vmax.f32 %v5527, 0.0
      %v5714 = vmax.f32 %v5529, 0.0
      %v5715 = vmax.f32 %v5531, 0.0
      %v5716 = vmax.f32 %v5533, 0.0
      %v5717 = vmax.f32 %v5537, 0.0
      %v5718 = vmax.f32 %v5539, 0.0
      %v5719 = vmax.f32 %v5541, 0.0
      %v5720 = vmax.f32 %v5543, 0.0
      %v5721 = vmax.f32 %v5547, 0.0
      %v5722 = vmax.f32 %v5549, 0.0
      %v5723 = vmax.f32 %v5551, 0.0
      %v5724 = vmax.f32 %v5553, 0.0
      %v5725 = vmax.f32 %v5557, 0.0
      %v5726 = vmax.f32 %v5559, 0.0
      %v5727 = vmax.f32 %v5561, 0.0
      %v5728 = vmax.f32 %v5563, 0.0
      %v5729 = vmax.f32 %v5567, 0.0
      %v5730 = vmax.f32 %v5569, 0.0
      %v5731 = vmax.f32 %v5571, 0.0
      %v5732 = vmax.f32 %v5573, 0.0
      %v5733 = vmax.f32 %v5577, 0.0
      %v5734 = vmax.f32 %v5579, 0.0
      %v5735 = vmax.f32 %v5581, 0.0
      %v5736 = vmax.f32 %v5583, 0.0
      %v5737 = vmax.f32 %v5587, 0.0
      %v5738 = vmax.f32 %v5589, 0.0
      %v5739 = vmax.f32 %v5591, 0.0
      %v5740 = vmax.f32 %v5593, 0.0
      %v5741 = vmax.f32 %v5597, 0.0
      %v5742 = vmax.f32 %v5599, 0.0
      %v5743 = vmax.f32 %v5601, 0.0
      %v5744 = vmax.f32 %v5603, 0.0
      %v5745 = vmax.f32 %v5607, 0.0
      %v5746 = vmax.f32 %v5609, 0.0
      %v5747 = vmax.f32 %v5611, 0.0
      %v5748 = vmax.f32 %v5613, 0.0
      %v5749 = vmax.f32 %v5617, 0.0
      %v5750 = vmax.f32 %v5619, 0.0
      %v5751 = vmax.f32 %v5621, 0.0
      %v5752 = vmax.f32 %v5623, 0.0
      %v5753 = vadd.f32 %v5625, %v4193
      %v5754 = vadd.f32 %v5626, %v4194
      %v5755 = vadd.f32 %v5627, %v4195
      %v5756 = vadd.f32 %v5628, %v4196
      %v5757 = vadd.f32 %v5629, %v4197
      %v5758 = vadd.f32 %v5630, %v4198
      %v5759 = vadd.f32 %v5631, %v4199
      %v5760 = vadd.f32 %v5632, %v4200
      %v5761 = vadd.f32 %v5633, %v4201
      %v5762 = vadd.f32 %v5634, %v4202
      %v5763 = vadd.f32 %v5635, %v4203
      %v5764 = vadd.f32 %v5636, %v4204
      %v5765 = vadd.f32 %v5637, %v4205
      %v5766 = vadd.f32 %v5638, %v4206
      %v5767 = vadd.f32 %v5639, %v4207
      %v5768 = vadd.f32 %v5640, %v4208
      %v5769 = vadd.f32 %v5641, %v4209
      %v5770 = vadd.f32 %v5642, %v4210
      %v5771 = vadd.f32 %v5643, %v4211
      %v5772 = vadd.f32 %v5644, %v4212
      %v5773 = vadd.f32 %v5645, %v4213
      %v5774 = vadd.f32 %v5646, %v4214
      %v5775 = vadd.f32 %v5647, %v4215
      %v5776 = vadd.f32 %v5648, %v4216
      %v5777 = vadd.f32 %v5649, %v4217
      %v5778 = vadd.f32 %v5650, %v4218
      %v5779 = vadd.f32 %v5651, %v4219
      %v5780 = vadd.f32 %v5652, %v4220
      %v5781 = vadd.f32 %v5653, %v4221
      %v5782 = vadd.f32 %v5654, %v4222
      %v5783 = vadd.f32 %v5655, %v4223
      %v5784 = vadd.f32 %v5656, %v4224
      %v5785 = vadd.f32 %v5657, %v4225
      %v5786 = vadd.f32 %v5658, %v4226
      %v5787 = vadd.f32 %v5659, %v4227
      %v5788 = vadd.f32 %v5660, %v4228
      %v5789 = vadd.f32 %v5661, %v4229
      %v5790 = vadd.f32 %v5662, %v4230
      %v5791 = vadd.f32 %v5663, %v4231
      %v5792 = vadd.f32 %v5664, %v4232
      %v5793 = vadd.f32 %v5665, %v4233
      %v5794 = vadd.f32 %v5666, %v4234
      %v5795 = vadd.f32 %v5667, %v4235
      %v5796 = vadd.f32 %v5668, %v4236
      %v5797 = vadd.f32 %v5669, %v4237
      %v5798 = vadd.f32 %v5670, %v4238
      %v5799 = vadd.f32 %v5671, %v4239
      %v5800 = vadd.f32 %v5672, %v4240
      %v5801 = vadd.f32 %v5673, %v4241
      %v5802 = vadd.f32 %v5674, %v4242
      %v5803 = vadd.f32 %v5675, %v4243
      %v5804 = vadd.f32 %v5676, %v4244
      %v5805 = vadd.f32 %v5677, %v4245
      %v5806 = vadd.f32 %v5678, %v4246
      %v5807 = vadd.f32 %v5679, %v4247
      %v5808 = vadd.f32 %v5680, %v4248
      %v5809 = vadd.f32 %v5681, %v4249
      %v5810 = vadd.f32 %v5682, %v4250
      %v5811 = vadd.f32 %v5683, %v4251
      %v5812 = vadd.f32 %v5684, %v4252
      %v5813 = vadd.f32 %v5685, %v4253
      %v5814 = vadd.f32 %v5686, %v4254
      %v5815 = vadd.f32 %v5687, %v4255
      %v5816 = vadd.f32 %v5688, %v4256
      %v5817 = vadd.f32 %v5689, %v4257
      %v5818 = vadd.f32 %v5690, %v4258
      %v5819 = vadd.f32 %v5691, %v4259
      %v5820 = vadd.f32 %v5692, %v4260
      %v5821 = vadd.f32 %v5693, %v4261
      %v5822 = vadd.f32 %v5694, %v4262
      %v5823 = vadd.f32 %v5695, %v4263
      %v5824 = vadd.f32 %v5696, %v4264
      %v5825 = vadd.f32 %v5697, %v4265
      %v5826 = vadd.f32 %v5698, %v4266
      %v5827 = vadd.f32 %v5699, %v4267
      %v5828 = vadd.f32 %v5700, %v4268
      %v5829 = vadd.f32 %v5701, %v4269
      %v5830 = vadd.f32 %v5702, %v4270
      %v5831 = vadd.f32 %v5703, %v4271
      %v5832 = vadd.f32 %v5704, %v4272
      %v5833 = vadd.f32 %v5705, %v4273
      %v5834 = vadd.f32 %v5706, %v4274
      %v5835 = vadd.f32 %v5707, %v4275
      %v5836 = vadd.f32 %v5708, %v4276
      %v5837 = vadd.f32 %v5709, %v4277
      %v5838 = vadd.f32 %v5710, %v4278
      %v5839 = vadd.f32 %v5711, %v4279
      %v5840 = vadd.f32 %v5712, %v4280
      %v5841 = vadd.f32 %v5713, %v4281
      %v5842 = vadd.f32 %v5714, %v4282
      %v5843 = vadd.f32 %v5715, %v4283
      %v5844 = vadd.f32 %v5716, %v4284
      %v5845 = vadd.f32 %v5717, %v4285
      %v5846 = vadd.f32 %v5718, %v4286
      %v5847 = vadd.f32 %v5719, %v4287
      %v5848 = vadd.f32 %v5720, %v4288
      %v5849 = vadd.f32 %v5721, %v4289
      %v5850 = vadd.f32 %v5722, %v4290
      %v5851 = vadd.f32 %v5723, %v4291
      %v5852 = vadd.f32 %v5724, %v4292
      %v5853 = vadd.f32 %v5725, %v4293
      %v5854 = vadd.f32 %v5726, %v4294
      %v5855 = vadd.f32 %v5727, %v4295
      %v5856 = vadd.f32 %v5728, %v4296
      %v5857 = vadd.f32 %v5729, %v4297
      %v5858 = vadd.f32 %v5730, %v4298
      %v5859 = vadd.f32 %v5731, %v4299
      %v5860 = vadd.f32 %v5732, %v4300
      %v5861 = vadd.f32 %v5733, %v4301
      %v5862 = vadd.f32 %v5734, %v4302
      %v5863 = vadd.f32 %v5735, %v4303
      %v5864 = vadd.f32 %v5736, %v4304
      %v5865 = vadd.f32 %v5737, %v4305
      %v5866 = vadd.f32 %v5738, %v4306
      %v5867 = vadd.f32 %v5739, %v4307
      %v5868 = vadd.f32 %v5740, %v4308
      %v5869 = vadd.f32 %v5741, %v4309
      %v5870 = vadd.f32 %v5742, %v4310
      %v5871 = vadd.f32 %v5743, %v4311
      %v5872 = vadd.f32 %v5744, %v4312
      %v5873 = vadd.f32 %v5745, %v4313
      %v5874 = vadd.f32 %v5746, %v4314
      %v5875 = vadd.f32 %v5747, %v4315
      %v5876 = vadd.f32 %v5748, %v4316
      %v5877 = vadd.f32 %v5749, %v4317
      %v5878 = vadd.f32 %v5750, %v4318
      %v5879 = vadd.f32 %v5751, %v4319
      %v5880 = vadd.f32 %v5752, %v4320
      %s5881 = scalar_lea.vmem %s3, 1536
      %v5882 = vld [vmem:[%s5881] sm:$0xff]
      %v5883 = vld [vmem:[%s5881 + $0x8] sm:$0xff]
      %v5884 = vld [vmem:[%s5881 + $0x10] sm:$0xff]
      %v5885 = vld [vmem:[%s5881 + $0x18] sm:$0xff]
      %v5886 = vld [vmem:[%s5881 + $0x20] sm:$0xff]
      %v5887 = vld [vmem:[%s5881 + $0x28] sm:$0xff]
      %v5888 = vld [vmem:[%s5881 + $0x30] sm:$0xff]
      %v5889 = vld [vmem:[%s5881 + $0x38] sm:$0xff]
      %v5890 = vld [vmem:[%s5881 + $0x40] sm:$0xff]
      %v5891 = vld [vmem:[%s5881 + $0x48] sm:$0xff]
      %v5892 = vld [vmem:[%s5881 + $0x50] sm:$0xff]
      %v5893 = vld [vmem:[%s5881 + $0x58] sm:$0xff]
      %v5894 = vld [vmem:[%s5881 + $0x60] sm:$0xff]
      %v5895 = vld [vmem:[%s5881 + $0x68] sm:$0xff]
      %v5896 = vld [vmem:[%s5881 + $0x70] sm:$0xff]
      %v5897 = vld [vmem:[%s5881 + $0x78] sm:$0xff]
      %v5898 = vld [vmem:[%s5881 + $0x80] sm:$0xff]
      %v5899 = vld [vmem:[%s5881 + $0x88] sm:$0xff]
      %v5900 = vld [vmem:[%s5881 + $0x90] sm:$0xff]
      %v5901 = vld [vmem:[%s5881 + $0x98] sm:$0xff]
      %v5902 = vld [vmem:[%s5881 + $0xa0] sm:$0xff]
      %v5903 = vld [vmem:[%s5881 + $0xa8] sm:$0xff]
      %v5904 = vld [vmem:[%s5881 + $0xb0] sm:$0xff]
      %v5905 = vld [vmem:[%s5881 + $0xb8] sm:$0xff]
      %v5906 = vld [vmem:[%s5881 + $0xc0] sm:$0xff]
      %v5907 = vld [vmem:[%s5881 + $0xc8] sm:$0xff]
      %v5908 = vld [vmem:[%s5881 + $0xd0] sm:$0xff]
      %v5909 = vld [vmem:[%s5881 + $0xd8] sm:$0xff]
      %v5910 = vld [vmem:[%s5881 + $0xe0] sm:$0xff]
      %v5911 = vld [vmem:[%s5881 + $0xe8] sm:$0xff]
      %v5912 = vld [vmem:[%s5881 + $0xf0] sm:$0xff]
      %v5913 = vld [vmem:[%s5881 + $0xf8] sm:$0xff]
      %s5914 = scalar_lea.vmem %s4, 12
      %v5915 = vld [vmem:[%s5914] sm:$0x3]
      %s5916 = scalar_lea.vmem %s3, 1792
      %v5917 = vld [vmem:[%s5916] sm:$0xff]
      %v5918 = vld [vmem:[%s5916 + $0x8] sm:$0xff]
      %v5919 = vld [vmem:[%s5916 + $0x10] sm:$0xff]
      %v5920 = vld [vmem:[%s5916 + $0x18] sm:$0xff]
      %v5921 = vld [vmem:[%s5916 + $0x20] sm:$0xff]
      %v5922 = vld [vmem:[%s5916 + $0x28] sm:$0xff]
      %v5923 = vld [vmem:[%s5916 + $0x30] sm:$0xff]
      %v5924 = vld [vmem:[%s5916 + $0x38] sm:$0xff]
      %v5925 = vld [vmem:[%s5916 + $0x40] sm:$0xff]
      %v5926 = vld [vmem:[%s5916 + $0x48] sm:$0xff]
      %v5927 = vld [vmem:[%s5916 + $0x50] sm:$0xff]
      %v5928 = vld [vmem:[%s5916 + $0x58] sm:$0xff]
      %v5929 = vld [vmem:[%s5916 + $0x60] sm:$0xff]
      %v5930 = vld [vmem:[%s5916 + $0x68] sm:$0xff]
      %v5931 = vld [vmem:[%s5916 + $0x70] sm:$0xff]
      %v5932 = vld [vmem:[%s5916 + $0x78] sm:$0xff]
      %v5933 = vld [vmem:[%s5916 + $0x80] sm:$0xff]
      %v5934 = vld [vmem:[%s5916 + $0x88] sm:$0xff]
      %v5935 = vld [vmem:[%s5916 + $0x90] sm:$0xff]
      %v5936 = vld [vmem:[%s5916 + $0x98] sm:$0xff]
      %v5937 = vld [vmem:[%s5916 + $0xa0] sm:$0xff]
      %v5938 = vld [vmem:[%s5916 + $0xa8] sm:$0xff]
      %v5939 = vld [vmem:[%s5916 + $0xb0] sm:$0xff]
      %v5940 = vld [vmem:[%s5916 + $0xb8] sm:$0xff]
      %v5941 = vld [vmem:[%s5916 + $0xc0] sm:$0xff]
      %v5942 = vld [vmem:[%s5916 + $0xc8] sm:$0xff]
      %v5943 = vld [vmem:[%s5916 + $0xd0] sm:$0xff]
      %v5944 = vld [vmem:[%s5916 + $0xd8] sm:$0xff]
      %v5945 = vld [vmem:[%s5916 + $0xe0] sm:$0xff]
      %v5946 = vld [vmem:[%s5916 + $0xe8] sm:$0xff]
      %v5947 = vld [vmem:[%s5916 + $0xf0] sm:$0xff]
      %v5948 = vld [vmem:[%s5916 + $0xf8] sm:$0xff]
      %s5949 = scalar_lea.vmem %s4, 14
      %v5950 = vld [vmem:[%s5949] sm:$0x3]
      %s5951 = scalar_lea.vmem %s3, 2048
      %v5952 = vld [vmem:[%s5951] sm:$0xff]
      %v5953 = vld [vmem:[%s5951 + $0x8] sm:$0xff]
      %v5954 = vld [vmem:[%s5951 + $0x10] sm:$0xff]
      %v5955 = vld [vmem:[%s5951 + $0x18] sm:$0xff]
      %v5956 = vld [vmem:[%s5951 + $0x20] sm:$0xff]
      %v5957 = vld [vmem:[%s5951 + $0x28] sm:$0xff]
      %v5958 = vld [vmem:[%s5951 + $0x30] sm:$0xff]
      %v5959 = vld [vmem:[%s5951 + $0x38] sm:$0xff]
      %v5960 = vld [vmem:[%s5951 + $0x40] sm:$0xff]
      %v5961 = vld [vmem:[%s5951 + $0x48] sm:$0xff]
      %v5962 = vld [vmem:[%s5951 + $0x50] sm:$0xff]
      %v5963 = vld [vmem:[%s5951 + $0x58] sm:$0xff]
      %v5964 = vld [vmem:[%s5951 + $0x60] sm:$0xff]
      %v5965 = vld [vmem:[%s5951 + $0x68] sm:$0xff]
      %v5966 = vld [vmem:[%s5951 + $0x70] sm:$0xff]
      %v5967 = vld [vmem:[%s5951 + $0x78] sm:$0xff]
      %v5968 = vld [vmem:[%s5951 + $0x80] sm:$0xff]
      %v5969 = vld [vmem:[%s5951 + $0x88] sm:$0xff]
      %v5970 = vld [vmem:[%s5951 + $0x90] sm:$0xff]
      %v5971 = vld [vmem:[%s5951 + $0x98] sm:$0xff]
      %v5972 = vld [vmem:[%s5951 + $0xa0] sm:$0xff]
      %v5973 = vld [vmem:[%s5951 + $0xa8] sm:$0xff]
      %v5974 = vld [vmem:[%s5951 + $0xb0] sm:$0xff]
      %v5975 = vld [vmem:[%s5951 + $0xb8] sm:$0xff]
      %v5976 = vld [vmem:[%s5951 + $0xc0] sm:$0xff]
      %v5977 = vld [vmem:[%s5951 + $0xc8] sm:$0xff]
      %v5978 = vld [vmem:[%s5951 + $0xd0] sm:$0xff]
      %v5979 = vld [vmem:[%s5951 + $0xd8] sm:$0xff]
      %v5980 = vld [vmem:[%s5951 + $0xe0] sm:$0xff]
      %v5981 = vld [vmem:[%s5951 + $0xe8] sm:$0xff]
      %v5982 = vld [vmem:[%s5951 + $0xf0] sm:$0xff]
      %v5983 = vld [vmem:[%s5951 + $0xf8] sm:$0xff]
      %s5984 = scalar_lea.vmem %s4, 16
      %v5985 = vld [vmem:[%s5984] sm:$0x3]
      %v5986 = vpack.c.bf16 %v5755, %v5753
      %v5987 = vpack.c.bf16 %v5756, %v5754
      %v5988 = vpack.c.bf16 %v5759, %v5757
      %v5989 = vpack.c.bf16 %v5760, %v5758
      %v5990 = vpack.c.bf16 %v5763, %v5761
      %v5991 = vpack.c.bf16 %v5764, %v5762
      %v5992 = vpack.c.bf16 %v5767, %v5765
      %v5993 = vpack.c.bf16 %v5768, %v5766
      %v5994 = vpack.c.bf16 %v5771, %v5769
      %v5995 = vpack.c.bf16 %v5772, %v5770
      %v5996 = vpack.c.bf16 %v5775, %v5773
      %v5997 = vpack.c.bf16 %v5776, %v5774
      %v5998 = vpack.c.bf16 %v5779, %v5777
      %v5999 = vpack.c.bf16 %v5780, %v5778
      %v6000 = vpack.c.bf16 %v5783, %v5781
      %v6001 = vpack.c.bf16 %v5784, %v5782
      %v6002 = vpack.c.bf16 %v5787, %v5785
      %v6003 = vpack.c.bf16 %v5788, %v5786
      %v6004 = vpack.c.bf16 %v5791, %v5789
      %v6005 = vpack.c.bf16 %v5792, %v5790
      %v6006 = vpack.c.bf16 %v5795, %v5793
      %v6007 = vpack.c.bf16 %v5796, %v5794
      %v6008 = vpack.c.bf16 %v5799, %v5797
      %v6009 = vpack.c.bf16 %v5800, %v5798
      %v6010 = vpack.c.bf16 %v5803, %v5801
      %v6011 = vpack.c.bf16 %v5804, %v5802
      %v6012 = vpack.c.bf16 %v5807, %v5805
      %v6013 = vpack.c.bf16 %v5808, %v5806
      %v6014 = vpack.c.bf16 %v5811, %v5809
      %v6015 = vpack.c.bf16 %v5812, %v5810
      %v6016 = vpack.c.bf16 %v5815, %v5813
      %v6017 = vpack.c.bf16 %v5816, %v5814
      %v6018 = vpack.c.bf16 %v5819, %v5817
      %v6019 = vpack.c.bf16 %v5820, %v5818
      %v6020 = vpack.c.bf16 %v5823, %v5821
      %v6021 = vpack.c.bf16 %v5824, %v5822
      %v6022 = vpack.c.bf16 %v5827, %v5825
      %v6023 = vpack.c.bf16 %v5828, %v5826
      %v6024 = vpack.c.bf16 %v5831, %v5829
      %v6025 = vpack.c.bf16 %v5832, %v5830
      %v6026 = vpack.c.bf16 %v5835, %v5833
      %v6027 = vpack.c.bf16 %v5836, %v5834
      %v6028 = vpack.c.bf16 %v5839, %v5837
      %v6029 = vpack.c.bf16 %v5840, %v5838
      %v6030 = vpack.c.bf16 %v5843, %v5841
      %v6031 = vpack.c.bf16 %v5844, %v5842
      %v6032 = vpack.c.bf16 %v5847, %v5845
      %v6033 = vpack.c.bf16 %v5848, %v5846
      %v6034 = vpack.c.bf16 %v5851, %v5849
      %v6035 = vpack.c.bf16 %v5852, %v5850
      %v6036 = vpack.c.bf16 %v5855, %v5853
      %v6037 = vpack.c.bf16 %v5856, %v5854
      %v6038 = vpack.c.bf16 %v5859, %v5857
      %v6039 = vpack.c.bf16 %v5860, %v5858
      %v6040 = vpack.c.bf16 %v5863, %v5861
      %v6041 = vpack.c.bf16 %v5864, %v5862
      %v6042 = vpack.c.bf16 %v5867, %v5865
      %v6043 = vpack.c.bf16 %v5868, %v5866
      %v6044 = vpack.c.bf16 %v5871, %v5869
      %v6045 = vpack.c.bf16 %v5872, %v5870
      %v6046 = vpack.c.bf16 %v5875, %v5873
      %v6047 = vpack.c.bf16 %v5876, %v5874
      %v6048 = vpack.c.bf16 %v5879, %v5877
      %v6049 = vpack.c.bf16 %v5880, %v5878
      %v6051 = vlaneseq
      %v6052 = vshrl.u32 %v6051, 7
      %v6053 = vsub.s32 0, %v6052
      %v6054 = vrot.slane %v5915, %v6053
      %v6055 = vlaneseq
      %v6056 = vshrl.u32 %v6055, 7
      %v6057 = vsub.s32 1, %v6056
      %v6058 = vrot.slane %v5915, %v6057
      %v6093 = vunpack.c.l.b16 %v5882
      %v6094 = vunpack.c.h.b16 %v5882
      %v6095 = vunpack.c.l.b16 %v5883
      %v6096 = vunpack.c.h.b16 %v5883
      %v6097 = vunpack.c.l.b16 %v5884
      %v6098 = vunpack.c.h.b16 %v5884
      %v6099 = vunpack.c.l.b16 %v5885
      %v6100 = vunpack.c.h.b16 %v5885
      %v6101 = vunpack.c.l.b16 %v5886
      %v6102 = vunpack.c.h.b16 %v5886
      %v6103 = vunpack.c.l.b16 %v5887
      %v6104 = vunpack.c.h.b16 %v5887
      %v6105 = vunpack.c.l.b16 %v5888
      %v6106 = vunpack.c.h.b16 %v5888
      %v6107 = vunpack.c.l.b16 %v5889
      %v6108 = vunpack.c.h.b16 %v5889
      %v6109 = vunpack.c.l.b16 %v5890
      %v6110 = vunpack.c.h.b16 %v5890
      %v6111 = vunpack.c.l.b16 %v5891
      %v6112 = vunpack.c.h.b16 %v5891
      %v6113 = vunpack.c.l.b16 %v5892
      %v6114 = vunpack.c.h.b16 %v5892
      %v6115 = vunpack.c.l.b16 %v5893
      %v6116 = vunpack.c.h.b16 %v5893
      %v6117 = vunpack.c.l.b16 %v5894
      %v6118 = vunpack.c.h.b16 %v5894
      %v6119 = vunpack.c.l.b16 %v5895
      %v6120 = vunpack.c.h.b16 %v5895
      %v6121 = vunpack.c.l.b16 %v5896
      %v6122 = vunpack.c.h.b16 %v5896
      %v6123 = vunpack.c.l.b16 %v5897
      %v6124 = vunpack.c.h.b16 %v5897
      %v6125 = vunpack.c.l.b16 %v5898
      %v6126 = vunpack.c.h.b16 %v5898
      %v6127 = vunpack.c.l.b16 %v5899
      %v6128 = vunpack.c.h.b16 %v5899
      %v6129 = vunpack.c.l.b16 %v5900
      %v6130 = vunpack.c.h.b16 %v5900
      %v6131 = vunpack.c.l.b16 %v5901
      %v6132 = vunpack.c.h.b16 %v5901
      %v6133 = vunpack.c.l.b16 %v5902
      %v6134 = vunpack.c.h.b16 %v5902
      %v6135 = vunpack.c.l.b16 %v5903
      %v6136 = vunpack.c.h.b16 %v5903
      %v6137 = vunpack.c.l.b16 %v5904
      %v6138 = vunpack.c.h.b16 %v5904
      %v6139 = vunpack.c.l.b16 %v5905
      %v6140 = vunpack.c.h.b16 %v5905
      %v6141 = vunpack.c.l.b16 %v5906
      %v6142 = vunpack.c.h.b16 %v5906
      %v6143 = vunpack.c.l.b16 %v5907
      %v6144 = vunpack.c.h.b16 %v5907
      %v6145 = vunpack.c.l.b16 %v5908
      %v6146 = vunpack.c.h.b16 %v5908
      %v6147 = vunpack.c.l.b16 %v5909
      %v6148 = vunpack.c.h.b16 %v5909
      %v6149 = vunpack.c.l.b16 %v5910
      %v6150 = vunpack.c.h.b16 %v5910
      %v6151 = vunpack.c.l.b16 %v5911
      %v6152 = vunpack.c.h.b16 %v5911
      %v6153 = vunpack.c.l.b16 %v5912
      %v6154 = vunpack.c.h.b16 %v5912
      %v6155 = vunpack.c.l.b16 %v5913
      %v6156 = vunpack.c.h.b16 %v5913
      %v6157 = vpack.c.b16 %v6095, %v6093
      %v6158 = vpack.c.b16 %v6096, %v6094
      %v6159 = vpack.c.b16 %v6099, %v6097
      %v6160 = vpack.c.b16 %v6100, %v6098
      %v6161 = vpack.c.b16 %v6103, %v6101
      %v6162 = vpack.c.b16 %v6104, %v6102
      %v6163 = vpack.c.b16 %v6107, %v6105
      %v6164 = vpack.c.b16 %v6108, %v6106
      %v6165 = vpack.c.b16 %v6111, %v6109
      %v6166 = vpack.c.b16 %v6112, %v6110
      %v6167 = vpack.c.b16 %v6115, %v6113
      %v6168 = vpack.c.b16 %v6116, %v6114
      %v6169 = vpack.c.b16 %v6119, %v6117
      %v6170 = vpack.c.b16 %v6120, %v6118
      %v6171 = vpack.c.b16 %v6123, %v6121
      %v6172 = vpack.c.b16 %v6124, %v6122
      %v6173 = vpack.c.b16 %v6127, %v6125
      %v6174 = vpack.c.b16 %v6128, %v6126
      %v6175 = vpack.c.b16 %v6131, %v6129
      %v6176 = vpack.c.b16 %v6132, %v6130
      %v6177 = vpack.c.b16 %v6135, %v6133
      %v6178 = vpack.c.b16 %v6136, %v6134
      %v6179 = vpack.c.b16 %v6139, %v6137
      %v6180 = vpack.c.b16 %v6140, %v6138
      %v6181 = vpack.c.b16 %v6143, %v6141
      %v6182 = vpack.c.b16 %v6144, %v6142
      %v6183 = vpack.c.b16 %v6147, %v6145
      %v6184 = vpack.c.b16 %v6148, %v6146
      %v6185 = vpack.c.b16 %v6151, %v6149
      %v6186 = vpack.c.b16 %v6152, %v6150
      %v6187 = vpack.c.b16 %v6155, %v6153
      %v6188 = vpack.c.b16 %v6156, %v6154
      %6221 = vmatprep.subr.bf16.mxu0 %v6158
      %6222 = vmatpush1.bf16.msra.mxu0 %v6157
      %6223 = vmatprep.subr.bf16.mxu0 %v6160
      %6224 = vmatpush1.bf16.msra.mxu0 %v6159
      %6225 = vmatprep.subr.bf16.mxu0 %v6162
      %6226 = vmatpush1.bf16.msra.mxu0 %v6161
      %6227 = vmatprep.subr.bf16.mxu0 %v6164
      %6228 = vmatpush1.bf16.msra.mxu0 %v6163
      %6229 = vmatprep.subr.bf16.mxu0 %v6166
      %6230 = vmatpush1.bf16.msra.mxu0 %v6165
      %6231 = vmatprep.subr.bf16.mxu0 %v6168
      %6232 = vmatpush1.bf16.msra.mxu0 %v6167
      %6233 = vmatprep.subr.bf16.mxu0 %v6170
      %6234 = vmatpush1.bf16.msra.mxu0 %v6169
      %6235 = vmatprep.subr.bf16.mxu0 %v6172
      %6236 = vmatpush1.bf16.msra.mxu0 %v6171
      %6237 = vmatprep.subr.bf16.mxu0 %v6174
      %6238 = vmatpush1.bf16.msra.mxu0 %v6173
      %6239 = vmatprep.subr.bf16.mxu0 %v6176
      %6240 = vmatpush1.bf16.msra.mxu0 %v6175
      %6241 = vmatprep.subr.bf16.mxu0 %v6178
      %6242 = vmatpush1.bf16.msra.mxu0 %v6177
      %6243 = vmatprep.subr.bf16.mxu0 %v6180
      %6244 = vmatpush1.bf16.msra.mxu0 %v6179
      %6245 = vmatprep.subr.bf16.mxu0 %v6182
      %6246 = vmatpush1.bf16.msra.mxu0 %v6181
      %6247 = vmatprep.subr.bf16.mxu0 %v6184
      %6248 = vmatpush1.bf16.msra.mxu0 %v6183
      %6249 = vmatprep.subr.bf16.mxu0 %v6186
      %6250 = vmatpush1.bf16.msra.mxu0 %v6185
      %6251 = vmatprep.subr.bf16.mxu0 %v6188
      %6252 = vmatpush1.bf16.msra.mxu0 %v6187
      %6253 = vmatprep.mubr.bf16.mxu0 %v5987
      %6254 = vmatmul.mubr.bf16.gmra.mrb[0].mxu0 %v5986
      %v6255 = vpop.f32.mrb[0].mxu0
      %v6256 = vadd.f32 %v6054, %v6255
      %v6257 = vpop.f32.mrb[0].mxu0
      %v6258 = vadd.f32 %v6058, %v6257
      %v6259 = vpop.f32.mrb[0].mxu0
      %v6260 = vadd.f32 %v6054, %v6259
      %v6261 = vpop.f32.mrb[0].mxu0
      %v6262 = vadd.f32 %v6058, %v6261
      %6263 = vmatprep.mubr.bf16.mxu0 %v5989
      %6264 = vmatmul.mubr.bf16.gmra.mrb[0].mxu0 %v5988
      %v6265 = vpop.f32.mrb[0].mxu0
      %v6266 = vadd.f32 %v6054, %v6265
      %v6267 = vpop.f32.mrb[0].mxu0
      %v6268 = vadd.f32 %v6058, %v6267
      %v6269 = vpop.f32.mrb[0].mxu0
      %v6270 = vadd.f32 %v6054, %v6269
      %v6271 = vpop.f32.mrb[0].mxu0
      %v6272 = vadd.f32 %v6058, %v6271
      %6273 = vmatprep.mubr.bf16.mxu0 %v5991
      %6274 = vmatmul.mubr.bf16.gmra.mrb[0].mxu0 %v5990
      %v6275 = vpop.f32.mrb[0].mxu0
      %v6276 = vadd.f32 %v6054, %v6275
      %v6277 = vpop.f32.mrb[0].mxu0
      %v6278 = vadd.f32 %v6058, %v6277
      %v6279 = vpop.f32.mrb[0].mxu0
      %v6280 = vadd.f32 %v6054, %v6279
      %v6281 = vpop.f32.mrb[0].mxu0
      %v6282 = vadd.f32 %v6058, %v6281
      %6283 = vmatprep.mubr.bf16.mxu0 %v5993
      %6284 = vmatmul.mubr.bf16.gmra.mrb[0].mxu0 %v5992
      %v6285 = vpop.f32.mrb[0].mxu0
      %v6286 = vadd.f32 %v6054, %v6285
      %v6287 = vpop.f32.mrb[0].mxu0
      %v6288 = vadd.f32 %v6058, %v6287
      %v6289 = vpop.f32.mrb[0].mxu0
      %v6290 = vadd.f32 %v6054, %v6289
      %v6291 = vpop.f32.mrb[0].mxu0
      %v6292 = vadd.f32 %v6058, %v6291
      %6293 = vmatprep.mubr.bf16.mxu0 %v5995
      %6294 = vmatmul.mubr.bf16.gmra.mrb[0].mxu0 %v5994
      %v6295 = vpop.f32.mrb[0].mxu0
      %v6296 = vadd.f32 %v6054, %v6295
      %v6297 = vpop.f32.mrb[0].mxu0
      %v6298 = vadd.f32 %v6058, %v6297
      %v6299 = vpop.f32.mrb[0].mxu0
      %v6300 = vadd.f32 %v6054, %v6299
      %v6301 = vpop.f32.mrb[0].mxu0
      %v6302 = vadd.f32 %v6058, %v6301
      %6303 = vmatprep.mubr.bf16.mxu0 %v5997
      %6304 = vmatmul.mubr.bf16.gmra.mrb[0].mxu0 %v5996
      %v6305 = vpop.f32.mrb[0].mxu0
      %v6306 = vadd.f32 %v6054, %v6305
      %v6307 = vpop.f32.mrb[0].mxu0
      %v6308 = vadd.f32 %v6058, %v6307
      %v6309 = vpop.f32.mrb[0].mxu0
      %v6310 = vadd.f32 %v6054, %v6309
      %v6311 = vpop.f32.mrb[0].mxu0
      %v6312 = vadd.f32 %v6058, %v6311
      %6313 = vmatprep.mubr.bf16.mxu0 %v5999
      %6314 = vmatmul.mubr.bf16.gmra.mrb[0].mxu0 %v5998
      %v6315 = vpop.f32.mrb[0].mxu0
      %v6316 = vadd.f32 %v6054, %v6315
      %v6317 = vpop.f32.mrb[0].mxu0
      %v6318 = vadd.f32 %v6058, %v6317
      %v6319 = vpop.f32.mrb[0].mxu0
      %v6320 = vadd.f32 %v6054, %v6319
      %v6321 = vpop.f32.mrb[0].mxu0
      %v6322 = vadd.f32 %v6058, %v6321
      %6323 = vmatprep.mubr.bf16.mxu0 %v6001
      %6324 = vmatmul.mubr.bf16.gmra.mrb[0].mxu0 %v6000
      %v6325 = vpop.f32.mrb[0].mxu0
      %v6326 = vadd.f32 %v6054, %v6325
      %v6327 = vpop.f32.mrb[0].mxu0
      %v6328 = vadd.f32 %v6058, %v6327
      %v6329 = vpop.f32.mrb[0].mxu0
      %v6330 = vadd.f32 %v6054, %v6329
      %v6331 = vpop.f32.mrb[0].mxu0
      %v6332 = vadd.f32 %v6058, %v6331
      %6333 = vmatprep.mubr.bf16.mxu0 %v6003
      %6334 = vmatmul.mubr.bf16.gmra.mrb[0].mxu0 %v6002
      %v6335 = vpop.f32.mrb[0].mxu0
      %v6336 = vadd.f32 %v6054, %v6335
      %v6337 = vpop.f32.mrb[0].mxu0
      %v6338 = vadd.f32 %v6058, %v6337
      %v6339 = vpop.f32.mrb[0].mxu0
      %v6340 = vadd.f32 %v6054, %v6339
      %v6341 = vpop.f32.mrb[0].mxu0
      %v6342 = vadd.f32 %v6058, %v6341
      %6343 = vmatprep.mubr.bf16.mxu0 %v6005
      %6344 = vmatmul.mubr.bf16.gmra.mrb[0].mxu0 %v6004
      %v6345 = vpop.f32.mrb[0].mxu0
      %v6346 = vadd.f32 %v6054, %v6345
      %v6347 = vpop.f32.mrb[0].mxu0
      %v6348 = vadd.f32 %v6058, %v6347
      %v6349 = vpop.f32.mrb[0].mxu0
      %v6350 = vadd.f32 %v6054, %v6349
      %v6351 = vpop.f32.mrb[0].mxu0
      %v6352 = vadd.f32 %v6058, %v6351
      %6353 = vmatprep.mubr.bf16.mxu0 %v6007
      %6354 = vmatmul.mubr.bf16.gmra.mrb[0].mxu0 %v6006
      %v6355 = vpop.f32.mrb[0].mxu0
      %v6356 = vadd.f32 %v6054, %v6355
      %v6357 = vpop.f32.mrb[0].mxu0
      %v6358 = vadd.f32 %v6058, %v6357
      %v6359 = vpop.f32.mrb[0].mxu0
      %v6360 = vadd.f32 %v6054, %v6359
      %v6361 = vpop.f32.mrb[0].mxu0
      %v6362 = vadd.f32 %v6058, %v6361
      %6363 = vmatprep.mubr.bf16.mxu0 %v6009
      %6364 = vmatmul.mubr.bf16.gmra.mrb[0].mxu0 %v6008
      %v6365 = vpop.f32.mrb[0].mxu0
      %v6366 = vadd.f32 %v6054, %v6365
      %v6367 = vpop.f32.mrb[0].mxu0
      %v6368 = vadd.f32 %v6058, %v6367
      %v6369 = vpop.f32.mrb[0].mxu0
      %v6370 = vadd.f32 %v6054, %v6369
      %v6371 = vpop.f32.mrb[0].mxu0
      %v6372 = vadd.f32 %v6058, %v6371
      %6373 = vmatprep.mubr.bf16.mxu0 %v6011
      %6374 = vmatmul.mubr.bf16.gmra.mrb[0].mxu0 %v6010
      %v6375 = vpop.f32.mrb[0].mxu0
      %v6376 = vadd.f32 %v6054, %v6375
      %v6377 = vpop.f32.mrb[0].mxu0
      %v6378 = vadd.f32 %v6058, %v6377
      %v6379 = vpop.f32.mrb[0].mxu0
      %v6380 = vadd.f32 %v6054, %v6379
      %v6381 = vpop.f32.mrb[0].mxu0
      %v6382 = vadd.f32 %v6058, %v6381
      %6383 = vmatprep.mubr.bf16.mxu0 %v6013
      %6384 = vmatmul.mubr.bf16.gmra.mrb[0].mxu0 %v6012
      %v6385 = vpop.f32.mrb[0].mxu0
      %v6386 = vadd.f32 %v6054, %v6385
      %v6387 = vpop.f32.mrb[0].mxu0
      %v6388 = vadd.f32 %v6058, %v6387
      %v6389 = vpop.f32.mrb[0].mxu0
      %v6390 = vadd.f32 %v6054, %v6389
      %v6391 = vpop.f32.mrb[0].mxu0
      %v6392 = vadd.f32 %v6058, %v6391
      %6393 = vmatprep.mubr.bf16.mxu0 %v6015
      %6394 = vmatmul.mubr.bf16.gmra.mrb[0].mxu0 %v6014
      %v6395 = vpop.f32.mrb[0].mxu0
      %v6396 = vadd.f32 %v6054, %v6395
      %v6397 = vpop.f32.mrb[0].mxu0
      %v6398 = vadd.f32 %v6058, %v6397
      %v6399 = vpop.f32.mrb[0].mxu0
      %v6400 = vadd.f32 %v6054, %v6399
      %v6401 = vpop.f32.mrb[0].mxu0
      %v6402 = vadd.f32 %v6058, %v6401
      %6403 = vmatprep.mubr.bf16.mxu0 %v6017
      %6404 = vmatmul.mubr.bf16.gmra.mrb[0].mxu0 %v6016
      %v6405 = vpop.f32.mrb[0].mxu0
      %v6406 = vadd.f32 %v6054, %v6405
      %v6407 = vpop.f32.mrb[0].mxu0
      %v6408 = vadd.f32 %v6058, %v6407
      %v6409 = vpop.f32.mrb[0].mxu0
      %v6410 = vadd.f32 %v6054, %v6409
      %v6411 = vpop.f32.mrb[0].mxu0
      %v6412 = vadd.f32 %v6058, %v6411
      %6413 = vmatprep.mubr.bf16.mxu0 %v6019
      %6414 = vmatmul.mubr.bf16.gmra.mrb[0].mxu0 %v6018
      %v6415 = vpop.f32.mrb[0].mxu0
      %v6416 = vadd.f32 %v6054, %v6415
      %v6417 = vpop.f32.mrb[0].mxu0
      %v6418 = vadd.f32 %v6058, %v6417
      %v6419 = vpop.f32.mrb[0].mxu0
      %v6420 = vadd.f32 %v6054, %v6419
      %v6421 = vpop.f32.mrb[0].mxu0
      %v6422 = vadd.f32 %v6058, %v6421
      %6423 = vmatprep.mubr.bf16.mxu0 %v6021
      %6424 = vmatmul.mubr.bf16.gmra.mrb[0].mxu0 %v6020
      %v6425 = vpop.f32.mrb[0].mxu0
      %v6426 = vadd.f32 %v6054, %v6425
      %v6427 = vpop.f32.mrb[0].mxu0
      %v6428 = vadd.f32 %v6058, %v6427
      %v6429 = vpop.f32.mrb[0].mxu0
      %v6430 = vadd.f32 %v6054, %v6429
      %v6431 = vpop.f32.mrb[0].mxu0
      %v6432 = vadd.f32 %v6058, %v6431
      %6433 = vmatprep.mubr.bf16.mxu0 %v6023
      %6434 = vmatmul.mubr.bf16.gmra.mrb[0].mxu0 %v6022
      %v6435 = vpop.f32.mrb[0].mxu0
      %v6436 = vadd.f32 %v6054, %v6435
      %v6437 = vpop.f32.mrb[0].mxu0
      %v6438 = vadd.f32 %v6058, %v6437
      %v6439 = vpop.f32.mrb[0].mxu0
      %v6440 = vadd.f32 %v6054, %v6439
      %v6441 = vpop.f32.mrb[0].mxu0
      %v6442 = vadd.f32 %v6058, %v6441
      %6443 = vmatprep.mubr.bf16.mxu0 %v6025
      %6444 = vmatmul.mubr.bf16.gmra.mrb[0].mxu0 %v6024
      %v6445 = vpop.f32.mrb[0].mxu0
      %v6446 = vadd.f32 %v6054, %v6445
      %v6447 = vpop.f32.mrb[0].mxu0
      %v6448 = vadd.f32 %v6058, %v6447
      %v6449 = vpop.f32.mrb[0].mxu0
      %v6450 = vadd.f32 %v6054, %v6449
      %v6451 = vpop.f32.mrb[0].mxu0
      %v6452 = vadd.f32 %v6058, %v6451
      %6453 = vmatprep.mubr.bf16.mxu0 %v6027
      %6454 = vmatmul.mubr.bf16.gmra.mrb[0].mxu0 %v6026
      %v6455 = vpop.f32.mrb[0].mxu0
      %v6456 = vadd.f32 %v6054, %v6455
      %v6457 = vpop.f32.mrb[0].mxu0
      %v6458 = vadd.f32 %v6058, %v6457
      %v6459 = vpop.f32.mrb[0].mxu0
      %v6460 = vadd.f32 %v6054, %v6459
      %v6461 = vpop.f32.mrb[0].mxu0
      %v6462 = vadd.f32 %v6058, %v6461
      %6463 = vmatprep.mubr.bf16.mxu0 %v6029
      %6464 = vmatmul.mubr.bf16.gmra.mrb[0].mxu0 %v6028
      %v6465 = vpop.f32.mrb[0].mxu0
      %v6466 = vadd.f32 %v6054, %v6465
      %v6467 = vpop.f32.mrb[0].mxu0
      %v6468 = vadd.f32 %v6058, %v6467
      %v6469 = vpop.f32.mrb[0].mxu0
      %v6470 = vadd.f32 %v6054, %v6469
      %v6471 = vpop.f32.mrb[0].mxu0
      %v6472 = vadd.f32 %v6058, %v6471
      %6473 = vmatprep.mubr.bf16.mxu0 %v6031
      %6474 = vmatmul.mubr.bf16.gmra.mrb[0].mxu0 %v6030
      %v6475 = vpop.f32.mrb[0].mxu0
      %v6476 = vadd.f32 %v6054, %v6475
      %v6477 = vpop.f32.mrb[0].mxu0
      %v6478 = vadd.f32 %v6058, %v6477
      %v6479 = vpop.f32.mrb[0].mxu0
      %v6480 = vadd.f32 %v6054, %v6479
      %v6481 = vpop.f32.mrb[0].mxu0
      %v6482 = vadd.f32 %v6058, %v6481
      %6483 = vmatprep.mubr.bf16.mxu0 %v6033
      %6484 = vmatmul.mubr.bf16.gmra.mrb[0].mxu0 %v6032
      %v6485 = vpop.f32.mrb[0].mxu0
      %v6486 = vadd.f32 %v6054, %v6485
      %v6487 = vpop.f32.mrb[0].mxu0
      %v6488 = vadd.f32 %v6058, %v6487
      %v6489 = vpop.f32.mrb[0].mxu0
      %v6490 = vadd.f32 %v6054, %v6489
      %v6491 = vpop.f32.mrb[0].mxu0
      %v6492 = vadd.f32 %v6058, %v6491
      %6493 = vmatprep.mubr.bf16.mxu0 %v6035
      %6494 = vmatmul.mubr.bf16.gmra.mrb[0].mxu0 %v6034
      %v6495 = vpop.f32.mrb[0].mxu0
      %v6496 = vadd.f32 %v6054, %v6495
      %v6497 = vpop.f32.mrb[0].mxu0
      %v6498 = vadd.f32 %v6058, %v6497
      %v6499 = vpop.f32.mrb[0].mxu0
      %v6500 = vadd.f32 %v6054, %v6499
      %v6501 = vpop.f32.mrb[0].mxu0
      %v6502 = vadd.f32 %v6058, %v6501
      %6503 = vmatprep.mubr.bf16.mxu0 %v6037
      %6504 = vmatmul.mubr.bf16.gmra.mrb[0].mxu0 %v6036
      %v6505 = vpop.f32.mrb[0].mxu0
      %v6506 = vadd.f32 %v6054, %v6505
      %v6507 = vpop.f32.mrb[0].mxu0
      %v6508 = vadd.f32 %v6058, %v6507
      %v6509 = vpop.f32.mrb[0].mxu0
      %v6510 = vadd.f32 %v6054, %v6509
      %v6511 = vpop.f32.mrb[0].mxu0
      %v6512 = vadd.f32 %v6058, %v6511
      %6513 = vmatprep.mubr.bf16.mxu0 %v6039
      %6514 = vmatmul.mubr.bf16.gmra.mrb[0].mxu0 %v6038
      %v6515 = vpop.f32.mrb[0].mxu0
      %v6516 = vadd.f32 %v6054, %v6515
      %v6517 = vpop.f32.mrb[0].mxu0
      %v6518 = vadd.f32 %v6058, %v6517
      %v6519 = vpop.f32.mrb[0].mxu0
      %v6520 = vadd.f32 %v6054, %v6519
      %v6521 = vpop.f32.mrb[0].mxu0
      %v6522 = vadd.f32 %v6058, %v6521
      %6523 = vmatprep.mubr.bf16.mxu0 %v6041
      %6524 = vmatmul.mubr.bf16.gmra.mrb[0].mxu0 %v6040
      %v6525 = vpop.f32.mrb[0].mxu0
      %v6526 = vadd.f32 %v6054, %v6525
      %v6527 = vpop.f32.mrb[0].mxu0
      %v6528 = vadd.f32 %v6058, %v6527
      %v6529 = vpop.f32.mrb[0].mxu0
      %v6530 = vadd.f32 %v6054, %v6529
      %v6531 = vpop.f32.mrb[0].mxu0
      %v6532 = vadd.f32 %v6058, %v6531
      %6533 = vmatprep.mubr.bf16.mxu0 %v6043
      %6534 = vmatmul.mubr.bf16.gmra.mrb[0].mxu0 %v6042
      %v6535 = vpop.f32.mrb[0].mxu0
      %v6536 = vadd.f32 %v6054, %v6535
      %v6537 = vpop.f32.mrb[0].mxu0
      %v6538 = vadd.f32 %v6058, %v6537
      %v6539 = vpop.f32.mrb[0].mxu0
      %v6540 = vadd.f32 %v6054, %v6539
      %v6541 = vpop.f32.mrb[0].mxu0
      %v6542 = vadd.f32 %v6058, %v6541
      %6543 = vmatprep.mubr.bf16.mxu0 %v6045
      %6544 = vmatmul.mubr.bf16.gmra.mrb[0].mxu0 %v6044
      %v6545 = vpop.f32.mrb[0].mxu0
      %v6546 = vadd.f32 %v6054, %v6545
      %v6547 = vpop.f32.mrb[0].mxu0
      %v6548 = vadd.f32 %v6058, %v6547
      %v6549 = vpop.f32.mrb[0].mxu0
      %v6550 = vadd.f32 %v6054, %v6549
      %v6551 = vpop.f32.mrb[0].mxu0
      %v6552 = vadd.f32 %v6058, %v6551
      %6553 = vmatprep.mubr.bf16.mxu0 %v6047
      %6554 = vmatmul.mubr.bf16.gmra.mrb[0].mxu0 %v6046
      %v6555 = vpop.f32.mrb[0].mxu0
      %v6556 = vadd.f32 %v6054, %v6555
      %v6557 = vpop.f32.mrb[0].mxu0
      %v6558 = vadd.f32 %v6058, %v6557
      %v6559 = vpop.f32.mrb[0].mxu0
      %v6560 = vadd.f32 %v6054, %v6559
      %v6561 = vpop.f32.mrb[0].mxu0
      %v6562 = vadd.f32 %v6058, %v6561
      %6563 = vmatprep.mubr.bf16.mxu0 %v6049
      %6564 = vmatmul.mubr.bf16.gmra.mrb[0].mxu0 %v6048
      %v6565 = vpop.f32.mrb[0].mxu0
      %v6566 = vadd.f32 %v6054, %v6565
      %v6567 = vpop.f32.mrb[0].mxu0
      %v6568 = vadd.f32 %v6058, %v6567
      %v6569 = vpop.f32.mrb[0].mxu0
      %v6570 = vadd.f32 %v6054, %v6569
      %v6571 = vpop.f32.mrb[0].mxu0
      %v6572 = vadd.f32 %v6058, %v6571
      %6573 = vdwg.mxu0
      %v6574 = vmax.f32 %v6256, 0.0
      %v6575 = vmax.f32 %v6258, 0.0
      %v6576 = vmax.f32 %v6260, 0.0
      %v6577 = vmax.f32 %v6262, 0.0
      %v6578 = vmax.f32 %v6266, 0.0
      %v6579 = vmax.f32 %v6268, 0.0
      %v6580 = vmax.f32 %v6270, 0.0
      %v6581 = vmax.f32 %v6272, 0.0
      %v6582 = vmax.f32 %v6276, 0.0
      %v6583 = vmax.f32 %v6278, 0.0
      %v6584 = vmax.f32 %v6280, 0.0
      %v6585 = vmax.f32 %v6282, 0.0
      %v6586 = vmax.f32 %v6286, 0.0
      %v6587 = vmax.f32 %v6288, 0.0
      %v6588 = vmax.f32 %v6290, 0.0
      %v6589 = vmax.f32 %v6292, 0.0
      %v6590 = vmax.f32 %v6296, 0.0
      %v6591 = vmax.f32 %v6298, 0.0
      %v6592 = vmax.f32 %v6300, 0.0
      %v6593 = vmax.f32 %v6302, 0.0
      %v6594 = vmax.f32 %v6306, 0.0
      %v6595 = vmax.f32 %v6308, 0.0
      %v6596 = vmax.f32 %v6310, 0.0
      %v6597 = vmax.f32 %v6312, 0.0
      %v6598 = vmax.f32 %v6316, 0.0
      %v6599 = vmax.f32 %v6318, 0.0
      %v6600 = vmax.f32 %v6320, 0.0
      %v6601 = vmax.f32 %v6322, 0.0
      %v6602 = vmax.f32 %v6326, 0.0
      %v6603 = vmax.f32 %v6328, 0.0
      %v6604 = vmax.f32 %v6330, 0.0
      %v6605 = vmax.f32 %v6332, 0.0
      %v6606 = vmax.f32 %v6336, 0.0
      %v6607 = vmax.f32 %v6338, 0.0
      %v6608 = vmax.f32 %v6340, 0.0
      %v6609 = vmax.f32 %v6342, 0.0
      %v6610 = vmax.f32 %v6346, 0.0
      %v6611 = vmax.f32 %v6348, 0.0
      %v6612 = vmax.f32 %v6350, 0.0
      %v6613 = vmax.f32 %v6352, 0.0
      %v6614 = vmax.f32 %v6356, 0.0
      %v6615 = vmax.f32 %v6358, 0.0
      %v6616 = vmax.f32 %v6360, 0.0
      %v6617 = vmax.f32 %v6362, 0.0
      %v6618 = vmax.f32 %v6366, 0.0
      %v6619 = vmax.f32 %v6368, 0.0
      %v6620 = vmax.f32 %v6370, 0.0
      %v6621 = vmax.f32 %v6372, 0.0
      %v6622 = vmax.f32 %v6376, 0.0
      %v6623 = vmax.f32 %v6378, 0.0
      %v6624 = vmax.f32 %v6380, 0.0
      %v6625 = vmax.f32 %v6382, 0.0
      %v6626 = vmax.f32 %v6386, 0.0
      %v6627 = vmax.f32 %v6388, 0.0
      %v6628 = vmax.f32 %v6390, 0.0
      %v6629 = vmax.f32 %v6392, 0.0
      %v6630 = vmax.f32 %v6396, 0.0
      %v6631 = vmax.f32 %v6398, 0.0
      %v6632 = vmax.f32 %v6400, 0.0
      %v6633 = vmax.f32 %v6402, 0.0
      %v6634 = vmax.f32 %v6406, 0.0
      %v6635 = vmax.f32 %v6408, 0.0
      %v6636 = vmax.f32 %v6410, 0.0
      %v6637 = vmax.f32 %v6412, 0.0
      %v6638 = vmax.f32 %v6416, 0.0
      %v6639 = vmax.f32 %v6418, 0.0
      %v6640 = vmax.f32 %v6420, 0.0
      %v6641 = vmax.f32 %v6422, 0.0
      %v6642 = vmax.f32 %v6426, 0.0
      %v6643 = vmax.f32 %v6428, 0.0
      %v6644 = vmax.f32 %v6430, 0.0
      %v6645 = vmax.f32 %v6432, 0.0
      %v6646 = vmax.f32 %v6436, 0.0
      %v6647 = vmax.f32 %v6438, 0.0
      %v6648 = vmax.f32 %v6440, 0.0
      %v6649 = vmax.f32 %v6442, 0.0
      %v6650 = vmax.f32 %v6446, 0.0
      %v6651 = vmax.f32 %v6448, 0.0
      %v6652 = vmax.f32 %v6450, 0.0
      %v6653 = vmax.f32 %v6452, 0.0
      %v6654 = vmax.f32 %v6456, 0.0
      %v6655 = vmax.f32 %v6458, 0.0
      %v6656 = vmax.f32 %v6460, 0.0
      %v6657 = vmax.f32 %v6462, 0.0
      %v6658 = vmax.f32 %v6466, 0.0
      %v6659 = vmax.f32 %v6468, 0.0
      %v6660 = vmax.f32 %v6470, 0.0
      %v6661 = vmax.f32 %v6472, 0.0
      %v6662 = vmax.f32 %v6476, 0.0
      %v6663 = vmax.f32 %v6478, 0.0
      %v6664 = vmax.f32 %v6480, 0.0
      %v6665 = vmax.f32 %v6482, 0.0
      %v6666 = vmax.f32 %v6486, 0.0
      %v6667 = vmax.f32 %v6488, 0.0
      %v6668 = vmax.f32 %v6490, 0.0
      %v6669 = vmax.f32 %v6492, 0.0
      %v6670 = vmax.f32 %v6496, 0.0
      %v6671 = vmax.f32 %v6498, 0.0
      %v6672 = vmax.f32 %v6500, 0.0
      %v6673 = vmax.f32 %v6502, 0.0
      %v6674 = vmax.f32 %v6506, 0.0
      %v6675 = vmax.f32 %v6508, 0.0
      %v6676 = vmax.f32 %v6510, 0.0
      %v6677 = vmax.f32 %v6512, 0.0
      %v6678 = vmax.f32 %v6516, 0.0
      %v6679 = vmax.f32 %v6518, 0.0
      %v6680 = vmax.f32 %v6520, 0.0
      %v6681 = vmax.f32 %v6522, 0.0
      %v6682 = vmax.f32 %v6526, 0.0
      %v6683 = vmax.f32 %v6528, 0.0
      %v6684 = vmax.f32 %v6530, 0.0
      %v6685 = vmax.f32 %v6532, 0.0
      %v6686 = vmax.f32 %v6536, 0.0
      %v6687 = vmax.f32 %v6538, 0.0
      %v6688 = vmax.f32 %v6540, 0.0
      %v6689 = vmax.f32 %v6542, 0.0
      %v6690 = vmax.f32 %v6546, 0.0
      %v6691 = vmax.f32 %v6548, 0.0
      %v6692 = vmax.f32 %v6550, 0.0
      %v6693 = vmax.f32 %v6552, 0.0
      %v6694 = vmax.f32 %v6556, 0.0
      %v6695 = vmax.f32 %v6558, 0.0
      %v6696 = vmax.f32 %v6560, 0.0
      %v6697 = vmax.f32 %v6562, 0.0
      %v6698 = vmax.f32 %v6566, 0.0
      %v6699 = vmax.f32 %v6568, 0.0
      %v6700 = vmax.f32 %v6570, 0.0
      %v6701 = vmax.f32 %v6572, 0.0
      %v6702 = vadd.f32 %v5753, %v6574
      %v6703 = vadd.f32 %v5754, %v6575
      %v6704 = vadd.f32 %v5755, %v6576
      %v6705 = vadd.f32 %v5756, %v6577
      %v6706 = vadd.f32 %v5757, %v6578
      %v6707 = vadd.f32 %v5758, %v6579
      %v6708 = vadd.f32 %v5759, %v6580
      %v6709 = vadd.f32 %v5760, %v6581
      %v6710 = vadd.f32 %v5761, %v6582
      %v6711 = vadd.f32 %v5762, %v6583
      %v6712 = vadd.f32 %v5763, %v6584
      %v6713 = vadd.f32 %v5764, %v6585
      %v6714 = vadd.f32 %v5765, %v6586
      %v6715 = vadd.f32 %v5766, %v6587
      %v6716 = vadd.f32 %v5767, %v6588
      %v6717 = vadd.f32 %v5768, %v6589
      %v6718 = vadd.f32 %v5769, %v6590
      %v6719 = vadd.f32 %v5770, %v6591
      %v6720 = vadd.f32 %v5771, %v6592
      %v6721 = vadd.f32 %v5772, %v6593
      %v6722 = vadd.f32 %v5773, %v6594
      %v6723 = vadd.f32 %v5774, %v6595
      %v6724 = vadd.f32 %v5775, %v6596
      %v6725 = vadd.f32 %v5776, %v6597
      %v6726 = vadd.f32 %v5777, %v6598
      %v6727 = vadd.f32 %v5778, %v6599
      %v6728 = vadd.f32 %v5779, %v6600
      %v6729 = vadd.f32 %v5780, %v6601
      %v6730 = vadd.f32 %v5781, %v6602
      %v6731 = vadd.f32 %v5782, %v6603
      %v6732 = vadd.f32 %v5783, %v6604
      %v6733 = vadd.f32 %v5784, %v6605
      %v6734 = vadd.f32 %v5785, %v6606
      %v6735 = vadd.f32 %v5786, %v6607
      %v6736 = vadd.f32 %v5787, %v6608
      %v6737 = vadd.f32 %v5788, %v6609
      %v6738 = vadd.f32 %v5789, %v6610
      %v6739 = vadd.f32 %v5790, %v6611
      %v6740 = vadd.f32 %v5791, %v6612
      %v6741 = vadd.f32 %v5792, %v6613
      %v6742 = vadd.f32 %v5793, %v6614
      %v6743 = vadd.f32 %v5794, %v6615
      %v6744 = vadd.f32 %v5795, %v6616
      %v6745 = vadd.f32 %v5796, %v6617
      %v6746 = vadd.f32 %v5797, %v6618
      %v6747 = vadd.f32 %v5798, %v6619
      %v6748 = vadd.f32 %v5799, %v6620
      %v6749 = vadd.f32 %v5800, %v6621
      %v6750 = vadd.f32 %v5801, %v6622
      %v6751 = vadd.f32 %v5802, %v6623
      %v6752 = vadd.f32 %v5803, %v6624
      %v6753 = vadd.f32 %v5804, %v6625
      %v6754 = vadd.f32 %v5805, %v6626
      %v6755 = vadd.f32 %v5806, %v6627
      %v6756 = vadd.f32 %v5807, %v6628
      %v6757 = vadd.f32 %v5808, %v6629
      %v6758 = vadd.f32 %v5809, %v6630
      %v6759 = vadd.f32 %v5810, %v6631
      %v6760 = vadd.f32 %v5811, %v6632
      %v6761 = vadd.f32 %v5812, %v6633
      %v6762 = vadd.f32 %v5813, %v6634
      %v6763 = vadd.f32 %v5814, %v6635
      %v6764 = vadd.f32 %v5815, %v6636
      %v6765 = vadd.f32 %v5816, %v6637
      %v6766 = vadd.f32 %v5817, %v6638
      %v6767 = vadd.f32 %v5818, %v6639
      %v6768 = vadd.f32 %v5819, %v6640
      %v6769 = vadd.f32 %v5820, %v6641
      %v6770 = vadd.f32 %v5821, %v6642
      %v6771 = vadd.f32 %v5822, %v6643
      %v6772 = vadd.f32 %v5823, %v6644
      %v6773 = vadd.f32 %v5824, %v6645
      %v6774 = vadd.f32 %v5825, %v6646
      %v6775 = vadd.f32 %v5826, %v6647
      %v6776 = vadd.f32 %v5827, %v6648
      %v6777 = vadd.f32 %v5828, %v6649
      %v6778 = vadd.f32 %v5829, %v6650
      %v6779 = vadd.f32 %v5830, %v6651
      %v6780 = vadd.f32 %v5831, %v6652
      %v6781 = vadd.f32 %v5832, %v6653
      %v6782 = vadd.f32 %v5833, %v6654
      %v6783 = vadd.f32 %v5834, %v6655
      %v6784 = vadd.f32 %v5835, %v6656
      %v6785 = vadd.f32 %v5836, %v6657
      %v6786 = vadd.f32 %v5837, %v6658
      %v6787 = vadd.f32 %v5838, %v6659
      %v6788 = vadd.f32 %v5839, %v6660
      %v6789 = vadd.f32 %v5840, %v6661
      %v6790 = vadd.f32 %v5841, %v6662
      %v6791 = vadd.f32 %v5842, %v6663
      %v6792 = vadd.f32 %v5843, %v6664
      %v6793 = vadd.f32 %v5844, %v6665
      %v6794 = vadd.f32 %v5845, %v6666
      %v6795 = vadd.f32 %v5846, %v6667
      %v6796 = vadd.f32 %v5847, %v6668
      %v6797 = vadd.f32 %v5848, %v6669
      %v6798 = vadd.f32 %v5849, %v6670
      %v6799 = vadd.f32 %v5850, %v6671
      %v6800 = vadd.f32 %v5851, %v6672
      %v6801 = vadd.f32 %v5852, %v6673
      %v6802 = vadd.f32 %v5853, %v6674
      %v6803 = vadd.f32 %v5854, %v6675
      %v6804 = vadd.f32 %v5855, %v6676
      %v6805 = vadd.f32 %v5856, %v6677
      %v6806 = vadd.f32 %v5857, %v6678
      %v6807 = vadd.f32 %v5858, %v6679
      %v6808 = vadd.f32 %v5859, %v6680
      %v6809 = vadd.f32 %v5860, %v6681
      %v6810 = vadd.f32 %v5861, %v6682
      %v6811 = vadd.f32 %v5862, %v6683
      %v6812 = vadd.f32 %v5863, %v6684
      %v6813 = vadd.f32 %v5864, %v6685
      %v6814 = vadd.f32 %v5865, %v6686
      %v6815 = vadd.f32 %v5866, %v6687
      %v6816 = vadd.f32 %v5867, %v6688
      %v6817 = vadd.f32 %v5868, %v6689
      %v6818 = vadd.f32 %v5869, %v6690
      %v6819 = vadd.f32 %v5870, %v6691
      %v6820 = vadd.f32 %v5871, %v6692
      %v6821 = vadd.f32 %v5872, %v6693
      %v6822 = vadd.f32 %v5873, %v6694
      %v6823 = vadd.f32 %v5874, %v6695
      %v6824 = vadd.f32 %v5875, %v6696
      %v6825 = vadd.f32 %v5876, %v6697
      %v6826 = vadd.f32 %v5877, %v6698
      %v6827 = vadd.f32 %v5878, %v6699
      %v6828 = vadd.f32 %v5879, %v6700
      %v6829 = vadd.f32 %v5880, %v6701
      %v6830 = vpack.c.bf16 %v6704, %v6702
      %v6831 = vpack.c.bf16 %v6705, %v6703
      %v6832 = vpack.c.bf16 %v6708, %v6706
      %v6833 = vpack.c.bf16 %v6709, %v6707
      %v6834 = vpack.c.bf16 %v6712, %v6710
      %v6835 = vpack.c.bf16 %v6713, %v6711
      %v6836 = vpack.c.bf16 %v6716, %v6714
      %v6837 = vpack.c.bf16 %v6717, %v6715
      %v6838 = vpack.c.bf16 %v6720, %v6718
      %v6839 = vpack.c.bf16 %v6721, %v6719
      %v6840 = vpack.c.bf16 %v6724, %v6722
      %v6841 = vpack.c.bf16 %v6725, %v6723
      %v6842 = vpack.c.bf16 %v6728, %v6726
      %v6843 = vpack.c.bf16 %v6729, %v6727
      %v6844 = vpack.c.bf16 %v6732, %v6730
      %v6845 = vpack.c.bf16 %v6733, %v6731
      %v6846 = vpack.c.bf16 %v6736, %v6734
      %v6847 = vpack.c.bf16 %v6737, %v6735
      %v6848 = vpack.c.bf16 %v6740, %v6738
      %v6849 = vpack.c.bf16 %v6741, %v6739
      %v6850 = vpack.c.bf16 %v6744, %v6742
      %v6851 = vpack.c.bf16 %v6745, %v6743
      %v6852 = vpack.c.bf16 %v6748, %v6746
      %v6853 = vpack.c.bf16 %v6749, %v6747
      %v6854 = vpack.c.bf16 %v6752, %v6750
      %v6855 = vpack.c.bf16 %v6753, %v6751
      %v6856 = vpack.c.bf16 %v6756, %v6754
      %v6857 = vpack.c.bf16 %v6757, %v6755
      %v6858 = vpack.c.bf16 %v6760, %v6758
      %v6859 = vpack.c.bf16 %v6761, %v6759
      %v6860 = vpack.c.bf16 %v6764, %v6762
      %v6861 = vpack.c.bf16 %v6765, %v6763
      %v6862 = vpack.c.bf16 %v6768, %v6766
      %v6863 = vpack.c.bf16 %v6769, %v6767
      %v6864 = vpack.c.bf16 %v6772, %v6770
      %v6865 = vpack.c.bf16 %v6773, %v6771
      %v6866 = vpack.c.bf16 %v6776, %v6774
      %v6867 = vpack.c.bf16 %v6777, %v6775
      %v6868 = vpack.c.bf16 %v6780, %v6778
      %v6869 = vpack.c.bf16 %v6781, %v6779
      %v6870 = vpack.c.bf16 %v6784, %v6782
      %v6871 = vpack.c.bf16 %v6785, %v6783
      %v6872 = vpack.c.bf16 %v6788, %v6786
      %v6873 = vpack.c.bf16 %v6789, %v6787
      %v6874 = vpack.c.bf16 %v6792, %v6790
      %v6875 = vpack.c.bf16 %v6793, %v6791
      %v6876 = vpack.c.bf16 %v6796, %v6794
      %v6877 = vpack.c.bf16 %v6797, %v6795
      %v6878 = vpack.c.bf16 %v6800, %v6798
      %v6879 = vpack.c.bf16 %v6801, %v6799
      %v6880 = vpack.c.bf16 %v6804, %v6802
      %v6881 = vpack.c.bf16 %v6805, %v6803
      %v6882 = vpack.c.bf16 %v6808, %v6806
      %v6883 = vpack.c.bf16 %v6809, %v6807
      %v6884 = vpack.c.bf16 %v6812, %v6810
      %v6885 = vpack.c.bf16 %v6813, %v6811
      %v6886 = vpack.c.bf16 %v6816, %v6814
      %v6887 = vpack.c.bf16 %v6817, %v6815
      %v6888 = vpack.c.bf16 %v6820, %v6818
      %v6889 = vpack.c.bf16 %v6821, %v6819
      %v6890 = vpack.c.bf16 %v6824, %v6822
      %v6891 = vpack.c.bf16 %v6825, %v6823
      %v6892 = vpack.c.bf16 %v6828, %v6826
      %v6893 = vpack.c.bf16 %v6829, %v6827
      %v6895 = vlaneseq
      %v6896 = vshrl.u32 %v6895, 7
      %v6897 = vsub.s32 0, %v6896
      %v6898 = vrot.slane %v5950, %v6897
      %v6899 = vlaneseq
      %v6900 = vshrl.u32 %v6899, 7
      %v6901 = vsub.s32 1, %v6900
      %v6902 = vrot.slane %v5950, %v6901
      %v6937 = vunpack.c.l.b16 %v5917
      %v6938 = vunpack.c.h.b16 %v5917
      %v6939 = vunpack.c.l.b16 %v5918
      %v6940 = vunpack.c.h.b16 %v5918
      %v6941 = vunpack.c.l.b16 %v5919
      %v6942 = vunpack.c.h.b16 %v5919
      %v6943 = vunpack.c.l.b16 %v5920
      %v6944 = vunpack.c.h.b16 %v5920
      %v6945 = vunpack.c.l.b16 %v5921
      %v6946 = vunpack.c.h.b16 %v5921
      %v6947 = vunpack.c.l.b16 %v5922
      %v6948 = vunpack.c.h.b16 %v5922
      %v6949 = vunpack.c.l.b16 %v5923
      %v6950 = vunpack.c.h.b16 %v5923
      %v6951 = vunpack.c.l.b16 %v5924
      %v6952 = vunpack.c.h.b16 %v5924
      %v6953 = vunpack.c.l.b16 %v5925
      %v6954 = vunpack.c.h.b16 %v5925
      %v6955 = vunpack.c.l.b16 %v5926
      %v6956 = vunpack.c.h.b16 %v5926
      %v6957 = vunpack.c.l.b16 %v5927
      %v6958 = vunpack.c.h.b16 %v5927
      %v6959 = vunpack.c.l.b16 %v5928
      %v6960 = vunpack.c.h.b16 %v5928
      %v6961 = vunpack.c.l.b16 %v5929
      %v6962 = vunpack.c.h.b16 %v5929
      %v6963 = vunpack.c.l.b16 %v5930
      %v6964 = vunpack.c.h.b16 %v5930
      %v6965 = vunpack.c.l.b16 %v5931
      %v6966 = vunpack.c.h.b16 %v5931
      %v6967 = vunpack.c.l.b16 %v5932
      %v6968 = vunpack.c.h.b16 %v5932
      %v6969 = vunpack.c.l.b16 %v5933
      %v6970 = vunpack.c.h.b16 %v5933
      %v6971 = vunpack.c.l.b16 %v5934
      %v6972 = vunpack.c.h.b16 %v5934
      %v6973 = vunpack.c.l.b16 %v5935
      %v6974 = vunpack.c.h.b16 %v5935
      %v6975 = vunpack.c.l.b16 %v5936
      %v6976 = vunpack.c.h.b16 %v5936
      %v6977 = vunpack.c.l.b16 %v5937
      %v6978 = vunpack.c.h.b16 %v5937
      %v6979 = vunpack.c.l.b16 %v5938
      %v6980 = vunpack.c.h.b16 %v5938
      %v6981 = vunpack.c.l.b16 %v5939
      %v6982 = vunpack.c.h.b16 %v5939
      %v6983 = vunpack.c.l.b16 %v5940
      %v6984 = vunpack.c.h.b16 %v5940
      %v6985 = vunpack.c.l.b16 %v5941
      %v6986 = vunpack.c.h.b16 %v5941
      %v6987 = vunpack.c.l.b16 %v5942
      %v6988 = vunpack.c.h.b16 %v5942
      %v6989 = vunpack.c.l.b16 %v5943
      %v6990 = vunpack.c.h.b16 %v5943
      %v6991 = vunpack.c.l.b16 %v5944
      %v6992 = vunpack.c.h.b16 %v5944
      %v6993 = vunpack.c.l.b16 %v5945
      %v6994 = vunpack.c.h.b16 %v5945
      %v6995 = vunpack.c.l.b16 %v5946
      %v6996 = vunpack.c.h.b16 %v5946
      %v6997 = vunpack.c.l.b16 %v5947
      %v6998 = vunpack.c.h.b16 %v5947
      %v6999 = vunpack.c.l.b16 %v5948
      %v7000 = vunpack.c.h.b16 %v5948
      %v7001 = vpack.c.b16 %v6939, %v6937
      %v7002 = vpack.c.b16 %v6940, %v6938
      %v7003 = vpack.c.b16 %v6943, %v6941
      %v7004 = vpack.c.b16 %v6944, %v6942
      %v7005 = vpack.c.b16 %v6947, %v6945
      %v7006 = vpack.c.b16 %v6948, %v6946
      %v7007 = vpack.c.b16 %v6951, %v6949
      %v7008 = vpack.c.b16 %v6952, %v6950
      %v7009 = vpack.c.b16 %v6955, %v6953
      %v7010 = vpack.c.b16 %v6956, %v6954
      %v7011 = vpack.c.b16 %v6959, %v6957
      %v7012 = vpack.c.b16 %v6960, %v6958
      %v7013 = vpack.c.b16 %v6963, %v6961
      %v7014 = vpack.c.b16 %v6964, %v6962
      %v7015 = vpack.c.b16 %v6967, %v6965
      %v7016 = vpack.c.b16 %v6968, %v6966
      %v7017 = vpack.c.b16 %v6971, %v6969
      %v7018 = vpack.c.b16 %v6972, %v6970
      %v7019 = vpack.c.b16 %v6975, %v6973
      %v7020 = vpack.c.b16 %v6976, %v6974
      %v7021 = vpack.c.b16 %v6979, %v6977
      %v7022 = vpack.c.b16 %v6980, %v6978
      %v7023 = vpack.c.b16 %v6983, %v6981
      %v7024 = vpack.c.b16 %v6984, %v6982
      %v7025 = vpack.c.b16 %v6987, %v6985
      %v7026 = vpack.c.b16 %v6988, %v6986
      %v7027 = vpack.c.b16 %v6991, %v6989
      %v7028 = vpack.c.b16 %v6992, %v6990
      %v7029 = vpack.c.b16 %v6995, %v6993
      %v7030 = vpack.c.b16 %v6996, %v6994
      %v7031 = vpack.c.b16 %v6999, %v6997
      %v7032 = vpack.c.b16 %v7000, %v6998
      %7065 = vmatprep.subr.bf16.mxu0 %v7002
      %7066 = vmatpush1.bf16.msra.mxu0 %v7001
      %7067 = vmatprep.subr.bf16.mxu0 %v7004
      %7068 = vmatpush1.bf16.msra.mxu0 %v7003
      %7069 = vmatprep.subr.bf16.mxu0 %v7006
      %7070 = vmatpush1.bf16.msra.mxu0 %v7005
      %7071 = vmatprep.subr.bf16.mxu0 %v7008
      %7072 = vmatpush1.bf16.msra.mxu0 %v7007
      %7073 = vmatprep.subr.bf16.mxu0 %v7010
      %7074 = vmatpush1.bf16.msra.mxu0 %v7009
      %7075 = vmatprep.subr.bf16.mxu0 %v7012
      %7076 = vmatpush1.bf16.msra.mxu0 %v7011
      %7077 = vmatprep.subr.bf16.mxu0 %v7014
      %7078 = vmatpush1.bf16.msra.mxu0 %v7013
      %7079 = vmatprep.subr.bf16.mxu0 %v7016
      %7080 = vmatpush1.bf16.msra.mxu0 %v7015
      %7081 = vmatprep.subr.bf16.mxu0 %v7018
      %7082 = vmatpush1.bf16.msra.mxu0 %v7017
      %7083 = vmatprep.subr.bf16.mxu0 %v7020
      %7084 = vmatpush1.bf16.msra.mxu0 %v7019
      %7085 = vmatprep.subr.bf16.mxu0 %v7022
      %7086 = vmatpush1.bf16.msra.mxu0 %v7021
      %7087 = vmatprep.subr.bf16.mxu0 %v7024
      %7088 = vmatpush1.bf16.msra.mxu0 %v7023
      %7089 = vmatprep.subr.bf16.mxu0 %v7026
      %7090 = vmatpush1.bf16.msra.mxu0 %v7025
      %7091 = vmatprep.subr.bf16.mxu0 %v7028
      %7092 = vmatpush1.bf16.msra.mxu0 %v7027
      %7093 = vmatprep.subr.bf16.mxu0 %v7030
      %7094 = vmatpush1.bf16.msra.mxu0 %v7029
      %7095 = vmatprep.subr.bf16.mxu0 %v7032
      %7096 = vmatpush1.bf16.msra.mxu0 %v7031
      %7097 = vmatprep.mubr.bf16.mxu0 %v6831
      %7098 = vmatmul.mubr.bf16.gmra.mrb[0].mxu0 %v6830
      %v7099 = vpop.f32.mrb[0].mxu0
      %v7100 = vadd.f32 %v6898, %v7099
      %v7101 = vpop.f32.mrb[0].mxu0
      %v7102 = vadd.f32 %v6902, %v7101
      %v7103 = vpop.f32.mrb[0].mxu0
      %v7104 = vadd.f32 %v6898, %v7103
      %v7105 = vpop.f32.mrb[0].mxu0
      %v7106 = vadd.f32 %v6902, %v7105
      %7107 = vmatprep.mubr.bf16.mxu0 %v6833
      %7108 = vmatmul.mubr.bf16.gmra.mrb[0].mxu0 %v6832
      %v7109 = vpop.f32.mrb[0].mxu0
      %v7110 = vadd.f32 %v6898, %v7109
      %v7111 = vpop.f32.mrb[0].mxu0
      %v7112 = vadd.f32 %v6902, %v7111
      %v7113 = vpop.f32.mrb[0].mxu0
      %v7114 = vadd.f32 %v6898, %v7113
      %v7115 = vpop.f32.mrb[0].mxu0
      %v7116 = vadd.f32 %v6902, %v7115
      %7117 = vmatprep.mubr.bf16.mxu0 %v6835
      %7118 = vmatmul.mubr.bf16.gmra.mrb[0].mxu0 %v6834
      %v7119 = vpop.f32.mrb[0].mxu0
      %v7120 = vadd.f32 %v6898, %v7119
      %v7121 = vpop.f32.mrb[0].mxu0
      %v7122 = vadd.f32 %v6902, %v7121
      %v7123 = vpop.f32.mrb[0].mxu0
      %v7124 = vadd.f32 %v6898, %v7123
      %v7125 = vpop.f32.mrb[0].mxu0
      %v7126 = vadd.f32 %v6902, %v7125
      %7127 = vmatprep.mubr.bf16.mxu0 %v6837
      %7128 = vmatmul.mubr.bf16.gmra.mrb[0].mxu0 %v6836
      %v7129 = vpop.f32.mrb[0].mxu0
      %v7130 = vadd.f32 %v6898, %v7129
      %v7131 = vpop.f32.mrb[0].mxu0
      %v7132 = vadd.f32 %v6902, %v7131
      %v7133 = vpop.f32.mrb[0].mxu0
      %v7134 = vadd.f32 %v6898, %v7133
      %v7135 = vpop.f32.mrb[0].mxu0
      %v7136 = vadd.f32 %v6902, %v7135
      %7137 = vmatprep.mubr.bf16.mxu0 %v6839
      %7138 = vmatmul.mubr.bf16.gmra.mrb[0].mxu0 %v6838
      %v7139 = vpop.f32.mrb[0].mxu0
      %v7140 = vadd.f32 %v6898, %v7139
      %v7141 = vpop.f32.mrb[0].mxu0
      %v7142 = vadd.f32 %v6902, %v7141
      %v7143 = vpop.f32.mrb[0].mxu0
      %v7144 = vadd.f32 %v6898, %v7143
      %v7145 = vpop.f32.mrb[0].mxu0
      %v7146 = vadd.f32 %v6902, %v7145
      %7147 = vmatprep.mubr.bf16.mxu0 %v6841
      %7148 = vmatmul.mubr.bf16.gmra.mrb[0].mxu0 %v6840
      %v7149 = vpop.f32.mrb[0].mxu0
      %v7150 = vadd.f32 %v6898, %v7149
      %v7151 = vpop.f32.mrb[0].mxu0
      %v7152 = vadd.f32 %v6902, %v7151
      %v7153 = vpop.f32.mrb[0].mxu0
      %v7154 = vadd.f32 %v6898, %v7153
      %v7155 = vpop.f32.mrb[0].mxu0
      %v7156 = vadd.f32 %v6902, %v7155
      %7157 = vmatprep.mubr.bf16.mxu0 %v6843
      %7158 = vmatmul.mubr.bf16.gmra.mrb[0].mxu0 %v6842
      %v7159 = vpop.f32.mrb[0].mxu0
      %v7160 = vadd.f32 %v6898, %v7159
      %v7161 = vpop.f32.mrb[0].mxu0
      %v7162 = vadd.f32 %v6902, %v7161
      %v7163 = vpop.f32.mrb[0].mxu0
      %v7164 = vadd.f32 %v6898, %v7163
      %v7165 = vpop.f32.mrb[0].mxu0
      %v7166 = vadd.f32 %v6902, %v7165
      %7167 = vmatprep.mubr.bf16.mxu0 %v6845
      %7168 = vmatmul.mubr.bf16.gmra.mrb[0].mxu0 %v6844
      %v7169 = vpop.f32.mrb[0].mxu0
      %v7170 = vadd.f32 %v6898, %v7169
      %v7171 = vpop.f32.mrb[0].mxu0
      %v7172 = vadd.f32 %v6902, %v7171
      %v7173 = vpop.f32.mrb[0].mxu0
      %v7174 = vadd.f32 %v6898, %v7173
      %v7175 = vpop.f32.mrb[0].mxu0
      %v7176 = vadd.f32 %v6902, %v7175
      %7177 = vmatprep.mubr.bf16.mxu0 %v6847
      %7178 = vmatmul.mubr.bf16.gmra.mrb[0].mxu0 %v6846
      %v7179 = vpop.f32.mrb[0].mxu0
      %v7180 = vadd.f32 %v6898, %v7179
      %v7181 = vpop.f32.mrb[0].mxu0
      %v7182 = vadd.f32 %v6902, %v7181
      %v7183 = vpop.f32.mrb[0].mxu0
      %v7184 = vadd.f32 %v6898, %v7183
      %v7185 = vpop.f32.mrb[0].mxu0
      %v7186 = vadd.f32 %v6902, %v7185
      %7187 = vmatprep.mubr.bf16.mxu0 %v6849
      %7188 = vmatmul.mubr.bf16.gmra.mrb[0].mxu0 %v6848
      %v7189 = vpop.f32.mrb[0].mxu0
      %v7190 = vadd.f32 %v6898, %v7189
      %v7191 = vpop.f32.mrb[0].mxu0
      %v7192 = vadd.f32 %v6902, %v7191
      %v7193 = vpop.f32.mrb[0].mxu0
      %v7194 = vadd.f32 %v6898, %v7193
      %v7195 = vpop.f32.mrb[0].mxu0
      %v7196 = vadd.f32 %v6902, %v7195
      %7197 = vmatprep.mubr.bf16.mxu0 %v6851
      %7198 = vmatmul.mubr.bf16.gmra.mrb[0].mxu0 %v6850
      %v7199 = vpop.f32.mrb[0].mxu0
      %v7200 = vadd.f32 %v6898, %v7199
      %v7201 = vpop.f32.mrb[0].mxu0
      %v7202 = vadd.f32 %v6902, %v7201
      %v7203 = vpop.f32.mrb[0].mxu0
      %v7204 = vadd.f32 %v6898, %v7203
      %v7205 = vpop.f32.mrb[0].mxu0
      %v7206 = vadd.f32 %v6902, %v7205
      %7207 = vmatprep.mubr.bf16.mxu0 %v6853
      %7208 = vmatmul.mubr.bf16.gmra.mrb[0].mxu0 %v6852
      %v7209 = vpop.f32.mrb[0].mxu0
      %v7210 = vadd.f32 %v6898, %v7209
      %v7211 = vpop.f32.mrb[0].mxu0
      %v7212 = vadd.f32 %v6902, %v7211
      %v7213 = vpop.f32.mrb[0].mxu0
      %v7214 = vadd.f32 %v6898, %v7213
      %v7215 = vpop.f32.mrb[0].mxu0
      %v7216 = vadd.f32 %v6902, %v7215
      %7217 = vmatprep.mubr.bf16.mxu0 %v6855
      %7218 = vmatmul.mubr.bf16.gmra.mrb[0].mxu0 %v6854
      %v7219 = vpop.f32.mrb[0].mxu0
      %v7220 = vadd.f32 %v6898, %v7219
      %v7221 = vpop.f32.mrb[0].mxu0
      %v7222 = vadd.f32 %v6902, %v7221
      %v7223 = vpop.f32.mrb[0].mxu0
      %v7224 = vadd.f32 %v6898, %v7223
      %v7225 = vpop.f32.mrb[0].mxu0
      %v7226 = vadd.f32 %v6902, %v7225
      %7227 = vmatprep.mubr.bf16.mxu0 %v6857
      %7228 = vmatmul.mubr.bf16.gmra.mrb[0].mxu0 %v6856
      %v7229 = vpop.f32.mrb[0].mxu0
      %v7230 = vadd.f32 %v6898, %v7229
      %v7231 = vpop.f32.mrb[0].mxu0
      %v7232 = vadd.f32 %v6902, %v7231
      %v7233 = vpop.f32.mrb[0].mxu0
      %v7234 = vadd.f32 %v6898, %v7233
      %v7235 = vpop.f32.mrb[0].mxu0
      %v7236 = vadd.f32 %v6902, %v7235
      %7237 = vmatprep.mubr.bf16.mxu0 %v6859
      %7238 = vmatmul.mubr.bf16.gmra.mrb[0].mxu0 %v6858
      %v7239 = vpop.f32.mrb[0].mxu0
      %v7240 = vadd.f32 %v6898, %v7239
      %v7241 = vpop.f32.mrb[0].mxu0
      %v7242 = vadd.f32 %v6902, %v7241
      %v7243 = vpop.f32.mrb[0].mxu0
      %v7244 = vadd.f32 %v6898, %v7243
      %v7245 = vpop.f32.mrb[0].mxu0
      %v7246 = vadd.f32 %v6902, %v7245
      %7247 = vmatprep.mubr.bf16.mxu0 %v6861
      %7248 = vmatmul.mubr.bf16.gmra.mrb[0].mxu0 %v6860
      %v7249 = vpop.f32.mrb[0].mxu0
      %v7250 = vadd.f32 %v6898, %v7249
      %v7251 = vpop.f32.mrb[0].mxu0
      %v7252 = vadd.f32 %v6902, %v7251
      %v7253 = vpop.f32.mrb[0].mxu0
      %v7254 = vadd.f32 %v6898, %v7253
      %v7255 = vpop.f32.mrb[0].mxu0
      %v7256 = vadd.f32 %v6902, %v7255
      %7257 = vmatprep.mubr.bf16.mxu0 %v6863
      %7258 = vmatmul.mubr.bf16.gmra.mrb[0].mxu0 %v6862
      %v7259 = vpop.f32.mrb[0].mxu0
      %v7260 = vadd.f32 %v6898, %v7259
      %v7261 = vpop.f32.mrb[0].mxu0
      %v7262 = vadd.f32 %v6902, %v7261
      %v7263 = vpop.f32.mrb[0].mxu0
      %v7264 = vadd.f32 %v6898, %v7263
      %v7265 = vpop.f32.mrb[0].mxu0
      %v7266 = vadd.f32 %v6902, %v7265
      %7267 = vmatprep.mubr.bf16.mxu0 %v6865
      %7268 = vmatmul.mubr.bf16.gmra.mrb[0].mxu0 %v6864
      %v7269 = vpop.f32.mrb[0].mxu0
      %v7270 = vadd.f32 %v6898, %v7269
      %v7271 = vpop.f32.mrb[0].mxu0
      %v7272 = vadd.f32 %v6902, %v7271
      %v7273 = vpop.f32.mrb[0].mxu0
      %v7274 = vadd.f32 %v6898, %v7273
      %v7275 = vpop.f32.mrb[0].mxu0
      %v7276 = vadd.f32 %v6902, %v7275
      %7277 = vmatprep.mubr.bf16.mxu0 %v6867
      %7278 = vmatmul.mubr.bf16.gmra.mrb[0].mxu0 %v6866
      %v7279 = vpop.f32.mrb[0].mxu0
      %v7280 = vadd.f32 %v6898, %v7279
      %v7281 = vpop.f32.mrb[0].mxu0
      %v7282 = vadd.f32 %v6902, %v7281
      %v7283 = vpop.f32.mrb[0].mxu0
      %v7284 = vadd.f32 %v6898, %v7283
      %v7285 = vpop.f32.mrb[0].mxu0
      %v7286 = vadd.f32 %v6902, %v7285
      %7287 = vmatprep.mubr.bf16.mxu0 %v6869
      %7288 = vmatmul.mubr.bf16.gmra.mrb[0].mxu0 %v6868
      %v7289 = vpop.f32.mrb[0].mxu0
      %v7290 = vadd.f32 %v6898, %v7289
      %v7291 = vpop.f32.mrb[0].mxu0
      %v7292 = vadd.f32 %v6902, %v7291
      %v7293 = vpop.f32.mrb[0].mxu0
      %v7294 = vadd.f32 %v6898, %v7293
      %v7295 = vpop.f32.mrb[0].mxu0
      %v7296 = vadd.f32 %v6902, %v7295
      %7297 = vmatprep.mubr.bf16.mxu0 %v6871
      %7298 = vmatmul.mubr.bf16.gmra.mrb[0].mxu0 %v6870
      %v7299 = vpop.f32.mrb[0].mxu0
      %v7300 = vadd.f32 %v6898, %v7299
      %v7301 = vpop.f32.mrb[0].mxu0
      %v7302 = vadd.f32 %v6902, %v7301
      %v7303 = vpop.f32.mrb[0].mxu0
      %v7304 = vadd.f32 %v6898, %v7303
      %v7305 = vpop.f32.mrb[0].mxu0
      %v7306 = vadd.f32 %v6902, %v7305
      %7307 = vmatprep.mubr.bf16.mxu0 %v6873
      %7308 = vmatmul.mubr.bf16.gmra.mrb[0].mxu0 %v6872
      %v7309 = vpop.f32.mrb[0].mxu0
      %v7310 = vadd.f32 %v6898, %v7309
      %v7311 = vpop.f32.mrb[0].mxu0
      %v7312 = vadd.f32 %v6902, %v7311
      %v7313 = vpop.f32.mrb[0].mxu0
      %v7314 = vadd.f32 %v6898, %v7313
      %v7315 = vpop.f32.mrb[0].mxu0
      %v7316 = vadd.f32 %v6902, %v7315
      %7317 = vmatprep.mubr.bf16.mxu0 %v6875
      %7318 = vmatmul.mubr.bf16.gmra.mrb[0].mxu0 %v6874
      %v7319 = vpop.f32.mrb[0].mxu0
      %v7320 = vadd.f32 %v6898, %v7319
      %v7321 = vpop.f32.mrb[0].mxu0
      %v7322 = vadd.f32 %v6902, %v7321
      %v7323 = vpop.f32.mrb[0].mxu0
      %v7324 = vadd.f32 %v6898, %v7323
      %v7325 = vpop.f32.mrb[0].mxu0
      %v7326 = vadd.f32 %v6902, %v7325
      %7327 = vmatprep.mubr.bf16.mxu0 %v6877
      %7328 = vmatmul.mubr.bf16.gmra.mrb[0].mxu0 %v6876
      %v7329 = vpop.f32.mrb[0].mxu0
      %v7330 = vadd.f32 %v6898, %v7329
      %v7331 = vpop.f32.mrb[0].mxu0
      %v7332 = vadd.f32 %v6902, %v7331
      %v7333 = vpop.f32.mrb[0].mxu0
      %v7334 = vadd.f32 %v6898, %v7333
      %v7335 = vpop.f32.mrb[0].mxu0
      %v7336 = vadd.f32 %v6902, %v7335
      %7337 = vmatprep.mubr.bf16.mxu0 %v6879
      %7338 = vmatmul.mubr.bf16.gmra.mrb[0].mxu0 %v6878
      %v7339 = vpop.f32.mrb[0].mxu0
      %v7340 = vadd.f32 %v6898, %v7339
      %v7341 = vpop.f32.mrb[0].mxu0
      %v7342 = vadd.f32 %v6902, %v7341
      %v7343 = vpop.f32.mrb[0].mxu0
      %v7344 = vadd.f32 %v6898, %v7343
      %v7345 = vpop.f32.mrb[0].mxu0
      %v7346 = vadd.f32 %v6902, %v7345
      %7347 = vmatprep.mubr.bf16.mxu0 %v6881
      %7348 = vmatmul.mubr.bf16.gmra.mrb[0].mxu0 %v6880
      %v7349 = vpop.f32.mrb[0].mxu0
      %v7350 = vadd.f32 %v6898, %v7349
      %v7351 = vpop.f32.mrb[0].mxu0
      %v7352 = vadd.f32 %v6902, %v7351
      %v7353 = vpop.f32.mrb[0].mxu0
      %v7354 = vadd.f32 %v6898, %v7353
      %v7355 = vpop.f32.mrb[0].mxu0
      %v7356 = vadd.f32 %v6902, %v7355
      %7357 = vmatprep.mubr.bf16.mxu0 %v6883
      %7358 = vmatmul.mubr.bf16.gmra.mrb[0].mxu0 %v6882
      %v7359 = vpop.f32.mrb[0].mxu0
      %v7360 = vadd.f32 %v6898, %v7359
      %v7361 = vpop.f32.mrb[0].mxu0
      %v7362 = vadd.f32 %v6902, %v7361
      %v7363 = vpop.f32.mrb[0].mxu0
      %v7364 = vadd.f32 %v6898, %v7363
      %v7365 = vpop.f32.mrb[0].mxu0
      %v7366 = vadd.f32 %v6902, %v7365
      %7367 = vmatprep.mubr.bf16.mxu0 %v6885
      %7368 = vmatmul.mubr.bf16.gmra.mrb[0].mxu0 %v6884
      %v7369 = vpop.f32.mrb[0].mxu0
      %v7370 = vadd.f32 %v6898, %v7369
      %v7371 = vpop.f32.mrb[0].mxu0
      %v7372 = vadd.f32 %v6902, %v7371
      %v7373 = vpop.f32.mrb[0].mxu0
      %v7374 = vadd.f32 %v6898, %v7373
      %v7375 = vpop.f32.mrb[0].mxu0
      %v7376 = vadd.f32 %v6902, %v7375
      %7377 = vmatprep.mubr.bf16.mxu0 %v6887
      %7378 = vmatmul.mubr.bf16.gmra.mrb[0].mxu0 %v6886
      %v7379 = vpop.f32.mrb[0].mxu0
      %v7380 = vadd.f32 %v6898, %v7379
      %v7381 = vpop.f32.mrb[0].mxu0
      %v7382 = vadd.f32 %v6902, %v7381
      %v7383 = vpop.f32.mrb[0].mxu0
      %v7384 = vadd.f32 %v6898, %v7383
      %v7385 = vpop.f32.mrb[0].mxu0
      %v7386 = vadd.f32 %v6902, %v7385
      %7387 = vmatprep.mubr.bf16.mxu0 %v6889
      %7388 = vmatmul.mubr.bf16.gmra.mrb[0].mxu0 %v6888
      %v7389 = vpop.f32.mrb[0].mxu0
      %v7390 = vadd.f32 %v6898, %v7389
      %v7391 = vpop.f32.mrb[0].mxu0
      %v7392 = vadd.f32 %v6902, %v7391
      %v7393 = vpop.f32.mrb[0].mxu0
      %v7394 = vadd.f32 %v6898, %v7393
      %v7395 = vpop.f32.mrb[0].mxu0
      %v7396 = vadd.f32 %v6902, %v7395
      %7397 = vmatprep.mubr.bf16.mxu0 %v6891
      %7398 = vmatmul.mubr.bf16.gmra.mrb[0].mxu0 %v6890
      %v7399 = vpop.f32.mrb[0].mxu0
      %v7400 = vadd.f32 %v6898, %v7399
      %v7401 = vpop.f32.mrb[0].mxu0
      %v7402 = vadd.f32 %v6902, %v7401
      %v7403 = vpop.f32.mrb[0].mxu0
      %v7404 = vadd.f32 %v6898, %v7403
      %v7405 = vpop.f32.mrb[0].mxu0
      %v7406 = vadd.f32 %v6902, %v7405
      %7407 = vmatprep.mubr.bf16.mxu0 %v6893
      %7408 = vmatmul.mubr.bf16.gmra.mrb[0].mxu0 %v6892
      %v7409 = vpop.f32.mrb[0].mxu0
      %v7410 = vadd.f32 %v6898, %v7409
      %v7411 = vpop.f32.mrb[0].mxu0
      %v7412 = vadd.f32 %v6902, %v7411
      %v7413 = vpop.f32.mrb[0].mxu0
      %v7414 = vadd.f32 %v6898, %v7413
      %v7415 = vpop.f32.mrb[0].mxu0
      %v7416 = vadd.f32 %v6902, %v7415
      %7417 = vdwg.mxu0
      %v7418 = vmax.f32 %v7100, 0.0
      %v7419 = vmax.f32 %v7102, 0.0
      %v7420 = vmax.f32 %v7104, 0.0
      %v7421 = vmax.f32 %v7106, 0.0
      %v7422 = vmax.f32 %v7110, 0.0
      %v7423 = vmax.f32 %v7112, 0.0
      %v7424 = vmax.f32 %v7114, 0.0
      %v7425 = vmax.f32 %v7116, 0.0
      %v7426 = vmax.f32 %v7120, 0.0
      %v7427 = vmax.f32 %v7122, 0.0
      %v7428 = vmax.f32 %v7124, 0.0
      %v7429 = vmax.f32 %v7126, 0.0
      %v7430 = vmax.f32 %v7130, 0.0
      %v7431 = vmax.f32 %v7132, 0.0
      %v7432 = vmax.f32 %v7134, 0.0
      %v7433 = vmax.f32 %v7136, 0.0
      %v7434 = vmax.f32 %v7140, 0.0
      %v7435 = vmax.f32 %v7142, 0.0
      %v7436 = vmax.f32 %v7144, 0.0
      %v7437 = vmax.f32 %v7146, 0.0
      %v7438 = vmax.f32 %v7150, 0.0
      %v7439 = vmax.f32 %v7152, 0.0
      %v7440 = vmax.f32 %v7154, 0.0
      %v7441 = vmax.f32 %v7156, 0.0
      %v7442 = vmax.f32 %v7160, 0.0
      %v7443 = vmax.f32 %v7162, 0.0
      %v7444 = vmax.f32 %v7164, 0.0
      %v7445 = vmax.f32 %v7166, 0.0
      %v7446 = vmax.f32 %v7170, 0.0
      %v7447 = vmax.f32 %v7172, 0.0
      %v7448 = vmax.f32 %v7174, 0.0
      %v7449 = vmax.f32 %v7176, 0.0
      %v7450 = vmax.f32 %v7180, 0.0
      %v7451 = vmax.f32 %v7182, 0.0
      %v7452 = vmax.f32 %v7184, 0.0
      %v7453 = vmax.f32 %v7186, 0.0
      %v7454 = vmax.f32 %v7190, 0.0
      %v7455 = vmax.f32 %v7192, 0.0
      %v7456 = vmax.f32 %v7194, 0.0
      %v7457 = vmax.f32 %v7196, 0.0
      %v7458 = vmax.f32 %v7200, 0.0
      %v7459 = vmax.f32 %v7202, 0.0
      %v7460 = vmax.f32 %v7204, 0.0
      %v7461 = vmax.f32 %v7206, 0.0
      %v7462 = vmax.f32 %v7210, 0.0
      %v7463 = vmax.f32 %v7212, 0.0
      %v7464 = vmax.f32 %v7214, 0.0
      %v7465 = vmax.f32 %v7216, 0.0
      %v7466 = vmax.f32 %v7220, 0.0
      %v7467 = vmax.f32 %v7222, 0.0
      %v7468 = vmax.f32 %v7224, 0.0
      %v7469 = vmax.f32 %v7226, 0.0
      %v7470 = vmax.f32 %v7230, 0.0
      %v7471 = vmax.f32 %v7232, 0.0
      %v7472 = vmax.f32 %v7234, 0.0
      %v7473 = vmax.f32 %v7236, 0.0
      %v7474 = vmax.f32 %v7240, 0.0
      %v7475 = vmax.f32 %v7242, 0.0
      %v7476 = vmax.f32 %v7244, 0.0
      %v7477 = vmax.f32 %v7246, 0.0
      %v7478 = vmax.f32 %v7250, 0.0
      %v7479 = vmax.f32 %v7252, 0.0
      %v7480 = vmax.f32 %v7254, 0.0
      %v7481 = vmax.f32 %v7256, 0.0
      %v7482 = vmax.f32 %v7260, 0.0
      %v7483 = vmax.f32 %v7262, 0.0
      %v7484 = vmax.f32 %v7264, 0.0
      %v7485 = vmax.f32 %v7266, 0.0
      %v7486 = vmax.f32 %v7270, 0.0
      %v7487 = vmax.f32 %v7272, 0.0
      %v7488 = vmax.f32 %v7274, 0.0
      %v7489 = vmax.f32 %v7276, 0.0
      %v7490 = vmax.f32 %v7280, 0.0
      %v7491 = vmax.f32 %v7282, 0.0
      %v7492 = vmax.f32 %v7284, 0.0
      %v7493 = vmax.f32 %v7286, 0.0
      %v7494 = vmax.f32 %v7290, 0.0
      %v7495 = vmax.f32 %v7292, 0.0
      %v7496 = vmax.f32 %v7294, 0.0
      %v7497 = vmax.f32 %v7296, 0.0
      %v7498 = vmax.f32 %v7300, 0.0
      %v7499 = vmax.f32 %v7302, 0.0
      %v7500 = vmax.f32 %v7304, 0.0
      %v7501 = vmax.f32 %v7306, 0.0
      %v7502 = vmax.f32 %v7310, 0.0
      %v7503 = vmax.f32 %v7312, 0.0
      %v7504 = vmax.f32 %v7314, 0.0
      %v7505 = vmax.f32 %v7316, 0.0
      %v7506 = vmax.f32 %v7320, 0.0
      %v7507 = vmax.f32 %v7322, 0.0
      %v7508 = vmax.f32 %v7324, 0.0
      %v7509 = vmax.f32 %v7326, 0.0
      %v7510 = vmax.f32 %v7330, 0.0
      %v7511 = vmax.f32 %v7332, 0.0
      %v7512 = vmax.f32 %v7334, 0.0
      %v7513 = vmax.f32 %v7336, 0.0
      %v7514 = vmax.f32 %v7340, 0.0
      %v7515 = vmax.f32 %v7342, 0.0
      %v7516 = vmax.f32 %v7344, 0.0
      %v7517 = vmax.f32 %v7346, 0.0
      %v7518 = vmax.f32 %v7350, 0.0
      %v7519 = vmax.f32 %v7352, 0.0
      %v7520 = vmax.f32 %v7354, 0.0
      %v7521 = vmax.f32 %v7356, 0.0
      %v7522 = vmax.f32 %v7360, 0.0
      %v7523 = vmax.f32 %v7362, 0.0
      %v7524 = vmax.f32 %v7364, 0.0
      %v7525 = vmax.f32 %v7366, 0.0
      %v7526 = vmax.f32 %v7370, 0.0
      %v7527 = vmax.f32 %v7372, 0.0
      %v7528 = vmax.f32 %v7374, 0.0
      %v7529 = vmax.f32 %v7376, 0.0
      %v7530 = vmax.f32 %v7380, 0.0
      %v7531 = vmax.f32 %v7382, 0.0
      %v7532 = vmax.f32 %v7384, 0.0
      %v7533 = vmax.f32 %v7386, 0.0
      %v7534 = vmax.f32 %v7390, 0.0
      %v7535 = vmax.f32 %v7392, 0.0
      %v7536 = vmax.f32 %v7394, 0.0
      %v7537 = vmax.f32 %v7396, 0.0
      %v7538 = vmax.f32 %v7400, 0.0
      %v7539 = vmax.f32 %v7402, 0.0
      %v7540 = vmax.f32 %v7404, 0.0
      %v7541 = vmax.f32 %v7406, 0.0
      %v7542 = vmax.f32 %v7410, 0.0
      %v7543 = vmax.f32 %v7412, 0.0
      %v7544 = vmax.f32 %v7414, 0.0
      %v7545 = vmax.f32 %v7416, 0.0
      %v7546 = vpack.c.bf16 %v7420, %v7418
      %v7547 = vpack.c.bf16 %v7421, %v7419
      %v7548 = vpack.c.bf16 %v7424, %v7422
      %v7549 = vpack.c.bf16 %v7425, %v7423
      %v7550 = vpack.c.bf16 %v7428, %v7426
      %v7551 = vpack.c.bf16 %v7429, %v7427
      %v7552 = vpack.c.bf16 %v7432, %v7430
      %v7553 = vpack.c.bf16 %v7433, %v7431
      %v7554 = vpack.c.bf16 %v7436, %v7434
      %v7555 = vpack.c.bf16 %v7437, %v7435
      %v7556 = vpack.c.bf16 %v7440, %v7438
      %v7557 = vpack.c.bf16 %v7441, %v7439
      %v7558 = vpack.c.bf16 %v7444, %v7442
      %v7559 = vpack.c.bf16 %v7445, %v7443
      %v7560 = vpack.c.bf16 %v7448, %v7446
      %v7561 = vpack.c.bf16 %v7449, %v7447
      %v7562 = vpack.c.bf16 %v7452, %v7450
      %v7563 = vpack.c.bf16 %v7453, %v7451
      %v7564 = vpack.c.bf16 %v7456, %v7454
      %v7565 = vpack.c.bf16 %v7457, %v7455
      %v7566 = vpack.c.bf16 %v7460, %v7458
      %v7567 = vpack.c.bf16 %v7461, %v7459
      %v7568 = vpack.c.bf16 %v7464, %v7462
      %v7569 = vpack.c.bf16 %v7465, %v7463
      %v7570 = vpack.c.bf16 %v7468, %v7466
      %v7571 = vpack.c.bf16 %v7469, %v7467
      %v7572 = vpack.c.bf16 %v7472, %v7470
      %v7573 = vpack.c.bf16 %v7473, %v7471
      %v7574 = vpack.c.bf16 %v7476, %v7474
      %v7575 = vpack.c.bf16 %v7477, %v7475
      %v7576 = vpack.c.bf16 %v7480, %v7478
      %v7577 = vpack.c.bf16 %v7481, %v7479
      %v7578 = vpack.c.bf16 %v7484, %v7482
      %v7579 = vpack.c.bf16 %v7485, %v7483
      %v7580 = vpack.c.bf16 %v7488, %v7486
      %v7581 = vpack.c.bf16 %v7489, %v7487
      %v7582 = vpack.c.bf16 %v7492, %v7490
      %v7583 = vpack.c.bf16 %v7493, %v7491
      %v7584 = vpack.c.bf16 %v7496, %v7494
      %v7585 = vpack.c.bf16 %v7497, %v7495
      %v7586 = vpack.c.bf16 %v7500, %v7498
      %v7587 = vpack.c.bf16 %v7501, %v7499
      %v7588 = vpack.c.bf16 %v7504, %v7502
      %v7589 = vpack.c.bf16 %v7505, %v7503
      %v7590 = vpack.c.bf16 %v7508, %v7506
      %v7591 = vpack.c.bf16 %v7509, %v7507
      %v7592 = vpack.c.bf16 %v7512, %v7510
      %v7593 = vpack.c.bf16 %v7513, %v7511
      %v7594 = vpack.c.bf16 %v7516, %v7514
      %v7595 = vpack.c.bf16 %v7517, %v7515
      %v7596 = vpack.c.bf16 %v7520, %v7518
      %v7597 = vpack.c.bf16 %v7521, %v7519
      %v7598 = vpack.c.bf16 %v7524, %v7522
      %v7599 = vpack.c.bf16 %v7525, %v7523
      %v7600 = vpack.c.bf16 %v7528, %v7526
      %v7601 = vpack.c.bf16 %v7529, %v7527
      %v7602 = vpack.c.bf16 %v7532, %v7530
      %v7603 = vpack.c.bf16 %v7533, %v7531
      %v7604 = vpack.c.bf16 %v7536, %v7534
      %v7605 = vpack.c.bf16 %v7537, %v7535
      %v7606 = vpack.c.bf16 %v7540, %v7538
      %v7607 = vpack.c.bf16 %v7541, %v7539
      %v7608 = vpack.c.bf16 %v7544, %v7542
      %v7609 = vpack.c.bf16 %v7545, %v7543
      %v7611 = vlaneseq
      %v7612 = vshrl.u32 %v7611, 7
      %v7613 = vsub.s32 0, %v7612
      %v7614 = vrot.slane %v5985, %v7613
      %v7615 = vlaneseq
      %v7616 = vshrl.u32 %v7615, 7
      %v7617 = vsub.s32 1, %v7616
      %v7618 = vrot.slane %v5985, %v7617
      %v7653 = vunpack.c.l.b16 %v5952
      %v7654 = vunpack.c.h.b16 %v5952
      %v7655 = vunpack.c.l.b16 %v5953
      %v7656 = vunpack.c.h.b16 %v5953
      %v7657 = vunpack.c.l.b16 %v5954
      %v7658 = vunpack.c.h.b16 %v5954
      %v7659 = vunpack.c.l.b16 %v5955
      %v7660 = vunpack.c.h.b16 %v5955
      %v7661 = vunpack.c.l.b16 %v5956
      %v7662 = vunpack.c.h.b16 %v5956
      %v7663 = vunpack.c.l.b16 %v5957
      %v7664 = vunpack.c.h.b16 %v5957
      %v7665 = vunpack.c.l.b16 %v5958
      %v7666 = vunpack.c.h.b16 %v5958
      %v7667 = vunpack.c.l.b16 %v5959
      %v7668 = vunpack.c.h.b16 %v5959
      %v7669 = vunpack.c.l.b16 %v5960
      %v7670 = vunpack.c.h.b16 %v5960
      %v7671 = vunpack.c.l.b16 %v5961
      %v7672 = vunpack.c.h.b16 %v5961
      %v7673 = vunpack.c.l.b16 %v5962
      %v7674 = vunpack.c.h.b16 %v5962
      %v7675 = vunpack.c.l.b16 %v5963
      %v7676 = vunpack.c.h.b16 %v5963
      %v7677 = vunpack.c.l.b16 %v5964
      %v7678 = vunpack.c.h.b16 %v5964
      %v7679 = vunpack.c.l.b16 %v5965
      %v7680 = vunpack.c.h.b16 %v5965
      %v7681 = vunpack.c.l.b16 %v5966
      %v7682 = vunpack.c.h.b16 %v5966
      %v7683 = vunpack.c.l.b16 %v5967
      %v7684 = vunpack.c.h.b16 %v5967
      %v7685 = vunpack.c.l.b16 %v5968
      %v7686 = vunpack.c.h.b16 %v5968
      %v7687 = vunpack.c.l.b16 %v5969
      %v7688 = vunpack.c.h.b16 %v5969
      %v7689 = vunpack.c.l.b16 %v5970
      %v7690 = vunpack.c.h.b16 %v5970
      %v7691 = vunpack.c.l.b16 %v5971
      %v7692 = vunpack.c.h.b16 %v5971
      %v7693 = vunpack.c.l.b16 %v5972
      %v7694 = vunpack.c.h.b16 %v5972
      %v7695 = vunpack.c.l.b16 %v5973
      %v7696 = vunpack.c.h.b16 %v5973
      %v7697 = vunpack.c.l.b16 %v5974
      %v7698 = vunpack.c.h.b16 %v5974
      %v7699 = vunpack.c.l.b16 %v5975
      %v7700 = vunpack.c.h.b16 %v5975
      %v7701 = vunpack.c.l.b16 %v5976
      %v7702 = vunpack.c.h.b16 %v5976
      %v7703 = vunpack.c.l.b16 %v5977
      %v7704 = vunpack.c.h.b16 %v5977
      %v7705 = vunpack.c.l.b16 %v5978
      %v7706 = vunpack.c.h.b16 %v5978
      %v7707 = vunpack.c.l.b16 %v5979
      %v7708 = vunpack.c.h.b16 %v5979
      %v7709 = vunpack.c.l.b16 %v5980
      %v7710 = vunpack.c.h.b16 %v5980
      %v7711 = vunpack.c.l.b16 %v5981
      %v7712 = vunpack.c.h.b16 %v5981
      %v7713 = vunpack.c.l.b16 %v5982
      %v7714 = vunpack.c.h.b16 %v5982
      %v7715 = vunpack.c.l.b16 %v5983
      %v7716 = vunpack.c.h.b16 %v5983
      %v7717 = vpack.c.b16 %v7655, %v7653
      %v7718 = vpack.c.b16 %v7656, %v7654
      %v7719 = vpack.c.b16 %v7659, %v7657
      %v7720 = vpack.c.b16 %v7660, %v7658
      %v7721 = vpack.c.b16 %v7663, %v7661
      %v7722 = vpack.c.b16 %v7664, %v7662
      %v7723 = vpack.c.b16 %v7667, %v7665
      %v7724 = vpack.c.b16 %v7668, %v7666
      %v7725 = vpack.c.b16 %v7671, %v7669
      %v7726 = vpack.c.b16 %v7672, %v7670
      %v7727 = vpack.c.b16 %v7675, %v7673
      %v7728 = vpack.c.b16 %v7676, %v7674
      %v7729 = vpack.c.b16 %v7679, %v7677
      %v7730 = vpack.c.b16 %v7680, %v7678
      %v7731 = vpack.c.b16 %v7683, %v7681
      %v7732 = vpack.c.b16 %v7684, %v7682
      %v7733 = vpack.c.b16 %v7687, %v7685
      %v7734 = vpack.c.b16 %v7688, %v7686
      %v7735 = vpack.c.b16 %v7691, %v7689
      %v7736 = vpack.c.b16 %v7692, %v7690
      %v7737 = vpack.c.b16 %v7695, %v7693
      %v7738 = vpack.c.b16 %v7696, %v7694
      %v7739 = vpack.c.b16 %v7699, %v7697
      %v7740 = vpack.c.b16 %v7700, %v7698
      %v7741 = vpack.c.b16 %v7703, %v7701
      %v7742 = vpack.c.b16 %v7704, %v7702
      %v7743 = vpack.c.b16 %v7707, %v7705
      %v7744 = vpack.c.b16 %v7708, %v7706
      %v7745 = vpack.c.b16 %v7711, %v7709
      %v7746 = vpack.c.b16 %v7712, %v7710
      %v7747 = vpack.c.b16 %v7715, %v7713
      %v7748 = vpack.c.b16 %v7716, %v7714
      %7781 = vmatprep.subr.bf16.mxu0 %v7718
      %7782 = vmatpush1.bf16.msra.mxu0 %v7717
      %7783 = vmatprep.subr.bf16.mxu0 %v7720
      %7784 = vmatpush1.bf16.msra.mxu0 %v7719
      %7785 = vmatprep.subr.bf16.mxu0 %v7722
      %7786 = vmatpush1.bf16.msra.mxu0 %v7721
      %7787 = vmatprep.subr.bf16.mxu0 %v7724
      %7788 = vmatpush1.bf16.msra.mxu0 %v7723
      %7789 = vmatprep.subr.bf16.mxu0 %v7726
      %7790 = vmatpush1.bf16.msra.mxu0 %v7725
      %7791 = vmatprep.subr.bf16.mxu0 %v7728
      %7792 = vmatpush1.bf16.msra.mxu0 %v7727
      %7793 = vmatprep.subr.bf16.mxu0 %v7730
      %7794 = vmatpush1.bf16.msra.mxu0 %v7729
      %7795 = vmatprep.subr.bf16.mxu0 %v7732
      %7796 = vmatpush1.bf16.msra.mxu0 %v7731
      %7797 = vmatprep.subr.bf16.mxu0 %v7734
      %7798 = vmatpush1.bf16.msra.mxu0 %v7733
      %7799 = vmatprep.subr.bf16.mxu0 %v7736
      %7800 = vmatpush1.bf16.msra.mxu0 %v7735
      %7801 = vmatprep.subr.bf16.mxu0 %v7738
      %7802 = vmatpush1.bf16.msra.mxu0 %v7737
      %7803 = vmatprep.subr.bf16.mxu0 %v7740
      %7804 = vmatpush1.bf16.msra.mxu0 %v7739
      %7805 = vmatprep.subr.bf16.mxu0 %v7742
      %7806 = vmatpush1.bf16.msra.mxu0 %v7741
      %7807 = vmatprep.subr.bf16.mxu0 %v7744
      %7808 = vmatpush1.bf16.msra.mxu0 %v7743
      %7809 = vmatprep.subr.bf16.mxu0 %v7746
      %7810 = vmatpush1.bf16.msra.mxu0 %v7745
      %7811 = vmatprep.subr.bf16.mxu0 %v7748
      %7812 = vmatpush1.bf16.msra.mxu0 %v7747
      %7813 = vmatprep.mubr.bf16.mxu0 %v7547
      %7814 = vmatmul.mubr.bf16.gmra.mrb[0].mxu0 %v7546
      %v7815 = vpop.f32.mrb[0].mxu0
      %v7816 = vadd.f32 %v7614, %v7815
      %v7817 = vpop.f32.mrb[0].mxu0
      %v7818 = vadd.f32 %v7618, %v7817
      %v7819 = vpop.f32.mrb[0].mxu0
      %v7820 = vadd.f32 %v7614, %v7819
      %v7821 = vpop.f32.mrb[0].mxu0
      %v7822 = vadd.f32 %v7618, %v7821
      %7823 = vmatprep.mubr.bf16.mxu0 %v7549
      %7824 = vmatmul.mubr.bf16.gmra.mrb[0].mxu0 %v7548
      %v7825 = vpop.f32.mrb[0].mxu0
      %v7826 = vadd.f32 %v7614, %v7825
      %v7827 = vpop.f32.mrb[0].mxu0
      %v7828 = vadd.f32 %v7618, %v7827
      %v7829 = vpop.f32.mrb[0].mxu0
      %v7830 = vadd.f32 %v7614, %v7829
      %v7831 = vpop.f32.mrb[0].mxu0
      %v7832 = vadd.f32 %v7618, %v7831
      %7833 = vmatprep.mubr.bf16.mxu0 %v7551
      %7834 = vmatmul.mubr.bf16.gmra.mrb[0].mxu0 %v7550
      %v7835 = vpop.f32.mrb[0].mxu0
      %v7836 = vadd.f32 %v7614, %v7835
      %v7837 = vpop.f32.mrb[0].mxu0
      %v7838 = vadd.f32 %v7618, %v7837
      %v7839 = vpop.f32.mrb[0].mxu0
      %v7840 = vadd.f32 %v7614, %v7839
      %v7841 = vpop.f32.mrb[0].mxu0
      %v7842 = vadd.f32 %v7618, %v7841
      %7843 = vmatprep.mubr.bf16.mxu0 %v7553
      %7844 = vmatmul.mubr.bf16.gmra.mrb[0].mxu0 %v7552
      %v7845 = vpop.f32.mrb[0].mxu0
      %v7846 = vadd.f32 %v7614, %v7845
      %v7847 = vpop.f32.mrb[0].mxu0
      %v7848 = vadd.f32 %v7618, %v7847
      %v7849 = vpop.f32.mrb[0].mxu0
      %v7850 = vadd.f32 %v7614, %v7849
      %v7851 = vpop.f32.mrb[0].mxu0
      %v7852 = vadd.f32 %v7618, %v7851
      %7853 = vmatprep.mubr.bf16.mxu0 %v7555
      %7854 = vmatmul.mubr.bf16.gmra.mrb[0].mxu0 %v7554
      %v7855 = vpop.f32.mrb[0].mxu0
      %v7856 = vadd.f32 %v7614, %v7855
      %v7857 = vpop.f32.mrb[0].mxu0
      %v7858 = vadd.f32 %v7618, %v7857
      %v7859 = vpop.f32.mrb[0].mxu0
      %v7860 = vadd.f32 %v7614, %v7859
      %v7861 = vpop.f32.mrb[0].mxu0
      %v7862 = vadd.f32 %v7618, %v7861
      %7863 = vmatprep.mubr.bf16.mxu0 %v7557
      %7864 = vmatmul.mubr.bf16.gmra.mrb[0].mxu0 %v7556
      %v7865 = vpop.f32.mrb[0].mxu0
      %v7866 = vadd.f32 %v7614, %v7865
      %v7867 = vpop.f32.mrb[0].mxu0
      %v7868 = vadd.f32 %v7618, %v7867
      %v7869 = vpop.f32.mrb[0].mxu0
      %v7870 = vadd.f32 %v7614, %v7869
      %v7871 = vpop.f32.mrb[0].mxu0
      %v7872 = vadd.f32 %v7618, %v7871
      %7873 = vmatprep.mubr.bf16.mxu0 %v7559
      %7874 = vmatmul.mubr.bf16.gmra.mrb[0].mxu0 %v7558
      %v7875 = vpop.f32.mrb[0].mxu0
      %v7876 = vadd.f32 %v7614, %v7875
      %v7877 = vpop.f32.mrb[0].mxu0
      %v7878 = vadd.f32 %v7618, %v7877
      %v7879 = vpop.f32.mrb[0].mxu0
      %v7880 = vadd.f32 %v7614, %v7879
      %v7881 = vpop.f32.mrb[0].mxu0
      %v7882 = vadd.f32 %v7618, %v7881
      %7883 = vmatprep.mubr.bf16.mxu0 %v7561
      %7884 = vmatmul.mubr.bf16.gmra.mrb[0].mxu0 %v7560
      %v7885 = vpop.f32.mrb[0].mxu0
      %v7886 = vadd.f32 %v7614, %v7885
      %v7887 = vpop.f32.mrb[0].mxu0
      %v7888 = vadd.f32 %v7618, %v7887
      %v7889 = vpop.f32.mrb[0].mxu0
      %v7890 = vadd.f32 %v7614, %v7889
      %v7891 = vpop.f32.mrb[0].mxu0
      %v7892 = vadd.f32 %v7618, %v7891
      %7893 = vmatprep.mubr.bf16.mxu0 %v7563
      %7894 = vmatmul.mubr.bf16.gmra.mrb[0].mxu0 %v7562
      %v7895 = vpop.f32.mrb[0].mxu0
      %v7896 = vadd.f32 %v7614, %v7895
      %v7897 = vpop.f32.mrb[0].mxu0
      %v7898 = vadd.f32 %v7618, %v7897
      %v7899 = vpop.f32.mrb[0].mxu0
      %v7900 = vadd.f32 %v7614, %v7899
      %v7901 = vpop.f32.mrb[0].mxu0
      %v7902 = vadd.f32 %v7618, %v7901
      %7903 = vmatprep.mubr.bf16.mxu0 %v7565
      %7904 = vmatmul.mubr.bf16.gmra.mrb[0].mxu0 %v7564
      %v7905 = vpop.f32.mrb[0].mxu0
      %v7906 = vadd.f32 %v7614, %v7905
      %v7907 = vpop.f32.mrb[0].mxu0
      %v7908 = vadd.f32 %v7618, %v7907
      %v7909 = vpop.f32.mrb[0].mxu0
      %v7910 = vadd.f32 %v7614, %v7909
      %v7911 = vpop.f32.mrb[0].mxu0
      %v7912 = vadd.f32 %v7618, %v7911
      %7913 = vmatprep.mubr.bf16.mxu0 %v7567
      %7914 = vmatmul.mubr.bf16.gmra.mrb[0].mxu0 %v7566
      %v7915 = vpop.f32.mrb[0].mxu0
      %v7916 = vadd.f32 %v7614, %v7915
      %v7917 = vpop.f32.mrb[0].mxu0
      %v7918 = vadd.f32 %v7618, %v7917
      %v7919 = vpop.f32.mrb[0].mxu0
      %v7920 = vadd.f32 %v7614, %v7919
      %v7921 = vpop.f32.mrb[0].mxu0
      %v7922 = vadd.f32 %v7618, %v7921
      %7923 = vmatprep.mubr.bf16.mxu0 %v7569
      %7924 = vmatmul.mubr.bf16.gmra.mrb[0].mxu0 %v7568
      %v7925 = vpop.f32.mrb[0].mxu0
      %v7926 = vadd.f32 %v7614, %v7925
      %v7927 = vpop.f32.mrb[0].mxu0
      %v7928 = vadd.f32 %v7618, %v7927
      %v7929 = vpop.f32.mrb[0].mxu0
      %v7930 = vadd.f32 %v7614, %v7929
      %v7931 = vpop.f32.mrb[0].mxu0
      %v7932 = vadd.f32 %v7618, %v7931
      %7933 = vmatprep.mubr.bf16.mxu0 %v7571
      %7934 = vmatmul.mubr.bf16.gmra.mrb[0].mxu0 %v7570
      %v7935 = vpop.f32.mrb[0].mxu0
      %v7936 = vadd.f32 %v7614, %v7935
      %v7937 = vpop.f32.mrb[0].mxu0
      %v7938 = vadd.f32 %v7618, %v7937
      %v7939 = vpop.f32.mrb[0].mxu0
      %v7940 = vadd.f32 %v7614, %v7939
      %v7941 = vpop.f32.mrb[0].mxu0
      %v7942 = vadd.f32 %v7618, %v7941
      %7943 = vmatprep.mubr.bf16.mxu0 %v7573
      %7944 = vmatmul.mubr.bf16.gmra.mrb[0].mxu0 %v7572
      %v7945 = vpop.f32.mrb[0].mxu0
      %v7946 = vadd.f32 %v7614, %v7945
      %v7947 = vpop.f32.mrb[0].mxu0
      %v7948 = vadd.f32 %v7618, %v7947
      %v7949 = vpop.f32.mrb[0].mxu0
      %v7950 = vadd.f32 %v7614, %v7949
      %v7951 = vpop.f32.mrb[0].mxu0
      %v7952 = vadd.f32 %v7618, %v7951
      %7953 = vmatprep.mubr.bf16.mxu0 %v7575
      %7954 = vmatmul.mubr.bf16.gmra.mrb[0].mxu0 %v7574
      %v7955 = vpop.f32.mrb[0].mxu0
      %v7956 = vadd.f32 %v7614, %v7955
      %v7957 = vpop.f32.mrb[0].mxu0
      %v7958 = vadd.f32 %v7618, %v7957
      %v7959 = vpop.f32.mrb[0].mxu0
      %v7960 = vadd.f32 %v7614, %v7959
      %v7961 = vpop.f32.mrb[0].mxu0
      %v7962 = vadd.f32 %v7618, %v7961
      %7963 = vmatprep.mubr.bf16.mxu0 %v7577
      %7964 = vmatmul.mubr.bf16.gmra.mrb[0].mxu0 %v7576
      %v7965 = vpop.f32.mrb[0].mxu0
      %v7966 = vadd.f32 %v7614, %v7965
      %v7967 = vpop.f32.mrb[0].mxu0
      %v7968 = vadd.f32 %v7618, %v7967
      %v7969 = vpop.f32.mrb[0].mxu0
      %v7970 = vadd.f32 %v7614, %v7969
      %v7971 = vpop.f32.mrb[0].mxu0
      %v7972 = vadd.f32 %v7618, %v7971
      %7973 = vmatprep.mubr.bf16.mxu0 %v7579
      %7974 = vmatmul.mubr.bf16.gmra.mrb[0].mxu0 %v7578
      %v7975 = vpop.f32.mrb[0].mxu0
      %v7976 = vadd.f32 %v7614, %v7975
      %v7977 = vpop.f32.mrb[0].mxu0
      %v7978 = vadd.f32 %v7618, %v7977
      %v7979 = vpop.f32.mrb[0].mxu0
      %v7980 = vadd.f32 %v7614, %v7979
      %v7981 = vpop.f32.mrb[0].mxu0
      %v7982 = vadd.f32 %v7618, %v7981
      %7983 = vmatprep.mubr.bf16.mxu0 %v7581
      %7984 = vmatmul.mubr.bf16.gmra.mrb[0].mxu0 %v7580
      %v7985 = vpop.f32.mrb[0].mxu0
      %v7986 = vadd.f32 %v7614, %v7985
      %v7987 = vpop.f32.mrb[0].mxu0
      %v7988 = vadd.f32 %v7618, %v7987
      %v7989 = vpop.f32.mrb[0].mxu0
      %v7990 = vadd.f32 %v7614, %v7989
      %v7991 = vpop.f32.mrb[0].mxu0
      %v7992 = vadd.f32 %v7618, %v7991
      %7993 = vmatprep.mubr.bf16.mxu0 %v7583
      %7994 = vmatmul.mubr.bf16.gmra.mrb[0].mxu0 %v7582
      %v7995 = vpop.f32.mrb[0].mxu0
      %v7996 = vadd.f32 %v7614, %v7995
      %v7997 = vpop.f32.mrb[0].mxu0
      %v7998 = vadd.f32 %v7618, %v7997
      %v7999 = vpop.f32.mrb[0].mxu0
      %v8000 = vadd.f32 %v7614, %v7999
      %v8001 = vpop.f32.mrb[0].mxu0
      %v8002 = vadd.f32 %v7618, %v8001
      %8003 = vmatprep.mubr.bf16.mxu0 %v7585
      %8004 = vmatmul.mubr.bf16.gmra.mrb[0].mxu0 %v7584
      %v8005 = vpop.f32.mrb[0].mxu0
      %v8006 = vadd.f32 %v7614, %v8005
      %v8007 = vpop.f32.mrb[0].mxu0
      %v8008 = vadd.f32 %v7618, %v8007
      %v8009 = vpop.f32.mrb[0].mxu0
      %v8010 = vadd.f32 %v7614, %v8009
      %v8011 = vpop.f32.mrb[0].mxu0
      %v8012 = vadd.f32 %v7618, %v8011
      %8013 = vmatprep.mubr.bf16.mxu0 %v7587
      %8014 = vmatmul.mubr.bf16.gmra.mrb[0].mxu0 %v7586
      %v8015 = vpop.f32.mrb[0].mxu0
      %v8016 = vadd.f32 %v7614, %v8015
      %v8017 = vpop.f32.mrb[0].mxu0
      %v8018 = vadd.f32 %v7618, %v8017
      %v8019 = vpop.f32.mrb[0].mxu0
      %v8020 = vadd.f32 %v7614, %v8019
      %v8021 = vpop.f32.mrb[0].mxu0
      %v8022 = vadd.f32 %v7618, %v8021
      %8023 = vmatprep.mubr.bf16.mxu0 %v7589
      %8024 = vmatmul.mubr.bf16.gmra.mrb[0].mxu0 %v7588
      %v8025 = vpop.f32.mrb[0].mxu0
      %v8026 = vadd.f32 %v7614, %v8025
      %v8027 = vpop.f32.mrb[0].mxu0
      %v8028 = vadd.f32 %v7618, %v8027
      %v8029 = vpop.f32.mrb[0].mxu0
      %v8030 = vadd.f32 %v7614, %v8029
      %v8031 = vpop.f32.mrb[0].mxu0
      %v8032 = vadd.f32 %v7618, %v8031
      %8033 = vmatprep.mubr.bf16.mxu0 %v7591
      %8034 = vmatmul.mubr.bf16.gmra.mrb[0].mxu0 %v7590
      %v8035 = vpop.f32.mrb[0].mxu0
      %v8036 = vadd.f32 %v7614, %v8035
      %v8037 = vpop.f32.mrb[0].mxu0
      %v8038 = vadd.f32 %v7618, %v8037
      %v8039 = vpop.f32.mrb[0].mxu0
      %v8040 = vadd.f32 %v7614, %v8039
      %v8041 = vpop.f32.mrb[0].mxu0
      %v8042 = vadd.f32 %v7618, %v8041
      %8043 = vmatprep.mubr.bf16.mxu0 %v7593
      %8044 = vmatmul.mubr.bf16.gmra.mrb[0].mxu0 %v7592
      %v8045 = vpop.f32.mrb[0].mxu0
      %v8046 = vadd.f32 %v7614, %v8045
      %v8047 = vpop.f32.mrb[0].mxu0
      %v8048 = vadd.f32 %v7618, %v8047
      %v8049 = vpop.f32.mrb[0].mxu0
      %v8050 = vadd.f32 %v7614, %v8049
      %v8051 = vpop.f32.mrb[0].mxu0
      %v8052 = vadd.f32 %v7618, %v8051
      %8053 = vmatprep.mubr.bf16.mxu0 %v7595
      %8054 = vmatmul.mubr.bf16.gmra.mrb[0].mxu0 %v7594
      %v8055 = vpop.f32.mrb[0].mxu0
      %v8056 = vadd.f32 %v7614, %v8055
      %v8057 = vpop.f32.mrb[0].mxu0
      %v8058 = vadd.f32 %v7618, %v8057
      %v8059 = vpop.f32.mrb[0].mxu0
      %v8060 = vadd.f32 %v7614, %v8059
      %v8061 = vpop.f32.mrb[0].mxu0
      %v8062 = vadd.f32 %v7618, %v8061
      %8063 = vmatprep.mubr.bf16.mxu0 %v7597
      %8064 = vmatmul.mubr.bf16.gmra.mrb[0].mxu0 %v7596
      %v8065 = vpop.f32.mrb[0].mxu0
      %v8066 = vadd.f32 %v7614, %v8065
      %v8067 = vpop.f32.mrb[0].mxu0
      %v8068 = vadd.f32 %v7618, %v8067
      %v8069 = vpop.f32.mrb[0].mxu0
      %v8070 = vadd.f32 %v7614, %v8069
      %v8071 = vpop.f32.mrb[0].mxu0
      %v8072 = vadd.f32 %v7618, %v8071
      %8073 = vmatprep.mubr.bf16.mxu0 %v7599
      %8074 = vmatmul.mubr.bf16.gmra.mrb[0].mxu0 %v7598
      %v8075 = vpop.f32.mrb[0].mxu0
      %v8076 = vadd.f32 %v7614, %v8075
      %v8077 = vpop.f32.mrb[0].mxu0
      %v8078 = vadd.f32 %v7618, %v8077
      %v8079 = vpop.f32.mrb[0].mxu0
      %v8080 = vadd.f32 %v7614, %v8079
      %v8081 = vpop.f32.mrb[0].mxu0
      %v8082 = vadd.f32 %v7618, %v8081
      %8083 = vmatprep.mubr.bf16.mxu0 %v7601
      %8084 = vmatmul.mubr.bf16.gmra.mrb[0].mxu0 %v7600
      %v8085 = vpop.f32.mrb[0].mxu0
      %v8086 = vadd.f32 %v7614, %v8085
      %v8087 = vpop.f32.mrb[0].mxu0
      %v8088 = vadd.f32 %v7618, %v8087
      %v8089 = vpop.f32.mrb[0].mxu0
      %v8090 = vadd.f32 %v7614, %v8089
      %v8091 = vpop.f32.mrb[0].mxu0
      %v8092 = vadd.f32 %v7618, %v8091
      %8093 = vmatprep.mubr.bf16.mxu0 %v7603
      %8094 = vmatmul.mubr.bf16.gmra.mrb[0].mxu0 %v7602
      %v8095 = vpop.f32.mrb[0].mxu0
      %v8096 = vadd.f32 %v7614, %v8095
      %v8097 = vpop.f32.mrb[0].mxu0
      %v8098 = vadd.f32 %v7618, %v8097
      %v8099 = vpop.f32.mrb[0].mxu0
      %v8100 = vadd.f32 %v7614, %v8099
      %v8101 = vpop.f32.mrb[0].mxu0
      %v8102 = vadd.f32 %v7618, %v8101
      %8103 = vmatprep.mubr.bf16.mxu0 %v7605
      %8104 = vmatmul.mubr.bf16.gmra.mrb[0].mxu0 %v7604
      %v8105 = vpop.f32.mrb[0].mxu0
      %v8106 = vadd.f32 %v7614, %v8105
      %v8107 = vpop.f32.mrb[0].mxu0
      %v8108 = vadd.f32 %v7618, %v8107
      %v8109 = vpop.f32.mrb[0].mxu0
      %v8110 = vadd.f32 %v7614, %v8109
      %v8111 = vpop.f32.mrb[0].mxu0
      %v8112 = vadd.f32 %v7618, %v8111
      %8113 = vmatprep.mubr.bf16.mxu0 %v7607
      %8114 = vmatmul.mubr.bf16.gmra.mrb[0].mxu0 %v7606
      %v8115 = vpop.f32.mrb[0].mxu0
      %v8116 = vadd.f32 %v7614, %v8115
      %v8117 = vpop.f32.mrb[0].mxu0
      %v8118 = vadd.f32 %v7618, %v8117
      %v8119 = vpop.f32.mrb[0].mxu0
      %v8120 = vadd.f32 %v7614, %v8119
      %v8121 = vpop.f32.mrb[0].mxu0
      %v8122 = vadd.f32 %v7618, %v8121
      %8123 = vmatprep.mubr.bf16.mxu0 %v7609
      %8124 = vmatmul.mubr.bf16.gmra.mrb[0].mxu0 %v7608
      %v8125 = vpop.f32.mrb[0].mxu0
      %v8126 = vadd.f32 %v7614, %v8125
      %v8127 = vpop.f32.mrb[0].mxu0
      %v8128 = vadd.f32 %v7618, %v8127
      %v8129 = vpop.f32.mrb[0].mxu0
      %v8130 = vadd.f32 %v7614, %v8129
      %v8131 = vpop.f32.mrb[0].mxu0
      %v8132 = vadd.f32 %v7618, %v8131
      %8133 = vdwg.mxu0
      %v8134 = vmax.f32 %v7816, 0.0
      %v8135 = vmax.f32 %v7818, 0.0
      %v8136 = vmax.f32 %v7820, 0.0
      %v8137 = vmax.f32 %v7822, 0.0
      %v8138 = vmax.f32 %v7826, 0.0
      %v8139 = vmax.f32 %v7828, 0.0
      %v8140 = vmax.f32 %v7830, 0.0
      %v8141 = vmax.f32 %v7832, 0.0
      %v8142 = vmax.f32 %v7836, 0.0
      %v8143 = vmax.f32 %v7838, 0.0
      %v8144 = vmax.f32 %v7840, 0.0
      %v8145 = vmax.f32 %v7842, 0.0
      %v8146 = vmax.f32 %v7846, 0.0
      %v8147 = vmax.f32 %v7848, 0.0
      %v8148 = vmax.f32 %v7850, 0.0
      %v8149 = vmax.f32 %v7852, 0.0
      %v8150 = vmax.f32 %v7856, 0.0
      %v8151 = vmax.f32 %v7858, 0.0
      %v8152 = vmax.f32 %v7860, 0.0
      %v8153 = vmax.f32 %v7862, 0.0
      %v8154 = vmax.f32 %v7866, 0.0
      %v8155 = vmax.f32 %v7868, 0.0
      %v8156 = vmax.f32 %v7870, 0.0
      %v8157 = vmax.f32 %v7872, 0.0
      %v8158 = vmax.f32 %v7876, 0.0
      %v8159 = vmax.f32 %v7878, 0.0
      %v8160 = vmax.f32 %v7880, 0.0
      %v8161 = vmax.f32 %v7882, 0.0
      %v8162 = vmax.f32 %v7886, 0.0
      %v8163 = vmax.f32 %v7888, 0.0
      %v8164 = vmax.f32 %v7890, 0.0
      %v8165 = vmax.f32 %v7892, 0.0
      %v8166 = vmax.f32 %v7896, 0.0
      %v8167 = vmax.f32 %v7898, 0.0
      %v8168 = vmax.f32 %v7900, 0.0
      %v8169 = vmax.f32 %v7902, 0.0
      %v8170 = vmax.f32 %v7906, 0.0
      %v8171 = vmax.f32 %v7908, 0.0
      %v8172 = vmax.f32 %v7910, 0.0
      %v8173 = vmax.f32 %v7912, 0.0
      %v8174 = vmax.f32 %v7916, 0.0
      %v8175 = vmax.f32 %v7918, 0.0
      %v8176 = vmax.f32 %v7920, 0.0
      %v8177 = vmax.f32 %v7922, 0.0
      %v8178 = vmax.f32 %v7926, 0.0
      %v8179 = vmax.f32 %v7928, 0.0
      %v8180 = vmax.f32 %v7930, 0.0
      %v8181 = vmax.f32 %v7932, 0.0
      %v8182 = vmax.f32 %v7936, 0.0
      %v8183 = vmax.f32 %v7938, 0.0
      %v8184 = vmax.f32 %v7940, 0.0
      %v8185 = vmax.f32 %v7942, 0.0
      %v8186 = vmax.f32 %v7946, 0.0
      %v8187 = vmax.f32 %v7948, 0.0
      %v8188 = vmax.f32 %v7950, 0.0
      %v8189 = vmax.f32 %v7952, 0.0
      %v8190 = vmax.f32 %v7956, 0.0
      %v8191 = vmax.f32 %v7958, 0.0
      %v8192 = vmax.f32 %v7960, 0.0
      %v8193 = vmax.f32 %v7962, 0.0
      %v8194 = vmax.f32 %v7966, 0.0
      %v8195 = vmax.f32 %v7968, 0.0
      %v8196 = vmax.f32 %v7970, 0.0
      %v8197 = vmax.f32 %v7972, 0.0
      %v8198 = vmax.f32 %v7976, 0.0
      %v8199 = vmax.f32 %v7978, 0.0
      %v8200 = vmax.f32 %v7980, 0.0
      %v8201 = vmax.f32 %v7982, 0.0
      %v8202 = vmax.f32 %v7986, 0.0
      %v8203 = vmax.f32 %v7988, 0.0
      %v8204 = vmax.f32 %v7990, 0.0
      %v8205 = vmax.f32 %v7992, 0.0
      %v8206 = vmax.f32 %v7996, 0.0
      %v8207 = vmax.f32 %v7998, 0.0
      %v8208 = vmax.f32 %v8000, 0.0
      %v8209 = vmax.f32 %v8002, 0.0
      %v8210 = vmax.f32 %v8006, 0.0
      %v8211 = vmax.f32 %v8008, 0.0
      %v8212 = vmax.f32 %v8010, 0.0
      %v8213 = vmax.f32 %v8012, 0.0
      %v8214 = vmax.f32 %v8016, 0.0
      %v8215 = vmax.f32 %v8018, 0.0
      %v8216 = vmax.f32 %v8020, 0.0
      %v8217 = vmax.f32 %v8022, 0.0
      %v8218 = vmax.f32 %v8026, 0.0
      %v8219 = vmax.f32 %v8028, 0.0
      %v8220 = vmax.f32 %v8030, 0.0
      %v8221 = vmax.f32 %v8032, 0.0
      %v8222 = vmax.f32 %v8036, 0.0
      %v8223 = vmax.f32 %v8038, 0.0
      %v8224 = vmax.f32 %v8040, 0.0
      %v8225 = vmax.f32 %v8042, 0.0
      %v8226 = vmax.f32 %v8046, 0.0
      %v8227 = vmax.f32 %v8048, 0.0
      %v8228 = vmax.f32 %v8050, 0.0
      %v8229 = vmax.f32 %v8052, 0.0
      %v8230 = vmax.f32 %v8056, 0.0
      %v8231 = vmax.f32 %v8058, 0.0
      %v8232 = vmax.f32 %v8060, 0.0
      %v8233 = vmax.f32 %v8062, 0.0
      %v8234 = vmax.f32 %v8066, 0.0
      %v8235 = vmax.f32 %v8068, 0.0
      %v8236 = vmax.f32 %v8070, 0.0
      %v8237 = vmax.f32 %v8072, 0.0
      %v8238 = vmax.f32 %v8076, 0.0
      %v8239 = vmax.f32 %v8078, 0.0
      %v8240 = vmax.f32 %v8080, 0.0
      %v8241 = vmax.f32 %v8082, 0.0
      %v8242 = vmax.f32 %v8086, 0.0
      %v8243 = vmax.f32 %v8088, 0.0
      %v8244 = vmax.f32 %v8090, 0.0
      %v8245 = vmax.f32 %v8092, 0.0
      %v8246 = vmax.f32 %v8096, 0.0
      %v8247 = vmax.f32 %v8098, 0.0
      %v8248 = vmax.f32 %v8100, 0.0
      %v8249 = vmax.f32 %v8102, 0.0
      %v8250 = vmax.f32 %v8106, 0.0
      %v8251 = vmax.f32 %v8108, 0.0
      %v8252 = vmax.f32 %v8110, 0.0
      %v8253 = vmax.f32 %v8112, 0.0
      %v8254 = vmax.f32 %v8116, 0.0
      %v8255 = vmax.f32 %v8118, 0.0
      %v8256 = vmax.f32 %v8120, 0.0
      %v8257 = vmax.f32 %v8122, 0.0
      %v8258 = vmax.f32 %v8126, 0.0
      %v8259 = vmax.f32 %v8128, 0.0
      %v8260 = vmax.f32 %v8130, 0.0
      %v8261 = vmax.f32 %v8132, 0.0
      %v8262 = vadd.f32 %v8134, %v6702
      %v8263 = vadd.f32 %v8135, %v6703
      %v8264 = vadd.f32 %v8136, %v6704
      %v8265 = vadd.f32 %v8137, %v6705
      %v8266 = vadd.f32 %v8138, %v6706
      %v8267 = vadd.f32 %v8139, %v6707
      %v8268 = vadd.f32 %v8140, %v6708
      %v8269 = vadd.f32 %v8141, %v6709
      %v8270 = vadd.f32 %v8142, %v6710
      %v8271 = vadd.f32 %v8143, %v6711
      %v8272 = vadd.f32 %v8144, %v6712
      %v8273 = vadd.f32 %v8145, %v6713
      %v8274 = vadd.f32 %v8146, %v6714
      %v8275 = vadd.f32 %v8147, %v6715
      %v8276 = vadd.f32 %v8148, %v6716
      %v8277 = vadd.f32 %v8149, %v6717
      %v8278 = vadd.f32 %v8150, %v6718
      %v8279 = vadd.f32 %v8151, %v6719
      %v8280 = vadd.f32 %v8152, %v6720
      %v8281 = vadd.f32 %v8153, %v6721
      %v8282 = vadd.f32 %v8154, %v6722
      %v8283 = vadd.f32 %v8155, %v6723
      %v8284 = vadd.f32 %v8156, %v6724
      %v8285 = vadd.f32 %v8157, %v6725
      %v8286 = vadd.f32 %v8158, %v6726
      %v8287 = vadd.f32 %v8159, %v6727
      %v8288 = vadd.f32 %v8160, %v6728
      %v8289 = vadd.f32 %v8161, %v6729
      %v8290 = vadd.f32 %v8162, %v6730
      %v8291 = vadd.f32 %v8163, %v6731
      %v8292 = vadd.f32 %v8164, %v6732
      %v8293 = vadd.f32 %v8165, %v6733
      %v8294 = vadd.f32 %v8166, %v6734
      %v8295 = vadd.f32 %v8167, %v6735
      %v8296 = vadd.f32 %v8168, %v6736
      %v8297 = vadd.f32 %v8169, %v6737
      %v8298 = vadd.f32 %v8170, %v6738
      %v8299 = vadd.f32 %v8171, %v6739
      %v8300 = vadd.f32 %v8172, %v6740
      %v8301 = vadd.f32 %v8173, %v6741
      %v8302 = vadd.f32 %v8174, %v6742
      %v8303 = vadd.f32 %v8175, %v6743
      %v8304 = vadd.f32 %v8176, %v6744
      %v8305 = vadd.f32 %v8177, %v6745
      %v8306 = vadd.f32 %v8178, %v6746
      %v8307 = vadd.f32 %v8179, %v6747
      %v8308 = vadd.f32 %v8180, %v6748
      %v8309 = vadd.f32 %v8181, %v6749
      %v8310 = vadd.f32 %v8182, %v6750
      %v8311 = vadd.f32 %v8183, %v6751
      %v8312 = vadd.f32 %v8184, %v6752
      %v8313 = vadd.f32 %v8185, %v6753
      %v8314 = vadd.f32 %v8186, %v6754
      %v8315 = vadd.f32 %v8187, %v6755
      %v8316 = vadd.f32 %v8188, %v6756
      %v8317 = vadd.f32 %v8189, %v6757
      %v8318 = vadd.f32 %v8190, %v6758
      %v8319 = vadd.f32 %v8191, %v6759
      %v8320 = vadd.f32 %v8192, %v6760
      %v8321 = vadd.f32 %v8193, %v6761
      %v8322 = vadd.f32 %v8194, %v6762
      %v8323 = vadd.f32 %v8195, %v6763
      %v8324 = vadd.f32 %v8196, %v6764
      %v8325 = vadd.f32 %v8197, %v6765
      %v8326 = vadd.f32 %v8198, %v6766
      %v8327 = vadd.f32 %v8199, %v6767
      %v8328 = vadd.f32 %v8200, %v6768
      %v8329 = vadd.f32 %v8201, %v6769
      %v8330 = vadd.f32 %v8202, %v6770
      %v8331 = vadd.f32 %v8203, %v6771
      %v8332 = vadd.f32 %v8204, %v6772
      %v8333 = vadd.f32 %v8205, %v6773
      %v8334 = vadd.f32 %v8206, %v6774
      %v8335 = vadd.f32 %v8207, %v6775
      %v8336 = vadd.f32 %v8208, %v6776
      %v8337 = vadd.f32 %v8209, %v6777
      %v8338 = vadd.f32 %v8210, %v6778
      %v8339 = vadd.f32 %v8211, %v6779
      %v8340 = vadd.f32 %v8212, %v6780
      %v8341 = vadd.f32 %v8213, %v6781
      %v8342 = vadd.f32 %v8214, %v6782
      %v8343 = vadd.f32 %v8215, %v6783
      %v8344 = vadd.f32 %v8216, %v6784
      %v8345 = vadd.f32 %v8217, %v6785
      %v8346 = vadd.f32 %v8218, %v6786
      %v8347 = vadd.f32 %v8219, %v6787
      %v8348 = vadd.f32 %v8220, %v6788
      %v8349 = vadd.f32 %v8221, %v6789
      %v8350 = vadd.f32 %v8222, %v6790
      %v8351 = vadd.f32 %v8223, %v6791
      %v8352 = vadd.f32 %v8224, %v6792
      %v8353 = vadd.f32 %v8225, %v6793
      %v8354 = vadd.f32 %v8226, %v6794
      %v8355 = vadd.f32 %v8227, %v6795
      %v8356 = vadd.f32 %v8228, %v6796
      %v8357 = vadd.f32 %v8229, %v6797
      %v8358 = vadd.f32 %v8230, %v6798
      %v8359 = vadd.f32 %v8231, %v6799
      %v8360 = vadd.f32 %v8232, %v6800
      %v8361 = vadd.f32 %v8233, %v6801
      %v8362 = vadd.f32 %v8234, %v6802
      %v8363 = vadd.f32 %v8235, %v6803
      %v8364 = vadd.f32 %v8236, %v6804
      %v8365 = vadd.f32 %v8237, %v6805
      %v8366 = vadd.f32 %v8238, %v6806
      %v8367 = vadd.f32 %v8239, %v6807
      %v8368 = vadd.f32 %v8240, %v6808
      %v8369 = vadd.f32 %v8241, %v6809
      %v8370 = vadd.f32 %v8242, %v6810
      %v8371 = vadd.f32 %v8243, %v6811
      %v8372 = vadd.f32 %v8244, %v6812
      %v8373 = vadd.f32 %v8245, %v6813
      %v8374 = vadd.f32 %v8246, %v6814
      %v8375 = vadd.f32 %v8247, %v6815
      %v8376 = vadd.f32 %v8248, %v6816
      %v8377 = vadd.f32 %v8249, %v6817
      %v8378 = vadd.f32 %v8250, %v6818
      %v8379 = vadd.f32 %v8251, %v6819
      %v8380 = vadd.f32 %v8252, %v6820
      %v8381 = vadd.f32 %v8253, %v6821
      %v8382 = vadd.f32 %v8254, %v6822
      %v8383 = vadd.f32 %v8255, %v6823
      %v8384 = vadd.f32 %v8256, %v6824
      %v8385 = vadd.f32 %v8257, %v6825
      %v8386 = vadd.f32 %v8258, %v6826
      %v8387 = vadd.f32 %v8259, %v6827
      %v8388 = vadd.f32 %v8260, %v6828
      %v8389 = vadd.f32 %v8261, %v6829
      %v8390 = vpack.c.bf16 %v8264, %v8262
      %v8391 = vpack.c.bf16 %v8265, %v8263
      %v8392 = vpack.c.bf16 %v8268, %v8266
      %v8393 = vpack.c.bf16 %v8269, %v8267
      %v8394 = vpack.c.bf16 %v8272, %v8270
      %v8395 = vpack.c.bf16 %v8273, %v8271
      %v8396 = vpack.c.bf16 %v8276, %v8274
      %v8397 = vpack.c.bf16 %v8277, %v8275
      %v8398 = vpack.c.bf16 %v8280, %v8278
      %v8399 = vpack.c.bf16 %v8281, %v8279
      %v8400 = vpack.c.bf16 %v8284, %v8282
      %v8401 = vpack.c.bf16 %v8285, %v8283
      %v8402 = vpack.c.bf16 %v8288, %v8286
      %v8403 = vpack.c.bf16 %v8289, %v8287
      %v8404 = vpack.c.bf16 %v8292, %v8290
      %v8405 = vpack.c.bf16 %v8293, %v8291
      %v8406 = vpack.c.bf16 %v8296, %v8294
      %v8407 = vpack.c.bf16 %v8297, %v8295
      %v8408 = vpack.c.bf16 %v8300, %v8298
      %v8409 = vpack.c.bf16 %v8301, %v8299
      %v8410 = vpack.c.bf16 %v8304, %v8302
      %v8411 = vpack.c.bf16 %v8305, %v8303
      %v8412 = vpack.c.bf16 %v8308, %v8306
      %v8413 = vpack.c.bf16 %v8309, %v8307
      %v8414 = vpack.c.bf16 %v8312, %v8310
      %v8415 = vpack.c.bf16 %v8313, %v8311
      %v8416 = vpack.c.bf16 %v8316, %v8314
      %v8417 = vpack.c.bf16 %v8317, %v8315
      %v8418 = vpack.c.bf16 %v8320, %v8318
      %v8419 = vpack.c.bf16 %v8321, %v8319
      %v8420 = vpack.c.bf16 %v8324, %v8322
      %v8421 = vpack.c.bf16 %v8325, %v8323
      %v8422 = vpack.c.bf16 %v8328, %v8326
      %v8423 = vpack.c.bf16 %v8329, %v8327
      %v8424 = vpack.c.bf16 %v8332, %v8330
      %v8425 = vpack.c.bf16 %v8333, %v8331
      %v8426 = vpack.c.bf16 %v8336, %v8334
      %v8427 = vpack.c.bf16 %v8337, %v8335
      %v8428 = vpack.c.bf16 %v8340, %v8338
      %v8429 = vpack.c.bf16 %v8341, %v8339
      %v8430 = vpack.c.bf16 %v8344, %v8342
      %v8431 = vpack.c.bf16 %v8345, %v8343
      %v8432 = vpack.c.bf16 %v8348, %v8346
      %v8433 = vpack.c.bf16 %v8349, %v8347
      %v8434 = vpack.c.bf16 %v8352, %v8350
      %v8435 = vpack.c.bf16 %v8353, %v8351
      %v8436 = vpack.c.bf16 %v8356, %v8354
      %v8437 = vpack.c.bf16 %v8357, %v8355
      %v8438 = vpack.c.bf16 %v8360, %v8358
      %v8439 = vpack.c.bf16 %v8361, %v8359
      %v8440 = vpack.c.bf16 %v8364, %v8362
      %v8441 = vpack.c.bf16 %v8365, %v8363
      %v8442 = vpack.c.bf16 %v8368, %v8366
      %v8443 = vpack.c.bf16 %v8369, %v8367
      %v8444 = vpack.c.bf16 %v8372, %v8370
      %v8445 = vpack.c.bf16 %v8373, %v8371
      %v8446 = vpack.c.bf16 %v8376, %v8374
      %v8447 = vpack.c.bf16 %v8377, %v8375
      %v8448 = vpack.c.bf16 %v8380, %v8378
      %v8449 = vpack.c.bf16 %v8381, %v8379
      %v8450 = vpack.c.bf16 %v8384, %v8382
      %v8451 = vpack.c.bf16 %v8385, %v8383
      %v8452 = vpack.c.bf16 %v8388, %v8386
      %v8453 = vpack.c.bf16 %v8389, %v8387
      %v8454 = vld [vmem:[%s5] sm:$0xf]
      %v8455 = vld [vmem:[%s5 + $0x4] sm:$0xf]
      %v8456 = vld [vmem:[%s5 + $0x8] sm:$0xf]
      %v8457 = vld [vmem:[%s5 + $0xc] sm:$0xf]
      %v8458 = vld [vmem:[%s5 + $0x10] sm:$0xf]
      %v8459 = vld [vmem:[%s5 + $0x14] sm:$0xf]
      %v8460 = vld [vmem:[%s5 + $0x18] sm:$0xf]
      %v8461 = vld [vmem:[%s5 + $0x1c] sm:$0xf]
      %v8462 = vld [vmem:[%s5 + $0x20] sm:$0xf]
      %v8463 = vld [vmem:[%s5 + $0x24] sm:$0xf]
      %v8464 = vld [vmem:[%s5 + $0x28] sm:$0xf]
      %v8465 = vld [vmem:[%s5 + $0x2c] sm:$0xf]
      %v8466 = vld [vmem:[%s5 + $0x30] sm:$0xf]
      %v8467 = vld [vmem:[%s5 + $0x34] sm:$0xf]
      %v8468 = vld [vmem:[%s5 + $0x38] sm:$0xf]
      %v8469 = vld [vmem:[%s5 + $0x3c] sm:$0xf]
      %v8470 = vld [vmem:[%s5 + $0x40] sm:$0xf]
      %v8471 = vld [vmem:[%s5 + $0x44] sm:$0xf]
      %v8472 = vld [vmem:[%s5 + $0x48] sm:$0xf]
      %v8473 = vld [vmem:[%s5 + $0x4c] sm:$0xf]
      %v8474 = vld [vmem:[%s5 + $0x50] sm:$0xf]
      %v8475 = vld [vmem:[%s5 + $0x54] sm:$0xf]
      %v8476 = vld [vmem:[%s5 + $0x58] sm:$0xf]
      %v8477 = vld [vmem:[%s5 + $0x5c] sm:$0xf]
      %v8478 = vld [vmem:[%s5 + $0x60] sm:$0xf]
      %v8479 = vld [vmem:[%s5 + $0x64] sm:$0xf]
      %v8480 = vld [vmem:[%s5 + $0x68] sm:$0xf]
      %v8481 = vld [vmem:[%s5 + $0x6c] sm:$0xf]
      %v8482 = vld [vmem:[%s5 + $0x70] sm:$0xf]
      %v8483 = vld [vmem:[%s5 + $0x74] sm:$0xf]
      %v8484 = vld [vmem:[%s5 + $0x78] sm:$0xf]
      %v8485 = vld [vmem:[%s5 + $0x7c] sm:$0xf]
      %v8486 = vld [vmem:[%s6] sm:$0x1]
      %v8488 = vlaneseq
      %v8489 = vshrl.u32 %v8488, 7
      %v8490 = vsub.s32 0, %v8489
      %v8491 = vrot.slane %v8486, %v8490
      %v8525 = vunpack.c.l.b16 %v8454
      %v8526 = vunpack.c.l.b16 %v8455
      %v8527 = vunpack.c.l.b16 %v8456
      %v8528 = vunpack.c.l.b16 %v8457
      %v8529 = vunpack.c.l.b16 %v8458
      %v8530 = vunpack.c.l.b16 %v8459
      %v8531 = vunpack.c.l.b16 %v8460
      %v8532 = vunpack.c.l.b16 %v8461
      %v8533 = vunpack.c.l.b16 %v8462
      %v8534 = vunpack.c.l.b16 %v8463
      %v8535 = vunpack.c.l.b16 %v8464
      %v8536 = vunpack.c.l.b16 %v8465
      %v8537 = vunpack.c.l.b16 %v8466
      %v8538 = vunpack.c.l.b16 %v8467
      %v8539 = vunpack.c.l.b16 %v8468
      %v8540 = vunpack.c.l.b16 %v8469
      %v8541 = vunpack.c.l.b16 %v8470
      %v8542 = vunpack.c.l.b16 %v8471
      %v8543 = vunpack.c.l.b16 %v8472
      %v8544 = vunpack.c.l.b16 %v8473
      %v8545 = vunpack.c.l.b16 %v8474
      %v8546 = vunpack.c.l.b16 %v8475
      %v8547 = vunpack.c.l.b16 %v8476
      %v8548 = vunpack.c.l.b16 %v8477
      %v8549 = vunpack.c.l.b16 %v8478
      %v8550 = vunpack.c.l.b16 %v8479
      %v8551 = vunpack.c.l.b16 %v8480
      %v8552 = vunpack.c.l.b16 %v8481
      %v8553 = vunpack.c.l.b16 %v8482
      %v8554 = vunpack.c.l.b16 %v8483
      %v8555 = vunpack.c.l.b16 %v8484
      %v8556 = vunpack.c.l.b16 %v8485
      %v8557 = vpack.c.b16 %v8526, %v8525
      %v8558 = vpack.c.b16 %v8528, %v8527
      %v8559 = vpack.c.b16 %v8530, %v8529
      %v8560 = vpack.c.b16 %v8532, %v8531
      %v8561 = vpack.c.b16 %v8534, %v8533
      %v8562 = vpack.c.b16 %v8536, %v8535
      %v8563 = vpack.c.b16 %v8538, %v8537
      %v8564 = vpack.c.b16 %v8540, %v8539
      %v8565 = vpack.c.b16 %v8542, %v8541
      %v8566 = vpack.c.b16 %v8544, %v8543
      %v8567 = vpack.c.b16 %v8546, %v8545
      %v8568 = vpack.c.b16 %v8548, %v8547
      %v8569 = vpack.c.b16 %v8550, %v8549
      %v8570 = vpack.c.b16 %v8552, %v8551
      %v8571 = vpack.c.b16 %v8554, %v8553
      %v8572 = vpack.c.b16 %v8556, %v8555
      %8589 = vmatprep.subr.bf16.mxu0 0
      %8590 = vmatpush1.bf16.msra.mxu0 %v8557
      %8591 = vmatprep.subr.bf16.mxu0 0
      %8592 = vmatpush1.bf16.msra.mxu0 %v8558
      %8593 = vmatprep.subr.bf16.mxu0 0
      %8594 = vmatpush1.bf16.msra.mxu0 %v8559
      %8595 = vmatprep.subr.bf16.mxu0 0
      %8596 = vmatpush1.bf16.msra.mxu0 %v8560
      %8597 = vmatprep.subr.bf16.mxu0 0
      %8598 = vmatpush1.bf16.msra.mxu0 %v8561
      %8599 = vmatprep.subr.bf16.mxu0 0
      %8600 = vmatpush1.bf16.msra.mxu0 %v8562
      %8601 = vmatprep.subr.bf16.mxu0 0
      %8602 = vmatpush1.bf16.msra.mxu0 %v8563
      %8603 = vmatprep.subr.bf16.mxu0 0
      %8604 = vmatpush1.bf16.msra.mxu0 %v8564
      %8605 = vmatprep.subr.bf16.mxu0 0
      %8606 = vmatpush1.bf16.msra.mxu0 %v8565
      %8607 = vmatprep.subr.bf16.mxu0 0
      %8608 = vmatpush1.bf16.msra.mxu0 %v8566
      %8609 = vmatprep.subr.bf16.mxu0 0
      %8610 = vmatpush1.bf16.msra.mxu0 %v8567
      %8611 = vmatprep.subr.bf16.mxu0 0
      %8612 = vmatpush1.bf16.msra.mxu0 %v8568
      %8613 = vmatprep.subr.bf16.mxu0 0
      %8614 = vmatpush1.bf16.msra.mxu0 %v8569
      %8615 = vmatprep.subr.bf16.mxu0 0
      %8616 = vmatpush1.bf16.msra.mxu0 %v8570
      %8617 = vmatprep.subr.bf16.mxu0 0
      %8618 = vmatpush1.bf16.msra.mxu0 %v8571
      %8619 = vmatprep.subr.bf16.mxu0 0
      %8620 = vmatpush1.bf16.msra.mxu0 %v8572
      %8621 = vmatprep.mubr.bf16.mxu0 %v8391
      %8622 = vmatmul.mubr.bf16.gmra.mrb[0].mxu0 %v8390
      %v8623 = vpop.f32.mrb[0].mxu0
      %v8624 = vadd.f32 %v8491, %v8623
      %v8625 = vpop.f32.mrb[0].mxu0
      %v8626 = vpop.f32.mrb[0].mxu0
      %v8627 = vadd.f32 %v8491, %v8626
      %v8628 = vpop.f32.mrb[0].mxu0
      %8629 = vmatprep.mubr.bf16.mxu0 %v8393
      %8630 = vmatmul.mubr.bf16.gmra.mrb[0].mxu0 %v8392
      %v8631 = vpop.f32.mrb[0].mxu0
      %v8632 = vadd.f32 %v8491, %v8631
      %v8633 = vpop.f32.mrb[0].mxu0
      %v8634 = vpop.f32.mrb[0].mxu0
      %v8635 = vadd.f32 %v8491, %v8634
      %v8636 = vpop.f32.mrb[0].mxu0
      %8637 = vmatprep.mubr.bf16.mxu0 %v8395
      %8638 = vmatmul.mubr.bf16.gmra.mrb[0].mxu0 %v8394
      %v8639 = vpop.f32.mrb[0].mxu0
      %v8640 = vadd.f32 %v8491, %v8639
      %v8641 = vpop.f32.mrb[0].mxu0
      %v8642 = vpop.f32.mrb[0].mxu0
      %v8643 = vadd.f32 %v8491, %v8642
      %v8644 = vpop.f32.mrb[0].mxu0
      %8645 = vmatprep.mubr.bf16.mxu0 %v8397
      %8646 = vmatmul.mubr.bf16.gmra.mrb[0].mxu0 %v8396
      %v8647 = vpop.f32.mrb[0].mxu0
      %v8648 = vadd.f32 %v8491, %v8647
      %v8649 = vpop.f32.mrb[0].mxu0
      %v8650 = vpop.f32.mrb[0].mxu0
      %v8651 = vadd.f32 %v8491, %v8650
      %v8652 = vpop.f32.mrb[0].mxu0
      %8653 = vmatprep.mubr.bf16.mxu0 %v8399
      %8654 = vmatmul.mubr.bf16.gmra.mrb[0].mxu0 %v8398
      %v8655 = vpop.f32.mrb[0].mxu0
      %v8656 = vadd.f32 %v8491, %v8655
      %v8657 = vpop.f32.mrb[0].mxu0
      %v8658 = vpop.f32.mrb[0].mxu0
      %v8659 = vadd.f32 %v8491, %v8658
      %v8660 = vpop.f32.mrb[0].mxu0
      %8661 = vmatprep.mubr.bf16.mxu0 %v8401
      %8662 = vmatmul.mubr.bf16.gmra.mrb[0].mxu0 %v8400
      %v8663 = vpop.f32.mrb[0].mxu0
      %v8664 = vadd.f32 %v8491, %v8663
      %v8665 = vpop.f32.mrb[0].mxu0
      %v8666 = vpop.f32.mrb[0].mxu0
      %v8667 = vadd.f32 %v8491, %v8666
      %v8668 = vpop.f32.mrb[0].mxu0
      %8669 = vmatprep.mubr.bf16.mxu0 %v8403
      %8670 = vmatmul.mubr.bf16.gmra.mrb[0].mxu0 %v8402
      %v8671 = vpop.f32.mrb[0].mxu0
      %v8672 = vadd.f32 %v8491, %v8671
      %v8673 = vpop.f32.mrb[0].mxu0
      %v8674 = vpop.f32.mrb[0].mxu0
      %v8675 = vadd.f32 %v8491, %v8674
      %v8676 = vpop.f32.mrb[0].mxu0
      %8677 = vmatprep.mubr.bf16.mxu0 %v8405
      %8678 = vmatmul.mubr.bf16.gmra.mrb[0].mxu0 %v8404
      %v8679 = vpop.f32.mrb[0].mxu0
      %v8680 = vadd.f32 %v8491, %v8679
      %v8681 = vpop.f32.mrb[0].mxu0
      %v8682 = vpop.f32.mrb[0].mxu0
      %v8683 = vadd.f32 %v8491, %v8682
      %v8684 = vpop.f32.mrb[0].mxu0
      %8685 = vmatprep.mubr.bf16.mxu0 %v8407
      %8686 = vmatmul.mubr.bf16.gmra.mrb[0].mxu0 %v8406
      %v8687 = vpop.f32.mrb[0].mxu0
      %v8688 = vadd.f32 %v8491, %v8687
      %v8689 = vpop.f32.mrb[0].mxu0
      %v8690 = vpop.f32.mrb[0].mxu0
      %v8691 = vadd.f32 %v8491, %v8690
      %v8692 = vpop.f32.mrb[0].mxu0
      %8693 = vmatprep.mubr.bf16.mxu0 %v8409
      %8694 = vmatmul.mubr.bf16.gmra.mrb[0].mxu0 %v8408
      %v8695 = vpop.f32.mrb[0].mxu0
      %v8696 = vadd.f32 %v8491, %v8695
      %v8697 = vpop.f32.mrb[0].mxu0
      %v8698 = vpop.f32.mrb[0].mxu0
      %v8699 = vadd.f32 %v8491, %v8698
      %v8700 = vpop.f32.mrb[0].mxu0
      %8701 = vmatprep.mubr.bf16.mxu0 %v8411
      %8702 = vmatmul.mubr.bf16.gmra.mrb[0].mxu0 %v8410
      %v8703 = vpop.f32.mrb[0].mxu0
      %v8704 = vadd.f32 %v8491, %v8703
      %v8705 = vpop.f32.mrb[0].mxu0
      %v8706 = vpop.f32.mrb[0].mxu0
      %v8707 = vadd.f32 %v8491, %v8706
      %v8708 = vpop.f32.mrb[0].mxu0
      %8709 = vmatprep.mubr.bf16.mxu0 %v8413
      %8710 = vmatmul.mubr.bf16.gmra.mrb[0].mxu0 %v8412
      %v8711 = vpop.f32.mrb[0].mxu0
      %v8712 = vadd.f32 %v8491, %v8711
      %v8713 = vpop.f32.mrb[0].mxu0
      %v8714 = vpop.f32.mrb[0].mxu0
      %v8715 = vadd.f32 %v8491, %v8714
      %v8716 = vpop.f32.mrb[0].mxu0
      %8717 = vmatprep.mubr.bf16.mxu0 %v8415
      %8718 = vmatmul.mubr.bf16.gmra.mrb[0].mxu0 %v8414
      %v8719 = vpop.f32.mrb[0].mxu0
      %v8720 = vadd.f32 %v8491, %v8719
      %v8721 = vpop.f32.mrb[0].mxu0
      %v8722 = vpop.f32.mrb[0].mxu0
      %v8723 = vadd.f32 %v8491, %v8722
      %v8724 = vpop.f32.mrb[0].mxu0
      %8725 = vmatprep.mubr.bf16.mxu0 %v8417
      %8726 = vmatmul.mubr.bf16.gmra.mrb[0].mxu0 %v8416
      %v8727 = vpop.f32.mrb[0].mxu0
      %v8728 = vadd.f32 %v8491, %v8727
      %v8729 = vpop.f32.mrb[0].mxu0
      %v8730 = vpop.f32.mrb[0].mxu0
      %v8731 = vadd.f32 %v8491, %v8730
      %v8732 = vpop.f32.mrb[0].mxu0
      %8733 = vmatprep.mubr.bf16.mxu0 %v8419
      %8734 = vmatmul.mubr.bf16.gmra.mrb[0].mxu0 %v8418
      %v8735 = vpop.f32.mrb[0].mxu0
      %v8736 = vadd.f32 %v8491, %v8735
      %v8737 = vpop.f32.mrb[0].mxu0
      %v8738 = vpop.f32.mrb[0].mxu0
      %v8739 = vadd.f32 %v8491, %v8738
      %v8740 = vpop.f32.mrb[0].mxu0
      %8741 = vmatprep.mubr.bf16.mxu0 %v8421
      %8742 = vmatmul.mubr.bf16.gmra.mrb[0].mxu0 %v8420
      %v8743 = vpop.f32.mrb[0].mxu0
      %v8744 = vadd.f32 %v8491, %v8743
      %v8745 = vpop.f32.mrb[0].mxu0
      %v8746 = vpop.f32.mrb[0].mxu0
      %v8747 = vadd.f32 %v8491, %v8746
      %v8748 = vpop.f32.mrb[0].mxu0
      %8749 = vmatprep.mubr.bf16.mxu0 %v8423
      %8750 = vmatmul.mubr.bf16.gmra.mrb[0].mxu0 %v8422
      %v8751 = vpop.f32.mrb[0].mxu0
      %v8752 = vadd.f32 %v8491, %v8751
      %v8753 = vpop.f32.mrb[0].mxu0
      %v8754 = vpop.f32.mrb[0].mxu0
      %v8755 = vadd.f32 %v8491, %v8754
      %v8756 = vpop.f32.mrb[0].mxu0
      %8757 = vmatprep.mubr.bf16.mxu0 %v8425
      %8758 = vmatmul.mubr.bf16.gmra.mrb[0].mxu0 %v8424
      %v8759 = vpop.f32.mrb[0].mxu0
      %v8760 = vadd.f32 %v8491, %v8759
      %v8761 = vpop.f32.mrb[0].mxu0
      %v8762 = vpop.f32.mrb[0].mxu0
      %v8763 = vadd.f32 %v8491, %v8762
      %v8764 = vpop.f32.mrb[0].mxu0
      %8765 = vmatprep.mubr.bf16.mxu0 %v8427
      %8766 = vmatmul.mubr.bf16.gmra.mrb[0].mxu0 %v8426
      %v8767 = vpop.f32.mrb[0].mxu0
      %v8768 = vadd.f32 %v8491, %v8767
      %v8769 = vpop.f32.mrb[0].mxu0
      %v8770 = vpop.f32.mrb[0].mxu0
      %v8771 = vadd.f32 %v8491, %v8770
      %v8772 = vpop.f32.mrb[0].mxu0
      %8773 = vmatprep.mubr.bf16.mxu0 %v8429
      %8774 = vmatmul.mubr.bf16.gmra.mrb[0].mxu0 %v8428
      %v8775 = vpop.f32.mrb[0].mxu0
      %v8776 = vadd.f32 %v8491, %v8775
      %v8777 = vpop.f32.mrb[0].mxu0
      %v8778 = vpop.f32.mrb[0].mxu0
      %v8779 = vadd.f32 %v8491, %v8778
      %v8780 = vpop.f32.mrb[0].mxu0
      %8781 = vmatprep.mubr.bf16.mxu0 %v8431
      %8782 = vmatmul.mubr.bf16.gmra.mrb[0].mxu0 %v8430
      %v8783 = vpop.f32.mrb[0].mxu0
      %v8784 = vadd.f32 %v8491, %v8783
      %v8785 = vpop.f32.mrb[0].mxu0
      %v8786 = vpop.f32.mrb[0].mxu0
      %v8787 = vadd.f32 %v8491, %v8786
      %v8788 = vpop.f32.mrb[0].mxu0
      %8789 = vmatprep.mubr.bf16.mxu0 %v8433
      %8790 = vmatmul.mubr.bf16.gmra.mrb[0].mxu0 %v8432
      %v8791 = vpop.f32.mrb[0].mxu0
      %v8792 = vadd.f32 %v8491, %v8791
      %v8793 = vpop.f32.mrb[0].mxu0
      %v8794 = vpop.f32.mrb[0].mxu0
      %v8795 = vadd.f32 %v8491, %v8794
      %v8796 = vpop.f32.mrb[0].mxu0
      %8797 = vmatprep.mubr.bf16.mxu0 %v8435
      %8798 = vmatmul.mubr.bf16.gmra.mrb[0].mxu0 %v8434
      %v8799 = vpop.f32.mrb[0].mxu0
      %v8800 = vadd.f32 %v8491, %v8799
      %v8801 = vpop.f32.mrb[0].mxu0
      %v8802 = vpop.f32.mrb[0].mxu0
      %v8803 = vadd.f32 %v8491, %v8802
      %v8804 = vpop.f32.mrb[0].mxu0
      %8805 = vmatprep.mubr.bf16.mxu0 %v8437
      %8806 = vmatmul.mubr.bf16.gmra.mrb[0].mxu0 %v8436
      %v8807 = vpop.f32.mrb[0].mxu0
      %v8808 = vadd.f32 %v8491, %v8807
      %v8809 = vpop.f32.mrb[0].mxu0
      %v8810 = vpop.f32.mrb[0].mxu0
      %v8811 = vadd.f32 %v8491, %v8810
      %v8812 = vpop.f32.mrb[0].mxu0
      %8813 = vmatprep.mubr.bf16.mxu0 %v8439
      %8814 = vmatmul.mubr.bf16.gmra.mrb[0].mxu0 %v8438
      %v8815 = vpop.f32.mrb[0].mxu0
      %v8816 = vadd.f32 %v8491, %v8815
      %v8817 = vpop.f32.mrb[0].mxu0
      %v8818 = vpop.f32.mrb[0].mxu0
      %v8819 = vadd.f32 %v8491, %v8818
      %v8820 = vpop.f32.mrb[0].mxu0
      %8821 = vmatprep.mubr.bf16.mxu0 %v8441
      %8822 = vmatmul.mubr.bf16.gmra.mrb[0].mxu0 %v8440
      %v8823 = vpop.f32.mrb[0].mxu0
      %v8824 = vadd.f32 %v8491, %v8823
      %v8825 = vpop.f32.mrb[0].mxu0
      %v8826 = vpop.f32.mrb[0].mxu0
      %v8827 = vadd.f32 %v8491, %v8826
      %v8828 = vpop.f32.mrb[0].mxu0
      %8829 = vmatprep.mubr.bf16.mxu0 %v8443
      %8830 = vmatmul.mubr.bf16.gmra.mrb[0].mxu0 %v8442
      %v8831 = vpop.f32.mrb[0].mxu0
      %v8832 = vadd.f32 %v8491, %v8831
      %v8833 = vpop.f32.mrb[0].mxu0
      %v8834 = vpop.f32.mrb[0].mxu0
      %v8835 = vadd.f32 %v8491, %v8834
      %v8836 = vpop.f32.mrb[0].mxu0
      %8837 = vmatprep.mubr.bf16.mxu0 %v8445
      %8838 = vmatmul.mubr.bf16.gmra.mrb[0].mxu0 %v8444
      %v8839 = vpop.f32.mrb[0].mxu0
      %v8840 = vadd.f32 %v8491, %v8839
      %v8841 = vpop.f32.mrb[0].mxu0
      %v8842 = vpop.f32.mrb[0].mxu0
      %v8843 = vadd.f32 %v8491, %v8842
      %v8844 = vpop.f32.mrb[0].mxu0
      %8845 = vmatprep.mubr.bf16.mxu0 %v8447
      %8846 = vmatmul.mubr.bf16.gmra.mrb[0].mxu0 %v8446
      %v8847 = vpop.f32.mrb[0].mxu0
      %v8848 = vadd.f32 %v8491, %v8847
      %v8849 = vpop.f32.mrb[0].mxu0
      %v8850 = vpop.f32.mrb[0].mxu0
      %v8851 = vadd.f32 %v8491, %v8850
      %v8852 = vpop.f32.mrb[0].mxu0
      %8853 = vmatprep.mubr.bf16.mxu0 %v8449
      %8854 = vmatmul.mubr.bf16.gmra.mrb[0].mxu0 %v8448
      %v8855 = vpop.f32.mrb[0].mxu0
      %v8856 = vadd.f32 %v8491, %v8855
      %v8857 = vpop.f32.mrb[0].mxu0
      %v8858 = vpop.f32.mrb[0].mxu0
      %v8859 = vadd.f32 %v8491, %v8858
      %v8860 = vpop.f32.mrb[0].mxu0
      %8861 = vmatprep.mubr.bf16.mxu0 %v8451
      %8862 = vmatmul.mubr.bf16.gmra.mrb[0].mxu0 %v8450
      %v8863 = vpop.f32.mrb[0].mxu0
      %v8864 = vadd.f32 %v8491, %v8863
      %v8865 = vpop.f32.mrb[0].mxu0
      %v8866 = vpop.f32.mrb[0].mxu0
      %v8867 = vadd.f32 %v8491, %v8866
      %v8868 = vpop.f32.mrb[0].mxu0
      %8869 = vmatprep.mubr.bf16.mxu0 %v8453
      %8870 = vmatmul.mubr.bf16.gmra.mrb[0].mxu0 %v8452
      %v8871 = vpop.f32.mrb[0].mxu0
      %v8872 = vadd.f32 %v8491, %v8871
      %v8873 = vpop.f32.mrb[0].mxu0
      %v8874 = vpop.f32.mrb[0].mxu0
      %v8875 = vadd.f32 %v8491, %v8874
      %v8876 = vpop.f32.mrb[0].mxu0
      %8877 = vdwg.mxu0
      %v8878 = vxor.u32 %v8624, 2147483648
      %v8879 = vxor.u32 %v8627, 2147483648
      %v8880 = vxor.u32 %v8632, 2147483648
      %v8881 = vxor.u32 %v8635, 2147483648
      %v8882 = vxor.u32 %v8640, 2147483648
      %v8883 = vxor.u32 %v8643, 2147483648
      %v8884 = vxor.u32 %v8648, 2147483648
      %v8885 = vxor.u32 %v8651, 2147483648
      %v8886 = vxor.u32 %v8656, 2147483648
      %v8887 = vxor.u32 %v8659, 2147483648
      %v8888 = vxor.u32 %v8664, 2147483648
      %v8889 = vxor.u32 %v8667, 2147483648
      %v8890 = vxor.u32 %v8672, 2147483648
      %v8891 = vxor.u32 %v8675, 2147483648
      %v8892 = vxor.u32 %v8680, 2147483648
      %v8893 = vxor.u32 %v8683, 2147483648
      %v8894 = vxor.u32 %v8688, 2147483648
      %v8895 = vxor.u32 %v8691, 2147483648
      %v8896 = vxor.u32 %v8696, 2147483648
      %v8897 = vxor.u32 %v8699, 2147483648
      %v8898 = vxor.u32 %v8704, 2147483648
      %v8899 = vxor.u32 %v8707, 2147483648
      %v8900 = vxor.u32 %v8712, 2147483648
      %v8901 = vxor.u32 %v8715, 2147483648
      %v8902 = vxor.u32 %v8720, 2147483648
      %v8903 = vxor.u32 %v8723, 2147483648
      %v8904 = vxor.u32 %v8728, 2147483648
      %v8905 = vxor.u32 %v8731, 2147483648
      %v8906 = vxor.u32 %v8736, 2147483648
      %v8907 = vxor.u32 %v8739, 2147483648
      %v8908 = vxor.u32 %v8744, 2147483648
      %v8909 = vxor.u32 %v8747, 2147483648
      %v8910 = vxor.u32 %v8752, 2147483648
      %v8911 = vxor.u32 %v8755, 2147483648
      %v8912 = vxor.u32 %v8760, 2147483648
      %v8913 = vxor.u32 %v8763, 2147483648
      %v8914 = vxor.u32 %v8768, 2147483648
      %v8915 = vxor.u32 %v8771, 2147483648
      %v8916 = vxor.u32 %v8776, 2147483648
      %v8917 = vxor.u32 %v8779, 2147483648
      %v8918 = vxor.u32 %v8784, 2147483648
      %v8919 = vxor.u32 %v8787, 2147483648
      %v8920 = vxor.u32 %v8792, 2147483648
      %v8921 = vxor.u32 %v8795, 2147483648
      %v8922 = vxor.u32 %v8800, 2147483648
      %v8923 = vxor.u32 %v8803, 2147483648
      %v8924 = vxor.u32 %v8808, 2147483648
      %v8925 = vxor.u32 %v8811, 2147483648
      %v8926 = vxor.u32 %v8816, 2147483648
      %v8927 = vxor.u32 %v8819, 2147483648
      %v8928 = vxor.u32 %v8824, 2147483648
      %v8929 = vxor.u32 %v8827, 2147483648
      %v8930 = vxor.u32 %v8832, 2147483648
      %v8931 = vxor.u32 %v8835, 2147483648
      %v8932 = vxor.u32 %v8840, 2147483648
      %v8933 = vxor.u32 %v8843, 2147483648
      %v8934 = vxor.u32 %v8848, 2147483648
      %v8935 = vxor.u32 %v8851, 2147483648
      %v8936 = vxor.u32 %v8856, 2147483648
      %v8937 = vxor.u32 %v8859, 2147483648
      %v8938 = vxor.u32 %v8864, 2147483648
      %v8939 = vxor.u32 %v8867, 2147483648
      %v8940 = vxor.u32 %v8872, 2147483648
      %v8941 = vxor.u32 %v8875, 2147483648
      %v8942 = vmul.f32 %v8878, 1.442695
      %v8943 = vpow.pop %v8942
      %v8944 = vmul.f32 %v8879, 1.442695
      %v8945 = vpow.pop %v8944
      %v8946 = vmul.f32 %v8880, 1.442695
      %v8947 = vpow.pop %v8946
      %v8948 = vmul.f32 %v8881, 1.442695
      %v8949 = vpow.pop %v8948
      %v8950 = vmul.f32 %v8882, 1.442695
      %v8951 = vpow.pop %v8950
      %v8952 = vmul.f32 %v8883, 1.442695
      %v8953 = vpow.pop %v8952
      %v8954 = vmul.f32 %v8884, 1.442695
      %v8955 = vpow.pop %v8954
      %v8956 = vmul.f32 %v8885, 1.442695
      %v8957 = vpow.pop %v8956
      %v8958 = vmul.f32 %v8886, 1.442695
      %v8959 = vpow.pop %v8958
      %v8960 = vmul.f32 %v8887, 1.442695
      %v8961 = vpow.pop %v8960
      %v8962 = vmul.f32 %v8888, 1.442695
      %v8963 = vpow.pop %v8962
      %v8964 = vmul.f32 %v8889, 1.442695
      %v8965 = vpow.pop %v8964
      %v8966 = vmul.f32 %v8890, 1.442695
      %v8967 = vpow.pop %v8966
      %v8968 = vmul.f32 %v8891, 1.442695
      %v8969 = vpow.pop %v8968
      %v8970 = vmul.f32 %v8892, 1.442695
      %v8971 = vpow.pop %v8970
      %v8972 = vmul.f32 %v8893, 1.442695
      %v8973 = vpow.pop %v8972
      %v8974 = vmul.f32 %v8894, 1.442695
      %v8975 = vpow.pop %v8974
      %v8976 = vmul.f32 %v8895, 1.442695
      %v8977 = vpow.pop %v8976
      %v8978 = vmul.f32 %v8896, 1.442695
      %v8979 = vpow.pop %v8978
      %v8980 = vmul.f32 %v8897, 1.442695
      %v8981 = vpow.pop %v8980
      %v8982 = vmul.f32 %v8898, 1.442695
      %v8983 = vpow.pop %v8982
      %v8984 = vmul.f32 %v8899, 1.442695
      %v8985 = vpow.pop %v8984
      %v8986 = vmul.f32 %v8900, 1.442695
      %v8987 = vpow.pop %v8986
      %v8988 = vmul.f32 %v8901, 1.442695
      %v8989 = vpow.pop %v8988
      %v8990 = vmul.f32 %v8902, 1.442695
      %v8991 = vpow.pop %v8990
      %v8992 = vmul.f32 %v8903, 1.442695
      %v8993 = vpow.pop %v8992
      %v8994 = vmul.f32 %v8904, 1.442695
      %v8995 = vpow.pop %v8994
      %v8996 = vmul.f32 %v8905, 1.442695
      %v8997 = vpow.pop %v8996
      %v8998 = vmul.f32 %v8906, 1.442695
      %v8999 = vpow.pop %v8998
      %v9000 = vmul.f32 %v8907, 1.442695
      %v9001 = vpow.pop %v9000
      %v9002 = vmul.f32 %v8908, 1.442695
      %v9003 = vpow.pop %v9002
      %v9004 = vmul.f32 %v8909, 1.442695
      %v9005 = vpow.pop %v9004
      %v9006 = vmul.f32 %v8910, 1.442695
      %v9007 = vpow.pop %v9006
      %v9008 = vmul.f32 %v8911, 1.442695
      %v9009 = vpow.pop %v9008
      %v9010 = vmul.f32 %v8912, 1.442695
      %v9011 = vpow.pop %v9010
      %v9012 = vmul.f32 %v8913, 1.442695
      %v9013 = vpow.pop %v9012
      %v9014 = vmul.f32 %v8914, 1.442695
      %v9015 = vpow.pop %v9014
      %v9016 = vmul.f32 %v8915, 1.442695
      %v9017 = vpow.pop %v9016
      %v9018 = vmul.f32 %v8916, 1.442695
      %v9019 = vpow.pop %v9018
      %v9020 = vmul.f32 %v8917, 1.442695
      %v9021 = vpow.pop %v9020
      %v9022 = vmul.f32 %v8918, 1.442695
      %v9023 = vpow.pop %v9022
      %v9024 = vmul.f32 %v8919, 1.442695
      %v9025 = vpow.pop %v9024
      %v9026 = vmul.f32 %v8920, 1.442695
      %v9027 = vpow.pop %v9026
      %v9028 = vmul.f32 %v8921, 1.442695
      %v9029 = vpow.pop %v9028
      %v9030 = vmul.f32 %v8922, 1.442695
      %v9031 = vpow.pop %v9030
      %v9032 = vmul.f32 %v8923, 1.442695
      %v9033 = vpow.pop %v9032
      %v9034 = vmul.f32 %v8924, 1.442695
      %v9035 = vpow.pop %v9034
      %v9036 = vmul.f32 %v8925, 1.442695
      %v9037 = vpow.pop %v9036
      %v9038 = vmul.f32 %v8926, 1.442695
      %v9039 = vpow.pop %v9038
      %v9040 = vmul.f32 %v8927, 1.442695
      %v9041 = vpow.pop %v9040
      %v9042 = vmul.f32 %v8928, 1.442695
      %v9043 = vpow.pop %v9042
      %v9044 = vmul.f32 %v8929, 1.442695
      %v9045 = vpow.pop %v9044
      %v9046 = vmul.f32 %v8930, 1.442695
      %v9047 = vpow.pop %v9046
      %v9048 = vmul.f32 %v8931, 1.442695
      %v9049 = vpow.pop %v9048
      %v9050 = vmul.f32 %v8932, 1.442695
      %v9051 = vpow.pop %v9050
      %v9052 = vmul.f32 %v8933, 1.442695
      %v9053 = vpow.pop %v9052
      %v9054 = vmul.f32 %v8934, 1.442695
      %v9055 = vpow.pop %v9054
      %v9056 = vmul.f32 %v8935, 1.442695
      %v9057 = vpow.pop %v9056
      %v9058 = vmul.f32 %v8936, 1.442695
      %v9059 = vpow.pop %v9058
      %v9060 = vmul.f32 %v8937, 1.442695
      %v9061 = vpow.pop %v9060
      %v9062 = vmul.f32 %v8938, 1.442695
      %v9063 = vpow.pop %v9062
      %v9064 = vmul.f32 %v8939, 1.442695
      %v9065 = vpow.pop %v9064
      %v9066 = vmul.f32 %v8940, 1.442695
      %v9067 = vpow.pop %v9066
      %v9068 = vmul.f32 %v8941, 1.442695
      %v9069 = vpow.pop %v9068
      %v9070 = vadd.f32 %v8943, 1.0
      %v9071 = vadd.f32 %v8945, 1.0
      %v9072 = vadd.f32 %v8947, 1.0
      %v9073 = vadd.f32 %v8949, 1.0
      %v9074 = vadd.f32 %v8951, 1.0
      %v9075 = vadd.f32 %v8953, 1.0
      %v9076 = vadd.f32 %v8955, 1.0
      %v9077 = vadd.f32 %v8957, 1.0
      %v9078 = vadd.f32 %v8959, 1.0
      %v9079 = vadd.f32 %v8961, 1.0
      %v9080 = vadd.f32 %v8963, 1.0
      %v9081 = vadd.f32 %v8965, 1.0
      %v9082 = vadd.f32 %v8967, 1.0
      %v9083 = vadd.f32 %v8969, 1.0
      %v9084 = vadd.f32 %v8971, 1.0
      %v9085 = vadd.f32 %v8973, 1.0
      %v9086 = vadd.f32 %v8975, 1.0
      %v9087 = vadd.f32 %v8977, 1.0
      %v9088 = vadd.f32 %v8979, 1.0
      %v9089 = vadd.f32 %v8981, 1.0
      %v9090 = vadd.f32 %v8983, 1.0
      %v9091 = vadd.f32 %v8985, 1.0
      %v9092 = vadd.f32 %v8987, 1.0
      %v9093 = vadd.f32 %v8989, 1.0
      %v9094 = vadd.f32 %v8991, 1.0
      %v9095 = vadd.f32 %v8993, 1.0
      %v9096 = vadd.f32 %v8995, 1.0
      %v9097 = vadd.f32 %v8997, 1.0
      %v9098 = vadd.f32 %v8999, 1.0
      %v9099 = vadd.f32 %v9001, 1.0
      %v9100 = vadd.f32 %v9003, 1.0
      %v9101 = vadd.f32 %v9005, 1.0
      %v9102 = vadd.f32 %v9007, 1.0
      %v9103 = vadd.f32 %v9009, 1.0
      %v9104 = vadd.f32 %v9011, 1.0
      %v9105 = vadd.f32 %v9013, 1.0
      %v9106 = vadd.f32 %v9015, 1.0
      %v9107 = vadd.f32 %v9017, 1.0
      %v9108 = vadd.f32 %v9019, 1.0
      %v9109 = vadd.f32 %v9021, 1.0
      %v9110 = vadd.f32 %v9023, 1.0
      %v9111 = vadd.f32 %v9025, 1.0
      %v9112 = vadd.f32 %v9027, 1.0
      %v9113 = vadd.f32 %v9029, 1.0
      %v9114 = vadd.f32 %v9031, 1.0
      %v9115 = vadd.f32 %v9033, 1.0
      %v9116 = vadd.f32 %v9035, 1.0
      %v9117 = vadd.f32 %v9037, 1.0
      %v9118 = vadd.f32 %v9039, 1.0
      %v9119 = vadd.f32 %v9041, 1.0
      %v9120 = vadd.f32 %v9043, 1.0
      %v9121 = vadd.f32 %v9045, 1.0
      %v9122 = vadd.f32 %v9047, 1.0
      %v9123 = vadd.f32 %v9049, 1.0
      %v9124 = vadd.f32 %v9051, 1.0
      %v9125 = vadd.f32 %v9053, 1.0
      %v9126 = vadd.f32 %v9055, 1.0
      %v9127 = vadd.f32 %v9057, 1.0
      %v9128 = vadd.f32 %v9059, 1.0
      %v9129 = vadd.f32 %v9061, 1.0
      %v9130 = vadd.f32 %v9063, 1.0
      %v9131 = vadd.f32 %v9065, 1.0
      %v9132 = vadd.f32 %v9067, 1.0
      %v9133 = vadd.f32 %v9069, 1.0
      %v9134 = vrcp.pop %v9070
      %v9135 = vmul.f32 1.0, %v9134
      %v9136 = vrcp.pop %v9071
      %v9137 = vmul.f32 1.0, %v9136
      %v9138 = vrcp.pop %v9072
      %v9139 = vmul.f32 1.0, %v9138
      %v9140 = vrcp.pop %v9073
      %v9141 = vmul.f32 1.0, %v9140
      %v9142 = vrcp.pop %v9074
      %v9143 = vmul.f32 1.0, %v9142
      %v9144 = vrcp.pop %v9075
      %v9145 = vmul.f32 1.0, %v9144
      %v9146 = vrcp.pop %v9076
      %v9147 = vmul.f32 1.0, %v9146
      %v9148 = vrcp.pop %v9077
      %v9149 = vmul.f32 1.0, %v9148
      %v9150 = vrcp.pop %v9078
      %v9151 = vmul.f32 1.0, %v9150
      %v9152 = vrcp.pop %v9079
      %v9153 = vmul.f32 1.0, %v9152
      %v9154 = vrcp.pop %v9080
      %v9155 = vmul.f32 1.0, %v9154
      %v9156 = vrcp.pop %v9081
      %v9157 = vmul.f32 1.0, %v9156
      %v9158 = vrcp.pop %v9082
      %v9159 = vmul.f32 1.0, %v9158
      %v9160 = vrcp.pop %v9083
      %v9161 = vmul.f32 1.0, %v9160
      %v9162 = vrcp.pop %v9084
      %v9163 = vmul.f32 1.0, %v9162
      %v9164 = vrcp.pop %v9085
      %v9165 = vmul.f32 1.0, %v9164
      %v9166 = vrcp.pop %v9086
      %v9167 = vmul.f32 1.0, %v9166
      %v9168 = vrcp.pop %v9087
      %v9169 = vmul.f32 1.0, %v9168
      %v9170 = vrcp.pop %v9088
      %v9171 = vmul.f32 1.0, %v9170
      %v9172 = vrcp.pop %v9089
      %v9173 = vmul.f32 1.0, %v9172
      %v9174 = vrcp.pop %v9090
      %v9175 = vmul.f32 1.0, %v9174
      %v9176 = vrcp.pop %v9091
      %v9177 = vmul.f32 1.0, %v9176
      %v9178 = vrcp.pop %v9092
      %v9179 = vmul.f32 1.0, %v9178
      %v9180 = vrcp.pop %v9093
      %v9181 = vmul.f32 1.0, %v9180
      %v9182 = vrcp.pop %v9094
      %v9183 = vmul.f32 1.0, %v9182
      %v9184 = vrcp.pop %v9095
      %v9185 = vmul.f32 1.0, %v9184
      %v9186 = vrcp.pop %v9096
      %v9187 = vmul.f32 1.0, %v9186
      %v9188 = vrcp.pop %v9097
      %v9189 = vmul.f32 1.0, %v9188
      %v9190 = vrcp.pop %v9098
      %v9191 = vmul.f32 1.0, %v9190
      %v9192 = vrcp.pop %v9099
      %v9193 = vmul.f32 1.0, %v9192
      %v9194 = vrcp.pop %v9100
      %v9195 = vmul.f32 1.0, %v9194
      %v9196 = vrcp.pop %v9101
      %v9197 = vmul.f32 1.0, %v9196
      %v9198 = vrcp.pop %v9102
      %v9199 = vmul.f32 1.0, %v9198
      %v9200 = vrcp.pop %v9103
      %v9201 = vmul.f32 1.0, %v9200
      %v9202 = vrcp.pop %v9104
      %v9203 = vmul.f32 1.0, %v9202
      %v9204 = vrcp.pop %v9105
      %v9205 = vmul.f32 1.0, %v9204
      %v9206 = vrcp.pop %v9106
      %v9207 = vmul.f32 1.0, %v9206
      %v9208 = vrcp.pop %v9107
      %v9209 = vmul.f32 1.0, %v9208
      %v9210 = vrcp.pop %v9108
      %v9211 = vmul.f32 1.0, %v9210
      %v9212 = vrcp.pop %v9109
      %v9213 = vmul.f32 1.0, %v9212
      %v9214 = vrcp.pop %v9110
      %v9215 = vmul.f32 1.0, %v9214
      %v9216 = vrcp.pop %v9111
      %v9217 = vmul.f32 1.0, %v9216
      %v9218 = vrcp.pop %v9112
      %v9219 = vmul.f32 1.0, %v9218
      %v9220 = vrcp.pop %v9113
      %v9221 = vmul.f32 1.0, %v9220
      %v9222 = vrcp.pop %v9114
      %v9223 = vmul.f32 1.0, %v9222
      %v9224 = vrcp.pop %v9115
      %v9225 = vmul.f32 1.0, %v9224
      %v9226 = vrcp.pop %v9116
      %v9227 = vmul.f32 1.0, %v9226
      %v9228 = vrcp.pop %v9117
      %v9229 = vmul.f32 1.0, %v9228
      %v9230 = vrcp.pop %v9118
      %v9231 = vmul.f32 1.0, %v9230
      %v9232 = vrcp.pop %v9119
      %v9233 = vmul.f32 1.0, %v9232
      %v9234 = vrcp.pop %v9120
      %v9235 = vmul.f32 1.0, %v9234
      %v9236 = vrcp.pop %v9121
      %v9237 = vmul.f32 1.0, %v9236
      %v9238 = vrcp.pop %v9122
      %v9239 = vmul.f32 1.0, %v9238
      %v9240 = vrcp.pop %v9123
      %v9241 = vmul.f32 1.0, %v9240
      %v9242 = vrcp.pop %v9124
      %v9243 = vmul.f32 1.0, %v9242
      %v9244 = vrcp.pop %v9125
      %v9245 = vmul.f32 1.0, %v9244
      %v9246 = vrcp.pop %v9126
      %v9247 = vmul.f32 1.0, %v9246
      %v9248 = vrcp.pop %v9127
      %v9249 = vmul.f32 1.0, %v9248
      %v9250 = vrcp.pop %v9128
      %v9251 = vmul.f32 1.0, %v9250
      %v9252 = vrcp.pop %v9129
      %v9253 = vmul.f32 1.0, %v9252
      %v9254 = vrcp.pop %v9130
      %v9255 = vmul.f32 1.0, %v9254
      %v9256 = vrcp.pop %v9131
      %v9257 = vmul.f32 1.0, %v9256
      %v9258 = vrcp.pop %v9132
      %v9259 = vmul.f32 1.0, %v9258
      %v9260 = vrcp.pop %v9133
      %v9261 = vmul.f32 1.0, %v9260
      %9262 = vst [vmem:[%s280] sm:$0xff] %v9135
      %9263 = vst [vmem:[%s280 + $0x8] sm:$0xff] %v9137
      %9264 = vst [vmem:[%s280 + $0x10] sm:$0xff] %v9139
      %9265 = vst [vmem:[%s280 + $0x18] sm:$0xff] %v9141
      %9266 = vst [vmem:[%s280 + $0x20] sm:$0xff] %v9143
      %9267 = vst [vmem:[%s280 + $0x28] sm:$0xff] %v9145
      %9268 = vst [vmem:[%s280 + $0x30] sm:$0xff] %v9147
      %9269 = vst [vmem:[%s280 + $0x38] sm:$0xff] %v9149
      %9270 = vst [vmem:[%s280 + $0x40] sm:$0xff] %v9151
      %9271 = vst [vmem:[%s280 + $0x48] sm:$0xff] %v9153
      %9272 = vst [vmem:[%s280 + $0x50] sm:$0xff] %v9155
      %9273 = vst [vmem:[%s280 + $0x58] sm:$0xff] %v9157
      %9274 = vst [vmem:[%s280 + $0x60] sm:$0xff] %v9159
      %9275 = vst [vmem:[%s280 + $0x68] sm:$0xff] %v9161
      %9276 = vst [vmem:[%s280 + $0x70] sm:$0xff] %v9163
      %9277 = vst [vmem:[%s280 + $0x78] sm:$0xff] %v9165
      %9278 = vst [vmem:[%s280 + $0x80] sm:$0xff] %v9167
      %9279 = vst [vmem:[%s280 + $0x88] sm:$0xff] %v9169
      %9280 = vst [vmem:[%s280 + $0x90] sm:$0xff] %v9171
      %9281 = vst [vmem:[%s280 + $0x98] sm:$0xff] %v9173
      %9282 = vst [vmem:[%s280 + $0xa0] sm:$0xff] %v9175
      %9283 = vst [vmem:[%s280 + $0xa8] sm:$0xff] %v9177
      %9284 = vst [vmem:[%s280 + $0xb0] sm:$0xff] %v9179
      %9285 = vst [vmem:[%s280 + $0xb8] sm:$0xff] %v9181
      %9286 = vst [vmem:[%s280 + $0xc0] sm:$0xff] %v9183
      %9287 = vst [vmem:[%s280 + $0xc8] sm:$0xff] %v9185
      %9288 = vst [vmem:[%s280 + $0xd0] sm:$0xff] %v9187
      %9289 = vst [vmem:[%s280 + $0xd8] sm:$0xff] %v9189
      %9290 = vst [vmem:[%s280 + $0xe0] sm:$0xff] %v9191
      %9291 = vst [vmem:[%s280 + $0xe8] sm:$0xff] %v9193
      %9292 = vst [vmem:[%s280 + $0xf0] sm:$0xff] %v9195
      %9293 = vst [vmem:[%s280 + $0xf8] sm:$0xff] %v9197
      %9294 = vst [vmem:[%s280 + $0x100] sm:$0xff] %v9199
      %9295 = vst [vmem:[%s280 + $0x108] sm:$0xff] %v9201
      %9296 = vst [vmem:[%s280 + $0x110] sm:$0xff] %v9203
      %9297 = vst [vmem:[%s280 + $0x118] sm:$0xff] %v9205
      %9298 = vst [vmem:[%s280 + $0x120] sm:$0xff] %v9207
      %9299 = vst [vmem:[%s280 + $0x128] sm:$0xff] %v9209
      %9300 = vst [vmem:[%s280 + $0x130] sm:$0xff] %v9211
      %9301 = vst [vmem:[%s280 + $0x138] sm:$0xff] %v9213
      %9302 = vst [vmem:[%s280 + $0x140] sm:$0xff] %v9215
      %9303 = vst [vmem:[%s280 + $0x148] sm:$0xff] %v9217
      %9304 = vst [vmem:[%s280 + $0x150] sm:$0xff] %v9219
      %9305 = vst [vmem:[%s280 + $0x158] sm:$0xff] %v9221
      %9306 = vst [vmem:[%s280 + $0x160] sm:$0xff] %v9223
      %9307 = vst [vmem:[%s280 + $0x168] sm:$0xff] %v9225
      %9308 = vst [vmem:[%s280 + $0x170] sm:$0xff] %v9227
      %9309 = vst [vmem:[%s280 + $0x178] sm:$0xff] %v9229
      %9310 = vst [vmem:[%s280 + $0x180] sm:$0xff] %v9231
      %9311 = vst [vmem:[%s280 + $0x188] sm:$0xff] %v9233
      %9312 = vst [vmem:[%s280 + $0x190] sm:$0xff] %v9235
      %9313 = vst [vmem:[%s280 + $0x198] sm:$0xff] %v9237
      %9314 = vst [vmem:[%s280 + $0x1a0] sm:$0xff] %v9239
      %9315 = vst [vmem:[%s280 + $0x1a8] sm:$0xff] %v9241
      %9316 = vst [vmem:[%s280 + $0x1b0] sm:$0xff] %v9243
      %9317 = vst [vmem:[%s280 + $0x1b8] sm:$0xff] %v9245
      %9318 = vst [vmem:[%s280 + $0x1c0] sm:$0xff] %v9247
      %9319 = vst [vmem:[%s280 + $0x1c8] sm:$0xff] %v9249
      %9320 = vst [vmem:[%s280 + $0x1d0] sm:$0xff] %v9251
      %9321 = vst [vmem:[%s280 + $0x1d8] sm:$0xff] %v9253
      %9322 = vst [vmem:[%s280 + $0x1e0] sm:$0xff] %v9255
      %9323 = vst [vmem:[%s280 + $0x1e8] sm:$0xff] %v9257
      %9324 = vst [vmem:[%s280 + $0x1f0] sm:$0xff] %v9259
      %9325 = vst [vmem:[%s280 + $0x1f8] sm:$0xff] %v9261
      %s9326 = smul.u32 64, %s18
      %p9327 = scmp.lt.s32.totalorder %s9326, 127
      %s9328 = scalar_select %p9327, %s9326, 127
      %s9329 = smul.addr %s9328, 8
      %s9330 = scalar_lea.vmem %s7, %s9329
      // Predicated region
      $region49: #{cond_mlp_pallas.1} parent=47 // pred_check
        %p9331 = pneg %p188
      $region50: #{cond_mlp_pallas.1} parent=47 // pred_check_branch
        %9333 = sbr.rel (%p9331) target = $region52
      $region51: #{cond_mlp_pallas.1} parent=47 // pred_region
        %s9334 = smul.u32 64, %s18
      $region52: #{cond_mlp_pallas.1} parent=47 // pred_fallthru
        _
    $region48: #{cond_mlp_pallas.1} parent=5 // pred_fallthru
      _
    %p9335 = scmp.le.s32.totalorder 2, %s13
    // Predicated region
    $region53: #{cond_mlp_pallas.1} parent=5 // pred_check
      %p9336 = pneg %p9335
    $region54: #{cond_mlp_pallas.1} parent=5 // pred_check_branch
      %9338 = sbr.rel (%p9336) target = $region56
    $region55: #{cond_mlp_pallas.1} parent=5 // pred_region
      %s9339 = ssub.s32 %s13, 2
      // Predicated region
      $region57: #{cond_mlp_pallas.1} parent=55 // pred_check
        %p9340 = pneg %p194
      $region58: #{cond_mlp_pallas.1} parent=55 // pred_check_branch
        %9342 = sbr.rel (%p9340) target = $region60
      $region59: #{cond_mlp_pallas.1} parent=55 // pred_region
        %s9343 = smul.u32 64, %s19
        %p9344 = scmp.lt.s32.totalorder %s9343, 127
        %s9345 = scalar_select %p9344, %s9343, 127
        %s9346 = smul.addr %s9345, 8
        %s9347 = scalar_lea.vmem %s7, %s9346
      $region60: #{cond_mlp_pallas.1} parent=55 // pred_fallthru
        _
    $region56: #{cond_mlp_pallas.1} parent=5 // pred_fallthru
      _
  $region6: #{cond_mlp_pallas.1} parent=0 // loop_footer
    %s17 = sadd.s32 1, %s13
  $region7: #{cond_mlp_pallas.1} parent=0 // loop_footer_branch
    %12 = sbr.rel target = $region3
  $region8: #{cond_mlp_pallas.1} parent=0 // loop_exit
    _

</llo_original>
